<compile_context>
chip_gen: v5e
topology: v5e:2x2
jax: 0.10.0
libtpu: 0.0.40
codegen_flags: <defaults>
</compile_context>

<pallas_src>
import functools

import numpy as np

import jax
import jax.numpy as jnp
from jax.experimental import pallas as pl
from jax.experimental.pallas import tpu as pltpu

# 8 neighbor offsets, in the same order as the one-hot 3x3 kernels produced by
# get_kernel(): kernel o has its 1 at (ky, kx) -> spatial offset (ky-1, kx-1).
_OFFSETS = ((-1, -1), (-1, 0), (-1, 1),
            (0, -1),           (0, 1),
            (1, -1),  (1, 0),  (1, 1))
_W1 = 0.3


# ---------------------------------------------------------------------------
# the Pallas kernel: one batch element, K neighbor tiles cached, fully fused
# ---------------------------------------------------------------------------
def _par3e_kernel(imgs_ref, masks_ref, out_ref, *, dilations, num_iter):
    imgs = imgs_ref[0].astype(jnp.float32)    # (C, H, W)
    masks = masks_ref[0].astype(jnp.float32)  # (CM, H, W)

    c, h, w = imgs.shape
    offsets = [(dy * d, dx * d) for d in dilations for (dy, dx) in _OFFSETS]
    knb = len(offsets)                        # K = 8 * len(dilations)
    inv_c = 1.0 / c
    inv_k = 1.0 / knb

    # ---- hoisted edge-fix machinery (one iota pair + one mask per distinct
    #      shift amount; +1 entries are for the temp1/temp2 shifts) ----------
    dy_set = sorted({dy for dy, _ in offsets if dy != 0} | {1})
    dx_set = sorted({dx for _, dx in offsets if dx != 0} | {1})
    row_pos = jax.lax.broadcasted_iota(jnp.int32, (h, w), 0)
    col_pos = jax.lax.broadcasted_iota(jnp.int32, (h, w), 1)
    row_mask = {dy: (row_pos >= h - dy) if dy > 0 else (row_pos < -dy)
                for dy in dy_set}
    col_mask = {dx: (col_pos >= w - dx) if dx > 0 else (col_pos < -dx)
                for dx in dx_set}

    # Edge-replicating single-axis shifts: one XLU roll on a folded 2-D
    # (sublane, lane) view + a hoisted-mask where().  Cross-channel wraparound
    # rows/cols are exactly the ones replaced by the edge fix, so the fold is
    # safe (H is a multiple of 8 at these shapes, so the reshape is free).
    def vshift(x, dy):                      # out[..., i, :] = x[..., clamp(i+dy), :]
        if dy == 0:
            return x
        flat = x.reshape(-1, w)
        rolled = pltpu.roll(flat, (-dy) % flat.shape[0], 0).reshape(x.shape)
        edge = x[..., h - 1:h, :] if dy > 0 else x[..., 0:1, :]
        return jnp.where(row_mask[dy], edge, rolled)

    def hshift(x, dx):                      # out[..., :, j] = x[..., :, clamp(j+dx)]
        if dx == 0:
            return x
        flat = x.reshape(-1, w)
        rolled = pltpu.roll(flat, (-dx) % w, 1).reshape(x.shape)
        edge = x[..., :, w - 1:w] if dx > 0 else x[..., :, 0:1]
        return jnp.where(col_mask[dx], edge, rolled)

    # ---- build & cache the K neighbor tiles once (dy-factored shifts) ------
    img_dys = sorted({dy for dy, _ in offsets})
    v_imgs = {dy: vshift(imgs, dy) for dy in img_dys}
    nb_k = [hshift(v_imgs[dy], dx) for (dy, dx) in offsets]   # K x (C, H, W)

    # ---- pass 1: neighbor mean over K (adds over cached tiles only) --------
    nb_sum = nb_k[0]
    for i in range(1, knb):
        nb_sum = nb_sum + nb_k[i]
    nb_mean = nb_sum * inv_k                                   # (C, H, W)

    # ---- pass 2: subtract-mean variance (matches torch.std, ddof=1) +
    #              per-offset channel-mean of temp --------------------------
    var_sum = jnp.zeros_like(imgs)
    temp_k = []                                                # K x (H, W)
    for nb in nb_k:
        d0 = nb - nb_mean
        var_sum = var_sum + d0 * d0
        t1 = vshift(nb, 1)                  # reference temp1 (row shift of nb)
        t2 = hshift(nb, 1)                  # reference temp2 (col shift of nb)
        tmp = (nb - t1) ** 2 + (nb - t2) ** 2
        temp_k.append(jnp.sum(tmp, axis=0) * inv_c)

    std = jnp.sqrt(var_sum * (1.0 / (knb - 1)))
    # exact divide on purpose: this factor is squared and fed through exp,
    # so approximate reciprocals here would be visible in the output.
    scale = (1.0 / _W1) / (std + 1e-8)                         # (C, H, W)

    # ---- pass 3: per-offset channel-mean of -(|nb - center| * scale)^2 -----
    aff_k = []                                                 # K x (H, W)
    for nb in nb_k:
        a = (nb - imgs) * scale
        aff_k.append(-(jnp.sum(a * a, axis=0) * inv_c))

    # ---- softmax(aff) / softmax(temp) over K, fused form --------------------
    aff_max, tmp_max = aff_k[0], temp_k[0]
    for i in range(1, knb):
        aff_max = jnp.maximum(aff_max, aff_k[i])
        tmp_max = jnp.maximum(tmp_max, temp_k[i])
    aff_sum = jnp.exp(aff_k[0] - aff_max)
    tmp_sum = jnp.exp(temp_k[0] - tmp_max)
    for i in range(1, knb):
        aff_sum = aff_sum + jnp.exp(aff_k[i] - aff_max)
        tmp_sum = tmp_sum + jnp.exp(temp_k[i] - tmp_max)
    # exact division (once per plane); no approx reciprocal, no 1/exp path.
    ratio = tmp_sum / aff_sum
    w_k = [jnp.exp((aff_k[i] - aff_max) - (temp_k[i] - tmp_max)) * ratio
           for i in range(knb)]                                # K x (H, W)

    # ---- num_iter fused mask-propagation steps (dy-factored shifts) --------
    for _ in range(num_iter):
        v_m = {dy: vshift(masks, dy) for dy in img_dys}
        acc = None
        for (dy, dx), wk in zip(offsets, w_k):
            term = hshift(v_m[dy], dx) * wk     # wk (H, W) broadcasts over CM
            acc = term if acc is None else acc + term
        masks = acc

    out_ref[0] = masks.astype(out_ref.dtype)


# ---------------------------------------------------------------------------
# glue (plain JAX): bilinear align_corners=True resize as two small matmuls
# ---------------------------------------------------------------------------
def _interp_matrix(in_size, out_size):
    pos = jnp.linspace(0.0, in_size - 1.0, out_size, dtype=jnp.float32)
    lo = jnp.floor(pos).astype(jnp.int32)
    hi = jnp.minimum(lo + 1, in_size - 1)
    frac = pos - lo.astype(jnp.float32)
    return (jax.nn.one_hot(lo, in_size, dtype=jnp.float32) * (1.0 - frac)[:, None]
            + jax.nn.one_hot(hi, in_size, dtype=jnp.float32) * frac[:, None])


def _resize_bilinear_matmul(x, out_h, out_w):
    """F.interpolate(mode='bilinear', align_corners=True) as Ry @ x @ Rx^T."""
    _, _, in_h, in_w = x.shape
    x = x.astype(jnp.float32)
    if (in_h, in_w) == (out_h, out_w):
        return x
    ry = _interp_matrix(in_h, out_h)          # (out_h, in_h)
    rx = _interp_matrix(in_w, out_w)          # (out_w, in_w)
    y = jnp.einsum('oh,bchw->bcow', ry, x, precision=jax.lax.Precision.HIGHEST)
    return jnp.einsum('bcow,pw->bcop', y, rx, precision=jax.lax.Precision.HIGHEST)


# ---------------------------------------------------------------------------
# wrapper = PAR3e.forward
# ---------------------------------------------------------------------------
@functools.partial(jax.jit, static_argnames=("dilations", "num_iter"))
def par3e_forward(imgs, masks, *, dilations=(1, 2), num_iter=2):
    b, c, h, w = imgs.shape
    cm = masks.shape[1]

    # imgs goes in at its native dtype (kernel upcasts in VMEM); masks are
    # resized to (H, W) with the matmul resize (MXU) and kept f32.
    masks_r = _resize_bilinear_matmul(masks, h, w).astype(jnp.float32)

    kernel = functools.partial(_par3e_kernel,
                               dilations=tuple(dilations),
                               num_iter=int(num_iter))
    return pl.pallas_call(
        kernel,
        out_shape=jax.ShapeDtypeStruct((b, cm, h, w), jnp.float32),
        grid=(b,),
        in_specs=[
            pl.BlockSpec((1, c, h, w), lambda i: (i, 0, 0, 0)),
            pl.BlockSpec((1, cm, h, w), lambda i: (i, 0, 0, 0)),
        ],
        out_specs=pl.BlockSpec((1, cm, h, w), lambda i: (i, 0, 0, 0)),
        # resized masks block is fully read before the output block is
        # written, so alias it to the output and save one HBM buffer.
        input_output_aliases={1: 0},
        compiler_params=pltpu.CompilerParams(
            dimension_semantics=("parallel",),    # batch -> both TCs on v7x
            vmem_limit_bytes=48 * 1024 * 1024),   # <= v7x 64 MiB/TC physical
    )(imgs, masks_r)


# ---------------------------------------------------------------------------
# pure-JAX reference (mirrors the PyTorch PAR3e module) for correctness check
# ---------------------------------------------------------------------------
def _resize_bilinear_align_corners_ref(x, out_h, out_w):
    b, c, in_h, in_w = x.shape
    if (in_h, in_w) == (out_h, out_w):
        return x
    ys = jnp.linspace(0.0, in_h - 1.0, out_h, dtype=jnp.float32)
    xs = jnp.linspace(0.0, in_w - 1.0, out_w, dtype=jnp.float32)
    y0 = jnp.floor(ys).astype(jnp.int32)
    x0 = jnp.floor(xs).astype(jnp.int32)
    y1 = jnp.minimum(y0 + 1, in_h - 1)
    x1 = jnp.minimum(x0 + 1, in_w - 1)
    wy = (ys - y0.astype(jnp.float32))[:, None]
    wx = (xs - x0.astype(jnp.float32))[None, :]

    def gather(yi, xi):
        return x[:, :, yi[:, None], xi[None, :]]

    v00, v01 = gather(y0, x0), gather(y0, x1)
    v10, v11 = gather(y1, x0), gather(y1, x1)
    return (v00 * (1 - wy) * (1 - wx) + v01 * (1 - wy) * wx
            + v10 * wy * (1 - wx) + v11 * wy * wx)


def _dilated_neighbors_ref(x, dilations):
    b, c, h, w = x.shape
    kpos = ((0, 0), (0, 1), (0, 2), (1, 0), (1, 2), (2, 0), (2, 1), (2, 2))
    outs = []
    for d in dilations:
        xp = jnp.pad(x, ((0, 0), (0, 0), (d, d), (d, d)), mode='edge')
        for (ky, kx) in kpos:
            outs.append(xp[:, :, d * ky:d * ky + h, d * kx:d * kx + w])
    return jnp.stack(outs, axis=2)  # (b, c, K, h, w)


def par3e_ref(imgs, masks, *, dilations=(1, 2), num_iter=2):
    b, c, h, w = imgs.shape
    imgs = imgs.astype(jnp.float32)
    masks = _resize_bilinear_align_corners_ref(masks.astype(jnp.float32), h, w)
    nb = _dilated_neighbors_ref(imgs, dilations)              # (b,c,K,h,w)
    t1 = jnp.concatenate([nb[:, :, :, 1:, :], nb[:, :, :, -1:, :]], axis=3)
    t2 = jnp.concatenate([nb[:, :, :, :, 1:], nb[:, :, :, :, -1:]], axis=4)
    temp = (nb - t1) ** 2 + (nb - t2) ** 2
    imgs_rep = imgs[:, :, None, :, :]
    std = jnp.std(nb, axis=2, keepdims=True, ddof=1)
    aff = -(jnp.abs(nb - imgs_rep) / (std + 1e-8) / _W1) ** 2
    aff = jnp.mean(aff, axis=1, keepdims=True)
    temp = jnp.mean(temp, axis=1, keepdims=True)
    aff = jax.nn.softmax(aff, axis=2) / jax.nn.softmax(temp, axis=2)
    for _ in range(num_iter):
        mnb = _dilated_neighbors_ref(masks, dilations)
        masks = jnp.sum(mnb * aff, axis=2)
    return masks


if __name__ == "__main__":
    key = jax.random.PRNGKey(0)
    k1, k2 = jax.random.split(key)

    # lane-dense shapes: W multiple of 128, H multiple of 8
    B, C, H, W = 2, 4, 16, 128     # imgs
    CM, HM, WM = 3, 8, 64          # masks (bilinearly resized up to H x W)
    DILATIONS = (1, 2)             # K = 16 neighbors
    NUM_ITER = 2

    imgs = jax.random.normal(k1, (B, C, H, W), dtype=jnp.float32)
    masks = jax.random.uniform(k2, (B, CM, HM, WM), dtype=jnp.float32)

    out = jax.block_until_ready(
        par3e_forward(imgs, masks, dilations=DILATIONS, num_iter=NUM_ITER))

    ref = jax.block_until_ready(
        par3e_ref(imgs, masks, dilations=DILATIONS, num_iter=NUM_ITER))

    assert out.shape == (B, CM, H, W)
    assert bool(jnp.all(jnp.isfinite(out)))
    # all arithmetic in the w (softmax-ratio) path is now exact f32; remaining
    # differences are reassociation-level (well under the tolerance even at
    # the exp-amplified pixels that previously tripped the approx reciprocals).
    np.testing.assert_allclose(np.asarray(out), np.asarray(ref),
                               rtol=1e-2, atol=1e-2)
    print("KERNEL_OK")
</pallas_src>

<mosaic_0001>
module attributes {stable_mosaic.version = 11 : i64} {
  func.func @_par3e_kernel(%arg0: i32, %arg1: memref<1x4x16x128xf32, #tpu.memory_space<vmem>>, %arg2: memref<1x3x16x128xf32, #tpu.memory_space<vmem>>, %arg3: memref<1x3x16x128xf32, #tpu.memory_space<vmem>>) attributes {dimension_semantics = [#tpu.dimension_semantics<parallel>], iteration_bounds = array<i64: 2>, scalar_prefetch = 0 : i64, scratch_operands = 0 : i64, tpu.core_type = #tpu.core_type<tc>, window_params = [{transform_indices = @transform_0, window_bounds = array<i64: 1, 4, 16, 128>}, {transform_indices = @transform_1, window_bounds = array<i64: 1, 3, 16, 128>}, {transform_indices = @transform_2, window_bounds = array<i64: 1, 3, 16, 128>}]} {
    %c0 = arith.constant 0 : index
    %c0_0 = arith.constant 0 : index
    %c0_1 = arith.constant 0 : index
    %c0_2 = arith.constant 0 : index
    %0 = vector.load %arg1[%c0, %c0_0, %c0_1, %c0_2] : memref<1x4x16x128xf32, #tpu.memory_space<vmem>>, vector<1x4x16x128xf32>
    %1 = vector.shape_cast %0 : vector<1x4x16x128xf32> to vector<4x16x128xf32>
    %c0_3 = arith.constant 0 : index
    %c0_4 = arith.constant 0 : index
    %c0_5 = arith.constant 0 : index
    %c0_6 = arith.constant 0 : index
    %2 = vector.load %arg2[%c0_3, %c0_4, %c0_5, %c0_6] : memref<1x3x16x128xf32, #tpu.memory_space<vmem>>, vector<1x3x16x128xf32>
    %3 = vector.shape_cast %2 : vector<1x3x16x128xf32> to vector<3x16x128xf32>
    %4 = tpu.iota {dimensions = array<i32: 0>} : vector<16x128xi32>
    %5 = tpu.iota {dimensions = array<i32: 1>} : vector<16x128xi32>
    %c2_i32 = arith.constant 2 : i32
    %6 = vector.broadcast %c2_i32 : i32 to vector<16x128xi32>
    %7 = arith.cmpi slt, %4, %6 : vector<16x128xi32>
    %c1_i32 = arith.constant 1 : i32
    %8 = vector.broadcast %c1_i32 : i32 to vector<16x128xi32>
    %9 = arith.cmpi slt, %4, %8 : vector<16x128xi32>
    %c15_i32 = arith.constant 15 : i32
    %10 = vector.broadcast %c15_i32 : i32 to vector<16x128xi32>
    %11 = arith.cmpi sge, %4, %10 : vector<16x128xi32>
    %c14_i32 = arith.constant 14 : i32
    %12 = vector.broadcast %c14_i32 : i32 to vector<16x128xi32>
    %13 = arith.cmpi sge, %4, %12 : vector<16x128xi32>
    %c2_i32_7 = arith.constant 2 : i32
    %14 = vector.broadcast %c2_i32_7 : i32 to vector<16x128xi32>
    %15 = arith.cmpi slt, %5, %14 : vector<16x128xi32>
    %c1_i32_8 = arith.constant 1 : i32
    %16 = vector.broadcast %c1_i32_8 : i32 to vector<16x128xi32>
    %17 = arith.cmpi slt, %5, %16 : vector<16x128xi32>
    %c127_i32 = arith.constant 127 : i32
    %18 = vector.broadcast %c127_i32 : i32 to vector<16x128xi32>
    %19 = arith.cmpi sge, %5, %18 : vector<16x128xi32>
    %c126_i32 = arith.constant 126 : i32
    %20 = vector.broadcast %c126_i32 : i32 to vector<16x128xi32>
    %21 = arith.cmpi sge, %5, %20 : vector<16x128xi32>
    %22 = vector.shape_cast %1 : vector<4x16x128xf32> to vector<64x128xf32>
    %c2_i32_9 = arith.constant 2 : i32
    %23 = tpu.dynamic_rotate %22 by %c2_i32_9 dim 0 : vector<64x128xf32>, i32 -> vector<64x128xf32>
    %24 = vector.shape_cast %23 : vector<64x128xf32> to vector<4x16x128xf32>
    %25 = vector.extract_strided_slice %1 {offsets = [0, 0, 0], sizes = [4, 1, 128], strides = [1, 1, 1]} : vector<4x16x128xf32> to vector<4x1x128xf32>
    %26 = vector.shape_cast %7 : vector<16x128xi1> to vector<1x16x128xi1>
    %27 = vector.broadcast %26 : vector<1x16x128xi1> to vector<4x16x128xi1>
    %28 = vector.shape_cast %25 : vector<4x1x128xf32> to vector<4x1x128xf32>
    %29 = vector.broadcast %28 : vector<4x1x128xf32> to vector<4x16x128xf32>
    %30 = arith.select %27, %29, %24 : vector<4x16x128xi1>, vector<4x16x128xf32>
    %31 = vector.shape_cast %1 : vector<4x16x128xf32> to vector<64x128xf32>
    %c1_i32_10 = arith.constant 1 : i32
    %32 = tpu.dynamic_rotate %31 by %c1_i32_10 dim 0 : vector<64x128xf32>, i32 -> vector<64x128xf32>
    %33 = vector.shape_cast %32 : vector<64x128xf32> to vector<4x16x128xf32>
    %34 = vector.extract_strided_slice %1 {offsets = [0, 0, 0], sizes = [4, 1, 128], strides = [1, 1, 1]} : vector<4x16x128xf32> to vector<4x1x128xf32>
    %35 = vector.shape_cast %9 : vector<16x128xi1> to vector<1x16x128xi1>
    %36 = vector.broadcast %35 : vector<1x16x128xi1> to vector<4x16x128xi1>
    %37 = vector.shape_cast %34 : vector<4x1x128xf32> to vector<4x1x128xf32>
    %38 = vector.broadcast %37 : vector<4x1x128xf32> to vector<4x16x128xf32>
    %39 = arith.select %36, %38, %33 : vector<4x16x128xi1>, vector<4x16x128xf32>
    %40 = vector.shape_cast %1 : vector<4x16x128xf32> to vector<64x128xf32>
    %c63_i32 = arith.constant 63 : i32
    %41 = tpu.dynamic_rotate %40 by %c63_i32 dim 0 : vector<64x128xf32>, i32 -> vector<64x128xf32>
    %42 = vector.shape_cast %41 : vector<64x128xf32> to vector<4x16x128xf32>
    %43 = vector.extract_strided_slice %1 {offsets = [0, 15, 0], sizes = [4, 1, 128], strides = [1, 1, 1]} : vector<4x16x128xf32> to vector<4x1x128xf32>
    %44 = vector.shape_cast %11 : vector<16x128xi1> to vector<1x16x128xi1>
    %45 = vector.broadcast %44 : vector<1x16x128xi1> to vector<4x16x128xi1>
    %46 = vector.shape_cast %43 : vector<4x1x128xf32> to vector<4x1x128xf32>
    %47 = vector.broadcast %46 : vector<4x1x128xf32> to vector<4x16x128xf32>
    %48 = arith.select %45, %47, %42 : vector<4x16x128xi1>, vector<4x16x128xf32>
    %49 = vector.shape_cast %1 : vector<4x16x128xf32> to vector<64x128xf32>
    %c62_i32 = arith.constant 62 : i32
    %50 = tpu.dynamic_rotate %49 by %c62_i32 dim 0 : vector<64x128xf32>, i32 -> vector<64x128xf32>
    %51 = vector.shape_cast %50 : vector<64x128xf32> to vector<4x16x128xf32>
    %52 = vector.extract_strided_slice %1 {offsets = [0, 15, 0], sizes = [4, 1, 128], strides = [1, 1, 1]} : vector<4x16x128xf32> to vector<4x1x128xf32>
    %53 = vector.shape_cast %13 : vector<16x128xi1> to vector<1x16x128xi1>
    %54 = vector.broadcast %53 : vector<1x16x128xi1> to vector<4x16x128xi1>
    %55 = vector.shape_cast %52 : vector<4x1x128xf32> to vector<4x1x128xf32>
    %56 = vector.broadcast %55 : vector<4x1x128xf32> to vector<4x16x128xf32>
    %57 = arith.select %54, %56, %51 : vector<4x16x128xi1>, vector<4x16x128xf32>
    %58 = vector.shape_cast %39 : vector<4x16x128xf32> to vector<64x128xf32>
    %c1_i32_11 = arith.constant 1 : i32
    %59 = tpu.dynamic_rotate %58 by %c1_i32_11 dim 1 : vector<64x128xf32>, i32 -> vector<64x128xf32>
    %60 = vector.shape_cast %59 : vector<64x128xf32> to vector<4x16x128xf32>
    %61 = vector.extract_strided_slice %39 {offsets = [0, 0, 0], sizes = [4, 16, 1], strides = [1, 1, 1]} : vector<4x16x128xf32> to vector<4x16x1xf32>
    %62 = vector.shape_cast %17 : vector<16x128xi1> to vector<1x16x128xi1>
    %63 = vector.broadcast %62 : vector<1x16x128xi1> to vector<4x16x128xi1>
    %64 = vector.shape_cast %61 : vector<4x16x1xf32> to vector<4x16x1xf32>
    %65 = vector.broadcast %64 : vector<4x16x1xf32> to vector<4x16x128xf32>
    %66 = arith.select %63, %65, %60 : vector<4x16x128xi1>, vector<4x16x128xf32>
    %67 = vector.shape_cast %39 : vector<4x16x128xf32> to vector<64x128xf32>
    %c127_i32_12 = arith.constant 127 : i32
    %68 = tpu.dynamic_rotate %67 by %c127_i32_12 dim 1 : vector<64x128xf32>, i32 -> vector<64x128xf32>
    %69 = vector.shape_cast %68 : vector<64x128xf32> to vector<4x16x128xf32>
    %70 = vector.extract_strided_slice %39 {offsets = [0, 0, 127], sizes = [4, 16, 1], strides = [1, 1, 1]} : vector<4x16x128xf32> to vector<4x16x1xf32>
    %71 = vector.shape_cast %19 : vector<16x128xi1> to vector<1x16x128xi1>
    %72 = vector.broadcast %71 : vector<1x16x128xi1> to vector<4x16x128xi1>
    %73 = vector.shape_cast %70 : vector<4x16x1xf32> to vector<4x16x1xf32>
    %74 = vector.broadcast %73 : vector<4x16x1xf32> to vector<4x16x128xf32>
    %75 = arith.select %72, %74, %69 : vector<4x16x128xi1>, vector<4x16x128xf32>
    %76 = vector.shape_cast %1 : vector<4x16x128xf32> to vector<64x128xf32>
    %c1_i32_13 = arith.constant 1 : i32
    %77 = tpu.dynamic_rotate %76 by %c1_i32_13 dim 1 : vector<64x128xf32>, i32 -> vector<64x128xf32>
    %78 = vector.shape_cast %77 : vector<64x128xf32> to vector<4x16x128xf32>
    %79 = vector.extract_strided_slice %1 {offsets = [0, 0, 0], sizes = [4, 16, 1], strides = [1, 1, 1]} : vector<4x16x128xf32> to vector<4x16x1xf32>
    %80 = vector.shape_cast %17 : vector<16x128xi1> to vector<1x16x128xi1>
    %81 = vector.broadcast %80 : vector<1x16x128xi1> to vector<4x16x128xi1>
    %82 = vector.shape_cast %79 : vector<4x16x1xf32> to vector<4x16x1xf32>
    %83 = vector.broadcast %82 : vector<4x16x1xf32> to vector<4x16x128xf32>
    %84 = arith.select %81, %83, %78 : vector<4x16x128xi1>, vector<4x16x128xf32>
    %85 = vector.shape_cast %1 : vector<4x16x128xf32> to vector<64x128xf32>
    %c127_i32_14 = arith.constant 127 : i32
    %86 = tpu.dynamic_rotate %85 by %c127_i32_14 dim 1 : vector<64x128xf32>, i32 -> vector<64x128xf32>
    %87 = vector.shape_cast %86 : vector<64x128xf32> to vector<4x16x128xf32>
    %88 = vector.extract_strided_slice %1 {offsets = [0, 0, 127], sizes = [4, 16, 1], strides = [1, 1, 1]} : vector<4x16x128xf32> to vector<4x16x1xf32>
    %89 = vector.shape_cast %19 : vector<16x128xi1> to vector<1x16x128xi1>
    %90 = vector.broadcast %89 : vector<1x16x128xi1> to vector<4x16x128xi1>
    %91 = vector.shape_cast %88 : vector<4x16x1xf32> to vector<4x16x1xf32>
    %92 = vector.broadcast %91 : vector<4x16x1xf32> to vector<4x16x128xf32>
    %93 = arith.select %90, %92, %87 : vector<4x16x128xi1>, vector<4x16x128xf32>
    %94 = vector.shape_cast %48 : vector<4x16x128xf32> to vector<64x128xf32>
    %c1_i32_15 = arith.constant 1 : i32
    %95 = tpu.dynamic_rotate %94 by %c1_i32_15 dim 1 : vector<64x128xf32>, i32 -> vector<64x128xf32>
    %96 = vector.shape_cast %95 : vector<64x128xf32> to vector<4x16x128xf32>
    %97 = vector.extract_strided_slice %48 {offsets = [0, 0, 0], sizes = [4, 16, 1], strides = [1, 1, 1]} : vector<4x16x128xf32> to vector<4x16x1xf32>
    %98 = vector.shape_cast %17 : vector<16x128xi1> to vector<1x16x128xi1>
    %99 = vector.broadcast %98 : vector<1x16x128xi1> to vector<4x16x128xi1>
    %100 = vector.shape_cast %97 : vector<4x16x1xf32> to vector<4x16x1xf32>
    %101 = vector.broadcast %100 : vector<4x16x1xf32> to vector<4x16x128xf32>
    %102 = arith.select %99, %101, %96 : vector<4x16x128xi1>, vector<4x16x128xf32>
    %103 = vector.shape_cast %48 : vector<4x16x128xf32> to vector<64x128xf32>
    %c127_i32_16 = arith.constant 127 : i32
    %104 = tpu.dynamic_rotate %103 by %c127_i32_16 dim 1 : vector<64x128xf32>, i32 -> vector<64x128xf32>
    %105 = vector.shape_cast %104 : vector<64x128xf32> to vector<4x16x128xf32>
    %106 = vector.extract_strided_slice %48 {offsets = [0, 0, 127], sizes = [4, 16, 1], strides = [1, 1, 1]} : vector<4x16x128xf32> to vector<4x16x1xf32>
    %107 = vector.shape_cast %19 : vector<16x128xi1> to vector<1x16x128xi1>
    %108 = vector.broadcast %107 : vector<1x16x128xi1> to vector<4x16x128xi1>
    %109 = vector.shape_cast %106 : vector<4x16x1xf32> to vector<4x16x1xf32>
    %110 = vector.broadcast %109 : vector<4x16x1xf32> to vector<4x16x128xf32>
    %111 = arith.select %108, %110, %105 : vector<4x16x128xi1>, vector<4x16x128xf32>
    %112 = vector.shape_cast %30 : vector<4x16x128xf32> to vector<64x128xf32>
    %c2_i32_17 = arith.constant 2 : i32
    %113 = tpu.dynamic_rotate %112 by %c2_i32_17 dim 1 : vector<64x128xf32>, i32 -> vector<64x128xf32>
    %114 = vector.shape_cast %113 : vector<64x128xf32> to vector<4x16x128xf32>
    %115 = vector.extract_strided_slice %30 {offsets = [0, 0, 0], sizes = [4, 16, 1], strides = [1, 1, 1]} : vector<4x16x128xf32> to vector<4x16x1xf32>
    %116 = vector.shape_cast %15 : vector<16x128xi1> to vector<1x16x128xi1>
    %117 = vector.broadcast %116 : vector<1x16x128xi1> to vector<4x16x128xi1>
    %118 = vector.shape_cast %115 : vector<4x16x1xf32> to vector<4x16x1xf32>
    %119 = vector.broadcast %118 : vector<4x16x1xf32> to vector<4x16x128xf32>
    %120 = arith.select %117, %119, %114 : vector<4x16x128xi1>, vector<4x16x128xf32>
    %121 = vector.shape_cast %30 : vector<4x16x128xf32> to vector<64x128xf32>
    %c126_i32_18 = arith.constant 126 : i32
    %122 = tpu.dynamic_rotate %121 by %c126_i32_18 dim 1 : vector<64x128xf32>, i32 -> vector<64x128xf32>
    %123 = vector.shape_cast %122 : vector<64x128xf32> to vector<4x16x128xf32>
    %124 = vector.extract_strided_slice %30 {offsets = [0, 0, 127], sizes = [4, 16, 1], strides = [1, 1, 1]} : vector<4x16x128xf32> to vector<4x16x1xf32>
    %125 = vector.shape_cast %21 : vector<16x128xi1> to vector<1x16x128xi1>
    %126 = vector.broadcast %125 : vector<1x16x128xi1> to vector<4x16x128xi1>
    %127 = vector.shape_cast %124 : vector<4x16x1xf32> to vector<4x16x1xf32>
    %128 = vector.broadcast %127 : vector<4x16x1xf32> to vector<4x16x128xf32>
    %129 = arith.select %126, %128, %123 : vector<4x16x128xi1>, vector<4x16x128xf32>
    %130 = vector.shape_cast %1 : vector<4x16x128xf32> to vector<64x128xf32>
    %c2_i32_19 = arith.constant 2 : i32
    %131 = tpu.dynamic_rotate %130 by %c2_i32_19 dim 1 : vector<64x128xf32>, i32 -> vector<64x128xf32>
    %132 = vector.shape_cast %131 : vector<64x128xf32> to vector<4x16x128xf32>
    %133 = vector.extract_strided_slice %1 {offsets = [0, 0, 0], sizes = [4, 16, 1], strides = [1, 1, 1]} : vector<4x16x128xf32> to vector<4x16x1xf32>
    %134 = vector.shape_cast %15 : vector<16x128xi1> to vector<1x16x128xi1>
    %135 = vector.broadcast %134 : vector<1x16x128xi1> to vector<4x16x128xi1>
    %136 = vector.shape_cast %133 : vector<4x16x1xf32> to vector<4x16x1xf32>
    %137 = vector.broadcast %136 : vector<4x16x1xf32> to vector<4x16x128xf32>
    %138 = arith.select %135, %137, %132 : vector<4x16x128xi1>, vector<4x16x128xf32>
    %139 = vector.shape_cast %1 : vector<4x16x128xf32> to vector<64x128xf32>
    %c126_i32_20 = arith.constant 126 : i32
    %140 = tpu.dynamic_rotate %139 by %c126_i32_20 dim 1 : vector<64x128xf32>, i32 -> vector<64x128xf32>
    %141 = vector.shape_cast %140 : vector<64x128xf32> to vector<4x16x128xf32>
    %142 = vector.extract_strided_slice %1 {offsets = [0, 0, 127], sizes = [4, 16, 1], strides = [1, 1, 1]} : vector<4x16x128xf32> to vector<4x16x1xf32>
    %143 = vector.shape_cast %21 : vector<16x128xi1> to vector<1x16x128xi1>
    %144 = vector.broadcast %143 : vector<1x16x128xi1> to vector<4x16x128xi1>
    %145 = vector.shape_cast %142 : vector<4x16x1xf32> to vector<4x16x1xf32>
    %146 = vector.broadcast %145 : vector<4x16x1xf32> to vector<4x16x128xf32>
    %147 = arith.select %144, %146, %141 : vector<4x16x128xi1>, vector<4x16x128xf32>
    %148 = vector.shape_cast %57 : vector<4x16x128xf32> to vector<64x128xf32>
    %c2_i32_21 = arith.constant 2 : i32
    %149 = tpu.dynamic_rotate %148 by %c2_i32_21 dim 1 : vector<64x128xf32>, i32 -> vector<64x128xf32>
    %150 = vector.shape_cast %149 : vector<64x128xf32> to vector<4x16x128xf32>
    %151 = vector.extract_strided_slice %57 {offsets = [0, 0, 0], sizes = [4, 16, 1], strides = [1, 1, 1]} : vector<4x16x128xf32> to vector<4x16x1xf32>
    %152 = vector.shape_cast %15 : vector<16x128xi1> to vector<1x16x128xi1>
    %153 = vector.broadcast %152 : vector<1x16x128xi1> to vector<4x16x128xi1>
    %154 = vector.shape_cast %151 : vector<4x16x1xf32> to vector<4x16x1xf32>
    %155 = vector.broadcast %154 : vector<4x16x1xf32> to vector<4x16x128xf32>
    %156 = arith.select %153, %155, %150 : vector<4x16x128xi1>, vector<4x16x128xf32>
    %157 = vector.shape_cast %57 : vector<4x16x128xf32> to vector<64x128xf32>
    %c126_i32_22 = arith.constant 126 : i32
    %158 = tpu.dynamic_rotate %157 by %c126_i32_22 dim 1 : vector<64x128xf32>, i32 -> vector<64x128xf32>
    %159 = vector.shape_cast %158 : vector<64x128xf32> to vector<4x16x128xf32>
    %160 = vector.extract_strided_slice %57 {offsets = [0, 0, 127], sizes = [4, 16, 1], strides = [1, 1, 1]} : vector<4x16x128xf32> to vector<4x16x1xf32>
    %161 = vector.shape_cast %21 : vector<16x128xi1> to vector<1x16x128xi1>
    %162 = vector.broadcast %161 : vector<1x16x128xi1> to vector<4x16x128xi1>
    %163 = vector.shape_cast %160 : vector<4x16x1xf32> to vector<4x16x1xf32>
    %164 = vector.broadcast %163 : vector<4x16x1xf32> to vector<4x16x128xf32>
    %165 = arith.select %162, %164, %159 : vector<4x16x128xi1>, vector<4x16x128xf32>
    %166 = arith.addf %66, %39 : vector<4x16x128xf32>
    %167 = arith.addf %166, %75 : vector<4x16x128xf32>
    %168 = arith.addf %167, %84 : vector<4x16x128xf32>
    %169 = arith.addf %168, %93 : vector<4x16x128xf32>
    %170 = arith.addf %169, %102 : vector<4x16x128xf32>
    %171 = arith.addf %170, %48 : vector<4x16x128xf32>
    %172 = arith.addf %171, %111 : vector<4x16x128xf32>
    %173 = arith.addf %172, %120 : vector<4x16x128xf32>
    %174 = arith.addf %173, %30 : vector<4x16x128xf32>
    %175 = arith.addf %174, %129 : vector<4x16x128xf32>
    %176 = arith.addf %175, %138 : vector<4x16x128xf32>
    %177 = arith.addf %176, %147 : vector<4x16x128xf32>
    %178 = arith.addf %177, %156 : vector<4x16x128xf32>
    %179 = arith.addf %178, %57 : vector<4x16x128xf32>
    %180 = arith.addf %179, %165 : vector<4x16x128xf32>
    %cst = arith.constant 6.250000e-02 : f32
    %181 = vector.broadcast %cst : f32 to vector<4x16x128xf32>
    %182 = arith.mulf %180, %181 : vector<4x16x128xf32>
    %cst_23 = arith.constant 0.000000e+00 : f32
    %183 = vector.broadcast %cst_23 : f32 to vector<4x16x128xf32>
    %184 = arith.subf %66, %182 : vector<4x16x128xf32>
    %185 = arith.mulf %184, %184 : vector<4x16x128xf32>
    %186 = arith.addf %183, %185 : vector<4x16x128xf32>
    %187 = vector.shape_cast %66 : vector<4x16x128xf32> to vector<64x128xf32>
    %c63_i32_24 = arith.constant 63 : i32
    %188 = tpu.dynamic_rotate %187 by %c63_i32_24 dim 0 : vector<64x128xf32>, i32 -> vector<64x128xf32>
    %189 = vector.shape_cast %188 : vector<64x128xf32> to vector<4x16x128xf32>
    %190 = vector.extract_strided_slice %66 {offsets = [0, 15, 0], sizes = [4, 1, 128], strides = [1, 1, 1]} : vector<4x16x128xf32> to vector<4x1x128xf32>
    %191 = vector.shape_cast %11 : vector<16x128xi1> to vector<1x16x128xi1>
    %192 = vector.broadcast %191 : vector<1x16x128xi1> to vector<4x16x128xi1>
    %193 = vector.shape_cast %190 : vector<4x1x128xf32> to vector<4x1x128xf32>
    %194 = vector.broadcast %193 : vector<4x1x128xf32> to vector<4x16x128xf32>
    %195 = arith.select %192, %194, %189 : vector<4x16x128xi1>, vector<4x16x128xf32>
    %196 = vector.shape_cast %66 : vector<4x16x128xf32> to vector<64x128xf32>
    %c127_i32_25 = arith.constant 127 : i32
    %197 = tpu.dynamic_rotate %196 by %c127_i32_25 dim 1 : vector<64x128xf32>, i32 -> vector<64x128xf32>
    %198 = vector.shape_cast %197 : vector<64x128xf32> to vector<4x16x128xf32>
    %199 = vector.extract_strided_slice %66 {offsets = [0, 0, 127], sizes = [4, 16, 1], strides = [1, 1, 1]} : vector<4x16x128xf32> to vector<4x16x1xf32>
    %200 = vector.shape_cast %19 : vector<16x128xi1> to vector<1x16x128xi1>
    %201 = vector.broadcast %200 : vector<1x16x128xi1> to vector<4x16x128xi1>
    %202 = vector.shape_cast %199 : vector<4x16x1xf32> to vector<4x16x1xf32>
    %203 = vector.broadcast %202 : vector<4x16x1xf32> to vector<4x16x128xf32>
    %204 = arith.select %201, %203, %198 : vector<4x16x128xi1>, vector<4x16x128xf32>
    %205 = arith.subf %66, %195 : vector<4x16x128xf32>
    %206 = arith.mulf %205, %205 : vector<4x16x128xf32>
    %207 = arith.subf %66, %204 : vector<4x16x128xf32>
    %208 = arith.mulf %207, %207 : vector<4x16x128xf32>
    %209 = arith.addf %206, %208 : vector<4x16x128xf32>
    %cst_26 = arith.constant dense<0.000000e+00> : vector<16x128xf32>
    %210 = vector.multi_reduction <add>, %209, %cst_26 [0] : vector<4x16x128xf32> to vector<16x128xf32>
    %cst_27 = arith.constant 2.500000e-01 : f32
    %211 = vector.broadcast %cst_27 : f32 to vector<16x128xf32>
    %212 = arith.mulf %210, %211 : vector<16x128xf32>
    %213 = arith.subf %39, %182 : vector<4x16x128xf32>
    %214 = arith.mulf %213, %213 : vector<4x16x128xf32>
    %215 = arith.addf %186, %214 : vector<4x16x128xf32>
    %216 = vector.shape_cast %39 : vector<4x16x128xf32> to vector<64x128xf32>
    %c63_i32_28 = arith.constant 63 : i32
    %217 = tpu.dynamic_rotate %216 by %c63_i32_28 dim 0 : vector<64x128xf32>, i32 -> vector<64x128xf32>
    %218 = vector.shape_cast %217 : vector<64x128xf32> to vector<4x16x128xf32>
    %219 = vector.extract_strided_slice %39 {offsets = [0, 15, 0], sizes = [4, 1, 128], strides = [1, 1, 1]} : vector<4x16x128xf32> to vector<4x1x128xf32>
    %220 = vector.shape_cast %11 : vector<16x128xi1> to vector<1x16x128xi1>
    %221 = vector.broadcast %220 : vector<1x16x128xi1> to vector<4x16x128xi1>
    %222 = vector.shape_cast %219 : vector<4x1x128xf32> to vector<4x1x128xf32>
    %223 = vector.broadcast %222 : vector<4x1x128xf32> to vector<4x16x128xf32>
    %224 = arith.select %221, %223, %218 : vector<4x16x128xi1>, vector<4x16x128xf32>
    %225 = vector.shape_cast %39 : vector<4x16x128xf32> to vector<64x128xf32>
    %c127_i32_29 = arith.constant 127 : i32
    %226 = tpu.dynamic_rotate %225 by %c127_i32_29 dim 1 : vector<64x128xf32>, i32 -> vector<64x128xf32>
    %227 = vector.shape_cast %226 : vector<64x128xf32> to vector<4x16x128xf32>
    %228 = vector.extract_strided_slice %39 {offsets = [0, 0, 127], sizes = [4, 16, 1], strides = [1, 1, 1]} : vector<4x16x128xf32> to vector<4x16x1xf32>
    %229 = vector.shape_cast %19 : vector<16x128xi1> to vector<1x16x128xi1>
    %230 = vector.broadcast %229 : vector<1x16x128xi1> to vector<4x16x128xi1>
    %231 = vector.shape_cast %228 : vector<4x16x1xf32> to vector<4x16x1xf32>
    %232 = vector.broadcast %231 : vector<4x16x1xf32> to vector<4x16x128xf32>
    %233 = arith.select %230, %232, %227 : vector<4x16x128xi1>, vector<4x16x128xf32>
    %234 = arith.subf %39, %224 : vector<4x16x128xf32>
    %235 = arith.mulf %234, %234 : vector<4x16x128xf32>
    %236 = arith.subf %39, %233 : vector<4x16x128xf32>
    %237 = arith.mulf %236, %236 : vector<4x16x128xf32>
    %238 = arith.addf %235, %237 : vector<4x16x128xf32>
    %cst_30 = arith.constant dense<0.000000e+00> : vector<16x128xf32>
    %239 = vector.multi_reduction <add>, %238, %cst_30 [0] : vector<4x16x128xf32> to vector<16x128xf32>
    %cst_31 = arith.constant 2.500000e-01 : f32
    %240 = vector.broadcast %cst_31 : f32 to vector<16x128xf32>
    %241 = arith.mulf %239, %240 : vector<16x128xf32>
    %242 = arith.subf %75, %182 : vector<4x16x128xf32>
    %243 = arith.mulf %242, %242 : vector<4x16x128xf32>
    %244 = arith.addf %215, %243 : vector<4x16x128xf32>
    %245 = vector.shape_cast %75 : vector<4x16x128xf32> to vector<64x128xf32>
    %c63_i32_32 = arith.constant 63 : i32
    %246 = tpu.dynamic_rotate %245 by %c63_i32_32 dim 0 : vector<64x128xf32>, i32 -> vector<64x128xf32>
    %247 = vector.shape_cast %246 : vector<64x128xf32> to vector<4x16x128xf32>
    %248 = vector.extract_strided_slice %75 {offsets = [0, 15, 0], sizes = [4, 1, 128], strides = [1, 1, 1]} : vector<4x16x128xf32> to vector<4x1x128xf32>
    %249 = vector.shape_cast %11 : vector<16x128xi1> to vector<1x16x128xi1>
    %250 = vector.broadcast %249 : vector<1x16x128xi1> to vector<4x16x128xi1>
    %251 = vector.shape_cast %248 : vector<4x1x128xf32> to vector<4x1x128xf32>
    %252 = vector.broadcast %251 : vector<4x1x128xf32> to vector<4x16x128xf32>
    %253 = arith.select %250, %252, %247 : vector<4x16x128xi1>, vector<4x16x128xf32>
    %254 = vector.shape_cast %75 : vector<4x16x128xf32> to vector<64x128xf32>
    %c127_i32_33 = arith.constant 127 : i32
    %255 = tpu.dynamic_rotate %254 by %c127_i32_33 dim 1 : vector<64x128xf32>, i32 -> vector<64x128xf32>
    %256 = vector.shape_cast %255 : vector<64x128xf32> to vector<4x16x128xf32>
    %257 = vector.extract_strided_slice %75 {offsets = [0, 0, 127], sizes = [4, 16, 1], strides = [1, 1, 1]} : vector<4x16x128xf32> to vector<4x16x1xf32>
    %258 = vector.shape_cast %19 : vector<16x128xi1> to vector<1x16x128xi1>
    %259 = vector.broadcast %258 : vector<1x16x128xi1> to vector<4x16x128xi1>
    %260 = vector.shape_cast %257 : vector<4x16x1xf32> to vector<4x16x1xf32>
    %261 = vector.broadcast %260 : vector<4x16x1xf32> to vector<4x16x128xf32>
    %262 = arith.select %259, %261, %256 : vector<4x16x128xi1>, vector<4x16x128xf32>
    %263 = arith.subf %75, %253 : vector<4x16x128xf32>
    %264 = arith.mulf %263, %263 : vector<4x16x128xf32>
    %265 = arith.subf %75, %262 : vector<4x16x128xf32>
    %266 = arith.mulf %265, %265 : vector<4x16x128xf32>
    %267 = arith.addf %264, %266 : vector<4x16x128xf32>
    %cst_34 = arith.constant dense<0.000000e+00> : vector<16x128xf32>
    %268 = vector.multi_reduction <add>, %267, %cst_34 [0] : vector<4x16x128xf32> to vector<16x128xf32>
    %cst_35 = arith.constant 2.500000e-01 : f32
    %269 = vector.broadcast %cst_35 : f32 to vector<16x128xf32>
    %270 = arith.mulf %268, %269 : vector<16x128xf32>
    %271 = arith.subf %84, %182 : vector<4x16x128xf32>
    %272 = arith.mulf %271, %271 : vector<4x16x128xf32>
    %273 = arith.addf %244, %272 : vector<4x16x128xf32>
    %274 = vector.shape_cast %84 : vector<4x16x128xf32> to vector<64x128xf32>
    %c63_i32_36 = arith.constant 63 : i32
    %275 = tpu.dynamic_rotate %274 by %c63_i32_36 dim 0 : vector<64x128xf32>, i32 -> vector<64x128xf32>
    %276 = vector.shape_cast %275 : vector<64x128xf32> to vector<4x16x128xf32>
    %277 = vector.extract_strided_slice %84 {offsets = [0, 15, 0], sizes = [4, 1, 128], strides = [1, 1, 1]} : vector<4x16x128xf32> to vector<4x1x128xf32>
    %278 = vector.shape_cast %11 : vector<16x128xi1> to vector<1x16x128xi1>
    %279 = vector.broadcast %278 : vector<1x16x128xi1> to vector<4x16x128xi1>
    %280 = vector.shape_cast %277 : vector<4x1x128xf32> to vector<4x1x128xf32>
    %281 = vector.broadcast %280 : vector<4x1x128xf32> to vector<4x16x128xf32>
    %282 = arith.select %279, %281, %276 : vector<4x16x128xi1>, vector<4x16x128xf32>
    %283 = vector.shape_cast %84 : vector<4x16x128xf32> to vector<64x128xf32>
    %c127_i32_37 = arith.constant 127 : i32
    %284 = tpu.dynamic_rotate %283 by %c127_i32_37 dim 1 : vector<64x128xf32>, i32 -> vector<64x128xf32>
    %285 = vector.shape_cast %284 : vector<64x128xf32> to vector<4x16x128xf32>
    %286 = vector.extract_strided_slice %84 {offsets = [0, 0, 127], sizes = [4, 16, 1], strides = [1, 1, 1]} : vector<4x16x128xf32> to vector<4x16x1xf32>
    %287 = vector.shape_cast %19 : vector<16x128xi1> to vector<1x16x128xi1>
    %288 = vector.broadcast %287 : vector<1x16x128xi1> to vector<4x16x128xi1>
    %289 = vector.shape_cast %286 : vector<4x16x1xf32> to vector<4x16x1xf32>
    %290 = vector.broadcast %289 : vector<4x16x1xf32> to vector<4x16x128xf32>
    %291 = arith.select %288, %290, %285 : vector<4x16x128xi1>, vector<4x16x128xf32>
    %292 = arith.subf %84, %282 : vector<4x16x128xf32>
    %293 = arith.mulf %292, %292 : vector<4x16x128xf32>
    %294 = arith.subf %84, %291 : vector<4x16x128xf32>
    %295 = arith.mulf %294, %294 : vector<4x16x128xf32>
    %296 = arith.addf %293, %295 : vector<4x16x128xf32>
    %cst_38 = arith.constant dense<0.000000e+00> : vector<16x128xf32>
    %297 = vector.multi_reduction <add>, %296, %cst_38 [0] : vector<4x16x128xf32> to vector<16x128xf32>
    %cst_39 = arith.constant 2.500000e-01 : f32
    %298 = vector.broadcast %cst_39 : f32 to vector<16x128xf32>
    %299 = arith.mulf %297, %298 : vector<16x128xf32>
    %300 = arith.subf %93, %182 : vector<4x16x128xf32>
    %301 = arith.mulf %300, %300 : vector<4x16x128xf32>
    %302 = arith.addf %273, %301 : vector<4x16x128xf32>
    %303 = vector.shape_cast %93 : vector<4x16x128xf32> to vector<64x128xf32>
    %c63_i32_40 = arith.constant 63 : i32
    %304 = tpu.dynamic_rotate %303 by %c63_i32_40 dim 0 : vector<64x128xf32>, i32 -> vector<64x128xf32>
    %305 = vector.shape_cast %304 : vector<64x128xf32> to vector<4x16x128xf32>
    %306 = vector.extract_strided_slice %93 {offsets = [0, 15, 0], sizes = [4, 1, 128], strides = [1, 1, 1]} : vector<4x16x128xf32> to vector<4x1x128xf32>
    %307 = vector.shape_cast %11 : vector<16x128xi1> to vector<1x16x128xi1>
    %308 = vector.broadcast %307 : vector<1x16x128xi1> to vector<4x16x128xi1>
    %309 = vector.shape_cast %306 : vector<4x1x128xf32> to vector<4x1x128xf32>
    %310 = vector.broadcast %309 : vector<4x1x128xf32> to vector<4x16x128xf32>
    %311 = arith.select %308, %310, %305 : vector<4x16x128xi1>, vector<4x16x128xf32>
    %312 = vector.shape_cast %93 : vector<4x16x128xf32> to vector<64x128xf32>
    %c127_i32_41 = arith.constant 127 : i32
    %313 = tpu.dynamic_rotate %312 by %c127_i32_41 dim 1 : vector<64x128xf32>, i32 -> vector<64x128xf32>
    %314 = vector.shape_cast %313 : vector<64x128xf32> to vector<4x16x128xf32>
    %315 = vector.extract_strided_slice %93 {offsets = [0, 0, 127], sizes = [4, 16, 1], strides = [1, 1, 1]} : vector<4x16x128xf32> to vector<4x16x1xf32>
    %316 = vector.shape_cast %19 : vector<16x128xi1> to vector<1x16x128xi1>
    %317 = vector.broadcast %316 : vector<1x16x128xi1> to vector<4x16x128xi1>
    %318 = vector.shape_cast %315 : vector<4x16x1xf32> to vector<4x16x1xf32>
    %319 = vector.broadcast %318 : vector<4x16x1xf32> to vector<4x16x128xf32>
    %320 = arith.select %317, %319, %314 : vector<4x16x128xi1>, vector<4x16x128xf32>
    %321 = arith.subf %93, %311 : vector<4x16x128xf32>
    %322 = arith.mulf %321, %321 : vector<4x16x128xf32>
    %323 = arith.subf %93, %320 : vector<4x16x128xf32>
    %324 = arith.mulf %323, %323 : vector<4x16x128xf32>
    %325 = arith.addf %322, %324 : vector<4x16x128xf32>
    %cst_42 = arith.constant dense<0.000000e+00> : vector<16x128xf32>
    %326 = vector.multi_reduction <add>, %325, %cst_42 [0] : vector<4x16x128xf32> to vector<16x128xf32>
    %cst_43 = arith.constant 2.500000e-01 : f32
    %327 = vector.broadcast %cst_43 : f32 to vector<16x128xf32>
    %328 = arith.mulf %326, %327 : vector<16x128xf32>
    %329 = arith.subf %102, %182 : vector<4x16x128xf32>
    %330 = arith.mulf %329, %329 : vector<4x16x128xf32>
    %331 = arith.addf %302, %330 : vector<4x16x128xf32>
    %332 = vector.shape_cast %102 : vector<4x16x128xf32> to vector<64x128xf32>
    %c63_i32_44 = arith.constant 63 : i32
    %333 = tpu.dynamic_rotate %332 by %c63_i32_44 dim 0 : vector<64x128xf32>, i32 -> vector<64x128xf32>
    %334 = vector.shape_cast %333 : vector<64x128xf32> to vector<4x16x128xf32>
    %335 = vector.extract_strided_slice %102 {offsets = [0, 15, 0], sizes = [4, 1, 128], strides = [1, 1, 1]} : vector<4x16x128xf32> to vector<4x1x128xf32>
    %336 = vector.shape_cast %11 : vector<16x128xi1> to vector<1x16x128xi1>
    %337 = vector.broadcast %336 : vector<1x16x128xi1> to vector<4x16x128xi1>
    %338 = vector.shape_cast %335 : vector<4x1x128xf32> to vector<4x1x128xf32>
    %339 = vector.broadcast %338 : vector<4x1x128xf32> to vector<4x16x128xf32>
    %340 = arith.select %337, %339, %334 : vector<4x16x128xi1>, vector<4x16x128xf32>
    %341 = vector.shape_cast %102 : vector<4x16x128xf32> to vector<64x128xf32>
    %c127_i32_45 = arith.constant 127 : i32
    %342 = tpu.dynamic_rotate %341 by %c127_i32_45 dim 1 : vector<64x128xf32>, i32 -> vector<64x128xf32>
    %343 = vector.shape_cast %342 : vector<64x128xf32> to vector<4x16x128xf32>
    %344 = vector.extract_strided_slice %102 {offsets = [0, 0, 127], sizes = [4, 16, 1], strides = [1, 1, 1]} : vector<4x16x128xf32> to vector<4x16x1xf32>
    %345 = vector.shape_cast %19 : vector<16x128xi1> to vector<1x16x128xi1>
    %346 = vector.broadcast %345 : vector<1x16x128xi1> to vector<4x16x128xi1>
    %347 = vector.shape_cast %344 : vector<4x16x1xf32> to vector<4x16x1xf32>
    %348 = vector.broadcast %347 : vector<4x16x1xf32> to vector<4x16x128xf32>
    %349 = arith.select %346, %348, %343 : vector<4x16x128xi1>, vector<4x16x128xf32>
    %350 = arith.subf %102, %340 : vector<4x16x128xf32>
    %351 = arith.mulf %350, %350 : vector<4x16x128xf32>
    %352 = arith.subf %102, %349 : vector<4x16x128xf32>
    %353 = arith.mulf %352, %352 : vector<4x16x128xf32>
    %354 = arith.addf %351, %353 : vector<4x16x128xf32>
    %cst_46 = arith.constant dense<0.000000e+00> : vector<16x128xf32>
    %355 = vector.multi_reduction <add>, %354, %cst_46 [0] : vector<4x16x128xf32> to vector<16x128xf32>
    %cst_47 = arith.constant 2.500000e-01 : f32
    %356 = vector.broadcast %cst_47 : f32 to vector<16x128xf32>
    %357 = arith.mulf %355, %356 : vector<16x128xf32>
    %358 = arith.subf %48, %182 : vector<4x16x128xf32>
    %359 = arith.mulf %358, %358 : vector<4x16x128xf32>
    %360 = arith.addf %331, %359 : vector<4x16x128xf32>
    %361 = vector.shape_cast %48 : vector<4x16x128xf32> to vector<64x128xf32>
    %c63_i32_48 = arith.constant 63 : i32
    %362 = tpu.dynamic_rotate %361 by %c63_i32_48 dim 0 : vector<64x128xf32>, i32 -> vector<64x128xf32>
    %363 = vector.shape_cast %362 : vector<64x128xf32> to vector<4x16x128xf32>
    %364 = vector.extract_strided_slice %48 {offsets = [0, 15, 0], sizes = [4, 1, 128], strides = [1, 1, 1]} : vector<4x16x128xf32> to vector<4x1x128xf32>
    %365 = vector.shape_cast %11 : vector<16x128xi1> to vector<1x16x128xi1>
    %366 = vector.broadcast %365 : vector<1x16x128xi1> to vector<4x16x128xi1>
    %367 = vector.shape_cast %364 : vector<4x1x128xf32> to vector<4x1x128xf32>
    %368 = vector.broadcast %367 : vector<4x1x128xf32> to vector<4x16x128xf32>
    %369 = arith.select %366, %368, %363 : vector<4x16x128xi1>, vector<4x16x128xf32>
    %370 = vector.shape_cast %48 : vector<4x16x128xf32> to vector<64x128xf32>
    %c127_i32_49 = arith.constant 127 : i32
    %371 = tpu.dynamic_rotate %370 by %c127_i32_49 dim 1 : vector<64x128xf32>, i32 -> vector<64x128xf32>
    %372 = vector.shape_cast %371 : vector<64x128xf32> to vector<4x16x128xf32>
    %373 = vector.extract_strided_slice %48 {offsets = [0, 0, 127], sizes = [4, 16, 1], strides = [1, 1, 1]} : vector<4x16x128xf32> to vector<4x16x1xf32>
    %374 = vector.shape_cast %19 : vector<16x128xi1> to vector<1x16x128xi1>
    %375 = vector.broadcast %374 : vector<1x16x128xi1> to vector<4x16x128xi1>
    %376 = vector.shape_cast %373 : vector<4x16x1xf32> to vector<4x16x1xf32>
    %377 = vector.broadcast %376 : vector<4x16x1xf32> to vector<4x16x128xf32>
    %378 = arith.select %375, %377, %372 : vector<4x16x128xi1>, vector<4x16x128xf32>
    %379 = arith.subf %48, %369 : vector<4x16x128xf32>
    %380 = arith.mulf %379, %379 : vector<4x16x128xf32>
    %381 = arith.subf %48, %378 : vector<4x16x128xf32>
    %382 = arith.mulf %381, %381 : vector<4x16x128xf32>
    %383 = arith.addf %380, %382 : vector<4x16x128xf32>
    %cst_50 = arith.constant dense<0.000000e+00> : vector<16x128xf32>
    %384 = vector.multi_reduction <add>, %383, %cst_50 [0] : vector<4x16x128xf32> to vector<16x128xf32>
    %cst_51 = arith.constant 2.500000e-01 : f32
    %385 = vector.broadcast %cst_51 : f32 to vector<16x128xf32>
    %386 = arith.mulf %384, %385 : vector<16x128xf32>
    %387 = arith.subf %111, %182 : vector<4x16x128xf32>
    %388 = arith.mulf %387, %387 : vector<4x16x128xf32>
    %389 = arith.addf %360, %388 : vector<4x16x128xf32>
    %390 = vector.shape_cast %111 : vector<4x16x128xf32> to vector<64x128xf32>
    %c63_i32_52 = arith.constant 63 : i32
    %391 = tpu.dynamic_rotate %390 by %c63_i32_52 dim 0 : vector<64x128xf32>, i32 -> vector<64x128xf32>
    %392 = vector.shape_cast %391 : vector<64x128xf32> to vector<4x16x128xf32>
    %393 = vector.extract_strided_slice %111 {offsets = [0, 15, 0], sizes = [4, 1, 128], strides = [1, 1, 1]} : vector<4x16x128xf32> to vector<4x1x128xf32>
    %394 = vector.shape_cast %11 : vector<16x128xi1> to vector<1x16x128xi1>
    %395 = vector.broadcast %394 : vector<1x16x128xi1> to vector<4x16x128xi1>
    %396 = vector.shape_cast %393 : vector<4x1x128xf32> to vector<4x1x128xf32>
    %397 = vector.broadcast %396 : vector<4x1x128xf32> to vector<4x16x128xf32>
    %398 = arith.select %395, %397, %392 : vector<4x16x128xi1>, vector<4x16x128xf32>
    %399 = vector.shape_cast %111 : vector<4x16x128xf32> to vector<64x128xf32>
    %c127_i32_53 = arith.constant 127 : i32
    %400 = tpu.dynamic_rotate %399 by %c127_i32_53 dim 1 : vector<64x128xf32>, i32 -> vector<64x128xf32>
    %401 = vector.shape_cast %400 : vector<64x128xf32> to vector<4x16x128xf32>
    %402 = vector.extract_strided_slice %111 {offsets = [0, 0, 127], sizes = [4, 16, 1], strides = [1, 1, 1]} : vector<4x16x128xf32> to vector<4x16x1xf32>
    %403 = vector.shape_cast %19 : vector<16x128xi1> to vector<1x16x128xi1>
    %404 = vector.broadcast %403 : vector<1x16x128xi1> to vector<4x16x128xi1>
    %405 = vector.shape_cast %402 : vector<4x16x1xf32> to vector<4x16x1xf32>
    %406 = vector.broadcast %405 : vector<4x16x1xf32> to vector<4x16x128xf32>
    %407 = arith.select %404, %406, %401 : vector<4x16x128xi1>, vector<4x16x128xf32>
    %408 = arith.subf %111, %398 : vector<4x16x128xf32>
    %409 = arith.mulf %408, %408 : vector<4x16x128xf32>
    %410 = arith.subf %111, %407 : vector<4x16x128xf32>
    %411 = arith.mulf %410, %410 : vector<4x16x128xf32>
    %412 = arith.addf %409, %411 : vector<4x16x128xf32>
    %cst_54 = arith.constant dense<0.000000e+00> : vector<16x128xf32>
    %413 = vector.multi_reduction <add>, %412, %cst_54 [0] : vector<4x16x128xf32> to vector<16x128xf32>
    %cst_55 = arith.constant 2.500000e-01 : f32
    %414 = vector.broadcast %cst_55 : f32 to vector<16x128xf32>
    %415 = arith.mulf %413, %414 : vector<16x128xf32>
    %416 = arith.subf %120, %182 : vector<4x16x128xf32>
    %417 = arith.mulf %416, %416 : vector<4x16x128xf32>
    %418 = arith.addf %389, %417 : vector<4x16x128xf32>
    %419 = vector.shape_cast %120 : vector<4x16x128xf32> to vector<64x128xf32>
    %c63_i32_56 = arith.constant 63 : i32
    %420 = tpu.dynamic_rotate %419 by %c63_i32_56 dim 0 : vector<64x128xf32>, i32 -> vector<64x128xf32>
    %421 = vector.shape_cast %420 : vector<64x128xf32> to vector<4x16x128xf32>
    %422 = vector.extract_strided_slice %120 {offsets = [0, 15, 0], sizes = [4, 1, 128], strides = [1, 1, 1]} : vector<4x16x128xf32> to vector<4x1x128xf32>
    %423 = vector.shape_cast %11 : vector<16x128xi1> to vector<1x16x128xi1>
    %424 = vector.broadcast %423 : vector<1x16x128xi1> to vector<4x16x128xi1>
    %425 = vector.shape_cast %422 : vector<4x1x128xf32> to vector<4x1x128xf32>
    %426 = vector.broadcast %425 : vector<4x1x128xf32> to vector<4x16x128xf32>
    %427 = arith.select %424, %426, %421 : vector<4x16x128xi1>, vector<4x16x128xf32>
    %428 = vector.shape_cast %120 : vector<4x16x128xf32> to vector<64x128xf32>
    %c127_i32_57 = arith.constant 127 : i32
    %429 = tpu.dynamic_rotate %428 by %c127_i32_57 dim 1 : vector<64x128xf32>, i32 -> vector<64x128xf32>
    %430 = vector.shape_cast %429 : vector<64x128xf32> to vector<4x16x128xf32>
    %431 = vector.extract_strided_slice %120 {offsets = [0, 0, 127], sizes = [4, 16, 1], strides = [1, 1, 1]} : vector<4x16x128xf32> to vector<4x16x1xf32>
    %432 = vector.shape_cast %19 : vector<16x128xi1> to vector<1x16x128xi1>
    %433 = vector.broadcast %432 : vector<1x16x128xi1> to vector<4x16x128xi1>
    %434 = vector.shape_cast %431 : vector<4x16x1xf32> to vector<4x16x1xf32>
    %435 = vector.broadcast %434 : vector<4x16x1xf32> to vector<4x16x128xf32>
    %436 = arith.select %433, %435, %430 : vector<4x16x128xi1>, vector<4x16x128xf32>
    %437 = arith.subf %120, %427 : vector<4x16x128xf32>
    %438 = arith.mulf %437, %437 : vector<4x16x128xf32>
    %439 = arith.subf %120, %436 : vector<4x16x128xf32>
    %440 = arith.mulf %439, %439 : vector<4x16x128xf32>
    %441 = arith.addf %438, %440 : vector<4x16x128xf32>
    %cst_58 = arith.constant dense<0.000000e+00> : vector<16x128xf32>
    %442 = vector.multi_reduction <add>, %441, %cst_58 [0] : vector<4x16x128xf32> to vector<16x128xf32>
    %cst_59 = arith.constant 2.500000e-01 : f32
    %443 = vector.broadcast %cst_59 : f32 to vector<16x128xf32>
    %444 = arith.mulf %442, %443 : vector<16x128xf32>
    %445 = arith.subf %30, %182 : vector<4x16x128xf32>
    %446 = arith.mulf %445, %445 : vector<4x16x128xf32>
    %447 = arith.addf %418, %446 : vector<4x16x128xf32>
    %448 = vector.shape_cast %30 : vector<4x16x128xf32> to vector<64x128xf32>
    %c63_i32_60 = arith.constant 63 : i32
    %449 = tpu.dynamic_rotate %448 by %c63_i32_60 dim 0 : vector<64x128xf32>, i32 -> vector<64x128xf32>
    %450 = vector.shape_cast %449 : vector<64x128xf32> to vector<4x16x128xf32>
    %451 = vector.extract_strided_slice %30 {offsets = [0, 15, 0], sizes = [4, 1, 128], strides = [1, 1, 1]} : vector<4x16x128xf32> to vector<4x1x128xf32>
    %452 = vector.shape_cast %11 : vector<16x128xi1> to vector<1x16x128xi1>
    %453 = vector.broadcast %452 : vector<1x16x128xi1> to vector<4x16x128xi1>
    %454 = vector.shape_cast %451 : vector<4x1x128xf32> to vector<4x1x128xf32>
    %455 = vector.broadcast %454 : vector<4x1x128xf32> to vector<4x16x128xf32>
    %456 = arith.select %453, %455, %450 : vector<4x16x128xi1>, vector<4x16x128xf32>
    %457 = vector.shape_cast %30 : vector<4x16x128xf32> to vector<64x128xf32>
    %c127_i32_61 = arith.constant 127 : i32
    %458 = tpu.dynamic_rotate %457 by %c127_i32_61 dim 1 : vector<64x128xf32>, i32 -> vector<64x128xf32>
    %459 = vector.shape_cast %458 : vector<64x128xf32> to vector<4x16x128xf32>
    %460 = vector.extract_strided_slice %30 {offsets = [0, 0, 127], sizes = [4, 16, 1], strides = [1, 1, 1]} : vector<4x16x128xf32> to vector<4x16x1xf32>
    %461 = vector.shape_cast %19 : vector<16x128xi1> to vector<1x16x128xi1>
    %462 = vector.broadcast %461 : vector<1x16x128xi1> to vector<4x16x128xi1>
    %463 = vector.shape_cast %460 : vector<4x16x1xf32> to vector<4x16x1xf32>
    %464 = vector.broadcast %463 : vector<4x16x1xf32> to vector<4x16x128xf32>
    %465 = arith.select %462, %464, %459 : vector<4x16x128xi1>, vector<4x16x128xf32>
    %466 = arith.subf %30, %456 : vector<4x16x128xf32>
    %467 = arith.mulf %466, %466 : vector<4x16x128xf32>
    %468 = arith.subf %30, %465 : vector<4x16x128xf32>
    %469 = arith.mulf %468, %468 : vector<4x16x128xf32>
    %470 = arith.addf %467, %469 : vector<4x16x128xf32>
    %cst_62 = arith.constant dense<0.000000e+00> : vector<16x128xf32>
    %471 = vector.multi_reduction <add>, %470, %cst_62 [0] : vector<4x16x128xf32> to vector<16x128xf32>
    %cst_63 = arith.constant 2.500000e-01 : f32
    %472 = vector.broadcast %cst_63 : f32 to vector<16x128xf32>
    %473 = arith.mulf %471, %472 : vector<16x128xf32>
    %474 = arith.subf %129, %182 : vector<4x16x128xf32>
    %475 = arith.mulf %474, %474 : vector<4x16x128xf32>
    %476 = arith.addf %447, %475 : vector<4x16x128xf32>
    %477 = vector.shape_cast %129 : vector<4x16x128xf32> to vector<64x128xf32>
    %c63_i32_64 = arith.constant 63 : i32
    %478 = tpu.dynamic_rotate %477 by %c63_i32_64 dim 0 : vector<64x128xf32>, i32 -> vector<64x128xf32>
    %479 = vector.shape_cast %478 : vector<64x128xf32> to vector<4x16x128xf32>
    %480 = vector.extract_strided_slice %129 {offsets = [0, 15, 0], sizes = [4, 1, 128], strides = [1, 1, 1]} : vector<4x16x128xf32> to vector<4x1x128xf32>
    %481 = vector.shape_cast %11 : vector<16x128xi1> to vector<1x16x128xi1>
    %482 = vector.broadcast %481 : vector<1x16x128xi1> to vector<4x16x128xi1>
    %483 = vector.shape_cast %480 : vector<4x1x128xf32> to vector<4x1x128xf32>
    %484 = vector.broadcast %483 : vector<4x1x128xf32> to vector<4x16x128xf32>
    %485 = arith.select %482, %484, %479 : vector<4x16x128xi1>, vector<4x16x128xf32>
    %486 = vector.shape_cast %129 : vector<4x16x128xf32> to vector<64x128xf32>
    %c127_i32_65 = arith.constant 127 : i32
    %487 = tpu.dynamic_rotate %486 by %c127_i32_65 dim 1 : vector<64x128xf32>, i32 -> vector<64x128xf32>
    %488 = vector.shape_cast %487 : vector<64x128xf32> to vector<4x16x128xf32>
    %489 = vector.extract_strided_slice %129 {offsets = [0, 0, 127], sizes = [4, 16, 1], strides = [1, 1, 1]} : vector<4x16x128xf32> to vector<4x16x1xf32>
    %490 = vector.shape_cast %19 : vector<16x128xi1> to vector<1x16x128xi1>
    %491 = vector.broadcast %490 : vector<1x16x128xi1> to vector<4x16x128xi1>
    %492 = vector.shape_cast %489 : vector<4x16x1xf32> to vector<4x16x1xf32>
    %493 = vector.broadcast %492 : vector<4x16x1xf32> to vector<4x16x128xf32>
    %494 = arith.select %491, %493, %488 : vector<4x16x128xi1>, vector<4x16x128xf32>
    %495 = arith.subf %129, %485 : vector<4x16x128xf32>
    %496 = arith.mulf %495, %495 : vector<4x16x128xf32>
    %497 = arith.subf %129, %494 : vector<4x16x128xf32>
    %498 = arith.mulf %497, %497 : vector<4x16x128xf32>
    %499 = arith.addf %496, %498 : vector<4x16x128xf32>
    %cst_66 = arith.constant dense<0.000000e+00> : vector<16x128xf32>
    %500 = vector.multi_reduction <add>, %499, %cst_66 [0] : vector<4x16x128xf32> to vector<16x128xf32>
    %cst_67 = arith.constant 2.500000e-01 : f32
    %501 = vector.broadcast %cst_67 : f32 to vector<16x128xf32>
    %502 = arith.mulf %500, %501 : vector<16x128xf32>
    %503 = arith.subf %138, %182 : vector<4x16x128xf32>
    %504 = arith.mulf %503, %503 : vector<4x16x128xf32>
    %505 = arith.addf %476, %504 : vector<4x16x128xf32>
    %506 = vector.shape_cast %138 : vector<4x16x128xf32> to vector<64x128xf32>
    %c63_i32_68 = arith.constant 63 : i32
    %507 = tpu.dynamic_rotate %506 by %c63_i32_68 dim 0 : vector<64x128xf32>, i32 -> vector<64x128xf32>
    %508 = vector.shape_cast %507 : vector<64x128xf32> to vector<4x16x128xf32>
    %509 = vector.extract_strided_slice %138 {offsets = [0, 15, 0], sizes = [4, 1, 128], strides = [1, 1, 1]} : vector<4x16x128xf32> to vector<4x1x128xf32>
    %510 = vector.shape_cast %11 : vector<16x128xi1> to vector<1x16x128xi1>
    %511 = vector.broadcast %510 : vector<1x16x128xi1> to vector<4x16x128xi1>
    %512 = vector.shape_cast %509 : vector<4x1x128xf32> to vector<4x1x128xf32>
    %513 = vector.broadcast %512 : vector<4x1x128xf32> to vector<4x16x128xf32>
    %514 = arith.select %511, %513, %508 : vector<4x16x128xi1>, vector<4x16x128xf32>
    %515 = vector.shape_cast %138 : vector<4x16x128xf32> to vector<64x128xf32>
    %c127_i32_69 = arith.constant 127 : i32
    %516 = tpu.dynamic_rotate %515 by %c127_i32_69 dim 1 : vector<64x128xf32>, i32 -> vector<64x128xf32>
    %517 = vector.shape_cast %516 : vector<64x128xf32> to vector<4x16x128xf32>
    %518 = vector.extract_strided_slice %138 {offsets = [0, 0, 127], sizes = [4, 16, 1], strides = [1, 1, 1]} : vector<4x16x128xf32> to vector<4x16x1xf32>
    %519 = vector.shape_cast %19 : vector<16x128xi1> to vector<1x16x128xi1>
    %520 = vector.broadcast %519 : vector<1x16x128xi1> to vector<4x16x128xi1>
    %521 = vector.shape_cast %518 : vector<4x16x1xf32> to vector<4x16x1xf32>
    %522 = vector.broadcast %521 : vector<4x16x1xf32> to vector<4x16x128xf32>
    %523 = arith.select %520, %522, %517 : vector<4x16x128xi1>, vector<4x16x128xf32>
    %524 = arith.subf %138, %514 : vector<4x16x128xf32>
    %525 = arith.mulf %524, %524 : vector<4x16x128xf32>
    %526 = arith.subf %138, %523 : vector<4x16x128xf32>
    %527 = arith.mulf %526, %526 : vector<4x16x128xf32>
    %528 = arith.addf %525, %527 : vector<4x16x128xf32>
    %cst_70 = arith.constant dense<0.000000e+00> : vector<16x128xf32>
    %529 = vector.multi_reduction <add>, %528, %cst_70 [0] : vector<4x16x128xf32> to vector<16x128xf32>
    %cst_71 = arith.constant 2.500000e-01 : f32
    %530 = vector.broadcast %cst_71 : f32 to vector<16x128xf32>
    %531 = arith.mulf %529, %530 : vector<16x128xf32>
    %532 = arith.subf %147, %182 : vector<4x16x128xf32>
    %533 = arith.mulf %532, %532 : vector<4x16x128xf32>
    %534 = arith.addf %505, %533 : vector<4x16x128xf32>
    %535 = vector.shape_cast %147 : vector<4x16x128xf32> to vector<64x128xf32>
    %c63_i32_72 = arith.constant 63 : i32
    %536 = tpu.dynamic_rotate %535 by %c63_i32_72 dim 0 : vector<64x128xf32>, i32 -> vector<64x128xf32>
    %537 = vector.shape_cast %536 : vector<64x128xf32> to vector<4x16x128xf32>
    %538 = vector.extract_strided_slice %147 {offsets = [0, 15, 0], sizes = [4, 1, 128], strides = [1, 1, 1]} : vector<4x16x128xf32> to vector<4x1x128xf32>
    %539 = vector.shape_cast %11 : vector<16x128xi1> to vector<1x16x128xi1>
    %540 = vector.broadcast %539 : vector<1x16x128xi1> to vector<4x16x128xi1>
    %541 = vector.shape_cast %538 : vector<4x1x128xf32> to vector<4x1x128xf32>
    %542 = vector.broadcast %541 : vector<4x1x128xf32> to vector<4x16x128xf32>
    %543 = arith.select %540, %542, %537 : vector<4x16x128xi1>, vector<4x16x128xf32>
    %544 = vector.shape_cast %147 : vector<4x16x128xf32> to vector<64x128xf32>
    %c127_i32_73 = arith.constant 127 : i32
    %545 = tpu.dynamic_rotate %544 by %c127_i32_73 dim 1 : vector<64x128xf32>, i32 -> vector<64x128xf32>
    %546 = vector.shape_cast %545 : vector<64x128xf32> to vector<4x16x128xf32>
    %547 = vector.extract_strided_slice %147 {offsets = [0, 0, 127], sizes = [4, 16, 1], strides = [1, 1, 1]} : vector<4x16x128xf32> to vector<4x16x1xf32>
    %548 = vector.shape_cast %19 : vector<16x128xi1> to vector<1x16x128xi1>
    %549 = vector.broadcast %548 : vector<1x16x128xi1> to vector<4x16x128xi1>
    %550 = vector.shape_cast %547 : vector<4x16x1xf32> to vector<4x16x1xf32>
    %551 = vector.broadcast %550 : vector<4x16x1xf32> to vector<4x16x128xf32>
    %552 = arith.select %549, %551, %546 : vector<4x16x128xi1>, vector<4x16x128xf32>
    %553 = arith.subf %147, %543 : vector<4x16x128xf32>
    %554 = arith.mulf %553, %553 : vector<4x16x128xf32>
    %555 = arith.subf %147, %552 : vector<4x16x128xf32>
    %556 = arith.mulf %555, %555 : vector<4x16x128xf32>
    %557 = arith.addf %554, %556 : vector<4x16x128xf32>
    %cst_74 = arith.constant dense<0.000000e+00> : vector<16x128xf32>
    %558 = vector.multi_reduction <add>, %557, %cst_74 [0] : vector<4x16x128xf32> to vector<16x128xf32>
    %cst_75 = arith.constant 2.500000e-01 : f32
    %559 = vector.broadcast %cst_75 : f32 to vector<16x128xf32>
    %560 = arith.mulf %558, %559 : vector<16x128xf32>
    %561 = arith.subf %156, %182 : vector<4x16x128xf32>
    %562 = arith.mulf %561, %561 : vector<4x16x128xf32>
    %563 = arith.addf %534, %562 : vector<4x16x128xf32>
    %564 = vector.shape_cast %156 : vector<4x16x128xf32> to vector<64x128xf32>
    %c63_i32_76 = arith.constant 63 : i32
    %565 = tpu.dynamic_rotate %564 by %c63_i32_76 dim 0 : vector<64x128xf32>, i32 -> vector<64x128xf32>
    %566 = vector.shape_cast %565 : vector<64x128xf32> to vector<4x16x128xf32>
    %567 = vector.extract_strided_slice %156 {offsets = [0, 15, 0], sizes = [4, 1, 128], strides = [1, 1, 1]} : vector<4x16x128xf32> to vector<4x1x128xf32>
    %568 = vector.shape_cast %11 : vector<16x128xi1> to vector<1x16x128xi1>
    %569 = vector.broadcast %568 : vector<1x16x128xi1> to vector<4x16x128xi1>
    %570 = vector.shape_cast %567 : vector<4x1x128xf32> to vector<4x1x128xf32>
    %571 = vector.broadcast %570 : vector<4x1x128xf32> to vector<4x16x128xf32>
    %572 = arith.select %569, %571, %566 : vector<4x16x128xi1>, vector<4x16x128xf32>
    %573 = vector.shape_cast %156 : vector<4x16x128xf32> to vector<64x128xf32>
    %c127_i32_77 = arith.constant 127 : i32
    %574 = tpu.dynamic_rotate %573 by %c127_i32_77 dim 1 : vector<64x128xf32>, i32 -> vector<64x128xf32>
    %575 = vector.shape_cast %574 : vector<64x128xf32> to vector<4x16x128xf32>
    %576 = vector.extract_strided_slice %156 {offsets = [0, 0, 127], sizes = [4, 16, 1], strides = [1, 1, 1]} : vector<4x16x128xf32> to vector<4x16x1xf32>
    %577 = vector.shape_cast %19 : vector<16x128xi1> to vector<1x16x128xi1>
    %578 = vector.broadcast %577 : vector<1x16x128xi1> to vector<4x16x128xi1>
    %579 = vector.shape_cast %576 : vector<4x16x1xf32> to vector<4x16x1xf32>
    %580 = vector.broadcast %579 : vector<4x16x1xf32> to vector<4x16x128xf32>
    %581 = arith.select %578, %580, %575 : vector<4x16x128xi1>, vector<4x16x128xf32>
    %582 = arith.subf %156, %572 : vector<4x16x128xf32>
    %583 = arith.mulf %582, %582 : vector<4x16x128xf32>
    %584 = arith.subf %156, %581 : vector<4x16x128xf32>
    %585 = arith.mulf %584, %584 : vector<4x16x128xf32>
    %586 = arith.addf %583, %585 : vector<4x16x128xf32>
    %cst_78 = arith.constant dense<0.000000e+00> : vector<16x128xf32>
    %587 = vector.multi_reduction <add>, %586, %cst_78 [0] : vector<4x16x128xf32> to vector<16x128xf32>
    %cst_79 = arith.constant 2.500000e-01 : f32
    %588 = vector.broadcast %cst_79 : f32 to vector<16x128xf32>
    %589 = arith.mulf %587, %588 : vector<16x128xf32>
    %590 = arith.subf %57, %182 : vector<4x16x128xf32>
    %591 = arith.mulf %590, %590 : vector<4x16x128xf32>
    %592 = arith.addf %563, %591 : vector<4x16x128xf32>
    %593 = vector.shape_cast %57 : vector<4x16x128xf32> to vector<64x128xf32>
    %c63_i32_80 = arith.constant 63 : i32
    %594 = tpu.dynamic_rotate %593 by %c63_i32_80 dim 0 : vector<64x128xf32>, i32 -> vector<64x128xf32>
    %595 = vector.shape_cast %594 : vector<64x128xf32> to vector<4x16x128xf32>
    %596 = vector.extract_strided_slice %57 {offsets = [0, 15, 0], sizes = [4, 1, 128], strides = [1, 1, 1]} : vector<4x16x128xf32> to vector<4x1x128xf32>
    %597 = vector.shape_cast %11 : vector<16x128xi1> to vector<1x16x128xi1>
    %598 = vector.broadcast %597 : vector<1x16x128xi1> to vector<4x16x128xi1>
    %599 = vector.shape_cast %596 : vector<4x1x128xf32> to vector<4x1x128xf32>
    %600 = vector.broadcast %599 : vector<4x1x128xf32> to vector<4x16x128xf32>
    %601 = arith.select %598, %600, %595 : vector<4x16x128xi1>, vector<4x16x128xf32>
    %602 = vector.shape_cast %57 : vector<4x16x128xf32> to vector<64x128xf32>
    %c127_i32_81 = arith.constant 127 : i32
    %603 = tpu.dynamic_rotate %602 by %c127_i32_81 dim 1 : vector<64x128xf32>, i32 -> vector<64x128xf32>
    %604 = vector.shape_cast %603 : vector<64x128xf32> to vector<4x16x128xf32>
    %605 = vector.extract_strided_slice %57 {offsets = [0, 0, 127], sizes = [4, 16, 1], strides = [1, 1, 1]} : vector<4x16x128xf32> to vector<4x16x1xf32>
    %606 = vector.shape_cast %19 : vector<16x128xi1> to vector<1x16x128xi1>
    %607 = vector.broadcast %606 : vector<1x16x128xi1> to vector<4x16x128xi1>
    %608 = vector.shape_cast %605 : vector<4x16x1xf32> to vector<4x16x1xf32>
    %609 = vector.broadcast %608 : vector<4x16x1xf32> to vector<4x16x128xf32>
    %610 = arith.select %607, %609, %604 : vector<4x16x128xi1>, vector<4x16x128xf32>
    %611 = arith.subf %57, %601 : vector<4x16x128xf32>
    %612 = arith.mulf %611, %611 : vector<4x16x128xf32>
    %613 = arith.subf %57, %610 : vector<4x16x128xf32>
    %614 = arith.mulf %613, %613 : vector<4x16x128xf32>
    %615 = arith.addf %612, %614 : vector<4x16x128xf32>
    %cst_82 = arith.constant dense<0.000000e+00> : vector<16x128xf32>
    %616 = vector.multi_reduction <add>, %615, %cst_82 [0] : vector<4x16x128xf32> to vector<16x128xf32>
    %cst_83 = arith.constant 2.500000e-01 : f32
    %617 = vector.broadcast %cst_83 : f32 to vector<16x128xf32>
    %618 = arith.mulf %616, %617 : vector<16x128xf32>
    %619 = arith.subf %165, %182 : vector<4x16x128xf32>
    %620 = arith.mulf %619, %619 : vector<4x16x128xf32>
    %621 = arith.addf %592, %620 : vector<4x16x128xf32>
    %622 = vector.shape_cast %165 : vector<4x16x128xf32> to vector<64x128xf32>
    %c63_i32_84 = arith.constant 63 : i32
    %623 = tpu.dynamic_rotate %622 by %c63_i32_84 dim 0 : vector<64x128xf32>, i32 -> vector<64x128xf32>
    %624 = vector.shape_cast %623 : vector<64x128xf32> to vector<4x16x128xf32>
    %625 = vector.extract_strided_slice %165 {offsets = [0, 15, 0], sizes = [4, 1, 128], strides = [1, 1, 1]} : vector<4x16x128xf32> to vector<4x1x128xf32>
    %626 = vector.shape_cast %11 : vector<16x128xi1> to vector<1x16x128xi1>
    %627 = vector.broadcast %626 : vector<1x16x128xi1> to vector<4x16x128xi1>
    %628 = vector.shape_cast %625 : vector<4x1x128xf32> to vector<4x1x128xf32>
    %629 = vector.broadcast %628 : vector<4x1x128xf32> to vector<4x16x128xf32>
    %630 = arith.select %627, %629, %624 : vector<4x16x128xi1>, vector<4x16x128xf32>
    %631 = vector.shape_cast %165 : vector<4x16x128xf32> to vector<64x128xf32>
    %c127_i32_85 = arith.constant 127 : i32
    %632 = tpu.dynamic_rotate %631 by %c127_i32_85 dim 1 : vector<64x128xf32>, i32 -> vector<64x128xf32>
    %633 = vector.shape_cast %632 : vector<64x128xf32> to vector<4x16x128xf32>
    %634 = vector.extract_strided_slice %165 {offsets = [0, 0, 127], sizes = [4, 16, 1], strides = [1, 1, 1]} : vector<4x16x128xf32> to vector<4x16x1xf32>
    %635 = vector.shape_cast %19 : vector<16x128xi1> to vector<1x16x128xi1>
    %636 = vector.broadcast %635 : vector<1x16x128xi1> to vector<4x16x128xi1>
    %637 = vector.shape_cast %634 : vector<4x16x1xf32> to vector<4x16x1xf32>
    %638 = vector.broadcast %637 : vector<4x16x1xf32> to vector<4x16x128xf32>
    %639 = arith.select %636, %638, %633 : vector<4x16x128xi1>, vector<4x16x128xf32>
    %640 = arith.subf %165, %630 : vector<4x16x128xf32>
    %641 = arith.mulf %640, %640 : vector<4x16x128xf32>
    %642 = arith.subf %165, %639 : vector<4x16x128xf32>
    %643 = arith.mulf %642, %642 : vector<4x16x128xf32>
    %644 = arith.addf %641, %643 : vector<4x16x128xf32>
    %cst_86 = arith.constant dense<0.000000e+00> : vector<16x128xf32>
    %645 = vector.multi_reduction <add>, %644, %cst_86 [0] : vector<4x16x128xf32> to vector<16x128xf32>
    %cst_87 = arith.constant 2.500000e-01 : f32
    %646 = vector.broadcast %cst_87 : f32 to vector<16x128xf32>
    %647 = arith.mulf %645, %646 : vector<16x128xf32>
    %cst_88 = arith.constant 0.0666666701 : f32
    %648 = vector.broadcast %cst_88 : f32 to vector<4x16x128xf32>
    %649 = arith.mulf %621, %648 : vector<4x16x128xf32>
    %650 = math.sqrt %649 : vector<4x16x128xf32>
    %cst_89 = arith.constant 9.99999993E-9 : f32
    %651 = vector.broadcast %cst_89 : f32 to vector<4x16x128xf32>
    %652 = arith.addf %650, %651 : vector<4x16x128xf32>
    %cst_90 = arith.constant 3.33333325 : f32
    %653 = vector.broadcast %cst_90 : f32 to vector<4x16x128xf32>
    %654 = arith.divf %653, %652 : vector<4x16x128xf32>
    %655 = arith.subf %66, %1 : vector<4x16x128xf32>
    %656 = arith.mulf %655, %654 : vector<4x16x128xf32>
    %657 = arith.mulf %656, %656 : vector<4x16x128xf32>
    %cst_91 = arith.constant dense<0.000000e+00> : vector<16x128xf32>
    %658 = vector.multi_reduction <add>, %657, %cst_91 [0] : vector<4x16x128xf32> to vector<16x128xf32>
    %cst_92 = arith.constant 2.500000e-01 : f32
    %659 = vector.broadcast %cst_92 : f32 to vector<16x128xf32>
    %660 = arith.mulf %658, %659 : vector<16x128xf32>
    %cst_93 = arith.constant 0.000000e+00 : f32
    %661 = vector.broadcast %cst_93 : f32 to vector<16x128xf32>
    %662 = arith.subf %661, %660 : vector<16x128xf32>
    %663 = arith.subf %39, %1 : vector<4x16x128xf32>
    %664 = arith.mulf %663, %654 : vector<4x16x128xf32>
    %665 = arith.mulf %664, %664 : vector<4x16x128xf32>
    %cst_94 = arith.constant dense<0.000000e+00> : vector<16x128xf32>
    %666 = vector.multi_reduction <add>, %665, %cst_94 [0] : vector<4x16x128xf32> to vector<16x128xf32>
    %cst_95 = arith.constant 2.500000e-01 : f32
    %667 = vector.broadcast %cst_95 : f32 to vector<16x128xf32>
    %668 = arith.mulf %666, %667 : vector<16x128xf32>
    %cst_96 = arith.constant 0.000000e+00 : f32
    %669 = vector.broadcast %cst_96 : f32 to vector<16x128xf32>
    %670 = arith.subf %669, %668 : vector<16x128xf32>
    %671 = arith.subf %75, %1 : vector<4x16x128xf32>
    %672 = arith.mulf %671, %654 : vector<4x16x128xf32>
    %673 = arith.mulf %672, %672 : vector<4x16x128xf32>
    %cst_97 = arith.constant dense<0.000000e+00> : vector<16x128xf32>
    %674 = vector.multi_reduction <add>, %673, %cst_97 [0] : vector<4x16x128xf32> to vector<16x128xf32>
    %cst_98 = arith.constant 2.500000e-01 : f32
    %675 = vector.broadcast %cst_98 : f32 to vector<16x128xf32>
    %676 = arith.mulf %674, %675 : vector<16x128xf32>
    %cst_99 = arith.constant 0.000000e+00 : f32
    %677 = vector.broadcast %cst_99 : f32 to vector<16x128xf32>
    %678 = arith.subf %677, %676 : vector<16x128xf32>
    %679 = arith.subf %84, %1 : vector<4x16x128xf32>
    %680 = arith.mulf %679, %654 : vector<4x16x128xf32>
    %681 = arith.mulf %680, %680 : vector<4x16x128xf32>
    %cst_100 = arith.constant dense<0.000000e+00> : vector<16x128xf32>
    %682 = vector.multi_reduction <add>, %681, %cst_100 [0] : vector<4x16x128xf32> to vector<16x128xf32>
    %cst_101 = arith.constant 2.500000e-01 : f32
    %683 = vector.broadcast %cst_101 : f32 to vector<16x128xf32>
    %684 = arith.mulf %682, %683 : vector<16x128xf32>
    %cst_102 = arith.constant 0.000000e+00 : f32
    %685 = vector.broadcast %cst_102 : f32 to vector<16x128xf32>
    %686 = arith.subf %685, %684 : vector<16x128xf32>
    %687 = arith.subf %93, %1 : vector<4x16x128xf32>
    %688 = arith.mulf %687, %654 : vector<4x16x128xf32>
    %689 = arith.mulf %688, %688 : vector<4x16x128xf32>
    %cst_103 = arith.constant dense<0.000000e+00> : vector<16x128xf32>
    %690 = vector.multi_reduction <add>, %689, %cst_103 [0] : vector<4x16x128xf32> to vector<16x128xf32>
    %cst_104 = arith.constant 2.500000e-01 : f32
    %691 = vector.broadcast %cst_104 : f32 to vector<16x128xf32>
    %692 = arith.mulf %690, %691 : vector<16x128xf32>
    %cst_105 = arith.constant 0.000000e+00 : f32
    %693 = vector.broadcast %cst_105 : f32 to vector<16x128xf32>
    %694 = arith.subf %693, %692 : vector<16x128xf32>
    %695 = arith.subf %102, %1 : vector<4x16x128xf32>
    %696 = arith.mulf %695, %654 : vector<4x16x128xf32>
    %697 = arith.mulf %696, %696 : vector<4x16x128xf32>
    %cst_106 = arith.constant dense<0.000000e+00> : vector<16x128xf32>
    %698 = vector.multi_reduction <add>, %697, %cst_106 [0] : vector<4x16x128xf32> to vector<16x128xf32>
    %cst_107 = arith.constant 2.500000e-01 : f32
    %699 = vector.broadcast %cst_107 : f32 to vector<16x128xf32>
    %700 = arith.mulf %698, %699 : vector<16x128xf32>
    %cst_108 = arith.constant 0.000000e+00 : f32
    %701 = vector.broadcast %cst_108 : f32 to vector<16x128xf32>
    %702 = arith.subf %701, %700 : vector<16x128xf32>
    %703 = arith.subf %48, %1 : vector<4x16x128xf32>
    %704 = arith.mulf %703, %654 : vector<4x16x128xf32>
    %705 = arith.mulf %704, %704 : vector<4x16x128xf32>
    %cst_109 = arith.constant dense<0.000000e+00> : vector<16x128xf32>
    %706 = vector.multi_reduction <add>, %705, %cst_109 [0] : vector<4x16x128xf32> to vector<16x128xf32>
    %cst_110 = arith.constant 2.500000e-01 : f32
    %707 = vector.broadcast %cst_110 : f32 to vector<16x128xf32>
    %708 = arith.mulf %706, %707 : vector<16x128xf32>
    %cst_111 = arith.constant 0.000000e+00 : f32
    %709 = vector.broadcast %cst_111 : f32 to vector<16x128xf32>
    %710 = arith.subf %709, %708 : vector<16x128xf32>
    %711 = arith.subf %111, %1 : vector<4x16x128xf32>
    %712 = arith.mulf %711, %654 : vector<4x16x128xf32>
    %713 = arith.mulf %712, %712 : vector<4x16x128xf32>
    %cst_112 = arith.constant dense<0.000000e+00> : vector<16x128xf32>
    %714 = vector.multi_reduction <add>, %713, %cst_112 [0] : vector<4x16x128xf32> to vector<16x128xf32>
    %cst_113 = arith.constant 2.500000e-01 : f32
    %715 = vector.broadcast %cst_113 : f32 to vector<16x128xf32>
    %716 = arith.mulf %714, %715 : vector<16x128xf32>
    %cst_114 = arith.constant 0.000000e+00 : f32
    %717 = vector.broadcast %cst_114 : f32 to vector<16x128xf32>
    %718 = arith.subf %717, %716 : vector<16x128xf32>
    %719 = arith.subf %120, %1 : vector<4x16x128xf32>
    %720 = arith.mulf %719, %654 : vector<4x16x128xf32>
    %721 = arith.mulf %720, %720 : vector<4x16x128xf32>
    %cst_115 = arith.constant dense<0.000000e+00> : vector<16x128xf32>
    %722 = vector.multi_reduction <add>, %721, %cst_115 [0] : vector<4x16x128xf32> to vector<16x128xf32>
    %cst_116 = arith.constant 2.500000e-01 : f32
    %723 = vector.broadcast %cst_116 : f32 to vector<16x128xf32>
    %724 = arith.mulf %722, %723 : vector<16x128xf32>
    %cst_117 = arith.constant 0.000000e+00 : f32
    %725 = vector.broadcast %cst_117 : f32 to vector<16x128xf32>
    %726 = arith.subf %725, %724 : vector<16x128xf32>
    %727 = arith.subf %30, %1 : vector<4x16x128xf32>
    %728 = arith.mulf %727, %654 : vector<4x16x128xf32>
    %729 = arith.mulf %728, %728 : vector<4x16x128xf32>
    %cst_118 = arith.constant dense<0.000000e+00> : vector<16x128xf32>
    %730 = vector.multi_reduction <add>, %729, %cst_118 [0] : vector<4x16x128xf32> to vector<16x128xf32>
    %cst_119 = arith.constant 2.500000e-01 : f32
    %731 = vector.broadcast %cst_119 : f32 to vector<16x128xf32>
    %732 = arith.mulf %730, %731 : vector<16x128xf32>
    %cst_120 = arith.constant 0.000000e+00 : f32
    %733 = vector.broadcast %cst_120 : f32 to vector<16x128xf32>
    %734 = arith.subf %733, %732 : vector<16x128xf32>
    %735 = arith.subf %129, %1 : vector<4x16x128xf32>
    %736 = arith.mulf %735, %654 : vector<4x16x128xf32>
    %737 = arith.mulf %736, %736 : vector<4x16x128xf32>
    %cst_121 = arith.constant dense<0.000000e+00> : vector<16x128xf32>
    %738 = vector.multi_reduction <add>, %737, %cst_121 [0] : vector<4x16x128xf32> to vector<16x128xf32>
    %cst_122 = arith.constant 2.500000e-01 : f32
    %739 = vector.broadcast %cst_122 : f32 to vector<16x128xf32>
    %740 = arith.mulf %738, %739 : vector<16x128xf32>
    %cst_123 = arith.constant 0.000000e+00 : f32
    %741 = vector.broadcast %cst_123 : f32 to vector<16x128xf32>
    %742 = arith.subf %741, %740 : vector<16x128xf32>
    %743 = arith.subf %138, %1 : vector<4x16x128xf32>
    %744 = arith.mulf %743, %654 : vector<4x16x128xf32>
    %745 = arith.mulf %744, %744 : vector<4x16x128xf32>
    %cst_124 = arith.constant dense<0.000000e+00> : vector<16x128xf32>
    %746 = vector.multi_reduction <add>, %745, %cst_124 [0] : vector<4x16x128xf32> to vector<16x128xf32>
    %cst_125 = arith.constant 2.500000e-01 : f32
    %747 = vector.broadcast %cst_125 : f32 to vector<16x128xf32>
    %748 = arith.mulf %746, %747 : vector<16x128xf32>
    %cst_126 = arith.constant 0.000000e+00 : f32
    %749 = vector.broadcast %cst_126 : f32 to vector<16x128xf32>
    %750 = arith.subf %749, %748 : vector<16x128xf32>
    %751 = arith.subf %147, %1 : vector<4x16x128xf32>
    %752 = arith.mulf %751, %654 : vector<4x16x128xf32>
    %753 = arith.mulf %752, %752 : vector<4x16x128xf32>
    %cst_127 = arith.constant dense<0.000000e+00> : vector<16x128xf32>
    %754 = vector.multi_reduction <add>, %753, %cst_127 [0] : vector<4x16x128xf32> to vector<16x128xf32>
    %cst_128 = arith.constant 2.500000e-01 : f32
    %755 = vector.broadcast %cst_128 : f32 to vector<16x128xf32>
    %756 = arith.mulf %754, %755 : vector<16x128xf32>
    %cst_129 = arith.constant 0.000000e+00 : f32
    %757 = vector.broadcast %cst_129 : f32 to vector<16x128xf32>
    %758 = arith.subf %757, %756 : vector<16x128xf32>
    %759 = arith.subf %156, %1 : vector<4x16x128xf32>
    %760 = arith.mulf %759, %654 : vector<4x16x128xf32>
    %761 = arith.mulf %760, %760 : vector<4x16x128xf32>
    %cst_130 = arith.constant dense<0.000000e+00> : vector<16x128xf32>
    %762 = vector.multi_reduction <add>, %761, %cst_130 [0] : vector<4x16x128xf32> to vector<16x128xf32>
    %cst_131 = arith.constant 2.500000e-01 : f32
    %763 = vector.broadcast %cst_131 : f32 to vector<16x128xf32>
    %764 = arith.mulf %762, %763 : vector<16x128xf32>
    %cst_132 = arith.constant 0.000000e+00 : f32
    %765 = vector.broadcast %cst_132 : f32 to vector<16x128xf32>
    %766 = arith.subf %765, %764 : vector<16x128xf32>
    %767 = arith.subf %57, %1 : vector<4x16x128xf32>
    %768 = arith.mulf %767, %654 : vector<4x16x128xf32>
    %769 = arith.mulf %768, %768 : vector<4x16x128xf32>
    %cst_133 = arith.constant dense<0.000000e+00> : vector<16x128xf32>
    %770 = vector.multi_reduction <add>, %769, %cst_133 [0] : vector<4x16x128xf32> to vector<16x128xf32>
    %cst_134 = arith.constant 2.500000e-01 : f32
    %771 = vector.broadcast %cst_134 : f32 to vector<16x128xf32>
    %772 = arith.mulf %770, %771 : vector<16x128xf32>
    %cst_135 = arith.constant 0.000000e+00 : f32
    %773 = vector.broadcast %cst_135 : f32 to vector<16x128xf32>
    %774 = arith.subf %773, %772 : vector<16x128xf32>
    %775 = arith.subf %165, %1 : vector<4x16x128xf32>
    %776 = arith.mulf %775, %654 : vector<4x16x128xf32>
    %777 = arith.mulf %776, %776 : vector<4x16x128xf32>
    %cst_136 = arith.constant dense<0.000000e+00> : vector<16x128xf32>
    %778 = vector.multi_reduction <add>, %777, %cst_136 [0] : vector<4x16x128xf32> to vector<16x128xf32>
    %cst_137 = arith.constant 2.500000e-01 : f32
    %779 = vector.broadcast %cst_137 : f32 to vector<16x128xf32>
    %780 = arith.mulf %778, %779 : vector<16x128xf32>
    %cst_138 = arith.constant 0.000000e+00 : f32
    %781 = vector.broadcast %cst_138 : f32 to vector<16x128xf32>
    %782 = arith.subf %781, %780 : vector<16x128xf32>
    %783 = arith.maximumf %662, %670 : vector<16x128xf32>
    %784 = arith.maximumf %212, %241 : vector<16x128xf32>
    %785 = arith.maximumf %783, %678 : vector<16x128xf32>
    %786 = arith.maximumf %784, %270 : vector<16x128xf32>
    %787 = arith.maximumf %785, %686 : vector<16x128xf32>
    %788 = arith.maximumf %786, %299 : vector<16x128xf32>
    %789 = arith.maximumf %787, %694 : vector<16x128xf32>
    %790 = arith.maximumf %788, %328 : vector<16x128xf32>
    %791 = arith.maximumf %789, %702 : vector<16x128xf32>
    %792 = arith.maximumf %790, %357 : vector<16x128xf32>
    %793 = arith.maximumf %791, %710 : vector<16x128xf32>
    %794 = arith.maximumf %792, %386 : vector<16x128xf32>
    %795 = arith.maximumf %793, %718 : vector<16x128xf32>
    %796 = arith.maximumf %794, %415 : vector<16x128xf32>
    %797 = arith.maximumf %795, %726 : vector<16x128xf32>
    %798 = arith.maximumf %796, %444 : vector<16x128xf32>
    %799 = arith.maximumf %797, %734 : vector<16x128xf32>
    %800 = arith.maximumf %798, %473 : vector<16x128xf32>
    %801 = arith.maximumf %799, %742 : vector<16x128xf32>
    %802 = arith.maximumf %800, %502 : vector<16x128xf32>
    %803 = arith.maximumf %801, %750 : vector<16x128xf32>
    %804 = arith.maximumf %802, %531 : vector<16x128xf32>
    %805 = arith.maximumf %803, %758 : vector<16x128xf32>
    %806 = arith.maximumf %804, %560 : vector<16x128xf32>
    %807 = arith.maximumf %805, %766 : vector<16x128xf32>
    %808 = arith.maximumf %806, %589 : vector<16x128xf32>
    %809 = arith.maximumf %807, %774 : vector<16x128xf32>
    %810 = arith.maximumf %808, %618 : vector<16x128xf32>
    %811 = arith.maximumf %809, %782 : vector<16x128xf32>
    %812 = arith.maximumf %810, %647 : vector<16x128xf32>
    %813 = arith.subf %662, %811 : vector<16x128xf32>
    %814 = math.exp %813 : vector<16x128xf32>
    %815 = arith.subf %212, %812 : vector<16x128xf32>
    %816 = math.exp %815 : vector<16x128xf32>
    %817 = arith.subf %670, %811 : vector<16x128xf32>
    %818 = math.exp %817 : vector<16x128xf32>
    %819 = arith.addf %814, %818 : vector<16x128xf32>
    %820 = arith.subf %241, %812 : vector<16x128xf32>
    %821 = math.exp %820 : vector<16x128xf32>
    %822 = arith.addf %816, %821 : vector<16x128xf32>
    %823 = arith.subf %678, %811 : vector<16x128xf32>
    %824 = math.exp %823 : vector<16x128xf32>
    %825 = arith.addf %819, %824 : vector<16x128xf32>
    %826 = arith.subf %270, %812 : vector<16x128xf32>
    %827 = math.exp %826 : vector<16x128xf32>
    %828 = arith.addf %822, %827 : vector<16x128xf32>
    %829 = arith.subf %686, %811 : vector<16x128xf32>
    %830 = math.exp %829 : vector<16x128xf32>
    %831 = arith.addf %825, %830 : vector<16x128xf32>
    %832 = arith.subf %299, %812 : vector<16x128xf32>
    %833 = math.exp %832 : vector<16x128xf32>
    %834 = arith.addf %828, %833 : vector<16x128xf32>
    %835 = arith.subf %694, %811 : vector<16x128xf32>
    %836 = math.exp %835 : vector<16x128xf32>
    %837 = arith.addf %831, %836 : vector<16x128xf32>
    %838 = arith.subf %328, %812 : vector<16x128xf32>
    %839 = math.exp %838 : vector<16x128xf32>
    %840 = arith.addf %834, %839 : vector<16x128xf32>
    %841 = arith.subf %702, %811 : vector<16x128xf32>
    %842 = math.exp %841 : vector<16x128xf32>
    %843 = arith.addf %837, %842 : vector<16x128xf32>
    %844 = arith.subf %357, %812 : vector<16x128xf32>
    %845 = math.exp %844 : vector<16x128xf32>
    %846 = arith.addf %840, %845 : vector<16x128xf32>
    %847 = arith.subf %710, %811 : vector<16x128xf32>
    %848 = math.exp %847 : vector<16x128xf32>
    %849 = arith.addf %843, %848 : vector<16x128xf32>
    %850 = arith.subf %386, %812 : vector<16x128xf32>
    %851 = math.exp %850 : vector<16x128xf32>
    %852 = arith.addf %846, %851 : vector<16x128xf32>
    %853 = arith.subf %718, %811 : vector<16x128xf32>
    %854 = math.exp %853 : vector<16x128xf32>
    %855 = arith.addf %849, %854 : vector<16x128xf32>
    %856 = arith.subf %415, %812 : vector<16x128xf32>
    %857 = math.exp %856 : vector<16x128xf32>
    %858 = arith.addf %852, %857 : vector<16x128xf32>
    %859 = arith.subf %726, %811 : vector<16x128xf32>
    %860 = math.exp %859 : vector<16x128xf32>
    %861 = arith.addf %855, %860 : vector<16x128xf32>
    %862 = arith.subf %444, %812 : vector<16x128xf32>
    %863 = math.exp %862 : vector<16x128xf32>
    %864 = arith.addf %858, %863 : vector<16x128xf32>
    %865 = arith.subf %734, %811 : vector<16x128xf32>
    %866 = math.exp %865 : vector<16x128xf32>
    %867 = arith.addf %861, %866 : vector<16x128xf32>
    %868 = arith.subf %473, %812 : vector<16x128xf32>
    %869 = math.exp %868 : vector<16x128xf32>
    %870 = arith.addf %864, %869 : vector<16x128xf32>
    %871 = arith.subf %742, %811 : vector<16x128xf32>
    %872 = math.exp %871 : vector<16x128xf32>
    %873 = arith.addf %867, %872 : vector<16x128xf32>
    %874 = arith.subf %502, %812 : vector<16x128xf32>
    %875 = math.exp %874 : vector<16x128xf32>
    %876 = arith.addf %870, %875 : vector<16x128xf32>
    %877 = arith.subf %750, %811 : vector<16x128xf32>
    %878 = math.exp %877 : vector<16x128xf32>
    %879 = arith.addf %873, %878 : vector<16x128xf32>
    %880 = arith.subf %531, %812 : vector<16x128xf32>
    %881 = math.exp %880 : vector<16x128xf32>
    %882 = arith.addf %876, %881 : vector<16x128xf32>
    %883 = arith.subf %758, %811 : vector<16x128xf32>
    %884 = math.exp %883 : vector<16x128xf32>
    %885 = arith.addf %879, %884 : vector<16x128xf32>
    %886 = arith.subf %560, %812 : vector<16x128xf32>
    %887 = math.exp %886 : vector<16x128xf32>
    %888 = arith.addf %882, %887 : vector<16x128xf32>
    %889 = arith.subf %766, %811 : vector<16x128xf32>
    %890 = math.exp %889 : vector<16x128xf32>
    %891 = arith.addf %885, %890 : vector<16x128xf32>
    %892 = arith.subf %589, %812 : vector<16x128xf32>
    %893 = math.exp %892 : vector<16x128xf32>
    %894 = arith.addf %888, %893 : vector<16x128xf32>
    %895 = arith.subf %774, %811 : vector<16x128xf32>
    %896 = math.exp %895 : vector<16x128xf32>
    %897 = arith.addf %891, %896 : vector<16x128xf32>
    %898 = arith.subf %618, %812 : vector<16x128xf32>
    %899 = math.exp %898 : vector<16x128xf32>
    %900 = arith.addf %894, %899 : vector<16x128xf32>
    %901 = arith.subf %782, %811 : vector<16x128xf32>
    %902 = math.exp %901 : vector<16x128xf32>
    %903 = arith.addf %897, %902 : vector<16x128xf32>
    %904 = arith.subf %647, %812 : vector<16x128xf32>
    %905 = math.exp %904 : vector<16x128xf32>
    %906 = arith.addf %900, %905 : vector<16x128xf32>
    %907 = arith.divf %906, %903 : vector<16x128xf32>
    %908 = arith.subf %662, %811 : vector<16x128xf32>
    %909 = arith.subf %212, %812 : vector<16x128xf32>
    %910 = arith.subf %908, %909 : vector<16x128xf32>
    %911 = math.exp %910 : vector<16x128xf32>
    %912 = arith.mulf %911, %907 : vector<16x128xf32>
    %913 = arith.subf %670, %811 : vector<16x128xf32>
    %914 = arith.subf %241, %812 : vector<16x128xf32>
    %915 = arith.subf %913, %914 : vector<16x128xf32>
    %916 = math.exp %915 : vector<16x128xf32>
    %917 = arith.mulf %916, %907 : vector<16x128xf32>
    %918 = arith.subf %678, %811 : vector<16x128xf32>
    %919 = arith.subf %270, %812 : vector<16x128xf32>
    %920 = arith.subf %918, %919 : vector<16x128xf32>
    %921 = math.exp %920 : vector<16x128xf32>
    %922 = arith.mulf %921, %907 : vector<16x128xf32>
    %923 = arith.subf %686, %811 : vector<16x128xf32>
    %924 = arith.subf %299, %812 : vector<16x128xf32>
    %925 = arith.subf %923, %924 : vector<16x128xf32>
    %926 = math.exp %925 : vector<16x128xf32>
    %927 = arith.mulf %926, %907 : vector<16x128xf32>
    %928 = arith.subf %694, %811 : vector<16x128xf32>
    %929 = arith.subf %328, %812 : vector<16x128xf32>
    %930 = arith.subf %928, %929 : vector<16x128xf32>
    %931 = math.exp %930 : vector<16x128xf32>
    %932 = arith.mulf %931, %907 : vector<16x128xf32>
    %933 = arith.subf %702, %811 : vector<16x128xf32>
    %934 = arith.subf %357, %812 : vector<16x128xf32>
    %935 = arith.subf %933, %934 : vector<16x128xf32>
    %936 = math.exp %935 : vector<16x128xf32>
    %937 = arith.mulf %936, %907 : vector<16x128xf32>
    %938 = arith.subf %710, %811 : vector<16x128xf32>
    %939 = arith.subf %386, %812 : vector<16x128xf32>
    %940 = arith.subf %938, %939 : vector<16x128xf32>
    %941 = math.exp %940 : vector<16x128xf32>
    %942 = arith.mulf %941, %907 : vector<16x128xf32>
    %943 = arith.subf %718, %811 : vector<16x128xf32>
    %944 = arith.subf %415, %812 : vector<16x128xf32>
    %945 = arith.subf %943, %944 : vector<16x128xf32>
    %946 = math.exp %945 : vector<16x128xf32>
    %947 = arith.mulf %946, %907 : vector<16x128xf32>
    %948 = arith.subf %726, %811 : vector<16x128xf32>
    %949 = arith.subf %444, %812 : vector<16x128xf32>
    %950 = arith.subf %948, %949 : vector<16x128xf32>
    %951 = math.exp %950 : vector<16x128xf32>
    %952 = arith.mulf %951, %907 : vector<16x128xf32>
    %953 = arith.subf %734, %811 : vector<16x128xf32>
    %954 = arith.subf %473, %812 : vector<16x128xf32>
    %955 = arith.subf %953, %954 : vector<16x128xf32>
    %956 = math.exp %955 : vector<16x128xf32>
    %957 = arith.mulf %956, %907 : vector<16x128xf32>
    %958 = arith.subf %742, %811 : vector<16x128xf32>
    %959 = arith.subf %502, %812 : vector<16x128xf32>
    %960 = arith.subf %958, %959 : vector<16x128xf32>
    %961 = math.exp %960 : vector<16x128xf32>
    %962 = arith.mulf %961, %907 : vector<16x128xf32>
    %963 = arith.subf %750, %811 : vector<16x128xf32>
    %964 = arith.subf %531, %812 : vector<16x128xf32>
    %965 = arith.subf %963, %964 : vector<16x128xf32>
    %966 = math.exp %965 : vector<16x128xf32>
    %967 = arith.mulf %966, %907 : vector<16x128xf32>
    %968 = arith.subf %758, %811 : vector<16x128xf32>
    %969 = arith.subf %560, %812 : vector<16x128xf32>
    %970 = arith.subf %968, %969 : vector<16x128xf32>
    %971 = math.exp %970 : vector<16x128xf32>
    %972 = arith.mulf %971, %907 : vector<16x128xf32>
    %973 = arith.subf %766, %811 : vector<16x128xf32>
    %974 = arith.subf %589, %812 : vector<16x128xf32>
    %975 = arith.subf %973, %974 : vector<16x128xf32>
    %976 = math.exp %975 : vector<16x128xf32>
    %977 = arith.mulf %976, %907 : vector<16x128xf32>
    %978 = arith.subf %774, %811 : vector<16x128xf32>
    %979 = arith.subf %618, %812 : vector<16x128xf32>
    %980 = arith.subf %978, %979 : vector<16x128xf32>
    %981 = math.exp %980 : vector<16x128xf32>
    %982 = arith.mulf %981, %907 : vector<16x128xf32>
    %983 = arith.subf %782, %811 : vector<16x128xf32>
    %984 = arith.subf %647, %812 : vector<16x128xf32>
    %985 = arith.subf %983, %984 : vector<16x128xf32>
    %986 = math.exp %985 : vector<16x128xf32>
    %987 = arith.mulf %986, %907 : vector<16x128xf32>
    %988 = vector.shape_cast %3 : vector<3x16x128xf32> to vector<48x128xf32>
    %c2_i32_139 = arith.constant 2 : i32
    %989 = tpu.dynamic_rotate %988 by %c2_i32_139 dim 0 : vector<48x128xf32>, i32 -> vector<48x128xf32>
    %990 = vector.shape_cast %989 : vector<48x128xf32> to vector<3x16x128xf32>
    %991 = vector.extract_strided_slice %3 {offsets = [0, 0, 0], sizes = [3, 1, 128], strides = [1, 1, 1]} : vector<3x16x128xf32> to vector<3x1x128xf32>
    %992 = vector.shape_cast %7 : vector<16x128xi1> to vector<1x16x128xi1>
    %993 = vector.broadcast %992 : vector<1x16x128xi1> to vector<3x16x128xi1>
    %994 = vector.shape_cast %991 : vector<3x1x128xf32> to vector<3x1x128xf32>
    %995 = vector.broadcast %994 : vector<3x1x128xf32> to vector<3x16x128xf32>
    %996 = arith.select %993, %995, %990 : vector<3x16x128xi1>, vector<3x16x128xf32>
    %997 = vector.shape_cast %3 : vector<3x16x128xf32> to vector<48x128xf32>
    %c1_i32_140 = arith.constant 1 : i32
    %998 = tpu.dynamic_rotate %997 by %c1_i32_140 dim 0 : vector<48x128xf32>, i32 -> vector<48x128xf32>
    %999 = vector.shape_cast %998 : vector<48x128xf32> to vector<3x16x128xf32>
    %1000 = vector.extract_strided_slice %3 {offsets = [0, 0, 0], sizes = [3, 1, 128], strides = [1, 1, 1]} : vector<3x16x128xf32> to vector<3x1x128xf32>
    %1001 = vector.shape_cast %9 : vector<16x128xi1> to vector<1x16x128xi1>
    %1002 = vector.broadcast %1001 : vector<1x16x128xi1> to vector<3x16x128xi1>
    %1003 = vector.shape_cast %1000 : vector<3x1x128xf32> to vector<3x1x128xf32>
    %1004 = vector.broadcast %1003 : vector<3x1x128xf32> to vector<3x16x128xf32>
    %1005 = arith.select %1002, %1004, %999 : vector<3x16x128xi1>, vector<3x16x128xf32>
    %1006 = vector.shape_cast %3 : vector<3x16x128xf32> to vector<48x128xf32>
    %c47_i32 = arith.constant 47 : i32
    %1007 = tpu.dynamic_rotate %1006 by %c47_i32 dim 0 : vector<48x128xf32>, i32 -> vector<48x128xf32>
    %1008 = vector.shape_cast %1007 : vector<48x128xf32> to vector<3x16x128xf32>
    %1009 = vector.extract_strided_slice %3 {offsets = [0, 15, 0], sizes = [3, 1, 128], strides = [1, 1, 1]} : vector<3x16x128xf32> to vector<3x1x128xf32>
    %1010 = vector.shape_cast %11 : vector<16x128xi1> to vector<1x16x128xi1>
    %1011 = vector.broadcast %1010 : vector<1x16x128xi1> to vector<3x16x128xi1>
    %1012 = vector.shape_cast %1009 : vector<3x1x128xf32> to vector<3x1x128xf32>
    %1013 = vector.broadcast %1012 : vector<3x1x128xf32> to vector<3x16x128xf32>
    %1014 = arith.select %1011, %1013, %1008 : vector<3x16x128xi1>, vector<3x16x128xf32>
    %1015 = vector.shape_cast %3 : vector<3x16x128xf32> to vector<48x128xf32>
    %c46_i32 = arith.constant 46 : i32
    %1016 = tpu.dynamic_rotate %1015 by %c46_i32 dim 0 : vector<48x128xf32>, i32 -> vector<48x128xf32>
    %1017 = vector.shape_cast %1016 : vector<48x128xf32> to vector<3x16x128xf32>
    %1018 = vector.extract_strided_slice %3 {offsets = [0, 15, 0], sizes = [3, 1, 128], strides = [1, 1, 1]} : vector<3x16x128xf32> to vector<3x1x128xf32>
    %1019 = vector.shape_cast %13 : vector<16x128xi1> to vector<1x16x128xi1>
    %1020 = vector.broadcast %1019 : vector<1x16x128xi1> to vector<3x16x128xi1>
    %1021 = vector.shape_cast %1018 : vector<3x1x128xf32> to vector<3x1x128xf32>
    %1022 = vector.broadcast %1021 : vector<3x1x128xf32> to vector<3x16x128xf32>
    %1023 = arith.select %1020, %1022, %1017 : vector<3x16x128xi1>, vector<3x16x128xf32>
    %1024 = vector.shape_cast %1005 : vector<3x16x128xf32> to vector<48x128xf32>
    %c1_i32_141 = arith.constant 1 : i32
    %1025 = tpu.dynamic_rotate %1024 by %c1_i32_141 dim 1 : vector<48x128xf32>, i32 -> vector<48x128xf32>
    %1026 = vector.shape_cast %1025 : vector<48x128xf32> to vector<3x16x128xf32>
    %1027 = vector.extract_strided_slice %1005 {offsets = [0, 0, 0], sizes = [3, 16, 1], strides = [1, 1, 1]} : vector<3x16x128xf32> to vector<3x16x1xf32>
    %1028 = vector.shape_cast %17 : vector<16x128xi1> to vector<1x16x128xi1>
    %1029 = vector.broadcast %1028 : vector<1x16x128xi1> to vector<3x16x128xi1>
    %1030 = vector.shape_cast %1027 : vector<3x16x1xf32> to vector<3x16x1xf32>
    %1031 = vector.broadcast %1030 : vector<3x16x1xf32> to vector<3x16x128xf32>
    %1032 = arith.select %1029, %1031, %1026 : vector<3x16x128xi1>, vector<3x16x128xf32>
    %1033 = vector.shape_cast %912 : vector<16x128xf32> to vector<1x16x128xf32>
    %1034 = vector.broadcast %1033 : vector<1x16x128xf32> to vector<3x16x128xf32>
    %1035 = arith.mulf %1032, %1034 : vector<3x16x128xf32>
    %1036 = vector.shape_cast %917 : vector<16x128xf32> to vector<1x16x128xf32>
    %1037 = vector.broadcast %1036 : vector<1x16x128xf32> to vector<3x16x128xf32>
    %1038 = arith.mulf %1005, %1037 : vector<3x16x128xf32>
    %1039 = arith.addf %1035, %1038 : vector<3x16x128xf32>
    %1040 = vector.shape_cast %1005 : vector<3x16x128xf32> to vector<48x128xf32>
    %c127_i32_142 = arith.constant 127 : i32
    %1041 = tpu.dynamic_rotate %1040 by %c127_i32_142 dim 1 : vector<48x128xf32>, i32 -> vector<48x128xf32>
    %1042 = vector.shape_cast %1041 : vector<48x128xf32> to vector<3x16x128xf32>
    %1043 = vector.extract_strided_slice %1005 {offsets = [0, 0, 127], sizes = [3, 16, 1], strides = [1, 1, 1]} : vector<3x16x128xf32> to vector<3x16x1xf32>
    %1044 = vector.shape_cast %19 : vector<16x128xi1> to vector<1x16x128xi1>
    %1045 = vector.broadcast %1044 : vector<1x16x128xi1> to vector<3x16x128xi1>
    %1046 = vector.shape_cast %1043 : vector<3x16x1xf32> to vector<3x16x1xf32>
    %1047 = vector.broadcast %1046 : vector<3x16x1xf32> to vector<3x16x128xf32>
    %1048 = arith.select %1045, %1047, %1042 : vector<3x16x128xi1>, vector<3x16x128xf32>
    %1049 = vector.shape_cast %922 : vector<16x128xf32> to vector<1x16x128xf32>
    %1050 = vector.broadcast %1049 : vector<1x16x128xf32> to vector<3x16x128xf32>
    %1051 = arith.mulf %1048, %1050 : vector<3x16x128xf32>
    %1052 = arith.addf %1039, %1051 : vector<3x16x128xf32>
    %1053 = vector.shape_cast %3 : vector<3x16x128xf32> to vector<48x128xf32>
    %c1_i32_143 = arith.constant 1 : i32
    %1054 = tpu.dynamic_rotate %1053 by %c1_i32_143 dim 1 : vector<48x128xf32>, i32 -> vector<48x128xf32>
    %1055 = vector.shape_cast %1054 : vector<48x128xf32> to vector<3x16x128xf32>
    %1056 = vector.extract_strided_slice %3 {offsets = [0, 0, 0], sizes = [3, 16, 1], strides = [1, 1, 1]} : vector<3x16x128xf32> to vector<3x16x1xf32>
    %1057 = vector.shape_cast %17 : vector<16x128xi1> to vector<1x16x128xi1>
    %1058 = vector.broadcast %1057 : vector<1x16x128xi1> to vector<3x16x128xi1>
    %1059 = vector.shape_cast %1056 : vector<3x16x1xf32> to vector<3x16x1xf32>
    %1060 = vector.broadcast %1059 : vector<3x16x1xf32> to vector<3x16x128xf32>
    %1061 = arith.select %1058, %1060, %1055 : vector<3x16x128xi1>, vector<3x16x128xf32>
    %1062 = vector.shape_cast %927 : vector<16x128xf32> to vector<1x16x128xf32>
    %1063 = vector.broadcast %1062 : vector<1x16x128xf32> to vector<3x16x128xf32>
    %1064 = arith.mulf %1061, %1063 : vector<3x16x128xf32>
    %1065 = arith.addf %1052, %1064 : vector<3x16x128xf32>
    %1066 = vector.shape_cast %3 : vector<3x16x128xf32> to vector<48x128xf32>
    %c127_i32_144 = arith.constant 127 : i32
    %1067 = tpu.dynamic_rotate %1066 by %c127_i32_144 dim 1 : vector<48x128xf32>, i32 -> vector<48x128xf32>
    %1068 = vector.shape_cast %1067 : vector<48x128xf32> to vector<3x16x128xf32>
    %1069 = vector.extract_strided_slice %3 {offsets = [0, 0, 127], sizes = [3, 16, 1], strides = [1, 1, 1]} : vector<3x16x128xf32> to vector<3x16x1xf32>
    %1070 = vector.shape_cast %19 : vector<16x128xi1> to vector<1x16x128xi1>
    %1071 = vector.broadcast %1070 : vector<1x16x128xi1> to vector<3x16x128xi1>
    %1072 = vector.shape_cast %1069 : vector<3x16x1xf32> to vector<3x16x1xf32>
    %1073 = vector.broadcast %1072 : vector<3x16x1xf32> to vector<3x16x128xf32>
    %1074 = arith.select %1071, %1073, %1068 : vector<3x16x128xi1>, vector<3x16x128xf32>
    %1075 = vector.shape_cast %932 : vector<16x128xf32> to vector<1x16x128xf32>
    %1076 = vector.broadcast %1075 : vector<1x16x128xf32> to vector<3x16x128xf32>
    %1077 = arith.mulf %1074, %1076 : vector<3x16x128xf32>
    %1078 = arith.addf %1065, %1077 : vector<3x16x128xf32>
    %1079 = vector.shape_cast %1014 : vector<3x16x128xf32> to vector<48x128xf32>
    %c1_i32_145 = arith.constant 1 : i32
    %1080 = tpu.dynamic_rotate %1079 by %c1_i32_145 dim 1 : vector<48x128xf32>, i32 -> vector<48x128xf32>
    %1081 = vector.shape_cast %1080 : vector<48x128xf32> to vector<3x16x128xf32>
    %1082 = vector.extract_strided_slice %1014 {offsets = [0, 0, 0], sizes = [3, 16, 1], strides = [1, 1, 1]} : vector<3x16x128xf32> to vector<3x16x1xf32>
    %1083 = vector.shape_cast %17 : vector<16x128xi1> to vector<1x16x128xi1>
    %1084 = vector.broadcast %1083 : vector<1x16x128xi1> to vector<3x16x128xi1>
    %1085 = vector.shape_cast %1082 : vector<3x16x1xf32> to vector<3x16x1xf32>
    %1086 = vector.broadcast %1085 : vector<3x16x1xf32> to vector<3x16x128xf32>
    %1087 = arith.select %1084, %1086, %1081 : vector<3x16x128xi1>, vector<3x16x128xf32>
    %1088 = vector.shape_cast %937 : vector<16x128xf32> to vector<1x16x128xf32>
    %1089 = vector.broadcast %1088 : vector<1x16x128xf32> to vector<3x16x128xf32>
    %1090 = arith.mulf %1087, %1089 : vector<3x16x128xf32>
    %1091 = arith.addf %1078, %1090 : vector<3x16x128xf32>
    %1092 = vector.shape_cast %942 : vector<16x128xf32> to vector<1x16x128xf32>
    %1093 = vector.broadcast %1092 : vector<1x16x128xf32> to vector<3x16x128xf32>
    %1094 = arith.mulf %1014, %1093 : vector<3x16x128xf32>
    %1095 = arith.addf %1091, %1094 : vector<3x16x128xf32>
    %1096 = vector.shape_cast %1014 : vector<3x16x128xf32> to vector<48x128xf32>
    %c127_i32_146 = arith.constant 127 : i32
    %1097 = tpu.dynamic_rotate %1096 by %c127_i32_146 dim 1 : vector<48x128xf32>, i32 -> vector<48x128xf32>
    %1098 = vector.shape_cast %1097 : vector<48x128xf32> to vector<3x16x128xf32>
    %1099 = vector.extract_strided_slice %1014 {offsets = [0, 0, 127], sizes = [3, 16, 1], strides = [1, 1, 1]} : vector<3x16x128xf32> to vector<3x16x1xf32>
    %1100 = vector.shape_cast %19 : vector<16x128xi1> to vector<1x16x128xi1>
    %1101 = vector.broadcast %1100 : vector<1x16x128xi1> to vector<3x16x128xi1>
    %1102 = vector.shape_cast %1099 : vector<3x16x1xf32> to vector<3x16x1xf32>
    %1103 = vector.broadcast %1102 : vector<3x16x1xf32> to vector<3x16x128xf32>
    %1104 = arith.select %1101, %1103, %1098 : vector<3x16x128xi1>, vector<3x16x128xf32>
    %1105 = vector.shape_cast %947 : vector<16x128xf32> to vector<1x16x128xf32>
    %1106 = vector.broadcast %1105 : vector<1x16x128xf32> to vector<3x16x128xf32>
    %1107 = arith.mulf %1104, %1106 : vector<3x16x128xf32>
    %1108 = arith.addf %1095, %1107 : vector<3x16x128xf32>
    %1109 = vector.shape_cast %996 : vector<3x16x128xf32> to vector<48x128xf32>
    %c2_i32_147 = arith.constant 2 : i32
    %1110 = tpu.dynamic_rotate %1109 by %c2_i32_147 dim 1 : vector<48x128xf32>, i32 -> vector<48x128xf32>
    %1111 = vector.shape_cast %1110 : vector<48x128xf32> to vector<3x16x128xf32>
    %1112 = vector.extract_strided_slice %996 {offsets = [0, 0, 0], sizes = [3, 16, 1], strides = [1, 1, 1]} : vector<3x16x128xf32> to vector<3x16x1xf32>
    %1113 = vector.shape_cast %15 : vector<16x128xi1> to vector<1x16x128xi1>
    %1114 = vector.broadcast %1113 : vector<1x16x128xi1> to vector<3x16x128xi1>
    %1115 = vector.shape_cast %1112 : vector<3x16x1xf32> to vector<3x16x1xf32>
    %1116 = vector.broadcast %1115 : vector<3x16x1xf32> to vector<3x16x128xf32>
    %1117 = arith.select %1114, %1116, %1111 : vector<3x16x128xi1>, vector<3x16x128xf32>
    %1118 = vector.shape_cast %952 : vector<16x128xf32> to vector<1x16x128xf32>
    %1119 = vector.broadcast %1118 : vector<1x16x128xf32> to vector<3x16x128xf32>
    %1120 = arith.mulf %1117, %1119 : vector<3x16x128xf32>
    %1121 = arith.addf %1108, %1120 : vector<3x16x128xf32>
    %1122 = vector.shape_cast %957 : vector<16x128xf32> to vector<1x16x128xf32>
    %1123 = vector.broadcast %1122 : vector<1x16x128xf32> to vector<3x16x128xf32>
    %1124 = arith.mulf %996, %1123 : vector<3x16x128xf32>
    %1125 = arith.addf %1121, %1124 : vector<3x16x128xf32>
    %1126 = vector.shape_cast %996 : vector<3x16x128xf32> to vector<48x128xf32>
    %c126_i32_148 = arith.constant 126 : i32
    %1127 = tpu.dynamic_rotate %1126 by %c126_i32_148 dim 1 : vector<48x128xf32>, i32 -> vector<48x128xf32>
    %1128 = vector.shape_cast %1127 : vector<48x128xf32> to vector<3x16x128xf32>
    %1129 = vector.extract_strided_slice %996 {offsets = [0, 0, 127], sizes = [3, 16, 1], strides = [1, 1, 1]} : vector<3x16x128xf32> to vector<3x16x1xf32>
    %1130 = vector.shape_cast %21 : vector<16x128xi1> to vector<1x16x128xi1>
    %1131 = vector.broadcast %1130 : vector<1x16x128xi1> to vector<3x16x128xi1>
    %1132 = vector.shape_cast %1129 : vector<3x16x1xf32> to vector<3x16x1xf32>
    %1133 = vector.broadcast %1132 : vector<3x16x1xf32> to vector<3x16x128xf32>
    %1134 = arith.select %1131, %1133, %1128 : vector<3x16x128xi1>, vector<3x16x128xf32>
    %1135 = vector.shape_cast %962 : vector<16x128xf32> to vector<1x16x128xf32>
    %1136 = vector.broadcast %1135 : vector<1x16x128xf32> to vector<3x16x128xf32>
    %1137 = arith.mulf %1134, %1136 : vector<3x16x128xf32>
    %1138 = arith.addf %1125, %1137 : vector<3x16x128xf32>
    %1139 = vector.shape_cast %3 : vector<3x16x128xf32> to vector<48x128xf32>
    %c2_i32_149 = arith.constant 2 : i32
    %1140 = tpu.dynamic_rotate %1139 by %c2_i32_149 dim 1 : vector<48x128xf32>, i32 -> vector<48x128xf32>
    %1141 = vector.shape_cast %1140 : vector<48x128xf32> to vector<3x16x128xf32>
    %1142 = vector.extract_strided_slice %3 {offsets = [0, 0, 0], sizes = [3, 16, 1], strides = [1, 1, 1]} : vector<3x16x128xf32> to vector<3x16x1xf32>
    %1143 = vector.shape_cast %15 : vector<16x128xi1> to vector<1x16x128xi1>
    %1144 = vector.broadcast %1143 : vector<1x16x128xi1> to vector<3x16x128xi1>
    %1145 = vector.shape_cast %1142 : vector<3x16x1xf32> to vector<3x16x1xf32>
    %1146 = vector.broadcast %1145 : vector<3x16x1xf32> to vector<3x16x128xf32>
    %1147 = arith.select %1144, %1146, %1141 : vector<3x16x128xi1>, vector<3x16x128xf32>
    %1148 = vector.shape_cast %967 : vector<16x128xf32> to vector<1x16x128xf32>
    %1149 = vector.broadcast %1148 : vector<1x16x128xf32> to vector<3x16x128xf32>
    %1150 = arith.mulf %1147, %1149 : vector<3x16x128xf32>
    %1151 = arith.addf %1138, %1150 : vector<3x16x128xf32>
    %1152 = vector.shape_cast %3 : vector<3x16x128xf32> to vector<48x128xf32>
    %c126_i32_150 = arith.constant 126 : i32
    %1153 = tpu.dynamic_rotate %1152 by %c126_i32_150 dim 1 : vector<48x128xf32>, i32 -> vector<48x128xf32>
    %1154 = vector.shape_cast %1153 : vector<48x128xf32> to vector<3x16x128xf32>
    %1155 = vector.extract_strided_slice %3 {offsets = [0, 0, 127], sizes = [3, 16, 1], strides = [1, 1, 1]} : vector<3x16x128xf32> to vector<3x16x1xf32>
    %1156 = vector.shape_cast %21 : vector<16x128xi1> to vector<1x16x128xi1>
    %1157 = vector.broadcast %1156 : vector<1x16x128xi1> to vector<3x16x128xi1>
    %1158 = vector.shape_cast %1155 : vector<3x16x1xf32> to vector<3x16x1xf32>
    %1159 = vector.broadcast %1158 : vector<3x16x1xf32> to vector<3x16x128xf32>
    %1160 = arith.select %1157, %1159, %1154 : vector<3x16x128xi1>, vector<3x16x128xf32>
    %1161 = vector.shape_cast %972 : vector<16x128xf32> to vector<1x16x128xf32>
    %1162 = vector.broadcast %1161 : vector<1x16x128xf32> to vector<3x16x128xf32>
    %1163 = arith.mulf %1160, %1162 : vector<3x16x128xf32>
    %1164 = arith.addf %1151, %1163 : vector<3x16x128xf32>
    %1165 = vector.shape_cast %1023 : vector<3x16x128xf32> to vector<48x128xf32>
    %c2_i32_151 = arith.constant 2 : i32
    %1166 = tpu.dynamic_rotate %1165 by %c2_i32_151 dim 1 : vector<48x128xf32>, i32 -> vector<48x128xf32>
    %1167 = vector.shape_cast %1166 : vector<48x128xf32> to vector<3x16x128xf32>
    %1168 = vector.extract_strided_slice %1023 {offsets = [0, 0, 0], sizes = [3, 16, 1], strides = [1, 1, 1]} : vector<3x16x128xf32> to vector<3x16x1xf32>
    %1169 = vector.shape_cast %15 : vector<16x128xi1> to vector<1x16x128xi1>
    %1170 = vector.broadcast %1169 : vector<1x16x128xi1> to vector<3x16x128xi1>
    %1171 = vector.shape_cast %1168 : vector<3x16x1xf32> to vector<3x16x1xf32>
    %1172 = vector.broadcast %1171 : vector<3x16x1xf32> to vector<3x16x128xf32>
    %1173 = arith.select %1170, %1172, %1167 : vector<3x16x128xi1>, vector<3x16x128xf32>
    %1174 = vector.shape_cast %977 : vector<16x128xf32> to vector<1x16x128xf32>
    %1175 = vector.broadcast %1174 : vector<1x16x128xf32> to vector<3x16x128xf32>
    %1176 = arith.mulf %1173, %1175 : vector<3x16x128xf32>
    %1177 = arith.addf %1164, %1176 : vector<3x16x128xf32>
    %1178 = vector.shape_cast %982 : vector<16x128xf32> to vector<1x16x128xf32>
    %1179 = vector.broadcast %1178 : vector<1x16x128xf32> to vector<3x16x128xf32>
    %1180 = arith.mulf %1023, %1179 : vector<3x16x128xf32>
    %1181 = arith.addf %1177, %1180 : vector<3x16x128xf32>
    %1182 = vector.shape_cast %1023 : vector<3x16x128xf32> to vector<48x128xf32>
    %c126_i32_152 = arith.constant 126 : i32
    %1183 = tpu.dynamic_rotate %1182 by %c126_i32_152 dim 1 : vector<48x128xf32>, i32 -> vector<48x128xf32>
    %1184 = vector.shape_cast %1183 : vector<48x128xf32> to vector<3x16x128xf32>
    %1185 = vector.extract_strided_slice %1023 {offsets = [0, 0, 127], sizes = [3, 16, 1], strides = [1, 1, 1]} : vector<3x16x128xf32> to vector<3x16x1xf32>
    %1186 = vector.shape_cast %21 : vector<16x128xi1> to vector<1x16x128xi1>
    %1187 = vector.broadcast %1186 : vector<1x16x128xi1> to vector<3x16x128xi1>
    %1188 = vector.shape_cast %1185 : vector<3x16x1xf32> to vector<3x16x1xf32>
    %1189 = vector.broadcast %1188 : vector<3x16x1xf32> to vector<3x16x128xf32>
    %1190 = arith.select %1187, %1189, %1184 : vector<3x16x128xi1>, vector<3x16x128xf32>
    %1191 = vector.shape_cast %987 : vector<16x128xf32> to vector<1x16x128xf32>
    %1192 = vector.broadcast %1191 : vector<1x16x128xf32> to vector<3x16x128xf32>
    %1193 = arith.mulf %1190, %1192 : vector<3x16x128xf32>
    %1194 = arith.addf %1181, %1193 : vector<3x16x128xf32>
    %1195 = vector.shape_cast %1194 : vector<3x16x128xf32> to vector<48x128xf32>
    %c2_i32_153 = arith.constant 2 : i32
    %1196 = tpu.dynamic_rotate %1195 by %c2_i32_153 dim 0 : vector<48x128xf32>, i32 -> vector<48x128xf32>
    %1197 = vector.shape_cast %1196 : vector<48x128xf32> to vector<3x16x128xf32>
    %1198 = vector.extract_strided_slice %1194 {offsets = [0, 0, 0], sizes = [3, 1, 128], strides = [1, 1, 1]} : vector<3x16x128xf32> to vector<3x1x128xf32>
    %1199 = vector.shape_cast %7 : vector<16x128xi1> to vector<1x16x128xi1>
    %1200 = vector.broadcast %1199 : vector<1x16x128xi1> to vector<3x16x128xi1>
    %1201 = vector.shape_cast %1198 : vector<3x1x128xf32> to vector<3x1x128xf32>
    %1202 = vector.broadcast %1201 : vector<3x1x128xf32> to vector<3x16x128xf32>
    %1203 = arith.select %1200, %1202, %1197 : vector<3x16x128xi1>, vector<3x16x128xf32>
    %1204 = vector.shape_cast %1194 : vector<3x16x128xf32> to vector<48x128xf32>
    %c1_i32_154 = arith.constant 1 : i32
    %1205 = tpu.dynamic_rotate %1204 by %c1_i32_154 dim 0 : vector<48x128xf32>, i32 -> vector<48x128xf32>
    %1206 = vector.shape_cast %1205 : vector<48x128xf32> to vector<3x16x128xf32>
    %1207 = vector.extract_strided_slice %1194 {offsets = [0, 0, 0], sizes = [3, 1, 128], strides = [1, 1, 1]} : vector<3x16x128xf32> to vector<3x1x128xf32>
    %1208 = vector.shape_cast %9 : vector<16x128xi1> to vector<1x16x128xi1>
    %1209 = vector.broadcast %1208 : vector<1x16x128xi1> to vector<3x16x128xi1>
    %1210 = vector.shape_cast %1207 : vector<3x1x128xf32> to vector<3x1x128xf32>
    %1211 = vector.broadcast %1210 : vector<3x1x128xf32> to vector<3x16x128xf32>
    %1212 = arith.select %1209, %1211, %1206 : vector<3x16x128xi1>, vector<3x16x128xf32>
    %1213 = vector.shape_cast %1194 : vector<3x16x128xf32> to vector<48x128xf32>
    %c47_i32_155 = arith.constant 47 : i32
    %1214 = tpu.dynamic_rotate %1213 by %c47_i32_155 dim 0 : vector<48x128xf32>, i32 -> vector<48x128xf32>
    %1215 = vector.shape_cast %1214 : vector<48x128xf32> to vector<3x16x128xf32>
    %1216 = vector.extract_strided_slice %1194 {offsets = [0, 15, 0], sizes = [3, 1, 128], strides = [1, 1, 1]} : vector<3x16x128xf32> to vector<3x1x128xf32>
    %1217 = vector.shape_cast %11 : vector<16x128xi1> to vector<1x16x128xi1>
    %1218 = vector.broadcast %1217 : vector<1x16x128xi1> to vector<3x16x128xi1>
    %1219 = vector.shape_cast %1216 : vector<3x1x128xf32> to vector<3x1x128xf32>
    %1220 = vector.broadcast %1219 : vector<3x1x128xf32> to vector<3x16x128xf32>
    %1221 = arith.select %1218, %1220, %1215 : vector<3x16x128xi1>, vector<3x16x128xf32>
    %1222 = vector.shape_cast %1194 : vector<3x16x128xf32> to vector<48x128xf32>
    %c46_i32_156 = arith.constant 46 : i32
    %1223 = tpu.dynamic_rotate %1222 by %c46_i32_156 dim 0 : vector<48x128xf32>, i32 -> vector<48x128xf32>
    %1224 = vector.shape_cast %1223 : vector<48x128xf32> to vector<3x16x128xf32>
    %1225 = vector.extract_strided_slice %1194 {offsets = [0, 15, 0], sizes = [3, 1, 128], strides = [1, 1, 1]} : vector<3x16x128xf32> to vector<3x1x128xf32>
    %1226 = vector.shape_cast %13 : vector<16x128xi1> to vector<1x16x128xi1>
    %1227 = vector.broadcast %1226 : vector<1x16x128xi1> to vector<3x16x128xi1>
    %1228 = vector.shape_cast %1225 : vector<3x1x128xf32> to vector<3x1x128xf32>
    %1229 = vector.broadcast %1228 : vector<3x1x128xf32> to vector<3x16x128xf32>
    %1230 = arith.select %1227, %1229, %1224 : vector<3x16x128xi1>, vector<3x16x128xf32>
    %1231 = vector.shape_cast %1212 : vector<3x16x128xf32> to vector<48x128xf32>
    %c1_i32_157 = arith.constant 1 : i32
    %1232 = tpu.dynamic_rotate %1231 by %c1_i32_157 dim 1 : vector<48x128xf32>, i32 -> vector<48x128xf32>
    %1233 = vector.shape_cast %1232 : vector<48x128xf32> to vector<3x16x128xf32>
    %1234 = vector.extract_strided_slice %1212 {offsets = [0, 0, 0], sizes = [3, 16, 1], strides = [1, 1, 1]} : vector<3x16x128xf32> to vector<3x16x1xf32>
    %1235 = vector.shape_cast %17 : vector<16x128xi1> to vector<1x16x128xi1>
    %1236 = vector.broadcast %1235 : vector<1x16x128xi1> to vector<3x16x128xi1>
    %1237 = vector.shape_cast %1234 : vector<3x16x1xf32> to vector<3x16x1xf32>
    %1238 = vector.broadcast %1237 : vector<3x16x1xf32> to vector<3x16x128xf32>
    %1239 = arith.select %1236, %1238, %1233 : vector<3x16x128xi1>, vector<3x16x128xf32>
    %1240 = vector.shape_cast %912 : vector<16x128xf32> to vector<1x16x128xf32>
    %1241 = vector.broadcast %1240 : vector<1x16x128xf32> to vector<3x16x128xf32>
    %1242 = arith.mulf %1239, %1241 : vector<3x16x128xf32>
    %1243 = vector.shape_cast %917 : vector<16x128xf32> to vector<1x16x128xf32>
    %1244 = vector.broadcast %1243 : vector<1x16x128xf32> to vector<3x16x128xf32>
    %1245 = arith.mulf %1212, %1244 : vector<3x16x128xf32>
    %1246 = arith.addf %1242, %1245 : vector<3x16x128xf32>
    %1247 = vector.shape_cast %1212 : vector<3x16x128xf32> to vector<48x128xf32>
    %c127_i32_158 = arith.constant 127 : i32
    %1248 = tpu.dynamic_rotate %1247 by %c127_i32_158 dim 1 : vector<48x128xf32>, i32 -> vector<48x128xf32>
    %1249 = vector.shape_cast %1248 : vector<48x128xf32> to vector<3x16x128xf32>
    %1250 = vector.extract_strided_slice %1212 {offsets = [0, 0, 127], sizes = [3, 16, 1], strides = [1, 1, 1]} : vector<3x16x128xf32> to vector<3x16x1xf32>
    %1251 = vector.shape_cast %19 : vector<16x128xi1> to vector<1x16x128xi1>
    %1252 = vector.broadcast %1251 : vector<1x16x128xi1> to vector<3x16x128xi1>
    %1253 = vector.shape_cast %1250 : vector<3x16x1xf32> to vector<3x16x1xf32>
    %1254 = vector.broadcast %1253 : vector<3x16x1xf32> to vector<3x16x128xf32>
    %1255 = arith.select %1252, %1254, %1249 : vector<3x16x128xi1>, vector<3x16x128xf32>
    %1256 = vector.shape_cast %922 : vector<16x128xf32> to vector<1x16x128xf32>
    %1257 = vector.broadcast %1256 : vector<1x16x128xf32> to vector<3x16x128xf32>
    %1258 = arith.mulf %1255, %1257 : vector<3x16x128xf32>
    %1259 = arith.addf %1246, %1258 : vector<3x16x128xf32>
    %1260 = vector.shape_cast %1194 : vector<3x16x128xf32> to vector<48x128xf32>
    %c1_i32_159 = arith.constant 1 : i32
    %1261 = tpu.dynamic_rotate %1260 by %c1_i32_159 dim 1 : vector<48x128xf32>, i32 -> vector<48x128xf32>
    %1262 = vector.shape_cast %1261 : vector<48x128xf32> to vector<3x16x128xf32>
    %1263 = vector.extract_strided_slice %1194 {offsets = [0, 0, 0], sizes = [3, 16, 1], strides = [1, 1, 1]} : vector<3x16x128xf32> to vector<3x16x1xf32>
    %1264 = vector.shape_cast %17 : vector<16x128xi1> to vector<1x16x128xi1>
    %1265 = vector.broadcast %1264 : vector<1x16x128xi1> to vector<3x16x128xi1>
    %1266 = vector.shape_cast %1263 : vector<3x16x1xf32> to vector<3x16x1xf32>
    %1267 = vector.broadcast %1266 : vector<3x16x1xf32> to vector<3x16x128xf32>
    %1268 = arith.select %1265, %1267, %1262 : vector<3x16x128xi1>, vector<3x16x128xf32>
    %1269 = vector.shape_cast %927 : vector<16x128xf32> to vector<1x16x128xf32>
    %1270 = vector.broadcast %1269 : vector<1x16x128xf32> to vector<3x16x128xf32>
    %1271 = arith.mulf %1268, %1270 : vector<3x16x128xf32>
    %1272 = arith.addf %1259, %1271 : vector<3x16x128xf32>
    %1273 = vector.shape_cast %1194 : vector<3x16x128xf32> to vector<48x128xf32>
    %c127_i32_160 = arith.constant 127 : i32
    %1274 = tpu.dynamic_rotate %1273 by %c127_i32_160 dim 1 : vector<48x128xf32>, i32 -> vector<48x128xf32>
    %1275 = vector.shape_cast %1274 : vector<48x128xf32> to vector<3x16x128xf32>
    %1276 = vector.extract_strided_slice %1194 {offsets = [0, 0, 127], sizes = [3, 16, 1], strides = [1, 1, 1]} : vector<3x16x128xf32> to vector<3x16x1xf32>
    %1277 = vector.shape_cast %19 : vector<16x128xi1> to vector<1x16x128xi1>
    %1278 = vector.broadcast %1277 : vector<1x16x128xi1> to vector<3x16x128xi1>
    %1279 = vector.shape_cast %1276 : vector<3x16x1xf32> to vector<3x16x1xf32>
    %1280 = vector.broadcast %1279 : vector<3x16x1xf32> to vector<3x16x128xf32>
    %1281 = arith.select %1278, %1280, %1275 : vector<3x16x128xi1>, vector<3x16x128xf32>
    %1282 = vector.shape_cast %932 : vector<16x128xf32> to vector<1x16x128xf32>
    %1283 = vector.broadcast %1282 : vector<1x16x128xf32> to vector<3x16x128xf32>
    %1284 = arith.mulf %1281, %1283 : vector<3x16x128xf32>
    %1285 = arith.addf %1272, %1284 : vector<3x16x128xf32>
    %1286 = vector.shape_cast %1221 : vector<3x16x128xf32> to vector<48x128xf32>
    %c1_i32_161 = arith.constant 1 : i32
    %1287 = tpu.dynamic_rotate %1286 by %c1_i32_161 dim 1 : vector<48x128xf32>, i32 -> vector<48x128xf32>
    %1288 = vector.shape_cast %1287 : vector<48x128xf32> to vector<3x16x128xf32>
    %1289 = vector.extract_strided_slice %1221 {offsets = [0, 0, 0], sizes = [3, 16, 1], strides = [1, 1, 1]} : vector<3x16x128xf32> to vector<3x16x1xf32>
    %1290 = vector.shape_cast %17 : vector<16x128xi1> to vector<1x16x128xi1>
    %1291 = vector.broadcast %1290 : vector<1x16x128xi1> to vector<3x16x128xi1>
    %1292 = vector.shape_cast %1289 : vector<3x16x1xf32> to vector<3x16x1xf32>
    %1293 = vector.broadcast %1292 : vector<3x16x1xf32> to vector<3x16x128xf32>
    %1294 = arith.select %1291, %1293, %1288 : vector<3x16x128xi1>, vector<3x16x128xf32>
    %1295 = vector.shape_cast %937 : vector<16x128xf32> to vector<1x16x128xf32>
    %1296 = vector.broadcast %1295 : vector<1x16x128xf32> to vector<3x16x128xf32>
    %1297 = arith.mulf %1294, %1296 : vector<3x16x128xf32>
    %1298 = arith.addf %1285, %1297 : vector<3x16x128xf32>
    %1299 = vector.shape_cast %942 : vector<16x128xf32> to vector<1x16x128xf32>
    %1300 = vector.broadcast %1299 : vector<1x16x128xf32> to vector<3x16x128xf32>
    %1301 = arith.mulf %1221, %1300 : vector<3x16x128xf32>
    %1302 = arith.addf %1298, %1301 : vector<3x16x128xf32>
    %1303 = vector.shape_cast %1221 : vector<3x16x128xf32> to vector<48x128xf32>
    %c127_i32_162 = arith.constant 127 : i32
    %1304 = tpu.dynamic_rotate %1303 by %c127_i32_162 dim 1 : vector<48x128xf32>, i32 -> vector<48x128xf32>
    %1305 = vector.shape_cast %1304 : vector<48x128xf32> to vector<3x16x128xf32>
    %1306 = vector.extract_strided_slice %1221 {offsets = [0, 0, 127], sizes = [3, 16, 1], strides = [1, 1, 1]} : vector<3x16x128xf32> to vector<3x16x1xf32>
    %1307 = vector.shape_cast %19 : vector<16x128xi1> to vector<1x16x128xi1>
    %1308 = vector.broadcast %1307 : vector<1x16x128xi1> to vector<3x16x128xi1>
    %1309 = vector.shape_cast %1306 : vector<3x16x1xf32> to vector<3x16x1xf32>
    %1310 = vector.broadcast %1309 : vector<3x16x1xf32> to vector<3x16x128xf32>
    %1311 = arith.select %1308, %1310, %1305 : vector<3x16x128xi1>, vector<3x16x128xf32>
    %1312 = vector.shape_cast %947 : vector<16x128xf32> to vector<1x16x128xf32>
    %1313 = vector.broadcast %1312 : vector<1x16x128xf32> to vector<3x16x128xf32>
    %1314 = arith.mulf %1311, %1313 : vector<3x16x128xf32>
    %1315 = arith.addf %1302, %1314 : vector<3x16x128xf32>
    %1316 = vector.shape_cast %1203 : vector<3x16x128xf32> to vector<48x128xf32>
    %c2_i32_163 = arith.constant 2 : i32
    %1317 = tpu.dynamic_rotate %1316 by %c2_i32_163 dim 1 : vector<48x128xf32>, i32 -> vector<48x128xf32>
    %1318 = vector.shape_cast %1317 : vector<48x128xf32> to vector<3x16x128xf32>
    %1319 = vector.extract_strided_slice %1203 {offsets = [0, 0, 0], sizes = [3, 16, 1], strides = [1, 1, 1]} : vector<3x16x128xf32> to vector<3x16x1xf32>
    %1320 = vector.shape_cast %15 : vector<16x128xi1> to vector<1x16x128xi1>
    %1321 = vector.broadcast %1320 : vector<1x16x128xi1> to vector<3x16x128xi1>
    %1322 = vector.shape_cast %1319 : vector<3x16x1xf32> to vector<3x16x1xf32>
    %1323 = vector.broadcast %1322 : vector<3x16x1xf32> to vector<3x16x128xf32>
    %1324 = arith.select %1321, %1323, %1318 : vector<3x16x128xi1>, vector<3x16x128xf32>
    %1325 = vector.shape_cast %952 : vector<16x128xf32> to vector<1x16x128xf32>
    %1326 = vector.broadcast %1325 : vector<1x16x128xf32> to vector<3x16x128xf32>
    %1327 = arith.mulf %1324, %1326 : vector<3x16x128xf32>
    %1328 = arith.addf %1315, %1327 : vector<3x16x128xf32>
    %1329 = vector.shape_cast %957 : vector<16x128xf32> to vector<1x16x128xf32>
    %1330 = vector.broadcast %1329 : vector<1x16x128xf32> to vector<3x16x128xf32>
    %1331 = arith.mulf %1203, %1330 : vector<3x16x128xf32>
    %1332 = arith.addf %1328, %1331 : vector<3x16x128xf32>
    %1333 = vector.shape_cast %1203 : vector<3x16x128xf32> to vector<48x128xf32>
    %c126_i32_164 = arith.constant 126 : i32
    %1334 = tpu.dynamic_rotate %1333 by %c126_i32_164 dim 1 : vector<48x128xf32>, i32 -> vector<48x128xf32>
    %1335 = vector.shape_cast %1334 : vector<48x128xf32> to vector<3x16x128xf32>
    %1336 = vector.extract_strided_slice %1203 {offsets = [0, 0, 127], sizes = [3, 16, 1], strides = [1, 1, 1]} : vector<3x16x128xf32> to vector<3x16x1xf32>
    %1337 = vector.shape_cast %21 : vector<16x128xi1> to vector<1x16x128xi1>
    %1338 = vector.broadcast %1337 : vector<1x16x128xi1> to vector<3x16x128xi1>
    %1339 = vector.shape_cast %1336 : vector<3x16x1xf32> to vector<3x16x1xf32>
    %1340 = vector.broadcast %1339 : vector<3x16x1xf32> to vector<3x16x128xf32>
    %1341 = arith.select %1338, %1340, %1335 : vector<3x16x128xi1>, vector<3x16x128xf32>
    %1342 = vector.shape_cast %962 : vector<16x128xf32> to vector<1x16x128xf32>
    %1343 = vector.broadcast %1342 : vector<1x16x128xf32> to vector<3x16x128xf32>
    %1344 = arith.mulf %1341, %1343 : vector<3x16x128xf32>
    %1345 = arith.addf %1332, %1344 : vector<3x16x128xf32>
    %1346 = vector.shape_cast %1194 : vector<3x16x128xf32> to vector<48x128xf32>
    %c2_i32_165 = arith.constant 2 : i32
    %1347 = tpu.dynamic_rotate %1346 by %c2_i32_165 dim 1 : vector<48x128xf32>, i32 -> vector<48x128xf32>
    %1348 = vector.shape_cast %1347 : vector<48x128xf32> to vector<3x16x128xf32>
    %1349 = vector.extract_strided_slice %1194 {offsets = [0, 0, 0], sizes = [3, 16, 1], strides = [1, 1, 1]} : vector<3x16x128xf32> to vector<3x16x1xf32>
    %1350 = vector.shape_cast %15 : vector<16x128xi1> to vector<1x16x128xi1>
    %1351 = vector.broadcast %1350 : vector<1x16x128xi1> to vector<3x16x128xi1>
    %1352 = vector.shape_cast %1349 : vector<3x16x1xf32> to vector<3x16x1xf32>
    %1353 = vector.broadcast %1352 : vector<3x16x1xf32> to vector<3x16x128xf32>
    %1354 = arith.select %1351, %1353, %1348 : vector<3x16x128xi1>, vector<3x16x128xf32>
    %1355 = vector.shape_cast %967 : vector<16x128xf32> to vector<1x16x128xf32>
    %1356 = vector.broadcast %1355 : vector<1x16x128xf32> to vector<3x16x128xf32>
    %1357 = arith.mulf %1354, %1356 : vector<3x16x128xf32>
    %1358 = arith.addf %1345, %1357 : vector<3x16x128xf32>
    %1359 = vector.shape_cast %1194 : vector<3x16x128xf32> to vector<48x128xf32>
    %c126_i32_166 = arith.constant 126 : i32
    %1360 = tpu.dynamic_rotate %1359 by %c126_i32_166 dim 1 : vector<48x128xf32>, i32 -> vector<48x128xf32>
    %1361 = vector.shape_cast %1360 : vector<48x128xf32> to vector<3x16x128xf32>
    %1362 = vector.extract_strided_slice %1194 {offsets = [0, 0, 127], sizes = [3, 16, 1], strides = [1, 1, 1]} : vector<3x16x128xf32> to vector<3x16x1xf32>
    %1363 = vector.shape_cast %21 : vector<16x128xi1> to vector<1x16x128xi1>
    %1364 = vector.broadcast %1363 : vector<1x16x128xi1> to vector<3x16x128xi1>
    %1365 = vector.shape_cast %1362 : vector<3x16x1xf32> to vector<3x16x1xf32>
    %1366 = vector.broadcast %1365 : vector<3x16x1xf32> to vector<3x16x128xf32>
    %1367 = arith.select %1364, %1366, %1361 : vector<3x16x128xi1>, vector<3x16x128xf32>
    %1368 = vector.shape_cast %972 : vector<16x128xf32> to vector<1x16x128xf32>
    %1369 = vector.broadcast %1368 : vector<1x16x128xf32> to vector<3x16x128xf32>
    %1370 = arith.mulf %1367, %1369 : vector<3x16x128xf32>
    %1371 = arith.addf %1358, %1370 : vector<3x16x128xf32>
    %1372 = vector.shape_cast %1230 : vector<3x16x128xf32> to vector<48x128xf32>
    %c2_i32_167 = arith.constant 2 : i32
    %1373 = tpu.dynamic_rotate %1372 by %c2_i32_167 dim 1 : vector<48x128xf32>, i32 -> vector<48x128xf32>
    %1374 = vector.shape_cast %1373 : vector<48x128xf32> to vector<3x16x128xf32>
    %1375 = vector.extract_strided_slice %1230 {offsets = [0, 0, 0], sizes = [3, 16, 1], strides = [1, 1, 1]} : vector<3x16x128xf32> to vector<3x16x1xf32>
    %1376 = vector.shape_cast %15 : vector<16x128xi1> to vector<1x16x128xi1>
    %1377 = vector.broadcast %1376 : vector<1x16x128xi1> to vector<3x16x128xi1>
    %1378 = vector.shape_cast %1375 : vector<3x16x1xf32> to vector<3x16x1xf32>
    %1379 = vector.broadcast %1378 : vector<3x16x1xf32> to vector<3x16x128xf32>
    %1380 = arith.select %1377, %1379, %1374 : vector<3x16x128xi1>, vector<3x16x128xf32>
    %1381 = vector.shape_cast %977 : vector<16x128xf32> to vector<1x16x128xf32>
    %1382 = vector.broadcast %1381 : vector<1x16x128xf32> to vector<3x16x128xf32>
    %1383 = arith.mulf %1380, %1382 : vector<3x16x128xf32>
    %1384 = arith.addf %1371, %1383 : vector<3x16x128xf32>
    %1385 = vector.shape_cast %982 : vector<16x128xf32> to vector<1x16x128xf32>
    %1386 = vector.broadcast %1385 : vector<1x16x128xf32> to vector<3x16x128xf32>
    %1387 = arith.mulf %1230, %1386 : vector<3x16x128xf32>
    %1388 = arith.addf %1384, %1387 : vector<3x16x128xf32>
    %1389 = vector.shape_cast %1230 : vector<3x16x128xf32> to vector<48x128xf32>
    %c126_i32_168 = arith.constant 126 : i32
    %1390 = tpu.dynamic_rotate %1389 by %c126_i32_168 dim 1 : vector<48x128xf32>, i32 -> vector<48x128xf32>
    %1391 = vector.shape_cast %1390 : vector<48x128xf32> to vector<3x16x128xf32>
    %1392 = vector.extract_strided_slice %1230 {offsets = [0, 0, 127], sizes = [3, 16, 1], strides = [1, 1, 1]} : vector<3x16x128xf32> to vector<3x16x1xf32>
    %1393 = vector.shape_cast %21 : vector<16x128xi1> to vector<1x16x128xi1>
    %1394 = vector.broadcast %1393 : vector<1x16x128xi1> to vector<3x16x128xi1>
    %1395 = vector.shape_cast %1392 : vector<3x16x1xf32> to vector<3x16x1xf32>
    %1396 = vector.broadcast %1395 : vector<3x16x1xf32> to vector<3x16x128xf32>
    %1397 = arith.select %1394, %1396, %1391 : vector<3x16x128xi1>, vector<3x16x128xf32>
    %1398 = vector.shape_cast %987 : vector<16x128xf32> to vector<1x16x128xf32>
    %1399 = vector.broadcast %1398 : vector<1x16x128xf32> to vector<3x16x128xf32>
    %1400 = arith.mulf %1397, %1399 : vector<3x16x128xf32>
    %1401 = arith.addf %1388, %1400 : vector<3x16x128xf32>
    %c0_169 = arith.constant 0 : index
    %c0_170 = arith.constant 0 : index
    %c0_171 = arith.constant 0 : index
    %c0_172 = arith.constant 0 : index
    %1402 = vector.load %arg3[%c0_169, %c0_170, %c0_171, %c0_172] : memref<1x3x16x128xf32, #tpu.memory_space<vmem>>, vector<1x3x16x128xf32>
    %1403 = vector.shape_cast %1402 : vector<1x3x16x128xf32> to vector<3x16x128xf32>
    %1404 = vector.shape_cast %1401 : vector<3x16x128xf32> to vector<1x3x16x128xf32>
    tpu.vector_store %arg3[%c0_169, %c0_170, %c0_171, %c0_172], %1404 {strides = array<i32>} : memref<1x3x16x128xf32, #tpu.memory_space<vmem>>, vector<1x3x16x128xf32>,
    return
  }
  func.func @transform_0(%arg0: i32) -> (i32, i32, i32, i32) {
    %c0_i32 = arith.constant 0 : i32
    %c0_i32_0 = arith.constant 0 : i32
    %c0_i32_1 = arith.constant 0 : i32
    %c0_i32_2 = arith.constant 0 : i32
    return %arg0, %c0_i32, %c0_i32_0, %c0_i32_1 : i32, i32, i32, i32
  }
  func.func @transform_1(%arg0: i32) -> (i32, i32, i32, i32) {
    %c0_i32 = arith.constant 0 : i32
    %c0_i32_0 = arith.constant 0 : i32
    %c0_i32_1 = arith.constant 0 : i32
    %c0_i32_2 = arith.constant 0 : i32
    return %arg0, %c0_i32, %c0_i32_0, %c0_i32_1 : i32, i32, i32, i32
  }
  func.func @transform_2(%arg0: i32) -> (i32, i32, i32, i32) {
    %c0_i32 = arith.constant 0 : i32
    %c0_i32_0 = arith.constant 0 : i32
    %c0_i32_1 = arith.constant 0 : i32
    %c0_i32_2 = arith.constant 0 : i32
    return %arg0, %c0_i32, %c0_i32_0, %c0_i32_1 : i32, i32, i32, i32
  }
}

</mosaic_0001>

<llo_original>
// kernel: par3e_forward.1
$region0: #{par3e_forward.1}
  #allocation0 [shape = 'u32[]', space=smem, size = 0x4, offset = 0x4, fixed_abs, tag = 'smem constant byte address 0x4 - core index']
  #allocation1 [shape = 'u32[72,128]{1,0:T(1,128)}', space=vmem, size = 0x9000, scoped, tag = 'internal scratch']
  %s0 = inlined_call_operand.vmem [shape: f32[2,4,16,128], index: 0, kind: input, shape index: {}]
  %s1 = inlined_call_operand.hbm [shape: f32[2,3,16,128], index: 1, kind: input, shape index: {}, may-alias: {1,2}]
  %s2 = inlined_call_operand.hbm [shape: f32[2,3,16,128], index: 2, kind: output, shape index: {}, may-alias: {1,2}]
  %s3 = sld [smem:[#allocation0]]
  $region45: #{par3e_forward.1} parent=0
    _
  %s5 = ssub.s32 1, %s3
  %s6 = scalar_select 0, %s5, %s3
  $region1: #{par3e_forward.1} parent=0
    #allocation2 [shape = 'u8[49152]{0}', space=vmem, size = 0xc000, scoped, tag = 'input window, operand 1']
    #allocation3 [shape = 's32[2]{0}', space=sflag, size = 0x8, scoped, tag = 'scoped memory for par3e_forward.1']
    #allocation4 [shape = 's32[2]{0}', space=sflag, size = 0x8, scoped, tag = 'scoped memory for par3e_forward.1']
    #allocation5 [shape = 'u8[49152]{0}', space=vmem, size = 0xc000, scoped, tag = 'output window, operand 0']
    %7 = vsyncpa [#allocation3], 0
    %s8 = scalar_lea.sflag [#allocation3], 1
    %9 = vsyncpa %s8, 0
    %10 = vsyncpa [#allocation4], 0
    %s11 = scalar_lea.sflag [#allocation4], 1
    %12 = vsyncpa %s11, 0
    loop: start=0, step=1, limit=4
    $region2: #{par3e_forward.1} parent=1 // loop_pre_header
      _
    $region3: #{par3e_forward.1} parent=1 // loop_header
      %s14 = sphi 0, %s18
      %p15 = scmp.ge.s32.totalorder %s14, 4
      %s24 = sphi 0, %s26
      %s27 = sphi 0, %s24
      %s28 = sphi 0, %s27
      %s44 = sphi 0, %s28
      %s50 = sphi 0, %s52
      %s53 = sphi 0, %s50
      %s54 = sphi 0, %s53
      %s70 = sphi 0, %s54
      %s76 = sphi 0, %s78
      %s79 = sphi 0, %s76
      %s80 = sphi 0, %s79
      %s96 = sphi 0, %s80
    $region4: #{par3e_forward.1} parent=1 // loop_header_branch
      %17 = sbr.rel (%p15) target = $region8
    $region5: #{par3e_forward.1} parent=1 // loop_body
      %s19 = ssub.s32 %s14, 1
      %s20 = ssub.s32 %s14, 2
      %s21 = sadd.s32 %s14, 1
      %s22 = ssub.s32 %s14, %s21
      %p23 = scmp.eq.s32.totalorder %s22, 0
      %s25 = sadd.s32 %s24, 1
      %s26 = scalar_select %p23, %s24, %s25
      %p29 = pneg %p23
      %p30 = scmp.eq.s32.totalorder %s14, 1
      %p31 = por %p29, %p30
      %p32 = scmp.ne.s32.totalorder %s24, %s27
      %p33 = scmp.eq.s32.totalorder %s14, 0
      %p34 = por %p32, %p33
      %p35 = scmp.ne.s32.totalorder %s24, %s27
      %p36 = scmp.eq.s32.totalorder %s19, 1
      %p37 = por %p35, %p36
      %p38 = scmp.ne.s32.totalorder %s27, %s28
      %p39 = scmp.eq.s32.totalorder %s19, 0
      %p40 = por %p38, %p39
      %p41 = scmp.ne.s32.totalorder %s27, %s28
      %p42 = scmp.eq.s32.totalorder %s20, 1
      %p43 = por %p41, %p42
      %p45 = scmp.ne.s32.totalorder %s28, %s44
      %p46 = scmp.eq.s32.totalorder %s20, 0
      %p47 = por %p45, %p46
      %s48 = ssub.s32 %s14, %s21
      %p49 = scmp.eq.s32.totalorder %s48, 0
      %s51 = sadd.s32 %s50, 1
      %s52 = scalar_select %p49, %s50, %s51
      %p55 = pneg %p49
      %p56 = scmp.eq.s32.totalorder %s14, 1
      %p57 = por %p55, %p56
      %p58 = scmp.ne.s32.totalorder %s50, %s53
      %p59 = scmp.eq.s32.totalorder %s14, 0
      %p60 = por %p58, %p59
      %p61 = scmp.ne.s32.totalorder %s50, %s53
      %p62 = scmp.eq.s32.totalorder %s19, 1
      %p63 = por %p61, %p62
      %p64 = scmp.ne.s32.totalorder %s53, %s54
      %p65 = scmp.eq.s32.totalorder %s19, 0
      %p66 = por %p64, %p65
      %p67 = scmp.ne.s32.totalorder %s53, %s54
      %p68 = scmp.eq.s32.totalorder %s20, 1
      %p69 = por %p67, %p68
      %p71 = scmp.ne.s32.totalorder %s54, %s70
      %p72 = scmp.eq.s32.totalorder %s20, 0
      %p73 = por %p71, %p72
      %s74 = ssub.s32 %s14, %s21
      %p75 = scmp.eq.s32.totalorder %s74, 0
      %s77 = sadd.s32 %s76, 1
      %s78 = scalar_select %p75, %s76, %s77
      %p81 = pneg %p75
      %p82 = scmp.eq.s32.totalorder %s14, 1
      %p83 = por %p81, %p82
      %p84 = scmp.ne.s32.totalorder %s76, %s79
      %p85 = scmp.eq.s32.totalorder %s14, 0
      %p86 = por %p84, %p85
      %p87 = scmp.ne.s32.totalorder %s76, %s79
      %p88 = scmp.eq.s32.totalorder %s19, 1
      %p89 = por %p87, %p88
      %p90 = scmp.ne.s32.totalorder %s79, %s80
      %p91 = scmp.eq.s32.totalorder %s19, 0
      %p92 = por %p90, %p91
      %p93 = scmp.ne.s32.totalorder %s79, %s80
      %p94 = scmp.eq.s32.totalorder %s20, 1
      %p95 = por %p93, %p94
      %p97 = scmp.ne.s32.totalorder %s80, %s96
      %p98 = scmp.eq.s32.totalorder %s20, 0
      %p99 = por %p97, %p98
      %p100 = scmp.le.s32.totalorder 1, %s14
      %p101 = scmp.lt.s32.totalorder %s14, 3
      %p102 = pnand %p100, %p101
      %p103 = pneg %p102
      // Predicated region
      $region9: #{par3e_forward.1} parent=5 // pred_check
        _
      $region10: #{par3e_forward.1} parent=5 // pred_check_branch
        %105 = sbr.rel (%p102) target = $region12
      $region11: #{par3e_forward.1} parent=5 // pred_region
        %s106 = ssub.s32 %s14, 1
      $region12: #{par3e_forward.1} parent=5 // pred_fallthru
        _
      %p107 = scmp.lt.s32.totalorder %s14, 2
      // Predicated region
      $region13: #{par3e_forward.1} parent=5 // pred_check
        %p108 = pneg %p107
      $region14: #{par3e_forward.1} parent=5 // pred_check_branch
        %110 = sbr.rel (%p108) target = $region16
      $region15: #{par3e_forward.1} parent=5 // pred_region
        // Predicated region
        $region17: #{par3e_forward.1} parent=15 // pred_check
          %p111 = pneg %p34
        $region18: #{par3e_forward.1} parent=15 // pred_check_branch
          %113 = sbr.rel (%p111) target = $region20
        $region19: #{par3e_forward.1} parent=15 // pred_region
          %p114 = scmp.lt.s32.totalorder %s14, 1
          %s115 = scalar_select %p114, %s14, 1
          %s116 = smul.addr %s115, 8
          %s117 = smul.addr %s116, 8
          %s118 = scalar_lea.vmem %s0, %s117
        $region20: #{par3e_forward.1} parent=15 // pred_fallthru
          _
        // Predicated region
        $region21: #{par3e_forward.1} parent=15 // pred_check
          %p119 = pneg %p60
        $region22: #{par3e_forward.1} parent=15 // pred_check_branch
          %121 = sbr.rel (%p119) target = $region24
        $region23: #{par3e_forward.1} parent=15 // pred_region
          %s122 = sand.u32 %s50, 1
          %s123 = scalar_lea.sflag [#allocation3], %s122
          %s124 = sand.u32 %s50, 1
          %s125 = smul.addr %s124, 48
          %s126 = scalar_lea.vmem [#allocation2], %s125
          %128 = vsyncadd %s123, 0
          %s129 = smul.addr %s14, 6
          %s130 = smul.addr %s129, 8
          %s131 = scalar_lea.hbm %s1, %s130
          %s132 = sshll.u32 %s131, 4
          %s133 = int_to_ptr.hbm [resolvable:$true] %s132
          %s134 = sshll.u32 %s126, 4
          %s135 = int_to_ptr.vmem [resolvable:$true] %s134
          %140 = dma.hbm_to_vmem [thread:$0]  %s133, 768, %s135, %s123, 128, 128, 8
        $region24: #{par3e_forward.1} parent=15 // pred_fallthru
          _
      $region16: #{par3e_forward.1} parent=5 // pred_fallthru
        _
      %p141 = scmp.le.s32.totalorder 1, %s14
      %p142 = scmp.lt.s32.totalorder %s14, 3
      %p143 = pnand %p141, %p142
      %p144 = pneg %p143
      // Predicated region
      $region25: #{par3e_forward.1} parent=5 // pred_check
        _
      $region26: #{par3e_forward.1} parent=5 // pred_check_branch
        %146 = sbr.rel (%p143) target = $region28
      $region27: #{par3e_forward.1} parent=5 // pred_region
        %s147 = ssub.s32 %s14, 1
        %s148 = sand.u32 %s53, 1
        %s149 = scalar_lea.sflag [#allocation3], %s148
        %s150 = sand.u32 %s53, 1
        %s151 = smul.addr %s150, 48
        %s152 = scalar_lea.vmem [#allocation2], %s151
        // Predicated region
        $region29: #{par3e_forward.1} parent=27 // pred_check
          %p153 = pneg %p66
        $region30: #{par3e_forward.1} parent=27 // pred_check_branch
          %155 = sbr.rel (%p153) target = $region32
        $region31: #{par3e_forward.1} parent=27 // pred_region
          %157 = dma.done %s149, 768
        $region32: #{par3e_forward.1} parent=27 // pred_fallthru
          _
        %p158 = scmp.lt.s32.totalorder %s19, 1
        %s159 = scalar_select %p158, %s19, 1
        %s160 = smul.addr %s159, 8
        %s161 = smul.addr %s160, 8
        %s162 = scalar_lea.vmem %s0, %s161
        %p163 = pneg %p40
        %p164 = pneg %p37
        %s165 = sand.u32 %s53, 1
        %s166 = scalar_lea.sflag [#allocation3], %s165
        %s167 = sand.u32 %s53, 1
        %s168 = smul.addr %s167, 48
        %s169 = scalar_lea.vmem [#allocation2], %s168
        %p170 = pneg %p66
        %p171 = pneg %p63
        %p172 = pneg %p92
        %p173 = pneg %p89
        %s174 = sand.u32 %s79, 1
        %s175 = scalar_lea.sflag [#allocation4], %s174
        %s176 = sand.u32 %s79, 1
        %s177 = smul.addr %s176, 48
        %s178 = scalar_lea.vmem [#allocation5], %s177
        %p179 = scmp.lt.s32.totalorder %s19, 1
        %s180 = scalar_select %p179, %s19, 1
        %s181 = smul.addr %s180, 8
        %s182 = smul.addr %s181, 8
        %s183 = scalar_lea.vmem %s0, %s182
        %v184 = vld [vmem:[%s183] sm:$0xff]
        %v185 = vld [vmem:[%s183 + $0x8] sm:$0xff]
        %v186 = vld [vmem:[%s183 + $0x10] sm:$0xff]
        %v187 = vld [vmem:[%s183 + $0x18] sm:$0xff]
        %v188 = vld [vmem:[%s183 + $0x20] sm:$0xff]
        %v189 = vld [vmem:[%s183 + $0x28] sm:$0xff]
        %v190 = vld [vmem:[%s183 + $0x30] sm:$0xff]
        %v191 = vld [vmem:[%s183 + $0x38] sm:$0xff]
        %v192 = vld [vmem:[%s152] sm:$0xff]
        %v193 = vld [vmem:[%s152 + $0x8] sm:$0xff]
        %v194 = vld [vmem:[%s152 + $0x10] sm:$0xff]
        %v195 = vld [vmem:[%s152 + $0x18] sm:$0xff]
        %v196 = vld [vmem:[%s152 + $0x20] sm:$0xff]
        %v197 = vld [vmem:[%s152 + $0x28] sm:$0xff]
        %v198 = vlaneseq
        %v199 = vshrl.u32 %v198, 7
        %v200 = vadd.s32 %v199, 8
        %v201 = vlaneseq
        %v202 = vand.u32 %v201, 127
        %vm203 = vcmp.lt.s32.totalorder %v199, 2
        %vm204 = vcmp.lt.s32.totalorder %v200, 2
        %vm205 = vcmp.lt.s32.totalorder %v199, 1
        %vm206 = vcmp.lt.s32.totalorder %v200, 1
        %vm207 = vcmp.ge.s32.totalorder %v199, 15
        %vm208 = vcmp.ge.s32.totalorder %v200, 15
        %vm209 = vcmp.ge.s32.totalorder %v199, 14
        %vm210 = vcmp.ge.s32.totalorder %v200, 14
        %vm211 = vcmp.lt.s32.totalorder %v202, 2
        %vm212 = vcmp.lt.s32.totalorder %v202, 1
        %vm213 = vcmp.ge.s32.totalorder %v202, 127
        %vm214 = vcmp.ge.s32.totalorder %v202, 126
        %v215 = vrot.slane %v184, 6
        %v216 = vrot.slane %v185, 6
        %v217 = vrot.slane %v186, 6
        %v218 = vrot.slane %v187, 6
        %v219 = vrot.slane %v188, 6
        %v220 = vrot.slane %v189, 6
        %v221 = vrot.slane %v190, 6
        %v222 = vrot.slane %v191, 6
        %v223 = vsel %vm203, %v221, %v222
        %v224 = vsel %vm203, %v220, %v221
        %v225 = vsel %vm203, %v219, %v220
        %v226 = vsel %vm203, %v218, %v219
        %v227 = vsel %vm203, %v217, %v218
        %v228 = vsel %vm203, %v216, %v217
        %v229 = vsel %vm203, %v215, %v216
        %v230 = vsel %vm203, %v222, %v215
        %v231 = vsel %vm203, 1, 0
        %v232 = vsel %vm204, 1, 0
        %vm233 = vcmp.eq.s32.totalorder %v231, 1
        %vm234 = vcmp.eq.s32.totalorder %v232, 1
        %v235 = vperm.slane %v184, 0
        %v236 = vperm.slane %v186, 0
        %v237 = vperm.slane %v188, 0
        %v238 = vperm.slane %v190, 0
        %v239 = vsel %vm233, %v235, %v230
        %v240 = vsel %vm234, %v235, %v229
        %v241 = vsel %vm233, %v236, %v228
        %v242 = vsel %vm234, %v236, %v227
        %v243 = vsel %vm233, %v237, %v226
        %v244 = vsel %vm234, %v237, %v225
        %v245 = vsel %vm233, %v238, %v224
        %v246 = vsel %vm234, %v238, %v223
        %v247 = vrot.slane %v184, 7
        %v248 = vrot.slane %v185, 7
        %v249 = vrot.slane %v186, 7
        %v250 = vrot.slane %v187, 7
        %v251 = vrot.slane %v188, 7
        %v252 = vrot.slane %v189, 7
        %v253 = vrot.slane %v190, 7
        %v254 = vrot.slane %v191, 7
        %v255 = vsel %vm205, %v253, %v254
        %v256 = vsel %vm205, %v252, %v253
        %v257 = vsel %vm205, %v251, %v252
        %v258 = vsel %vm205, %v250, %v251
        %v259 = vsel %vm205, %v249, %v250
        %v260 = vsel %vm205, %v248, %v249
        %v261 = vsel %vm205, %v247, %v248
        %v262 = vsel %vm205, %v254, %v247
        %v263 = vsel %vm205, 1, 0
        %v264 = vsel %vm206, 1, 0
        %vm265 = vcmp.eq.s32.totalorder %v263, 1
        %vm266 = vcmp.eq.s32.totalorder %v264, 1
        %v267 = vsel %vm265, %v235, %v262
        %v268 = vsel %vm266, %v235, %v261
        %v269 = vsel %vm265, %v236, %v260
        %v270 = vsel %vm266, %v236, %v259
        %v271 = vsel %vm265, %v237, %v258
        %v272 = vsel %vm266, %v237, %v257
        %v273 = vsel %vm265, %v238, %v256
        %v274 = vsel %vm266, %v238, %v255
        %v275 = vrot.slane %v184, 1
        %v276 = vrot.slane %v185, 1
        %v277 = vrot.slane %v186, 1
        %v278 = vrot.slane %v187, 1
        %v279 = vrot.slane %v188, 1
        %v280 = vrot.slane %v189, 1
        %v281 = vrot.slane %v190, 1
        %v282 = vrot.slane %v191, 1
        %vm283 = vcmp.lt.s32.totalorder %v199, 7
        %v284 = vsel %vm283, %v281, %v282
        %v285 = vsel %vm283, %v280, %v281
        %v286 = vsel %vm283, %v279, %v280
        %v287 = vsel %vm283, %v278, %v279
        %v288 = vsel %vm283, %v277, %v278
        %v289 = vsel %vm283, %v276, %v277
        %v290 = vsel %vm283, %v275, %v276
        %v291 = vsel %vm283, %v282, %v275
        %v292 = vsel %vm207, 1, 0
        %v293 = vsel %vm208, 1, 0
        %vm294 = vcmp.eq.s32.totalorder %v292, 1
        %vm295 = vcmp.eq.s32.totalorder %v293, 1
        %v296 = vperm.slane %v185, 7
        %v297 = vperm.slane %v187, 7
        %v298 = vperm.slane %v189, 7
        %v299 = vperm.slane %v191, 7
        %v300 = vsel %vm294, %v296, %v290
        %v301 = vsel %vm295, %v296, %v289
        %v302 = vsel %vm294, %v297, %v288
        %v303 = vsel %vm295, %v297, %v287
        %v304 = vsel %vm294, %v298, %v286
        %v305 = vsel %vm295, %v298, %v285
        %v306 = vsel %vm294, %v299, %v284
        %v307 = vsel %vm295, %v299, %v291
        %v308 = vrot.slane %v184, 2
        %v309 = vrot.slane %v185, 2
        %v310 = vrot.slane %v186, 2
        %v311 = vrot.slane %v187, 2
        %v312 = vrot.slane %v188, 2
        %v313 = vrot.slane %v189, 2
        %v314 = vrot.slane %v190, 2
        %v315 = vrot.slane %v191, 2
        %vm316 = vcmp.lt.s32.totalorder %v199, 6
        %v317 = vsel %vm316, %v314, %v315
        %v318 = vsel %vm316, %v313, %v314
        %v319 = vsel %vm316, %v312, %v313
        %v320 = vsel %vm316, %v311, %v312
        %v321 = vsel %vm316, %v310, %v311
        %v322 = vsel %vm316, %v309, %v310
        %v323 = vsel %vm316, %v308, %v309
        %v324 = vsel %vm316, %v315, %v308
        %v325 = vsel %vm209, 1, 0
        %v326 = vsel %vm210, 1, 0
        %vm327 = vcmp.eq.s32.totalorder %v325, 1
        %vm328 = vcmp.eq.s32.totalorder %v326, 1
        %v329 = vsel %vm327, %v296, %v323
        %v330 = vsel %vm328, %v296, %v322
        %v331 = vsel %vm327, %v297, %v321
        %v332 = vsel %vm328, %v297, %v320
        %v333 = vsel %vm327, %v298, %v319
        %v334 = vsel %vm328, %v298, %v318
        %v335 = vsel %vm327, %v299, %v317
        %v336 = vsel %vm328, %v299, %v324
        %337 = vrot.lane.b32.xlu0 %v267, 1
        %v338 = vpop.permute.xlu0 %337
        %339 = vrot.lane.b32.xlu0 %v268, 1
        %v340 = vpop.permute.xlu0 %339
        %341 = vrot.lane.b32.xlu0 %v269, 1
        %v342 = vpop.permute.xlu0 %341
        %343 = vrot.lane.b32.xlu0 %v270, 1
        %v344 = vpop.permute.xlu0 %343
        %345 = vrot.lane.b32.xlu0 %v271, 1
        %v346 = vpop.permute.xlu0 %345
        %347 = vrot.lane.b32.xlu0 %v272, 1
        %v348 = vpop.permute.xlu0 %347
        %349 = vrot.lane.b32.xlu0 %v273, 1
        %v350 = vpop.permute.xlu0 %349
        %351 = vrot.lane.b32.xlu0 %v274, 1
        %v352 = vpop.permute.xlu0 %351
        %v353 = vsel %vm212, 1, 0
        %vm354 = vcmp.eq.s32.totalorder %v353, 1
        %356 = vset.pattern.permute.xlu0 0
        %357 = vperm.xlu0 %356, %v267
        %v358 = vpop.permute.xlu0 %357
        %361 = vset.pattern.permute.xlu0 0
        %362 = vperm.xlu0 %361, %v268
        %v363 = vpop.permute.xlu0 %362
        %366 = vset.pattern.permute.xlu0 0
        %367 = vperm.xlu0 %366, %v269
        %v368 = vpop.permute.xlu0 %367
        %371 = vset.pattern.permute.xlu0 0
        %372 = vperm.xlu0 %371, %v270
        %v373 = vpop.permute.xlu0 %372
        %376 = vset.pattern.permute.xlu0 0
        %377 = vperm.xlu0 %376, %v271
        %v378 = vpop.permute.xlu0 %377
        %381 = vset.pattern.permute.xlu0 0
        %382 = vperm.xlu0 %381, %v272
        %v383 = vpop.permute.xlu0 %382
        %386 = vset.pattern.permute.xlu0 0
        %387 = vperm.xlu0 %386, %v273
        %v388 = vpop.permute.xlu0 %387
        %391 = vset.pattern.permute.xlu0 0
        %392 = vperm.xlu0 %391, %v274
        %v393 = vpop.permute.xlu0 %392
        %v395 = vsel %vm354, %v358, %v338
        %v396 = vsel %vm354, %v363, %v340
        %v397 = vsel %vm354, %v368, %v342
        %v398 = vsel %vm354, %v373, %v344
        %v399 = vsel %vm354, %v378, %v346
        %v400 = vsel %vm354, %v383, %v348
        %v401 = vsel %vm354, %v388, %v350
        %v402 = vsel %vm354, %v393, %v352
        %403 = vrot.lane.b32.xlu0 %v267, 127
        %v404 = vpop.permute.xlu0 %403
        %405 = vrot.lane.b32.xlu0 %v268, 127
        %v406 = vpop.permute.xlu0 %405
        %407 = vrot.lane.b32.xlu0 %v269, 127
        %v408 = vpop.permute.xlu0 %407
        %409 = vrot.lane.b32.xlu0 %v270, 127
        %v410 = vpop.permute.xlu0 %409
        %411 = vrot.lane.b32.xlu0 %v271, 127
        %v412 = vpop.permute.xlu0 %411
        %413 = vrot.lane.b32.xlu0 %v272, 127
        %v414 = vpop.permute.xlu0 %413
        %415 = vrot.lane.b32.xlu0 %v273, 127
        %v416 = vpop.permute.xlu0 %415
        %417 = vrot.lane.b32.xlu0 %v274, 127
        %v418 = vpop.permute.xlu0 %417
        %v419 = vsel %vm213, 1, 0
        %vm420 = vcmp.eq.s32.totalorder %v419, 1
        %421 = vset.pattern.permute.xlu0 127
        %422 = vperm.xlu0 %421, %v267
        %v423 = vpop.permute.xlu0 %422
        %425 = vset.pattern.permute.xlu0 127
        %426 = vperm.xlu0 %425, %v268
        %v427 = vpop.permute.xlu0 %426
        %429 = vset.pattern.permute.xlu0 127
        %430 = vperm.xlu0 %429, %v269
        %v431 = vpop.permute.xlu0 %430
        %433 = vset.pattern.permute.xlu0 127
        %434 = vperm.xlu0 %433, %v270
        %v435 = vpop.permute.xlu0 %434
        %437 = vset.pattern.permute.xlu0 127
        %438 = vperm.xlu0 %437, %v271
        %v439 = vpop.permute.xlu0 %438
        %441 = vset.pattern.permute.xlu0 127
        %442 = vperm.xlu0 %441, %v272
        %v443 = vpop.permute.xlu0 %442
        %445 = vset.pattern.permute.xlu0 127
        %446 = vperm.xlu0 %445, %v273
        %v447 = vpop.permute.xlu0 %446
        %449 = vset.pattern.permute.xlu0 127
        %450 = vperm.xlu0 %449, %v274
        %v451 = vpop.permute.xlu0 %450
        %v453 = vsel %vm420, %v423, %v404
        %v454 = vsel %vm420, %v427, %v406
        %v455 = vsel %vm420, %v431, %v408
        %v456 = vsel %vm420, %v435, %v410
        %v457 = vsel %vm420, %v439, %v412
        %v458 = vsel %vm420, %v443, %v414
        %v459 = vsel %vm420, %v447, %v416
        %v460 = vsel %vm420, %v451, %v418
        %461 = vrot.lane.b32.xlu0 %v184, 1
        %v462 = vpop.permute.xlu0 %461
        %463 = vrot.lane.b32.xlu0 %v185, 1
        %v464 = vpop.permute.xlu0 %463
        %465 = vrot.lane.b32.xlu0 %v186, 1
        %v466 = vpop.permute.xlu0 %465
        %467 = vrot.lane.b32.xlu0 %v187, 1
        %v468 = vpop.permute.xlu0 %467
        %469 = vrot.lane.b32.xlu0 %v188, 1
        %v470 = vpop.permute.xlu0 %469
        %471 = vrot.lane.b32.xlu0 %v189, 1
        %v472 = vpop.permute.xlu0 %471
        %473 = vrot.lane.b32.xlu0 %v190, 1
        %v474 = vpop.permute.xlu0 %473
        %475 = vrot.lane.b32.xlu0 %v191, 1
        %v476 = vpop.permute.xlu0 %475
        %478 = vset.pattern.permute.xlu0 0
        %479 = vperm.xlu0 %478, %v184
        %v480 = vpop.permute.xlu0 %479
        %483 = vset.pattern.permute.xlu0 0
        %484 = vperm.xlu0 %483, %v185
        %v485 = vpop.permute.xlu0 %484
        %488 = vset.pattern.permute.xlu0 0
        %489 = vperm.xlu0 %488, %v186
        %v490 = vpop.permute.xlu0 %489
        %493 = vset.pattern.permute.xlu0 0
        %494 = vperm.xlu0 %493, %v187
        %v495 = vpop.permute.xlu0 %494
        %498 = vset.pattern.permute.xlu0 0
        %499 = vperm.xlu0 %498, %v188
        %v500 = vpop.permute.xlu0 %499
        %503 = vset.pattern.permute.xlu0 0
        %504 = vperm.xlu0 %503, %v189
        %v505 = vpop.permute.xlu0 %504
        %508 = vset.pattern.permute.xlu0 0
        %509 = vperm.xlu0 %508, %v190
        %v510 = vpop.permute.xlu0 %509
        %513 = vset.pattern.permute.xlu0 0
        %514 = vperm.xlu0 %513, %v191
        %v515 = vpop.permute.xlu0 %514
        %v517 = vsel %vm354, %v480, %v462
        %v518 = vsel %vm354, %v485, %v464
        %v519 = vsel %vm354, %v490, %v466
        %v520 = vsel %vm354, %v495, %v468
        %v521 = vsel %vm354, %v500, %v470
        %v522 = vsel %vm354, %v505, %v472
        %v523 = vsel %vm354, %v510, %v474
        %v524 = vsel %vm354, %v515, %v476
        %525 = vrot.lane.b32.xlu0 %v184, 127
        %v526 = vpop.permute.xlu0 %525
        %527 = vrot.lane.b32.xlu0 %v185, 127
        %v528 = vpop.permute.xlu0 %527
        %529 = vrot.lane.b32.xlu0 %v186, 127
        %v530 = vpop.permute.xlu0 %529
        %531 = vrot.lane.b32.xlu0 %v187, 127
        %v532 = vpop.permute.xlu0 %531
        %533 = vrot.lane.b32.xlu0 %v188, 127
        %v534 = vpop.permute.xlu0 %533
        %535 = vrot.lane.b32.xlu0 %v189, 127
        %v536 = vpop.permute.xlu0 %535
        %537 = vrot.lane.b32.xlu0 %v190, 127
        %v538 = vpop.permute.xlu0 %537
        %539 = vrot.lane.b32.xlu0 %v191, 127
        %v540 = vpop.permute.xlu0 %539
        %541 = vset.pattern.permute.xlu0 127
        %542 = vperm.xlu0 %541, %v184
        %v543 = vpop.permute.xlu0 %542
        %545 = vset.pattern.permute.xlu0 127
        %546 = vperm.xlu0 %545, %v185
        %v547 = vpop.permute.xlu0 %546
        %549 = vset.pattern.permute.xlu0 127
        %550 = vperm.xlu0 %549, %v186
        %v551 = vpop.permute.xlu0 %550
        %553 = vset.pattern.permute.xlu0 127
        %554 = vperm.xlu0 %553, %v187
        %v555 = vpop.permute.xlu0 %554
        %557 = vset.pattern.permute.xlu0 127
        %558 = vperm.xlu0 %557, %v188
        %v559 = vpop.permute.xlu0 %558
        %561 = vset.pattern.permute.xlu0 127
        %562 = vperm.xlu0 %561, %v189
        %v563 = vpop.permute.xlu0 %562
        %565 = vset.pattern.permute.xlu0 127
        %566 = vperm.xlu0 %565, %v190
        %v567 = vpop.permute.xlu0 %566
        %569 = vset.pattern.permute.xlu0 127
        %570 = vperm.xlu0 %569, %v191
        %v571 = vpop.permute.xlu0 %570
        %v573 = vsel %vm420, %v543, %v526
        %v574 = vsel %vm420, %v547, %v528
        %v575 = vsel %vm420, %v551, %v530
        %v576 = vsel %vm420, %v555, %v532
        %v577 = vsel %vm420, %v559, %v534
        %v578 = vsel %vm420, %v563, %v536
        %v579 = vsel %vm420, %v567, %v538
        %v580 = vsel %vm420, %v571, %v540
        %581 = vrot.lane.b32.xlu0 %v300, 1
        %v582 = vpop.permute.xlu0 %581
        %583 = vrot.lane.b32.xlu0 %v301, 1
        %v584 = vpop.permute.xlu0 %583
        %585 = vrot.lane.b32.xlu0 %v302, 1
        %v586 = vpop.permute.xlu0 %585
        %587 = vrot.lane.b32.xlu0 %v303, 1
        %v588 = vpop.permute.xlu0 %587
        %589 = vrot.lane.b32.xlu0 %v304, 1
        %v590 = vpop.permute.xlu0 %589
        %591 = vrot.lane.b32.xlu0 %v305, 1
        %v592 = vpop.permute.xlu0 %591
        %593 = vrot.lane.b32.xlu0 %v306, 1
        %v594 = vpop.permute.xlu0 %593
        %595 = vrot.lane.b32.xlu0 %v307, 1
        %v596 = vpop.permute.xlu0 %595
        %598 = vset.pattern.permute.xlu0 0
        %599 = vperm.xlu0 %598, %v300
        %v600 = vpop.permute.xlu0 %599
        %603 = vset.pattern.permute.xlu0 0
        %604 = vperm.xlu0 %603, %v301
        %v605 = vpop.permute.xlu0 %604
        %608 = vset.pattern.permute.xlu0 0
        %609 = vperm.xlu0 %608, %v302
        %v610 = vpop.permute.xlu0 %609
        %613 = vset.pattern.permute.xlu0 0
        %614 = vperm.xlu0 %613, %v303
        %v615 = vpop.permute.xlu0 %614
        %618 = vset.pattern.permute.xlu0 0
        %619 = vperm.xlu0 %618, %v304
        %v620 = vpop.permute.xlu0 %619
        %623 = vset.pattern.permute.xlu0 0
        %624 = vperm.xlu0 %623, %v305
        %v625 = vpop.permute.xlu0 %624
        %628 = vset.pattern.permute.xlu0 0
        %629 = vperm.xlu0 %628, %v306
        %v630 = vpop.permute.xlu0 %629
        %633 = vset.pattern.permute.xlu0 0
        %634 = vperm.xlu0 %633, %v307
        %v635 = vpop.permute.xlu0 %634
        %v637 = vsel %vm354, %v600, %v582
        %v638 = vsel %vm354, %v605, %v584
        %v639 = vsel %vm354, %v610, %v586
        %v640 = vsel %vm354, %v615, %v588
        %v641 = vsel %vm354, %v620, %v590
        %v642 = vsel %vm354, %v625, %v592
        %v643 = vsel %vm354, %v630, %v594
        %v644 = vsel %vm354, %v635, %v596
        %645 = vrot.lane.b32.xlu0 %v300, 127
        %v646 = vpop.permute.xlu0 %645
        %647 = vrot.lane.b32.xlu0 %v301, 127
        %v648 = vpop.permute.xlu0 %647
        %649 = vrot.lane.b32.xlu0 %v302, 127
        %v650 = vpop.permute.xlu0 %649
        %651 = vrot.lane.b32.xlu0 %v303, 127
        %v652 = vpop.permute.xlu0 %651
        %653 = vrot.lane.b32.xlu0 %v304, 127
        %v654 = vpop.permute.xlu0 %653
        %655 = vrot.lane.b32.xlu0 %v305, 127
        %v656 = vpop.permute.xlu0 %655
        %657 = vrot.lane.b32.xlu0 %v306, 127
        %v658 = vpop.permute.xlu0 %657
        %659 = vrot.lane.b32.xlu0 %v307, 127
        %v660 = vpop.permute.xlu0 %659
        %661 = vset.pattern.permute.xlu0 127
        %662 = vperm.xlu0 %661, %v300
        %v663 = vpop.permute.xlu0 %662
        %665 = vset.pattern.permute.xlu0 127
        %666 = vperm.xlu0 %665, %v301
        %v667 = vpop.permute.xlu0 %666
        %669 = vset.pattern.permute.xlu0 127
        %670 = vperm.xlu0 %669, %v302
        %v671 = vpop.permute.xlu0 %670
        %673 = vset.pattern.permute.xlu0 127
        %674 = vperm.xlu0 %673, %v303
        %v675 = vpop.permute.xlu0 %674
        %677 = vset.pattern.permute.xlu0 127
        %678 = vperm.xlu0 %677, %v304
        %v679 = vpop.permute.xlu0 %678
        %681 = vset.pattern.permute.xlu0 127
        %682 = vperm.xlu0 %681, %v305
        %v683 = vpop.permute.xlu0 %682
        %685 = vset.pattern.permute.xlu0 127
        %686 = vperm.xlu0 %685, %v306
        %v687 = vpop.permute.xlu0 %686
        %689 = vset.pattern.permute.xlu0 127
        %690 = vperm.xlu0 %689, %v307
        %v691 = vpop.permute.xlu0 %690
        %v693 = vsel %vm420, %v663, %v646
        %v694 = vsel %vm420, %v667, %v648
        %v695 = vsel %vm420, %v671, %v650
        %v696 = vsel %vm420, %v675, %v652
        %v697 = vsel %vm420, %v679, %v654
        %v698 = vsel %vm420, %v683, %v656
        %v699 = vsel %vm420, %v687, %v658
        %v700 = vsel %vm420, %v691, %v660
        %701 = vrot.lane.b32.xlu0 %v239, 2
        %v702 = vpop.permute.xlu0 %701
        %703 = vrot.lane.b32.xlu0 %v240, 2
        %v704 = vpop.permute.xlu0 %703
        %705 = vrot.lane.b32.xlu0 %v241, 2
        %v706 = vpop.permute.xlu0 %705
        %707 = vrot.lane.b32.xlu0 %v242, 2
        %v708 = vpop.permute.xlu0 %707
        %709 = vrot.lane.b32.xlu0 %v243, 2
        %v710 = vpop.permute.xlu0 %709
        %711 = vrot.lane.b32.xlu0 %v244, 2
        %v712 = vpop.permute.xlu0 %711
        %713 = vrot.lane.b32.xlu0 %v245, 2
        %v714 = vpop.permute.xlu0 %713
        %715 = vrot.lane.b32.xlu0 %v246, 2
        %v716 = vpop.permute.xlu0 %715
        %v717 = vsel %vm211, 1, 0
        %vm718 = vcmp.eq.s32.totalorder %v717, 1
        %720 = vset.pattern.permute.xlu0 0
        %721 = vperm.xlu0 %720, %v239
        %v722 = vpop.permute.xlu0 %721
        %725 = vset.pattern.permute.xlu0 0
        %726 = vperm.xlu0 %725, %v240
        %v727 = vpop.permute.xlu0 %726
        %730 = vset.pattern.permute.xlu0 0
        %731 = vperm.xlu0 %730, %v241
        %v732 = vpop.permute.xlu0 %731
        %735 = vset.pattern.permute.xlu0 0
        %736 = vperm.xlu0 %735, %v242
        %v737 = vpop.permute.xlu0 %736
        %740 = vset.pattern.permute.xlu0 0
        %741 = vperm.xlu0 %740, %v243
        %v742 = vpop.permute.xlu0 %741
        %745 = vset.pattern.permute.xlu0 0
        %746 = vperm.xlu0 %745, %v244
        %v747 = vpop.permute.xlu0 %746
        %750 = vset.pattern.permute.xlu0 0
        %751 = vperm.xlu0 %750, %v245
        %v752 = vpop.permute.xlu0 %751
        %755 = vset.pattern.permute.xlu0 0
        %756 = vperm.xlu0 %755, %v246
        %v757 = vpop.permute.xlu0 %756
        %v759 = vsel %vm718, %v722, %v702
        %v760 = vsel %vm718, %v727, %v704
        %v761 = vsel %vm718, %v732, %v706
        %v762 = vsel %vm718, %v737, %v708
        %v763 = vsel %vm718, %v742, %v710
        %v764 = vsel %vm718, %v747, %v712
        %v765 = vsel %vm718, %v752, %v714
        %v766 = vsel %vm718, %v757, %v716
        %767 = vrot.lane.b32.xlu0 %v239, 126
        %v768 = vpop.permute.xlu0 %767
        %769 = vrot.lane.b32.xlu0 %v240, 126
        %v770 = vpop.permute.xlu0 %769
        %771 = vrot.lane.b32.xlu0 %v241, 126
        %v772 = vpop.permute.xlu0 %771
        %773 = vrot.lane.b32.xlu0 %v242, 126
        %v774 = vpop.permute.xlu0 %773
        %775 = vrot.lane.b32.xlu0 %v243, 126
        %v776 = vpop.permute.xlu0 %775
        %777 = vrot.lane.b32.xlu0 %v244, 126
        %v778 = vpop.permute.xlu0 %777
        %779 = vrot.lane.b32.xlu0 %v245, 126
        %v780 = vpop.permute.xlu0 %779
        %781 = vrot.lane.b32.xlu0 %v246, 126
        %v782 = vpop.permute.xlu0 %781
        %v783 = vsel %vm214, 1, 0
        %vm784 = vcmp.eq.s32.totalorder %v783, 1
        %785 = vset.pattern.permute.xlu0 127
        %786 = vperm.xlu0 %785, %v239
        %v787 = vpop.permute.xlu0 %786
        %789 = vset.pattern.permute.xlu0 127
        %790 = vperm.xlu0 %789, %v240
        %v791 = vpop.permute.xlu0 %790
        %793 = vset.pattern.permute.xlu0 127
        %794 = vperm.xlu0 %793, %v241
        %v795 = vpop.permute.xlu0 %794
        %797 = vset.pattern.permute.xlu0 127
        %798 = vperm.xlu0 %797, %v242
        %v799 = vpop.permute.xlu0 %798
        %801 = vset.pattern.permute.xlu0 127
        %802 = vperm.xlu0 %801, %v243
        %v803 = vpop.permute.xlu0 %802
        %805 = vset.pattern.permute.xlu0 127
        %806 = vperm.xlu0 %805, %v244
        %v807 = vpop.permute.xlu0 %806
        %809 = vset.pattern.permute.xlu0 127
        %810 = vperm.xlu0 %809, %v245
        %v811 = vpop.permute.xlu0 %810
        %813 = vset.pattern.permute.xlu0 127
        %814 = vperm.xlu0 %813, %v246
        %v815 = vpop.permute.xlu0 %814
        %v817 = vsel %vm784, %v787, %v768
        %v818 = vsel %vm784, %v791, %v770
        %v819 = vsel %vm784, %v795, %v772
        %v820 = vsel %vm784, %v799, %v774
        %v821 = vsel %vm784, %v803, %v776
        %v822 = vsel %vm784, %v807, %v778
        %v823 = vsel %vm784, %v811, %v780
        %v824 = vsel %vm784, %v815, %v782
        %825 = vrot.lane.b32.xlu0 %v184, 2
        %v826 = vpop.permute.xlu0 %825
        %827 = vrot.lane.b32.xlu0 %v185, 2
        %v828 = vpop.permute.xlu0 %827
        %829 = vrot.lane.b32.xlu0 %v186, 2
        %v830 = vpop.permute.xlu0 %829
        %831 = vrot.lane.b32.xlu0 %v187, 2
        %v832 = vpop.permute.xlu0 %831
        %833 = vrot.lane.b32.xlu0 %v188, 2
        %v834 = vpop.permute.xlu0 %833
        %835 = vrot.lane.b32.xlu0 %v189, 2
        %v836 = vpop.permute.xlu0 %835
        %837 = vrot.lane.b32.xlu0 %v190, 2
        %v838 = vpop.permute.xlu0 %837
        %839 = vrot.lane.b32.xlu0 %v191, 2
        %v840 = vpop.permute.xlu0 %839
        %v841 = vsel %vm718, %v480, %v826
        %v842 = vsel %vm718, %v485, %v828
        %v843 = vsel %vm718, %v490, %v830
        %v844 = vsel %vm718, %v495, %v832
        %v845 = vsel %vm718, %v500, %v834
        %v846 = vsel %vm718, %v505, %v836
        %v847 = vsel %vm718, %v510, %v838
        %v848 = vsel %vm718, %v515, %v840
        %849 = vrot.lane.b32.xlu0 %v184, 126
        %v850 = vpop.permute.xlu0 %849
        %851 = vrot.lane.b32.xlu0 %v185, 126
        %v852 = vpop.permute.xlu0 %851
        %853 = vrot.lane.b32.xlu0 %v186, 126
        %v854 = vpop.permute.xlu0 %853
        %855 = vrot.lane.b32.xlu0 %v187, 126
        %v856 = vpop.permute.xlu0 %855
        %857 = vrot.lane.b32.xlu0 %v188, 126
        %v858 = vpop.permute.xlu0 %857
        %859 = vrot.lane.b32.xlu0 %v189, 126
        %v860 = vpop.permute.xlu0 %859
        %861 = vrot.lane.b32.xlu0 %v190, 126
        %v862 = vpop.permute.xlu0 %861
        %863 = vrot.lane.b32.xlu0 %v191, 126
        %v864 = vpop.permute.xlu0 %863
        %v865 = vsel %vm784, %v543, %v850
        %v866 = vsel %vm784, %v547, %v852
        %v867 = vsel %vm784, %v551, %v854
        %v868 = vsel %vm784, %v555, %v856
        %v869 = vsel %vm784, %v559, %v858
        %v870 = vsel %vm784, %v563, %v860
        %v871 = vsel %vm784, %v567, %v862
        %v872 = vsel %vm784, %v571, %v864
        %873 = vrot.lane.b32.xlu0 %v329, 2
        %v874 = vpop.permute.xlu0 %873
        %875 = vrot.lane.b32.xlu0 %v330, 2
        %v876 = vpop.permute.xlu0 %875
        %877 = vrot.lane.b32.xlu0 %v331, 2
        %v878 = vpop.permute.xlu0 %877
        %879 = vrot.lane.b32.xlu0 %v332, 2
        %v880 = vpop.permute.xlu0 %879
        %881 = vrot.lane.b32.xlu0 %v333, 2
        %v882 = vpop.permute.xlu0 %881
        %883 = vrot.lane.b32.xlu0 %v334, 2
        %v884 = vpop.permute.xlu0 %883
        %885 = vrot.lane.b32.xlu0 %v335, 2
        %v886 = vpop.permute.xlu0 %885
        %887 = vrot.lane.b32.xlu0 %v336, 2
        %v888 = vpop.permute.xlu0 %887
        %890 = vset.pattern.permute.xlu0 0
        %891 = vperm.xlu0 %890, %v329
        %v892 = vpop.permute.xlu0 %891
        %895 = vset.pattern.permute.xlu0 0
        %896 = vperm.xlu0 %895, %v330
        %v897 = vpop.permute.xlu0 %896
        %900 = vset.pattern.permute.xlu0 0
        %901 = vperm.xlu0 %900, %v331
        %v902 = vpop.permute.xlu0 %901
        %905 = vset.pattern.permute.xlu0 0
        %906 = vperm.xlu0 %905, %v332
        %v907 = vpop.permute.xlu0 %906
        %910 = vset.pattern.permute.xlu0 0
        %911 = vperm.xlu0 %910, %v333
        %v912 = vpop.permute.xlu0 %911
        %915 = vset.pattern.permute.xlu0 0
        %916 = vperm.xlu0 %915, %v334
        %v917 = vpop.permute.xlu0 %916
        %920 = vset.pattern.permute.xlu0 0
        %921 = vperm.xlu0 %920, %v335
        %v922 = vpop.permute.xlu0 %921
        %925 = vset.pattern.permute.xlu0 0
        %926 = vperm.xlu0 %925, %v336
        %v927 = vpop.permute.xlu0 %926
        %v929 = vsel %vm718, %v892, %v874
        %v930 = vsel %vm718, %v897, %v876
        %v931 = vsel %vm718, %v902, %v878
        %v932 = vsel %vm718, %v907, %v880
        %v933 = vsel %vm718, %v912, %v882
        %v934 = vsel %vm718, %v917, %v884
        %v935 = vsel %vm718, %v922, %v886
        %v936 = vsel %vm718, %v927, %v888
        %937 = vrot.lane.b32.xlu0 %v329, 126
        %v938 = vpop.permute.xlu0 %937
        %939 = vrot.lane.b32.xlu0 %v330, 126
        %v940 = vpop.permute.xlu0 %939
        %941 = vrot.lane.b32.xlu0 %v331, 126
        %v942 = vpop.permute.xlu0 %941
        %943 = vrot.lane.b32.xlu0 %v332, 126
        %v944 = vpop.permute.xlu0 %943
        %945 = vrot.lane.b32.xlu0 %v333, 126
        %v946 = vpop.permute.xlu0 %945
        %947 = vrot.lane.b32.xlu0 %v334, 126
        %v948 = vpop.permute.xlu0 %947
        %949 = vrot.lane.b32.xlu0 %v335, 126
        %v950 = vpop.permute.xlu0 %949
        %951 = vrot.lane.b32.xlu0 %v336, 126
        %v952 = vpop.permute.xlu0 %951
        %953 = vset.pattern.permute.xlu0 127
        %954 = vperm.xlu0 %953, %v329
        %v955 = vpop.permute.xlu0 %954
        %957 = vset.pattern.permute.xlu0 127
        %958 = vperm.xlu0 %957, %v330
        %v959 = vpop.permute.xlu0 %958
        %961 = vset.pattern.permute.xlu0 127
        %962 = vperm.xlu0 %961, %v331
        %v963 = vpop.permute.xlu0 %962
        %965 = vset.pattern.permute.xlu0 127
        %966 = vperm.xlu0 %965, %v332
        %v967 = vpop.permute.xlu0 %966
        %969 = vset.pattern.permute.xlu0 127
        %970 = vperm.xlu0 %969, %v333
        %v971 = vpop.permute.xlu0 %970
        %973 = vset.pattern.permute.xlu0 127
        %974 = vperm.xlu0 %973, %v334
        %v975 = vpop.permute.xlu0 %974
        %977 = vset.pattern.permute.xlu0 127
        %978 = vperm.xlu0 %977, %v335
        %v979 = vpop.permute.xlu0 %978
        %981 = vset.pattern.permute.xlu0 127
        %982 = vperm.xlu0 %981, %v336
        %v983 = vpop.permute.xlu0 %982
        %v985 = vsel %vm784, %v955, %v938
        %v986 = vsel %vm784, %v959, %v940
        %v987 = vsel %vm784, %v963, %v942
        %v988 = vsel %vm784, %v967, %v944
        %v989 = vsel %vm784, %v971, %v946
        %v990 = vsel %vm784, %v975, %v948
        %v991 = vsel %vm784, %v979, %v950
        %v992 = vsel %vm784, %v983, %v952
        %v993 = vadd.f32 %v395, %v267
        %v994 = vadd.f32 %v396, %v268
        %v995 = vadd.f32 %v397, %v269
        %v996 = vadd.f32 %v398, %v270
        %v997 = vadd.f32 %v399, %v271
        %v998 = vadd.f32 %v400, %v272
        %v999 = vadd.f32 %v401, %v273
        %v1000 = vadd.f32 %v402, %v274
        %v1001 = vadd.f32 %v993, %v453
        %v1002 = vadd.f32 %v994, %v454
        %v1003 = vadd.f32 %v995, %v455
        %v1004 = vadd.f32 %v996, %v456
        %v1005 = vadd.f32 %v997, %v457
        %v1006 = vadd.f32 %v998, %v458
        %v1007 = vadd.f32 %v999, %v459
        %v1008 = vadd.f32 %v1000, %v460
        %v1009 = vadd.f32 %v1001, %v517
        %v1010 = vadd.f32 %v1002, %v518
        %v1011 = vadd.f32 %v1003, %v519
        %v1012 = vadd.f32 %v1004, %v520
        %v1013 = vadd.f32 %v1005, %v521
        %v1014 = vadd.f32 %v1006, %v522
        %v1015 = vadd.f32 %v1007, %v523
        %v1016 = vadd.f32 %v1008, %v524
        %v1017 = vadd.f32 %v1009, %v573
        %v1018 = vadd.f32 %v1010, %v574
        %v1019 = vadd.f32 %v1011, %v575
        %v1020 = vadd.f32 %v1012, %v576
        %v1021 = vadd.f32 %v1013, %v577
        %v1022 = vadd.f32 %v1014, %v578
        %v1023 = vadd.f32 %v1015, %v579
        %v1024 = vadd.f32 %v1016, %v580
        %v1025 = vadd.f32 %v1017, %v637
        %v1026 = vadd.f32 %v1018, %v638
        %v1027 = vadd.f32 %v1019, %v639
        %v1028 = vadd.f32 %v1020, %v640
        %v1029 = vadd.f32 %v1021, %v641
        %v1030 = vadd.f32 %v1022, %v642
        %v1031 = vadd.f32 %v1023, %v643
        %v1032 = vadd.f32 %v1024, %v644
        %v1033 = vadd.f32 %v1025, %v300
        %v1034 = vadd.f32 %v1026, %v301
        %v1035 = vadd.f32 %v1027, %v302
        %v1036 = vadd.f32 %v1028, %v303
        %v1037 = vadd.f32 %v1029, %v304
        %v1038 = vadd.f32 %v1030, %v305
        %v1039 = vadd.f32 %v1031, %v306
        %v1040 = vadd.f32 %v1032, %v307
        %v1041 = vadd.f32 %v1033, %v693
        %v1042 = vadd.f32 %v1034, %v694
        %v1043 = vadd.f32 %v1035, %v695
        %v1044 = vadd.f32 %v1036, %v696
        %v1045 = vadd.f32 %v1037, %v697
        %v1046 = vadd.f32 %v1038, %v698
        %v1047 = vadd.f32 %v1039, %v699
        %v1048 = vadd.f32 %v1040, %v700
        %v1049 = vadd.f32 %v1041, %v759
        %v1050 = vadd.f32 %v1042, %v760
        %v1051 = vadd.f32 %v1043, %v761
        %v1052 = vadd.f32 %v1044, %v762
        %v1053 = vadd.f32 %v1045, %v763
        %v1054 = vadd.f32 %v1046, %v764
        %v1055 = vadd.f32 %v1047, %v765
        %v1056 = vadd.f32 %v1048, %v766
        %v1057 = vadd.f32 %v1049, %v239
        %v1058 = vadd.f32 %v1050, %v240
        %v1059 = vadd.f32 %v1051, %v241
        %v1060 = vadd.f32 %v1052, %v242
        %v1061 = vadd.f32 %v1053, %v243
        %v1062 = vadd.f32 %v1054, %v244
        %v1063 = vadd.f32 %v1055, %v245
        %v1064 = vadd.f32 %v1056, %v246
        %v1065 = vadd.f32 %v1057, %v817
        %v1066 = vadd.f32 %v1058, %v818
        %v1067 = vadd.f32 %v1059, %v819
        %v1068 = vadd.f32 %v1060, %v820
        %v1069 = vadd.f32 %v1061, %v821
        %v1070 = vadd.f32 %v1062, %v822
        %v1071 = vadd.f32 %v1063, %v823
        %v1072 = vadd.f32 %v1064, %v824
        %v1073 = vadd.f32 %v1065, %v841
        %v1074 = vadd.f32 %v1066, %v842
        %v1075 = vadd.f32 %v1067, %v843
        %v1076 = vadd.f32 %v1068, %v844
        %v1077 = vadd.f32 %v1069, %v845
        %v1078 = vadd.f32 %v1070, %v846
        %v1079 = vadd.f32 %v1071, %v847
        %v1080 = vadd.f32 %v1072, %v848
        %v1081 = vadd.f32 %v1073, %v865
        %v1082 = vadd.f32 %v1074, %v866
        %v1083 = vadd.f32 %v1075, %v867
        %v1084 = vadd.f32 %v1076, %v868
        %v1085 = vadd.f32 %v1077, %v869
        %v1086 = vadd.f32 %v1078, %v870
        %v1087 = vadd.f32 %v1079, %v871
        %v1088 = vadd.f32 %v1080, %v872
        %v1089 = vadd.f32 %v1081, %v929
        %v1090 = vadd.f32 %v1082, %v930
        %v1091 = vadd.f32 %v1083, %v931
        %v1092 = vadd.f32 %v1084, %v932
        %v1093 = vadd.f32 %v1085, %v933
        %v1094 = vadd.f32 %v1086, %v934
        %v1095 = vadd.f32 %v1087, %v935
        %v1096 = vadd.f32 %v1088, %v936
        %v1097 = vadd.f32 %v1089, %v329
        %v1098 = vadd.f32 %v1090, %v330
        %v1099 = vadd.f32 %v1091, %v331
        %v1100 = vadd.f32 %v1092, %v332
        %v1101 = vadd.f32 %v1093, %v333
        %v1102 = vadd.f32 %v1094, %v334
        %v1103 = vadd.f32 %v1095, %v335
        %v1104 = vadd.f32 %v1096, %v336
        %v1105 = vadd.f32 %v1097, %v985
        %v1106 = vadd.f32 %v1098, %v986
        %v1107 = vadd.f32 %v1099, %v987
        %v1108 = vadd.f32 %v1100, %v988
        %v1109 = vadd.f32 %v1101, %v989
        %v1110 = vadd.f32 %v1102, %v990
        %v1111 = vadd.f32 %v1103, %v991
        %v1112 = vadd.f32 %v1104, %v992
        %v1113 = vmul.f32 %v1105, 0.0625
        %v1114 = vmul.f32 %v1106, 0.0625
        %v1115 = vmul.f32 %v1107, 0.0625
        %v1116 = vmul.f32 %v1108, 0.0625
        %v1117 = vmul.f32 %v1109, 0.0625
        %v1118 = vmul.f32 %v1110, 0.0625
        %v1119 = vmul.f32 %v1111, 0.0625
        %v1120 = vmul.f32 %v1112, 0.0625
        %v1121 = vsub.f32 %v395, %v1113
        %v1122 = vsub.f32 %v396, %v1114
        %v1123 = vsub.f32 %v397, %v1115
        %v1124 = vsub.f32 %v398, %v1116
        %v1125 = vsub.f32 %v399, %v1117
        %v1126 = vsub.f32 %v400, %v1118
        %v1127 = vsub.f32 %v401, %v1119
        %v1128 = vsub.f32 %v402, %v1120
        %v1129 = vmul.f32 %v1121, %v1121
        %v1130 = vmul.f32 %v1122, %v1122
        %v1131 = vmul.f32 %v1123, %v1123
        %v1132 = vmul.f32 %v1124, %v1124
        %v1133 = vmul.f32 %v1125, %v1125
        %v1134 = vmul.f32 %v1126, %v1126
        %v1135 = vmul.f32 %v1127, %v1127
        %v1136 = vmul.f32 %v1128, %v1128
        %v1137 = vadd.f32 %v1129, 0.0
        %v1138 = vadd.f32 %v1130, 0.0
        %v1139 = vadd.f32 %v1131, 0.0
        %v1140 = vadd.f32 %v1132, 0.0
        %v1141 = vadd.f32 %v1133, 0.0
        %v1142 = vadd.f32 %v1134, 0.0
        %v1143 = vadd.f32 %v1135, 0.0
        %v1144 = vadd.f32 %v1136, 0.0
        %v1145 = vrot.slane %v395, 1
        %v1146 = vrot.slane %v396, 1
        %v1147 = vrot.slane %v397, 1
        %v1148 = vrot.slane %v398, 1
        %v1149 = vrot.slane %v399, 1
        %v1150 = vrot.slane %v400, 1
        %v1151 = vrot.slane %v401, 1
        %v1152 = vrot.slane %v402, 1
        %v1153 = vsel %vm283, %v1151, %v1152
        %v1154 = vsel %vm283, %v1150, %v1151
        %v1155 = vsel %vm283, %v1149, %v1150
        %v1156 = vsel %vm283, %v1148, %v1149
        %v1157 = vsel %vm283, %v1147, %v1148
        %v1158 = vsel %vm283, %v1146, %v1147
        %v1159 = vsel %vm283, %v1145, %v1146
        %v1160 = vsel %vm283, %v1152, %v1145
        %v1161 = vperm.slane %v396, 7
        %v1162 = vperm.slane %v398, 7
        %v1163 = vperm.slane %v400, 7
        %v1164 = vperm.slane %v402, 7
        %v1165 = vsel %vm294, %v1161, %v1159
        %v1166 = vsel %vm295, %v1161, %v1158
        %v1167 = vsel %vm294, %v1162, %v1157
        %v1168 = vsel %vm295, %v1162, %v1156
        %v1169 = vsel %vm294, %v1163, %v1155
        %v1170 = vsel %vm295, %v1163, %v1154
        %v1171 = vsel %vm294, %v1164, %v1153
        %v1172 = vsel %vm295, %v1164, %v1160
        %1173 = vrot.lane.b32.xlu0 %v395, 127
        %v1174 = vpop.permute.xlu0 %1173
        %1175 = vrot.lane.b32.xlu0 %v396, 127
        %v1176 = vpop.permute.xlu0 %1175
        %1177 = vrot.lane.b32.xlu0 %v397, 127
        %v1178 = vpop.permute.xlu0 %1177
        %1179 = vrot.lane.b32.xlu0 %v398, 127
        %v1180 = vpop.permute.xlu0 %1179
        %1181 = vrot.lane.b32.xlu0 %v399, 127
        %v1182 = vpop.permute.xlu0 %1181
        %1183 = vrot.lane.b32.xlu0 %v400, 127
        %v1184 = vpop.permute.xlu0 %1183
        %1185 = vrot.lane.b32.xlu0 %v401, 127
        %v1186 = vpop.permute.xlu0 %1185
        %1187 = vrot.lane.b32.xlu0 %v402, 127
        %v1188 = vpop.permute.xlu0 %1187
        %1190 = vset.pattern.permute.xlu0 127
        %1191 = vperm.xlu0 %1190, %v395
        %v1192 = vpop.permute.xlu0 %1191
        %1195 = vset.pattern.permute.xlu0 127
        %1196 = vperm.xlu0 %1195, %v396
        %v1197 = vpop.permute.xlu0 %1196
        %1200 = vset.pattern.permute.xlu0 127
        %1201 = vperm.xlu0 %1200, %v397
        %v1202 = vpop.permute.xlu0 %1201
        %1205 = vset.pattern.permute.xlu0 127
        %1206 = vperm.xlu0 %1205, %v398
        %v1207 = vpop.permute.xlu0 %1206
        %1210 = vset.pattern.permute.xlu0 127
        %1211 = vperm.xlu0 %1210, %v399
        %v1212 = vpop.permute.xlu0 %1211
        %1215 = vset.pattern.permute.xlu0 127
        %1216 = vperm.xlu0 %1215, %v400
        %v1217 = vpop.permute.xlu0 %1216
        %1220 = vset.pattern.permute.xlu0 127
        %1221 = vperm.xlu0 %1220, %v401
        %v1222 = vpop.permute.xlu0 %1221
        %1225 = vset.pattern.permute.xlu0 127
        %1226 = vperm.xlu0 %1225, %v402
        %v1227 = vpop.permute.xlu0 %1226
        %v1229 = vsel %vm420, %v1192, %v1174
        %v1230 = vsel %vm420, %v1197, %v1176
        %v1231 = vsel %vm420, %v1202, %v1178
        %v1232 = vsel %vm420, %v1207, %v1180
        %v1233 = vsel %vm420, %v1212, %v1182
        %v1234 = vsel %vm420, %v1217, %v1184
        %v1235 = vsel %vm420, %v1222, %v1186
        %v1236 = vsel %vm420, %v1227, %v1188
        %v1237 = vsub.f32 %v395, %v1165
        %v1238 = vsub.f32 %v396, %v1166
        %v1239 = vsub.f32 %v397, %v1167
        %v1240 = vsub.f32 %v398, %v1168
        %v1241 = vsub.f32 %v399, %v1169
        %v1242 = vsub.f32 %v400, %v1170
        %v1243 = vsub.f32 %v401, %v1171
        %v1244 = vsub.f32 %v402, %v1172
        %v1245 = vmul.f32 %v1237, %v1237
        %v1246 = vmul.f32 %v1238, %v1238
        %v1247 = vmul.f32 %v1239, %v1239
        %v1248 = vmul.f32 %v1240, %v1240
        %v1249 = vmul.f32 %v1241, %v1241
        %v1250 = vmul.f32 %v1242, %v1242
        %v1251 = vmul.f32 %v1243, %v1243
        %v1252 = vmul.f32 %v1244, %v1244
        %v1253 = vsub.f32 %v395, %v1229
        %v1254 = vsub.f32 %v396, %v1230
        %v1255 = vsub.f32 %v397, %v1231
        %v1256 = vsub.f32 %v398, %v1232
        %v1257 = vsub.f32 %v399, %v1233
        %v1258 = vsub.f32 %v400, %v1234
        %v1259 = vsub.f32 %v401, %v1235
        %v1260 = vsub.f32 %v402, %v1236
        %v1261 = vmul.f32 %v1253, %v1253
        %v1262 = vmul.f32 %v1254, %v1254
        %v1263 = vmul.f32 %v1255, %v1255
        %v1264 = vmul.f32 %v1256, %v1256
        %v1265 = vmul.f32 %v1257, %v1257
        %v1266 = vmul.f32 %v1258, %v1258
        %v1267 = vmul.f32 %v1259, %v1259
        %v1268 = vmul.f32 %v1260, %v1260
        %v1269 = vadd.f32 %v1245, %v1261
        %v1270 = vadd.f32 %v1246, %v1262
        %v1271 = vadd.f32 %v1247, %v1263
        %v1272 = vadd.f32 %v1248, %v1264
        %v1273 = vadd.f32 %v1249, %v1265
        %v1274 = vadd.f32 %v1250, %v1266
        %v1275 = vadd.f32 %v1251, %v1267
        %v1276 = vadd.f32 %v1252, %v1268
        %v1277 = vadd.f32 %v1269, %v1271
        %v1278 = vadd.f32 %v1277, %v1273
        %v1279 = vadd.f32 %v1278, %v1275
        %v1280 = vadd.f32 %v1270, %v1272
        %v1281 = vadd.f32 %v1280, %v1274
        %v1282 = vadd.f32 %v1281, %v1276
        %v1283 = vmul.f32 %v1279, 0.25
        %v1284 = vmul.f32 %v1282, 0.25
        %v1285 = vsub.f32 %v267, %v1113
        %v1286 = vsub.f32 %v268, %v1114
        %v1287 = vsub.f32 %v269, %v1115
        %v1288 = vsub.f32 %v270, %v1116
        %v1289 = vsub.f32 %v271, %v1117
        %v1290 = vsub.f32 %v272, %v1118
        %v1291 = vsub.f32 %v273, %v1119
        %v1292 = vsub.f32 %v274, %v1120
        %v1293 = vmul.f32 %v1285, %v1285
        %v1294 = vmul.f32 %v1286, %v1286
        %v1295 = vmul.f32 %v1287, %v1287
        %v1296 = vmul.f32 %v1288, %v1288
        %v1297 = vmul.f32 %v1289, %v1289
        %v1298 = vmul.f32 %v1290, %v1290
        %v1299 = vmul.f32 %v1291, %v1291
        %v1300 = vmul.f32 %v1292, %v1292
        %v1301 = vadd.f32 %v1137, %v1293
        %v1302 = vadd.f32 %v1138, %v1294
        %v1303 = vadd.f32 %v1139, %v1295
        %v1304 = vadd.f32 %v1140, %v1296
        %v1305 = vadd.f32 %v1141, %v1297
        %v1306 = vadd.f32 %v1142, %v1298
        %v1307 = vadd.f32 %v1143, %v1299
        %v1308 = vadd.f32 %v1144, %v1300
        %v1309 = vrot.slane %v267, 1
        %v1310 = vrot.slane %v268, 1
        %v1311 = vrot.slane %v269, 1
        %v1312 = vrot.slane %v270, 1
        %v1313 = vrot.slane %v271, 1
        %v1314 = vrot.slane %v272, 1
        %v1315 = vrot.slane %v273, 1
        %v1316 = vrot.slane %v274, 1
        %v1317 = vsel %vm283, %v1315, %v1316
        %v1318 = vsel %vm283, %v1314, %v1315
        %v1319 = vsel %vm283, %v1313, %v1314
        %v1320 = vsel %vm283, %v1312, %v1313
        %v1321 = vsel %vm283, %v1311, %v1312
        %v1322 = vsel %vm283, %v1310, %v1311
        %v1323 = vsel %vm283, %v1309, %v1310
        %v1324 = vsel %vm283, %v1316, %v1309
        %v1325 = vperm.slane %v268, 7
        %v1326 = vperm.slane %v270, 7
        %v1327 = vperm.slane %v272, 7
        %v1328 = vperm.slane %v274, 7
        %v1329 = vsel %vm294, %v1325, %v1323
        %v1330 = vsel %vm295, %v1325, %v1322
        %v1331 = vsel %vm294, %v1326, %v1321
        %v1332 = vsel %vm295, %v1326, %v1320
        %v1333 = vsel %vm294, %v1327, %v1319
        %v1334 = vsel %vm295, %v1327, %v1318
        %v1335 = vsel %vm294, %v1328, %v1317
        %v1336 = vsel %vm295, %v1328, %v1324
        %v1337 = vsub.f32 %v267, %v1329
        %v1338 = vsub.f32 %v268, %v1330
        %v1339 = vsub.f32 %v269, %v1331
        %v1340 = vsub.f32 %v270, %v1332
        %v1341 = vsub.f32 %v271, %v1333
        %v1342 = vsub.f32 %v272, %v1334
        %v1343 = vsub.f32 %v273, %v1335
        %v1344 = vsub.f32 %v274, %v1336
        %v1345 = vmul.f32 %v1337, %v1337
        %v1346 = vmul.f32 %v1338, %v1338
        %v1347 = vmul.f32 %v1339, %v1339
        %v1348 = vmul.f32 %v1340, %v1340
        %v1349 = vmul.f32 %v1341, %v1341
        %v1350 = vmul.f32 %v1342, %v1342
        %v1351 = vmul.f32 %v1343, %v1343
        %v1352 = vmul.f32 %v1344, %v1344
        %v1353 = vsub.f32 %v267, %v453
        %v1354 = vsub.f32 %v268, %v454
        %v1355 = vsub.f32 %v269, %v455
        %v1356 = vsub.f32 %v270, %v456
        %v1357 = vsub.f32 %v271, %v457
        %v1358 = vsub.f32 %v272, %v458
        %v1359 = vsub.f32 %v273, %v459
        %v1360 = vsub.f32 %v274, %v460
        %v1361 = vmul.f32 %v1353, %v1353
        %v1362 = vmul.f32 %v1354, %v1354
        %v1363 = vmul.f32 %v1355, %v1355
        %v1364 = vmul.f32 %v1356, %v1356
        %v1365 = vmul.f32 %v1357, %v1357
        %v1366 = vmul.f32 %v1358, %v1358
        %v1367 = vmul.f32 %v1359, %v1359
        %v1368 = vmul.f32 %v1360, %v1360
        %v1369 = vadd.f32 %v1345, %v1361
        %v1370 = vadd.f32 %v1346, %v1362
        %v1371 = vadd.f32 %v1347, %v1363
        %v1372 = vadd.f32 %v1348, %v1364
        %v1373 = vadd.f32 %v1349, %v1365
        %v1374 = vadd.f32 %v1350, %v1366
        %v1375 = vadd.f32 %v1351, %v1367
        %v1376 = vadd.f32 %v1352, %v1368
        %v1377 = vadd.f32 %v1369, %v1371
        %v1378 = vadd.f32 %v1377, %v1373
        %v1379 = vadd.f32 %v1378, %v1375
        %v1380 = vadd.f32 %v1370, %v1372
        %v1381 = vadd.f32 %v1380, %v1374
        %v1382 = vadd.f32 %v1381, %v1376
        %v1383 = vmul.f32 %v1379, 0.25
        %v1384 = vmul.f32 %v1382, 0.25
        %v1385 = vsub.f32 %v453, %v1113
        %v1386 = vsub.f32 %v454, %v1114
        %v1387 = vsub.f32 %v455, %v1115
        %v1388 = vsub.f32 %v456, %v1116
        %v1389 = vsub.f32 %v457, %v1117
        %v1390 = vsub.f32 %v458, %v1118
        %v1391 = vsub.f32 %v459, %v1119
        %v1392 = vsub.f32 %v460, %v1120
        %v1393 = vmul.f32 %v1385, %v1385
        %v1394 = vmul.f32 %v1386, %v1386
        %v1395 = vmul.f32 %v1387, %v1387
        %v1396 = vmul.f32 %v1388, %v1388
        %v1397 = vmul.f32 %v1389, %v1389
        %v1398 = vmul.f32 %v1390, %v1390
        %v1399 = vmul.f32 %v1391, %v1391
        %v1400 = vmul.f32 %v1392, %v1392
        %v1401 = vadd.f32 %v1301, %v1393
        %v1402 = vadd.f32 %v1302, %v1394
        %v1403 = vadd.f32 %v1303, %v1395
        %v1404 = vadd.f32 %v1304, %v1396
        %v1405 = vadd.f32 %v1305, %v1397
        %v1406 = vadd.f32 %v1306, %v1398
        %v1407 = vadd.f32 %v1307, %v1399
        %v1408 = vadd.f32 %v1308, %v1400
        %v1409 = vrot.slane %v453, 1
        %v1410 = vrot.slane %v454, 1
        %v1411 = vrot.slane %v455, 1
        %v1412 = vrot.slane %v456, 1
        %v1413 = vrot.slane %v457, 1
        %v1414 = vrot.slane %v458, 1
        %v1415 = vrot.slane %v459, 1
        %v1416 = vrot.slane %v460, 1
        %v1417 = vsel %vm283, %v1415, %v1416
        %v1418 = vsel %vm283, %v1414, %v1415
        %v1419 = vsel %vm283, %v1413, %v1414
        %v1420 = vsel %vm283, %v1412, %v1413
        %v1421 = vsel %vm283, %v1411, %v1412
        %v1422 = vsel %vm283, %v1410, %v1411
        %v1423 = vsel %vm283, %v1409, %v1410
        %v1424 = vsel %vm283, %v1416, %v1409
        %v1425 = vperm.slane %v454, 7
        %v1426 = vperm.slane %v456, 7
        %v1427 = vperm.slane %v458, 7
        %v1428 = vperm.slane %v460, 7
        %v1429 = vsel %vm294, %v1425, %v1423
        %v1430 = vsel %vm295, %v1425, %v1422
        %v1431 = vsel %vm294, %v1426, %v1421
        %v1432 = vsel %vm295, %v1426, %v1420
        %v1433 = vsel %vm294, %v1427, %v1419
        %v1434 = vsel %vm295, %v1427, %v1418
        %v1435 = vsel %vm294, %v1428, %v1417
        %v1436 = vsel %vm295, %v1428, %v1424
        %1437 = vrot.lane.b32.xlu0 %v453, 127
        %v1438 = vpop.permute.xlu0 %1437
        %1439 = vrot.lane.b32.xlu0 %v454, 127
        %v1440 = vpop.permute.xlu0 %1439
        %1441 = vrot.lane.b32.xlu0 %v455, 127
        %v1442 = vpop.permute.xlu0 %1441
        %1443 = vrot.lane.b32.xlu0 %v456, 127
        %v1444 = vpop.permute.xlu0 %1443
        %1445 = vrot.lane.b32.xlu0 %v457, 127
        %v1446 = vpop.permute.xlu0 %1445
        %1447 = vrot.lane.b32.xlu0 %v458, 127
        %v1448 = vpop.permute.xlu0 %1447
        %1449 = vrot.lane.b32.xlu0 %v459, 127
        %v1450 = vpop.permute.xlu0 %1449
        %1451 = vrot.lane.b32.xlu0 %v460, 127
        %v1452 = vpop.permute.xlu0 %1451
        %1454 = vset.pattern.permute.xlu0 127
        %1455 = vperm.xlu0 %1454, %v453
        %v1456 = vpop.permute.xlu0 %1455
        %1459 = vset.pattern.permute.xlu0 127
        %1460 = vperm.xlu0 %1459, %v454
        %v1461 = vpop.permute.xlu0 %1460
        %1464 = vset.pattern.permute.xlu0 127
        %1465 = vperm.xlu0 %1464, %v455
        %v1466 = vpop.permute.xlu0 %1465
        %1469 = vset.pattern.permute.xlu0 127
        %1470 = vperm.xlu0 %1469, %v456
        %v1471 = vpop.permute.xlu0 %1470
        %1474 = vset.pattern.permute.xlu0 127
        %1475 = vperm.xlu0 %1474, %v457
        %v1476 = vpop.permute.xlu0 %1475
        %1479 = vset.pattern.permute.xlu0 127
        %1480 = vperm.xlu0 %1479, %v458
        %v1481 = vpop.permute.xlu0 %1480
        %1484 = vset.pattern.permute.xlu0 127
        %1485 = vperm.xlu0 %1484, %v459
        %v1486 = vpop.permute.xlu0 %1485
        %1489 = vset.pattern.permute.xlu0 127
        %1490 = vperm.xlu0 %1489, %v460
        %v1491 = vpop.permute.xlu0 %1490
        %v1493 = vsel %vm420, %v1456, %v1438
        %v1494 = vsel %vm420, %v1461, %v1440
        %v1495 = vsel %vm420, %v1466, %v1442
        %v1496 = vsel %vm420, %v1471, %v1444
        %v1497 = vsel %vm420, %v1476, %v1446
        %v1498 = vsel %vm420, %v1481, %v1448
        %v1499 = vsel %vm420, %v1486, %v1450
        %v1500 = vsel %vm420, %v1491, %v1452
        %v1501 = vsub.f32 %v453, %v1429
        %v1502 = vsub.f32 %v454, %v1430
        %v1503 = vsub.f32 %v455, %v1431
        %v1504 = vsub.f32 %v456, %v1432
        %v1505 = vsub.f32 %v457, %v1433
        %v1506 = vsub.f32 %v458, %v1434
        %v1507 = vsub.f32 %v459, %v1435
        %v1508 = vsub.f32 %v460, %v1436
        %v1509 = vmul.f32 %v1501, %v1501
        %v1510 = vmul.f32 %v1502, %v1502
        %v1511 = vmul.f32 %v1503, %v1503
        %v1512 = vmul.f32 %v1504, %v1504
        %v1513 = vmul.f32 %v1505, %v1505
        %v1514 = vmul.f32 %v1506, %v1506
        %v1515 = vmul.f32 %v1507, %v1507
        %v1516 = vmul.f32 %v1508, %v1508
        %v1517 = vsub.f32 %v453, %v1493
        %v1518 = vsub.f32 %v454, %v1494
        %v1519 = vsub.f32 %v455, %v1495
        %v1520 = vsub.f32 %v456, %v1496
        %v1521 = vsub.f32 %v457, %v1497
        %v1522 = vsub.f32 %v458, %v1498
        %v1523 = vsub.f32 %v459, %v1499
        %v1524 = vsub.f32 %v460, %v1500
        %v1525 = vmul.f32 %v1517, %v1517
        %v1526 = vmul.f32 %v1518, %v1518
        %v1527 = vmul.f32 %v1519, %v1519
        %v1528 = vmul.f32 %v1520, %v1520
        %v1529 = vmul.f32 %v1521, %v1521
        %v1530 = vmul.f32 %v1522, %v1522
        %v1531 = vmul.f32 %v1523, %v1523
        %v1532 = vmul.f32 %v1524, %v1524
        %v1533 = vadd.f32 %v1509, %v1525
        %v1534 = vadd.f32 %v1510, %v1526
        %v1535 = vadd.f32 %v1511, %v1527
        %v1536 = vadd.f32 %v1512, %v1528
        %v1537 = vadd.f32 %v1513, %v1529
        %v1538 = vadd.f32 %v1514, %v1530
        %v1539 = vadd.f32 %v1515, %v1531
        %v1540 = vadd.f32 %v1516, %v1532
        %v1541 = vadd.f32 %v1533, %v1535
        %v1542 = vadd.f32 %v1541, %v1537
        %v1543 = vadd.f32 %v1542, %v1539
        %v1544 = vadd.f32 %v1534, %v1536
        %v1545 = vadd.f32 %v1544, %v1538
        %v1546 = vadd.f32 %v1545, %v1540
        %v1547 = vmul.f32 %v1543, 0.25
        %v1548 = vmul.f32 %v1546, 0.25
        %v1549 = vsub.f32 %v517, %v1113
        %v1550 = vsub.f32 %v518, %v1114
        %v1551 = vsub.f32 %v519, %v1115
        %v1552 = vsub.f32 %v520, %v1116
        %v1553 = vsub.f32 %v521, %v1117
        %v1554 = vsub.f32 %v522, %v1118
        %v1555 = vsub.f32 %v523, %v1119
        %v1556 = vsub.f32 %v524, %v1120
        %v1557 = vmul.f32 %v1549, %v1549
        %v1558 = vmul.f32 %v1550, %v1550
        %v1559 = vmul.f32 %v1551, %v1551
        %v1560 = vmul.f32 %v1552, %v1552
        %v1561 = vmul.f32 %v1553, %v1553
        %v1562 = vmul.f32 %v1554, %v1554
        %v1563 = vmul.f32 %v1555, %v1555
        %v1564 = vmul.f32 %v1556, %v1556
        %v1565 = vadd.f32 %v1401, %v1557
        %v1566 = vadd.f32 %v1402, %v1558
        %v1567 = vadd.f32 %v1403, %v1559
        %v1568 = vadd.f32 %v1404, %v1560
        %v1569 = vadd.f32 %v1405, %v1561
        %v1570 = vadd.f32 %v1406, %v1562
        %v1571 = vadd.f32 %v1407, %v1563
        %v1572 = vadd.f32 %v1408, %v1564
        %v1573 = vrot.slane %v517, 1
        %v1574 = vrot.slane %v518, 1
        %v1575 = vrot.slane %v519, 1
        %v1576 = vrot.slane %v520, 1
        %v1577 = vrot.slane %v521, 1
        %v1578 = vrot.slane %v522, 1
        %v1579 = vrot.slane %v523, 1
        %v1580 = vrot.slane %v524, 1
        %v1581 = vsel %vm283, %v1579, %v1580
        %v1582 = vsel %vm283, %v1578, %v1579
        %v1583 = vsel %vm283, %v1577, %v1578
        %v1584 = vsel %vm283, %v1576, %v1577
        %v1585 = vsel %vm283, %v1575, %v1576
        %v1586 = vsel %vm283, %v1574, %v1575
        %v1587 = vsel %vm283, %v1573, %v1574
        %v1588 = vsel %vm283, %v1580, %v1573
        %v1589 = vperm.slane %v518, 7
        %v1590 = vperm.slane %v520, 7
        %v1591 = vperm.slane %v522, 7
        %v1592 = vperm.slane %v524, 7
        %v1593 = vsel %vm294, %v1589, %v1587
        %v1594 = vsel %vm295, %v1589, %v1586
        %v1595 = vsel %vm294, %v1590, %v1585
        %v1596 = vsel %vm295, %v1590, %v1584
        %v1597 = vsel %vm294, %v1591, %v1583
        %v1598 = vsel %vm295, %v1591, %v1582
        %v1599 = vsel %vm294, %v1592, %v1581
        %v1600 = vsel %vm295, %v1592, %v1588
        %1601 = vrot.lane.b32.xlu0 %v517, 127
        %v1602 = vpop.permute.xlu0 %1601
        %1603 = vrot.lane.b32.xlu0 %v518, 127
        %v1604 = vpop.permute.xlu0 %1603
        %1605 = vrot.lane.b32.xlu0 %v519, 127
        %v1606 = vpop.permute.xlu0 %1605
        %1607 = vrot.lane.b32.xlu0 %v520, 127
        %v1608 = vpop.permute.xlu0 %1607
        %1609 = vrot.lane.b32.xlu0 %v521, 127
        %v1610 = vpop.permute.xlu0 %1609
        %1611 = vrot.lane.b32.xlu0 %v522, 127
        %v1612 = vpop.permute.xlu0 %1611
        %1613 = vrot.lane.b32.xlu0 %v523, 127
        %v1614 = vpop.permute.xlu0 %1613
        %1615 = vrot.lane.b32.xlu0 %v524, 127
        %v1616 = vpop.permute.xlu0 %1615
        %1618 = vset.pattern.permute.xlu0 127
        %1619 = vperm.xlu0 %1618, %v517
        %v1620 = vpop.permute.xlu0 %1619
        %1623 = vset.pattern.permute.xlu0 127
        %1624 = vperm.xlu0 %1623, %v518
        %v1625 = vpop.permute.xlu0 %1624
        %1628 = vset.pattern.permute.xlu0 127
        %1629 = vperm.xlu0 %1628, %v519
        %v1630 = vpop.permute.xlu0 %1629
        %1633 = vset.pattern.permute.xlu0 127
        %1634 = vperm.xlu0 %1633, %v520
        %v1635 = vpop.permute.xlu0 %1634
        %1638 = vset.pattern.permute.xlu0 127
        %1639 = vperm.xlu0 %1638, %v521
        %v1640 = vpop.permute.xlu0 %1639
        %1643 = vset.pattern.permute.xlu0 127
        %1644 = vperm.xlu0 %1643, %v522
        %v1645 = vpop.permute.xlu0 %1644
        %1648 = vset.pattern.permute.xlu0 127
        %1649 = vperm.xlu0 %1648, %v523
        %v1650 = vpop.permute.xlu0 %1649
        %1653 = vset.pattern.permute.xlu0 127
        %1654 = vperm.xlu0 %1653, %v524
        %v1655 = vpop.permute.xlu0 %1654
        %v1657 = vsel %vm420, %v1620, %v1602
        %v1658 = vsel %vm420, %v1625, %v1604
        %v1659 = vsel %vm420, %v1630, %v1606
        %v1660 = vsel %vm420, %v1635, %v1608
        %v1661 = vsel %vm420, %v1640, %v1610
        %v1662 = vsel %vm420, %v1645, %v1612
        %v1663 = vsel %vm420, %v1650, %v1614
        %v1664 = vsel %vm420, %v1655, %v1616
        %v1665 = vsub.f32 %v517, %v1593
        %v1666 = vsub.f32 %v518, %v1594
        %v1667 = vsub.f32 %v519, %v1595
        %v1668 = vsub.f32 %v520, %v1596
        %v1669 = vsub.f32 %v521, %v1597
        %v1670 = vsub.f32 %v522, %v1598
        %v1671 = vsub.f32 %v523, %v1599
        %v1672 = vsub.f32 %v524, %v1600
        %v1673 = vmul.f32 %v1665, %v1665
        %v1674 = vmul.f32 %v1666, %v1666
        %v1675 = vmul.f32 %v1667, %v1667
        %v1676 = vmul.f32 %v1668, %v1668
        %v1677 = vmul.f32 %v1669, %v1669
        %v1678 = vmul.f32 %v1670, %v1670
        %v1679 = vmul.f32 %v1671, %v1671
        %v1680 = vmul.f32 %v1672, %v1672
        %v1681 = vsub.f32 %v517, %v1657
        %v1682 = vsub.f32 %v518, %v1658
        %v1683 = vsub.f32 %v519, %v1659
        %v1684 = vsub.f32 %v520, %v1660
        %v1685 = vsub.f32 %v521, %v1661
        %v1686 = vsub.f32 %v522, %v1662
        %v1687 = vsub.f32 %v523, %v1663
        %v1688 = vsub.f32 %v524, %v1664
        %v1689 = vmul.f32 %v1681, %v1681
        %v1690 = vmul.f32 %v1682, %v1682
        %v1691 = vmul.f32 %v1683, %v1683
        %v1692 = vmul.f32 %v1684, %v1684
        %v1693 = vmul.f32 %v1685, %v1685
        %v1694 = vmul.f32 %v1686, %v1686
        %v1695 = vmul.f32 %v1687, %v1687
        %v1696 = vmul.f32 %v1688, %v1688
        %v1697 = vadd.f32 %v1673, %v1689
        %v1698 = vadd.f32 %v1674, %v1690
        %v1699 = vadd.f32 %v1675, %v1691
        %v1700 = vadd.f32 %v1676, %v1692
        %v1701 = vadd.f32 %v1677, %v1693
        %v1702 = vadd.f32 %v1678, %v1694
        %v1703 = vadd.f32 %v1679, %v1695
        %v1704 = vadd.f32 %v1680, %v1696
        %v1705 = vadd.f32 %v1697, %v1699
        %v1706 = vadd.f32 %v1705, %v1701
        %v1707 = vadd.f32 %v1706, %v1703
        %v1708 = vadd.f32 %v1698, %v1700
        %v1709 = vadd.f32 %v1708, %v1702
        %v1710 = vadd.f32 %v1709, %v1704
        %v1711 = vmul.f32 %v1707, 0.25
        %v1712 = vmul.f32 %v1710, 0.25
        %v1713 = vsub.f32 %v573, %v1113
        %v1714 = vsub.f32 %v574, %v1114
        %v1715 = vsub.f32 %v575, %v1115
        %v1716 = vsub.f32 %v576, %v1116
        %v1717 = vsub.f32 %v577, %v1117
        %v1718 = vsub.f32 %v578, %v1118
        %v1719 = vsub.f32 %v579, %v1119
        %v1720 = vsub.f32 %v580, %v1120
        %v1721 = vmul.f32 %v1713, %v1713
        %v1722 = vmul.f32 %v1714, %v1714
        %v1723 = vmul.f32 %v1715, %v1715
        %v1724 = vmul.f32 %v1716, %v1716
        %v1725 = vmul.f32 %v1717, %v1717
        %v1726 = vmul.f32 %v1718, %v1718
        %v1727 = vmul.f32 %v1719, %v1719
        %v1728 = vmul.f32 %v1720, %v1720
        %v1729 = vadd.f32 %v1565, %v1721
        %v1730 = vadd.f32 %v1566, %v1722
        %v1731 = vadd.f32 %v1567, %v1723
        %v1732 = vadd.f32 %v1568, %v1724
        %v1733 = vadd.f32 %v1569, %v1725
        %v1734 = vadd.f32 %v1570, %v1726
        %v1735 = vadd.f32 %v1571, %v1727
        %v1736 = vadd.f32 %v1572, %v1728
        %v1737 = vrot.slane %v573, 1
        %v1738 = vrot.slane %v574, 1
        %v1739 = vrot.slane %v575, 1
        %v1740 = vrot.slane %v576, 1
        %v1741 = vrot.slane %v577, 1
        %v1742 = vrot.slane %v578, 1
        %v1743 = vrot.slane %v579, 1
        %v1744 = vrot.slane %v580, 1
        %v1745 = vsel %vm283, %v1743, %v1744
        %v1746 = vsel %vm283, %v1742, %v1743
        %v1747 = vsel %vm283, %v1741, %v1742
        %v1748 = vsel %vm283, %v1740, %v1741
        %v1749 = vsel %vm283, %v1739, %v1740
        %v1750 = vsel %vm283, %v1738, %v1739
        %v1751 = vsel %vm283, %v1737, %v1738
        %v1752 = vsel %vm283, %v1744, %v1737
        %v1753 = vperm.slane %v574, 7
        %v1754 = vperm.slane %v576, 7
        %v1755 = vperm.slane %v578, 7
        %v1756 = vperm.slane %v580, 7
        %v1757 = vsel %vm294, %v1753, %v1751
        %v1758 = vsel %vm295, %v1753, %v1750
        %v1759 = vsel %vm294, %v1754, %v1749
        %v1760 = vsel %vm295, %v1754, %v1748
        %v1761 = vsel %vm294, %v1755, %v1747
        %v1762 = vsel %vm295, %v1755, %v1746
        %v1763 = vsel %vm294, %v1756, %v1745
        %v1764 = vsel %vm295, %v1756, %v1752
        %1765 = vrot.lane.b32.xlu0 %v573, 127
        %v1766 = vpop.permute.xlu0 %1765
        %1767 = vrot.lane.b32.xlu0 %v574, 127
        %v1768 = vpop.permute.xlu0 %1767
        %1769 = vrot.lane.b32.xlu0 %v575, 127
        %v1770 = vpop.permute.xlu0 %1769
        %1771 = vrot.lane.b32.xlu0 %v576, 127
        %v1772 = vpop.permute.xlu0 %1771
        %1773 = vrot.lane.b32.xlu0 %v577, 127
        %v1774 = vpop.permute.xlu0 %1773
        %1775 = vrot.lane.b32.xlu0 %v578, 127
        %v1776 = vpop.permute.xlu0 %1775
        %1777 = vrot.lane.b32.xlu0 %v579, 127
        %v1778 = vpop.permute.xlu0 %1777
        %1779 = vrot.lane.b32.xlu0 %v580, 127
        %v1780 = vpop.permute.xlu0 %1779
        %1782 = vset.pattern.permute.xlu0 127
        %1783 = vperm.xlu0 %1782, %v573
        %v1784 = vpop.permute.xlu0 %1783
        %1787 = vset.pattern.permute.xlu0 127
        %1788 = vperm.xlu0 %1787, %v574
        %v1789 = vpop.permute.xlu0 %1788
        %1792 = vset.pattern.permute.xlu0 127
        %1793 = vperm.xlu0 %1792, %v575
        %v1794 = vpop.permute.xlu0 %1793
        %1797 = vset.pattern.permute.xlu0 127
        %1798 = vperm.xlu0 %1797, %v576
        %v1799 = vpop.permute.xlu0 %1798
        %1802 = vset.pattern.permute.xlu0 127
        %1803 = vperm.xlu0 %1802, %v577
        %v1804 = vpop.permute.xlu0 %1803
        %1807 = vset.pattern.permute.xlu0 127
        %1808 = vperm.xlu0 %1807, %v578
        %v1809 = vpop.permute.xlu0 %1808
        %1812 = vset.pattern.permute.xlu0 127
        %1813 = vperm.xlu0 %1812, %v579
        %v1814 = vpop.permute.xlu0 %1813
        %1817 = vset.pattern.permute.xlu0 127
        %1818 = vperm.xlu0 %1817, %v580
        %v1819 = vpop.permute.xlu0 %1818
        %v1821 = vsel %vm420, %v1784, %v1766
        %v1822 = vsel %vm420, %v1789, %v1768
        %v1823 = vsel %vm420, %v1794, %v1770
        %v1824 = vsel %vm420, %v1799, %v1772
        %v1825 = vsel %vm420, %v1804, %v1774
        %v1826 = vsel %vm420, %v1809, %v1776
        %v1827 = vsel %vm420, %v1814, %v1778
        %v1828 = vsel %vm420, %v1819, %v1780
        %v1829 = vsub.f32 %v573, %v1757
        %v1830 = vsub.f32 %v574, %v1758
        %v1831 = vsub.f32 %v575, %v1759
        %v1832 = vsub.f32 %v576, %v1760
        %v1833 = vsub.f32 %v577, %v1761
        %v1834 = vsub.f32 %v578, %v1762
        %v1835 = vsub.f32 %v579, %v1763
        %v1836 = vsub.f32 %v580, %v1764
        %v1837 = vmul.f32 %v1829, %v1829
        %v1838 = vmul.f32 %v1830, %v1830
        %v1839 = vmul.f32 %v1831, %v1831
        %v1840 = vmul.f32 %v1832, %v1832
        %v1841 = vmul.f32 %v1833, %v1833
        %v1842 = vmul.f32 %v1834, %v1834
        %v1843 = vmul.f32 %v1835, %v1835
        %v1844 = vmul.f32 %v1836, %v1836
        %v1845 = vsub.f32 %v573, %v1821
        %v1846 = vsub.f32 %v574, %v1822
        %v1847 = vsub.f32 %v575, %v1823
        %v1848 = vsub.f32 %v576, %v1824
        %v1849 = vsub.f32 %v577, %v1825
        %v1850 = vsub.f32 %v578, %v1826
        %v1851 = vsub.f32 %v579, %v1827
        %v1852 = vsub.f32 %v580, %v1828
        %v1853 = vmul.f32 %v1845, %v1845
        %v1854 = vmul.f32 %v1846, %v1846
        %v1855 = vmul.f32 %v1847, %v1847
        %v1856 = vmul.f32 %v1848, %v1848
        %v1857 = vmul.f32 %v1849, %v1849
        %v1858 = vmul.f32 %v1850, %v1850
        %v1859 = vmul.f32 %v1851, %v1851
        %v1860 = vmul.f32 %v1852, %v1852
        %v1861 = vadd.f32 %v1837, %v1853
        %v1862 = vadd.f32 %v1838, %v1854
        %v1863 = vadd.f32 %v1839, %v1855
        %v1864 = vadd.f32 %v1840, %v1856
        %v1865 = vadd.f32 %v1841, %v1857
        %v1866 = vadd.f32 %v1842, %v1858
        %v1867 = vadd.f32 %v1843, %v1859
        %v1868 = vadd.f32 %v1844, %v1860
        %v1869 = vadd.f32 %v1861, %v1863
        %v1870 = vadd.f32 %v1869, %v1865
        %v1871 = vadd.f32 %v1870, %v1867
        %v1872 = vadd.f32 %v1862, %v1864
        %v1873 = vadd.f32 %v1872, %v1866
        %v1874 = vadd.f32 %v1873, %v1868
        %v1875 = vmul.f32 %v1871, 0.25
        %v1876 = vmul.f32 %v1874, 0.25
        %v1877 = vsub.f32 %v637, %v1113
        %v1878 = vsub.f32 %v638, %v1114
        %v1879 = vsub.f32 %v639, %v1115
        %v1880 = vsub.f32 %v640, %v1116
        %v1881 = vsub.f32 %v641, %v1117
        %v1882 = vsub.f32 %v642, %v1118
        %v1883 = vsub.f32 %v643, %v1119
        %v1884 = vsub.f32 %v644, %v1120
        %v1885 = vmul.f32 %v1877, %v1877
        %v1886 = vmul.f32 %v1878, %v1878
        %v1887 = vmul.f32 %v1879, %v1879
        %v1888 = vmul.f32 %v1880, %v1880
        %v1889 = vmul.f32 %v1881, %v1881
        %v1890 = vmul.f32 %v1882, %v1882
        %v1891 = vmul.f32 %v1883, %v1883
        %v1892 = vmul.f32 %v1884, %v1884
        %v1893 = vadd.f32 %v1729, %v1885
        %v1894 = vadd.f32 %v1730, %v1886
        %v1895 = vadd.f32 %v1731, %v1887
        %v1896 = vadd.f32 %v1732, %v1888
        %v1897 = vadd.f32 %v1733, %v1889
        %v1898 = vadd.f32 %v1734, %v1890
        %v1899 = vadd.f32 %v1735, %v1891
        %v1900 = vadd.f32 %v1736, %v1892
        %v1901 = vrot.slane %v637, 1
        %v1902 = vrot.slane %v638, 1
        %v1903 = vrot.slane %v639, 1
        %v1904 = vrot.slane %v640, 1
        %v1905 = vrot.slane %v641, 1
        %v1906 = vrot.slane %v642, 1
        %v1907 = vrot.slane %v643, 1
        %v1908 = vrot.slane %v644, 1
        %v1909 = vsel %vm283, %v1907, %v1908
        %v1910 = vsel %vm283, %v1906, %v1907
        %v1911 = vsel %vm283, %v1905, %v1906
        %v1912 = vsel %vm283, %v1904, %v1905
        %v1913 = vsel %vm283, %v1903, %v1904
        %v1914 = vsel %vm283, %v1902, %v1903
        %v1915 = vsel %vm283, %v1901, %v1902
        %v1916 = vsel %vm283, %v1908, %v1901
        %v1917 = vperm.slane %v638, 7
        %v1918 = vperm.slane %v640, 7
        %v1919 = vperm.slane %v642, 7
        %v1920 = vperm.slane %v644, 7
        %v1921 = vsel %vm294, %v1917, %v1915
        %v1922 = vsel %vm295, %v1917, %v1914
        %v1923 = vsel %vm294, %v1918, %v1913
        %v1924 = vsel %vm295, %v1918, %v1912
        %v1925 = vsel %vm294, %v1919, %v1911
        %v1926 = vsel %vm295, %v1919, %v1910
        %v1927 = vsel %vm294, %v1920, %v1909
        %v1928 = vsel %vm295, %v1920, %v1916
        %1929 = vrot.lane.b32.xlu0 %v637, 127
        %v1930 = vpop.permute.xlu0 %1929
        %1931 = vrot.lane.b32.xlu0 %v638, 127
        %v1932 = vpop.permute.xlu0 %1931
        %1933 = vrot.lane.b32.xlu0 %v639, 127
        %v1934 = vpop.permute.xlu0 %1933
        %1935 = vrot.lane.b32.xlu0 %v640, 127
        %v1936 = vpop.permute.xlu0 %1935
        %1937 = vrot.lane.b32.xlu0 %v641, 127
        %v1938 = vpop.permute.xlu0 %1937
        %1939 = vrot.lane.b32.xlu0 %v642, 127
        %v1940 = vpop.permute.xlu0 %1939
        %1941 = vrot.lane.b32.xlu0 %v643, 127
        %v1942 = vpop.permute.xlu0 %1941
        %1943 = vrot.lane.b32.xlu0 %v644, 127
        %v1944 = vpop.permute.xlu0 %1943
        %1946 = vset.pattern.permute.xlu0 127
        %1947 = vperm.xlu0 %1946, %v637
        %v1948 = vpop.permute.xlu0 %1947
        %1951 = vset.pattern.permute.xlu0 127
        %1952 = vperm.xlu0 %1951, %v638
        %v1953 = vpop.permute.xlu0 %1952
        %1956 = vset.pattern.permute.xlu0 127
        %1957 = vperm.xlu0 %1956, %v639
        %v1958 = vpop.permute.xlu0 %1957
        %1961 = vset.pattern.permute.xlu0 127
        %1962 = vperm.xlu0 %1961, %v640
        %v1963 = vpop.permute.xlu0 %1962
        %1966 = vset.pattern.permute.xlu0 127
        %1967 = vperm.xlu0 %1966, %v641
        %v1968 = vpop.permute.xlu0 %1967
        %1971 = vset.pattern.permute.xlu0 127
        %1972 = vperm.xlu0 %1971, %v642
        %v1973 = vpop.permute.xlu0 %1972
        %1976 = vset.pattern.permute.xlu0 127
        %1977 = vperm.xlu0 %1976, %v643
        %v1978 = vpop.permute.xlu0 %1977
        %1981 = vset.pattern.permute.xlu0 127
        %1982 = vperm.xlu0 %1981, %v644
        %v1983 = vpop.permute.xlu0 %1982
        %v1985 = vsel %vm420, %v1948, %v1930
        %v1986 = vsel %vm420, %v1953, %v1932
        %v1987 = vsel %vm420, %v1958, %v1934
        %v1988 = vsel %vm420, %v1963, %v1936
        %v1989 = vsel %vm420, %v1968, %v1938
        %v1990 = vsel %vm420, %v1973, %v1940
        %v1991 = vsel %vm420, %v1978, %v1942
        %v1992 = vsel %vm420, %v1983, %v1944
        %v1993 = vsub.f32 %v637, %v1921
        %v1994 = vsub.f32 %v638, %v1922
        %v1995 = vsub.f32 %v639, %v1923
        %v1996 = vsub.f32 %v640, %v1924
        %v1997 = vsub.f32 %v641, %v1925
        %v1998 = vsub.f32 %v642, %v1926
        %v1999 = vsub.f32 %v643, %v1927
        %v2000 = vsub.f32 %v644, %v1928
        %v2001 = vmul.f32 %v1993, %v1993
        %v2002 = vmul.f32 %v1994, %v1994
        %v2003 = vmul.f32 %v1995, %v1995
        %v2004 = vmul.f32 %v1996, %v1996
        %v2005 = vmul.f32 %v1997, %v1997
        %v2006 = vmul.f32 %v1998, %v1998
        %v2007 = vmul.f32 %v1999, %v1999
        %v2008 = vmul.f32 %v2000, %v2000
        %v2009 = vsub.f32 %v637, %v1985
        %v2010 = vsub.f32 %v638, %v1986
        %v2011 = vsub.f32 %v639, %v1987
        %v2012 = vsub.f32 %v640, %v1988
        %v2013 = vsub.f32 %v641, %v1989
        %v2014 = vsub.f32 %v642, %v1990
        %v2015 = vsub.f32 %v643, %v1991
        %v2016 = vsub.f32 %v644, %v1992
        %v2017 = vmul.f32 %v2009, %v2009
        %v2018 = vmul.f32 %v2010, %v2010
        %v2019 = vmul.f32 %v2011, %v2011
        %v2020 = vmul.f32 %v2012, %v2012
        %v2021 = vmul.f32 %v2013, %v2013
        %v2022 = vmul.f32 %v2014, %v2014
        %v2023 = vmul.f32 %v2015, %v2015
        %v2024 = vmul.f32 %v2016, %v2016
        %v2025 = vadd.f32 %v2001, %v2017
        %v2026 = vadd.f32 %v2002, %v2018
        %v2027 = vadd.f32 %v2003, %v2019
        %v2028 = vadd.f32 %v2004, %v2020
        %v2029 = vadd.f32 %v2005, %v2021
        %v2030 = vadd.f32 %v2006, %v2022
        %v2031 = vadd.f32 %v2007, %v2023
        %v2032 = vadd.f32 %v2008, %v2024
        %v2033 = vadd.f32 %v2025, %v2027
        %v2034 = vadd.f32 %v2033, %v2029
        %v2035 = vadd.f32 %v2034, %v2031
        %v2036 = vadd.f32 %v2026, %v2028
        %v2037 = vadd.f32 %v2036, %v2030
        %v2038 = vadd.f32 %v2037, %v2032
        %v2039 = vmul.f32 %v2035, 0.25
        %v2040 = vmul.f32 %v2038, 0.25
        %v2041 = vsub.f32 %v300, %v1113
        %v2042 = vsub.f32 %v301, %v1114
        %v2043 = vsub.f32 %v302, %v1115
        %v2044 = vsub.f32 %v303, %v1116
        %v2045 = vsub.f32 %v304, %v1117
        %v2046 = vsub.f32 %v305, %v1118
        %v2047 = vsub.f32 %v306, %v1119
        %v2048 = vsub.f32 %v307, %v1120
        %v2049 = vmul.f32 %v2041, %v2041
        %v2050 = vmul.f32 %v2042, %v2042
        %v2051 = vmul.f32 %v2043, %v2043
        %v2052 = vmul.f32 %v2044, %v2044
        %v2053 = vmul.f32 %v2045, %v2045
        %v2054 = vmul.f32 %v2046, %v2046
        %v2055 = vmul.f32 %v2047, %v2047
        %v2056 = vmul.f32 %v2048, %v2048
        %v2057 = vadd.f32 %v1893, %v2049
        %v2058 = vadd.f32 %v1894, %v2050
        %v2059 = vadd.f32 %v1895, %v2051
        %v2060 = vadd.f32 %v1896, %v2052
        %v2061 = vadd.f32 %v1897, %v2053
        %v2062 = vadd.f32 %v1898, %v2054
        %v2063 = vadd.f32 %v1899, %v2055
        %v2064 = vadd.f32 %v1900, %v2056
        %v2065 = vrot.slane %v300, 1
        %v2066 = vrot.slane %v301, 1
        %v2067 = vrot.slane %v302, 1
        %v2068 = vrot.slane %v303, 1
        %v2069 = vrot.slane %v304, 1
        %v2070 = vrot.slane %v305, 1
        %v2071 = vrot.slane %v306, 1
        %v2072 = vrot.slane %v307, 1
        %v2073 = vsel %vm283, %v2071, %v2072
        %v2074 = vsel %vm283, %v2070, %v2071
        %v2075 = vsel %vm283, %v2069, %v2070
        %v2076 = vsel %vm283, %v2068, %v2069
        %v2077 = vsel %vm283, %v2067, %v2068
        %v2078 = vsel %vm283, %v2066, %v2067
        %v2079 = vsel %vm283, %v2065, %v2066
        %v2080 = vsel %vm283, %v2072, %v2065
        %v2081 = vperm.slane %v301, 7
        %v2082 = vperm.slane %v303, 7
        %v2083 = vperm.slane %v305, 7
        %v2084 = vperm.slane %v307, 7
        %v2085 = vsel %vm294, %v2081, %v2079
        %v2086 = vsel %vm295, %v2081, %v2078
        %v2087 = vsel %vm294, %v2082, %v2077
        %v2088 = vsel %vm295, %v2082, %v2076
        %v2089 = vsel %vm294, %v2083, %v2075
        %v2090 = vsel %vm295, %v2083, %v2074
        %v2091 = vsel %vm294, %v2084, %v2073
        %v2092 = vsel %vm295, %v2084, %v2080
        %v2093 = vsub.f32 %v300, %v2085
        %v2094 = vsub.f32 %v301, %v2086
        %v2095 = vsub.f32 %v302, %v2087
        %v2096 = vsub.f32 %v303, %v2088
        %v2097 = vsub.f32 %v304, %v2089
        %v2098 = vsub.f32 %v305, %v2090
        %v2099 = vsub.f32 %v306, %v2091
        %v2100 = vsub.f32 %v307, %v2092
        %v2101 = vmul.f32 %v2093, %v2093
        %v2102 = vmul.f32 %v2094, %v2094
        %v2103 = vmul.f32 %v2095, %v2095
        %v2104 = vmul.f32 %v2096, %v2096
        %v2105 = vmul.f32 %v2097, %v2097
        %v2106 = vmul.f32 %v2098, %v2098
        %v2107 = vmul.f32 %v2099, %v2099
        %v2108 = vmul.f32 %v2100, %v2100
        %v2109 = vsub.f32 %v300, %v693
        %v2110 = vsub.f32 %v301, %v694
        %v2111 = vsub.f32 %v302, %v695
        %v2112 = vsub.f32 %v303, %v696
        %v2113 = vsub.f32 %v304, %v697
        %v2114 = vsub.f32 %v305, %v698
        %v2115 = vsub.f32 %v306, %v699
        %v2116 = vsub.f32 %v307, %v700
        %v2117 = vmul.f32 %v2109, %v2109
        %v2118 = vmul.f32 %v2110, %v2110
        %v2119 = vmul.f32 %v2111, %v2111
        %v2120 = vmul.f32 %v2112, %v2112
        %v2121 = vmul.f32 %v2113, %v2113
        %v2122 = vmul.f32 %v2114, %v2114
        %v2123 = vmul.f32 %v2115, %v2115
        %v2124 = vmul.f32 %v2116, %v2116
        %v2125 = vadd.f32 %v2101, %v2117
        %v2126 = vadd.f32 %v2102, %v2118
        %v2127 = vadd.f32 %v2103, %v2119
        %v2128 = vadd.f32 %v2104, %v2120
        %v2129 = vadd.f32 %v2105, %v2121
        %v2130 = vadd.f32 %v2106, %v2122
        %v2131 = vadd.f32 %v2107, %v2123
        %v2132 = vadd.f32 %v2108, %v2124
        %v2133 = vadd.f32 %v2125, %v2127
        %v2134 = vadd.f32 %v2133, %v2129
        %v2135 = vadd.f32 %v2134, %v2131
        %v2136 = vadd.f32 %v2126, %v2128
        %v2137 = vadd.f32 %v2136, %v2130
        %v2138 = vadd.f32 %v2137, %v2132
        %v2139 = vmul.f32 %v2135, 0.25
        %v2140 = vmul.f32 %v2138, 0.25
        %v2141 = vsub.f32 %v693, %v1113
        %v2142 = vsub.f32 %v694, %v1114
        %v2143 = vsub.f32 %v695, %v1115
        %v2144 = vsub.f32 %v696, %v1116
        %v2145 = vsub.f32 %v697, %v1117
        %v2146 = vsub.f32 %v698, %v1118
        %v2147 = vsub.f32 %v699, %v1119
        %v2148 = vsub.f32 %v700, %v1120
        %v2149 = vmul.f32 %v2141, %v2141
        %v2150 = vmul.f32 %v2142, %v2142
        %v2151 = vmul.f32 %v2143, %v2143
        %v2152 = vmul.f32 %v2144, %v2144
        %v2153 = vmul.f32 %v2145, %v2145
        %v2154 = vmul.f32 %v2146, %v2146
        %v2155 = vmul.f32 %v2147, %v2147
        %v2156 = vmul.f32 %v2148, %v2148
        %v2157 = vadd.f32 %v2057, %v2149
        %v2158 = vadd.f32 %v2058, %v2150
        %v2159 = vadd.f32 %v2059, %v2151
        %v2160 = vadd.f32 %v2060, %v2152
        %v2161 = vadd.f32 %v2061, %v2153
        %v2162 = vadd.f32 %v2062, %v2154
        %v2163 = vadd.f32 %v2063, %v2155
        %v2164 = vadd.f32 %v2064, %v2156
        %v2165 = vrot.slane %v693, 1
        %v2166 = vrot.slane %v694, 1
        %v2167 = vrot.slane %v695, 1
        %v2168 = vrot.slane %v696, 1
        %v2169 = vrot.slane %v697, 1
        %v2170 = vrot.slane %v698, 1
        %v2171 = vrot.slane %v699, 1
        %v2172 = vrot.slane %v700, 1
        %v2173 = vsel %vm283, %v2171, %v2172
        %v2174 = vsel %vm283, %v2170, %v2171
        %v2175 = vsel %vm283, %v2169, %v2170
        %v2176 = vsel %vm283, %v2168, %v2169
        %v2177 = vsel %vm283, %v2167, %v2168
        %v2178 = vsel %vm283, %v2166, %v2167
        %v2179 = vsel %vm283, %v2165, %v2166
        %v2180 = vsel %vm283, %v2172, %v2165
        %v2181 = vperm.slane %v694, 7
        %v2182 = vperm.slane %v696, 7
        %v2183 = vperm.slane %v698, 7
        %v2184 = vperm.slane %v700, 7
        %v2185 = vsel %vm294, %v2181, %v2179
        %v2186 = vsel %vm295, %v2181, %v2178
        %v2187 = vsel %vm294, %v2182, %v2177
        %v2188 = vsel %vm295, %v2182, %v2176
        %v2189 = vsel %vm294, %v2183, %v2175
        %v2190 = vsel %vm295, %v2183, %v2174
        %v2191 = vsel %vm294, %v2184, %v2173
        %v2192 = vsel %vm295, %v2184, %v2180
        %2193 = vrot.lane.b32.xlu0 %v693, 127
        %v2194 = vpop.permute.xlu0 %2193
        %2195 = vrot.lane.b32.xlu0 %v694, 127
        %v2196 = vpop.permute.xlu0 %2195
        %2197 = vrot.lane.b32.xlu0 %v695, 127
        %v2198 = vpop.permute.xlu0 %2197
        %2199 = vrot.lane.b32.xlu0 %v696, 127
        %v2200 = vpop.permute.xlu0 %2199
        %2201 = vrot.lane.b32.xlu0 %v697, 127
        %v2202 = vpop.permute.xlu0 %2201
        %2203 = vrot.lane.b32.xlu0 %v698, 127
        %v2204 = vpop.permute.xlu0 %2203
        %2205 = vrot.lane.b32.xlu0 %v699, 127
        %v2206 = vpop.permute.xlu0 %2205
        %2207 = vrot.lane.b32.xlu0 %v700, 127
        %v2208 = vpop.permute.xlu0 %2207
        %2210 = vset.pattern.permute.xlu0 127
        %2211 = vperm.xlu0 %2210, %v693
        %v2212 = vpop.permute.xlu0 %2211
        %2215 = vset.pattern.permute.xlu0 127
        %2216 = vperm.xlu0 %2215, %v694
        %v2217 = vpop.permute.xlu0 %2216
        %2220 = vset.pattern.permute.xlu0 127
        %2221 = vperm.xlu0 %2220, %v695
        %v2222 = vpop.permute.xlu0 %2221
        %2225 = vset.pattern.permute.xlu0 127
        %2226 = vperm.xlu0 %2225, %v696
        %v2227 = vpop.permute.xlu0 %2226
        %2230 = vset.pattern.permute.xlu0 127
        %2231 = vperm.xlu0 %2230, %v697
        %v2232 = vpop.permute.xlu0 %2231
        %2235 = vset.pattern.permute.xlu0 127
        %2236 = vperm.xlu0 %2235, %v698
        %v2237 = vpop.permute.xlu0 %2236
        %2240 = vset.pattern.permute.xlu0 127
        %2241 = vperm.xlu0 %2240, %v699
        %v2242 = vpop.permute.xlu0 %2241
        %2245 = vset.pattern.permute.xlu0 127
        %2246 = vperm.xlu0 %2245, %v700
        %v2247 = vpop.permute.xlu0 %2246
        %v2249 = vsel %vm420, %v2212, %v2194
        %v2250 = vsel %vm420, %v2217, %v2196
        %v2251 = vsel %vm420, %v2222, %v2198
        %v2252 = vsel %vm420, %v2227, %v2200
        %v2253 = vsel %vm420, %v2232, %v2202
        %v2254 = vsel %vm420, %v2237, %v2204
        %v2255 = vsel %vm420, %v2242, %v2206
        %v2256 = vsel %vm420, %v2247, %v2208
        %v2257 = vsub.f32 %v693, %v2185
        %v2258 = vsub.f32 %v694, %v2186
        %v2259 = vsub.f32 %v695, %v2187
        %v2260 = vsub.f32 %v696, %v2188
        %v2261 = vsub.f32 %v697, %v2189
        %v2262 = vsub.f32 %v698, %v2190
        %v2263 = vsub.f32 %v699, %v2191
        %v2264 = vsub.f32 %v700, %v2192
        %v2265 = vmul.f32 %v2257, %v2257
        %v2266 = vmul.f32 %v2258, %v2258
        %v2267 = vmul.f32 %v2259, %v2259
        %v2268 = vmul.f32 %v2260, %v2260
        %v2269 = vmul.f32 %v2261, %v2261
        %v2270 = vmul.f32 %v2262, %v2262
        %v2271 = vmul.f32 %v2263, %v2263
        %v2272 = vmul.f32 %v2264, %v2264
        %v2273 = vsub.f32 %v693, %v2249
        %v2274 = vsub.f32 %v694, %v2250
        %v2275 = vsub.f32 %v695, %v2251
        %v2276 = vsub.f32 %v696, %v2252
        %v2277 = vsub.f32 %v697, %v2253
        %v2278 = vsub.f32 %v698, %v2254
        %v2279 = vsub.f32 %v699, %v2255
        %v2280 = vsub.f32 %v700, %v2256
        %v2281 = vmul.f32 %v2273, %v2273
        %v2282 = vmul.f32 %v2274, %v2274
        %v2283 = vmul.f32 %v2275, %v2275
        %v2284 = vmul.f32 %v2276, %v2276
        %v2285 = vmul.f32 %v2277, %v2277
        %v2286 = vmul.f32 %v2278, %v2278
        %v2287 = vmul.f32 %v2279, %v2279
        %v2288 = vmul.f32 %v2280, %v2280
        %v2289 = vadd.f32 %v2265, %v2281
        %v2290 = vadd.f32 %v2266, %v2282
        %v2291 = vadd.f32 %v2267, %v2283
        %v2292 = vadd.f32 %v2268, %v2284
        %v2293 = vadd.f32 %v2269, %v2285
        %v2294 = vadd.f32 %v2270, %v2286
        %v2295 = vadd.f32 %v2271, %v2287
        %v2296 = vadd.f32 %v2272, %v2288
        %v2297 = vadd.f32 %v2289, %v2291
        %v2298 = vadd.f32 %v2297, %v2293
        %v2299 = vadd.f32 %v2298, %v2295
        %v2300 = vadd.f32 %v2290, %v2292
        %v2301 = vadd.f32 %v2300, %v2294
        %v2302 = vadd.f32 %v2301, %v2296
        %v2303 = vmul.f32 %v2299, 0.25
        %v2304 = vmul.f32 %v2302, 0.25
        %v2305 = vsub.f32 %v759, %v1113
        %v2306 = vsub.f32 %v760, %v1114
        %v2307 = vsub.f32 %v761, %v1115
        %v2308 = vsub.f32 %v762, %v1116
        %v2309 = vsub.f32 %v763, %v1117
        %v2310 = vsub.f32 %v764, %v1118
        %v2311 = vsub.f32 %v765, %v1119
        %v2312 = vsub.f32 %v766, %v1120
        %v2313 = vmul.f32 %v2305, %v2305
        %v2314 = vmul.f32 %v2306, %v2306
        %v2315 = vmul.f32 %v2307, %v2307
        %v2316 = vmul.f32 %v2308, %v2308
        %v2317 = vmul.f32 %v2309, %v2309
        %v2318 = vmul.f32 %v2310, %v2310
        %v2319 = vmul.f32 %v2311, %v2311
        %v2320 = vmul.f32 %v2312, %v2312
        %v2321 = vadd.f32 %v2157, %v2313
        %v2322 = vadd.f32 %v2158, %v2314
        %v2323 = vadd.f32 %v2159, %v2315
        %v2324 = vadd.f32 %v2160, %v2316
        %v2325 = vadd.f32 %v2161, %v2317
        %v2326 = vadd.f32 %v2162, %v2318
        %v2327 = vadd.f32 %v2163, %v2319
        %v2328 = vadd.f32 %v2164, %v2320
        %v2329 = vrot.slane %v759, 1
        %v2330 = vrot.slane %v760, 1
        %v2331 = vrot.slane %v761, 1
        %v2332 = vrot.slane %v762, 1
        %v2333 = vrot.slane %v763, 1
        %v2334 = vrot.slane %v764, 1
        %v2335 = vrot.slane %v765, 1
        %v2336 = vrot.slane %v766, 1
        %v2337 = vsel %vm283, %v2335, %v2336
        %v2338 = vsel %vm283, %v2334, %v2335
        %v2339 = vsel %vm283, %v2333, %v2334
        %v2340 = vsel %vm283, %v2332, %v2333
        %v2341 = vsel %vm283, %v2331, %v2332
        %v2342 = vsel %vm283, %v2330, %v2331
        %v2343 = vsel %vm283, %v2329, %v2330
        %v2344 = vsel %vm283, %v2336, %v2329
        %v2345 = vperm.slane %v760, 7
        %v2346 = vperm.slane %v762, 7
        %v2347 = vperm.slane %v764, 7
        %v2348 = vperm.slane %v766, 7
        %v2349 = vsel %vm294, %v2345, %v2343
        %v2350 = vsel %vm295, %v2345, %v2342
        %v2351 = vsel %vm294, %v2346, %v2341
        %v2352 = vsel %vm295, %v2346, %v2340
        %v2353 = vsel %vm294, %v2347, %v2339
        %v2354 = vsel %vm295, %v2347, %v2338
        %v2355 = vsel %vm294, %v2348, %v2337
        %v2356 = vsel %vm295, %v2348, %v2344
        %2357 = vrot.lane.b32.xlu0 %v759, 127
        %v2358 = vpop.permute.xlu0 %2357
        %2359 = vrot.lane.b32.xlu0 %v760, 127
        %v2360 = vpop.permute.xlu0 %2359
        %2361 = vrot.lane.b32.xlu0 %v761, 127
        %v2362 = vpop.permute.xlu0 %2361
        %2363 = vrot.lane.b32.xlu0 %v762, 127
        %v2364 = vpop.permute.xlu0 %2363
        %2365 = vrot.lane.b32.xlu0 %v763, 127
        %v2366 = vpop.permute.xlu0 %2365
        %2367 = vrot.lane.b32.xlu0 %v764, 127
        %v2368 = vpop.permute.xlu0 %2367
        %2369 = vrot.lane.b32.xlu0 %v765, 127
        %v2370 = vpop.permute.xlu0 %2369
        %2371 = vrot.lane.b32.xlu0 %v766, 127
        %v2372 = vpop.permute.xlu0 %2371
        %2374 = vset.pattern.permute.xlu0 127
        %2375 = vperm.xlu0 %2374, %v759
        %v2376 = vpop.permute.xlu0 %2375
        %2379 = vset.pattern.permute.xlu0 127
        %2380 = vperm.xlu0 %2379, %v760
        %v2381 = vpop.permute.xlu0 %2380
        %2384 = vset.pattern.permute.xlu0 127
        %2385 = vperm.xlu0 %2384, %v761
        %v2386 = vpop.permute.xlu0 %2385
        %2389 = vset.pattern.permute.xlu0 127
        %2390 = vperm.xlu0 %2389, %v762
        %v2391 = vpop.permute.xlu0 %2390
        %2394 = vset.pattern.permute.xlu0 127
        %2395 = vperm.xlu0 %2394, %v763
        %v2396 = vpop.permute.xlu0 %2395
        %2399 = vset.pattern.permute.xlu0 127
        %2400 = vperm.xlu0 %2399, %v764
        %v2401 = vpop.permute.xlu0 %2400
        %2404 = vset.pattern.permute.xlu0 127
        %2405 = vperm.xlu0 %2404, %v765
        %v2406 = vpop.permute.xlu0 %2405
        %2409 = vset.pattern.permute.xlu0 127
        %2410 = vperm.xlu0 %2409, %v766
        %v2411 = vpop.permute.xlu0 %2410
        %v2413 = vsel %vm420, %v2376, %v2358
        %v2414 = vsel %vm420, %v2381, %v2360
        %v2415 = vsel %vm420, %v2386, %v2362
        %v2416 = vsel %vm420, %v2391, %v2364
        %v2417 = vsel %vm420, %v2396, %v2366
        %v2418 = vsel %vm420, %v2401, %v2368
        %v2419 = vsel %vm420, %v2406, %v2370
        %v2420 = vsel %vm420, %v2411, %v2372
        %v2421 = vsub.f32 %v759, %v2349
        %v2422 = vsub.f32 %v760, %v2350
        %v2423 = vsub.f32 %v761, %v2351
        %v2424 = vsub.f32 %v762, %v2352
        %v2425 = vsub.f32 %v763, %v2353
        %v2426 = vsub.f32 %v764, %v2354
        %v2427 = vsub.f32 %v765, %v2355
        %v2428 = vsub.f32 %v766, %v2356
        %v2429 = vmul.f32 %v2421, %v2421
        %v2430 = vmul.f32 %v2422, %v2422
        %v2431 = vmul.f32 %v2423, %v2423
        %v2432 = vmul.f32 %v2424, %v2424
        %v2433 = vmul.f32 %v2425, %v2425
        %v2434 = vmul.f32 %v2426, %v2426
        %v2435 = vmul.f32 %v2427, %v2427
        %v2436 = vmul.f32 %v2428, %v2428
        %v2437 = vsub.f32 %v759, %v2413
        %v2438 = vsub.f32 %v760, %v2414
        %v2439 = vsub.f32 %v761, %v2415
        %v2440 = vsub.f32 %v762, %v2416
        %v2441 = vsub.f32 %v763, %v2417
        %v2442 = vsub.f32 %v764, %v2418
        %v2443 = vsub.f32 %v765, %v2419
        %v2444 = vsub.f32 %v766, %v2420
        %v2445 = vmul.f32 %v2437, %v2437
        %v2446 = vmul.f32 %v2438, %v2438
        %v2447 = vmul.f32 %v2439, %v2439
        %v2448 = vmul.f32 %v2440, %v2440
        %v2449 = vmul.f32 %v2441, %v2441
        %v2450 = vmul.f32 %v2442, %v2442
        %v2451 = vmul.f32 %v2443, %v2443
        %v2452 = vmul.f32 %v2444, %v2444
        %v2453 = vadd.f32 %v2429, %v2445
        %v2454 = vadd.f32 %v2430, %v2446
        %v2455 = vadd.f32 %v2431, %v2447
        %v2456 = vadd.f32 %v2432, %v2448
        %v2457 = vadd.f32 %v2433, %v2449
        %v2458 = vadd.f32 %v2434, %v2450
        %v2459 = vadd.f32 %v2435, %v2451
        %v2460 = vadd.f32 %v2436, %v2452
        %v2461 = vadd.f32 %v2453, %v2455
        %v2462 = vadd.f32 %v2461, %v2457
        %v2463 = vadd.f32 %v2462, %v2459
        %v2464 = vadd.f32 %v2454, %v2456
        %v2465 = vadd.f32 %v2464, %v2458
        %v2466 = vadd.f32 %v2465, %v2460
        %v2467 = vmul.f32 %v2463, 0.25
        %v2468 = vmul.f32 %v2466, 0.25
        %v2469 = vsub.f32 %v239, %v1113
        %v2470 = vsub.f32 %v240, %v1114
        %v2471 = vsub.f32 %v241, %v1115
        %v2472 = vsub.f32 %v242, %v1116
        %v2473 = vsub.f32 %v243, %v1117
        %v2474 = vsub.f32 %v244, %v1118
        %v2475 = vsub.f32 %v245, %v1119
        %v2476 = vsub.f32 %v246, %v1120
        %v2477 = vmul.f32 %v2469, %v2469
        %v2478 = vmul.f32 %v2470, %v2470
        %v2479 = vmul.f32 %v2471, %v2471
        %v2480 = vmul.f32 %v2472, %v2472
        %v2481 = vmul.f32 %v2473, %v2473
        %v2482 = vmul.f32 %v2474, %v2474
        %v2483 = vmul.f32 %v2475, %v2475
        %v2484 = vmul.f32 %v2476, %v2476
        %v2485 = vadd.f32 %v2321, %v2477
        %v2486 = vadd.f32 %v2322, %v2478
        %v2487 = vadd.f32 %v2323, %v2479
        %v2488 = vadd.f32 %v2324, %v2480
        %v2489 = vadd.f32 %v2325, %v2481
        %v2490 = vadd.f32 %v2326, %v2482
        %v2491 = vadd.f32 %v2327, %v2483
        %v2492 = vadd.f32 %v2328, %v2484
        %v2493 = vrot.slane %v239, 1
        %v2494 = vrot.slane %v240, 1
        %v2495 = vrot.slane %v241, 1
        %v2496 = vrot.slane %v242, 1
        %v2497 = vrot.slane %v243, 1
        %v2498 = vrot.slane %v244, 1
        %v2499 = vrot.slane %v245, 1
        %v2500 = vrot.slane %v246, 1
        %v2501 = vsel %vm283, %v2499, %v2500
        %v2502 = vsel %vm283, %v2498, %v2499
        %v2503 = vsel %vm283, %v2497, %v2498
        %v2504 = vsel %vm283, %v2496, %v2497
        %v2505 = vsel %vm283, %v2495, %v2496
        %v2506 = vsel %vm283, %v2494, %v2495
        %v2507 = vsel %vm283, %v2493, %v2494
        %v2508 = vsel %vm283, %v2500, %v2493
        %v2509 = vperm.slane %v240, 7
        %v2510 = vperm.slane %v242, 7
        %v2511 = vperm.slane %v244, 7
        %v2512 = vperm.slane %v246, 7
        %v2513 = vsel %vm294, %v2509, %v2507
        %v2514 = vsel %vm295, %v2509, %v2506
        %v2515 = vsel %vm294, %v2510, %v2505
        %v2516 = vsel %vm295, %v2510, %v2504
        %v2517 = vsel %vm294, %v2511, %v2503
        %v2518 = vsel %vm295, %v2511, %v2502
        %v2519 = vsel %vm294, %v2512, %v2501
        %v2520 = vsel %vm295, %v2512, %v2508
        %2521 = vrot.lane.b32.xlu0 %v239, 127
        %v2522 = vpop.permute.xlu0 %2521
        %2523 = vrot.lane.b32.xlu0 %v240, 127
        %v2524 = vpop.permute.xlu0 %2523
        %2525 = vrot.lane.b32.xlu0 %v241, 127
        %v2526 = vpop.permute.xlu0 %2525
        %2527 = vrot.lane.b32.xlu0 %v242, 127
        %v2528 = vpop.permute.xlu0 %2527
        %2529 = vrot.lane.b32.xlu0 %v243, 127
        %v2530 = vpop.permute.xlu0 %2529
        %2531 = vrot.lane.b32.xlu0 %v244, 127
        %v2532 = vpop.permute.xlu0 %2531
        %2533 = vrot.lane.b32.xlu0 %v245, 127
        %v2534 = vpop.permute.xlu0 %2533
        %2535 = vrot.lane.b32.xlu0 %v246, 127
        %v2536 = vpop.permute.xlu0 %2535
        %v2537 = vsel %vm420, %v787, %v2522
        %v2538 = vsel %vm420, %v791, %v2524
        %v2539 = vsel %vm420, %v795, %v2526
        %v2540 = vsel %vm420, %v799, %v2528
        %v2541 = vsel %vm420, %v803, %v2530
        %v2542 = vsel %vm420, %v807, %v2532
        %v2543 = vsel %vm420, %v811, %v2534
        %v2544 = vsel %vm420, %v815, %v2536
        %v2545 = vsub.f32 %v239, %v2513
        %v2546 = vsub.f32 %v240, %v2514
        %v2547 = vsub.f32 %v241, %v2515
        %v2548 = vsub.f32 %v242, %v2516
        %v2549 = vsub.f32 %v243, %v2517
        %v2550 = vsub.f32 %v244, %v2518
        %v2551 = vsub.f32 %v245, %v2519
        %v2552 = vsub.f32 %v246, %v2520
        %v2553 = vmul.f32 %v2545, %v2545
        %v2554 = vmul.f32 %v2546, %v2546
        %v2555 = vmul.f32 %v2547, %v2547
        %v2556 = vmul.f32 %v2548, %v2548
        %v2557 = vmul.f32 %v2549, %v2549
        %v2558 = vmul.f32 %v2550, %v2550
        %v2559 = vmul.f32 %v2551, %v2551
        %v2560 = vmul.f32 %v2552, %v2552
        %v2561 = vsub.f32 %v239, %v2537
        %v2562 = vsub.f32 %v240, %v2538
        %v2563 = vsub.f32 %v241, %v2539
        %v2564 = vsub.f32 %v242, %v2540
        %v2565 = vsub.f32 %v243, %v2541
        %v2566 = vsub.f32 %v244, %v2542
        %v2567 = vsub.f32 %v245, %v2543
        %v2568 = vsub.f32 %v246, %v2544
        %v2569 = vmul.f32 %v2561, %v2561
        %v2570 = vmul.f32 %v2562, %v2562
        %v2571 = vmul.f32 %v2563, %v2563
        %v2572 = vmul.f32 %v2564, %v2564
        %v2573 = vmul.f32 %v2565, %v2565
        %v2574 = vmul.f32 %v2566, %v2566
        %v2575 = vmul.f32 %v2567, %v2567
        %v2576 = vmul.f32 %v2568, %v2568
        %v2577 = vadd.f32 %v2553, %v2569
        %v2578 = vadd.f32 %v2554, %v2570
        %v2579 = vadd.f32 %v2555, %v2571
        %v2580 = vadd.f32 %v2556, %v2572
        %v2581 = vadd.f32 %v2557, %v2573
        %v2582 = vadd.f32 %v2558, %v2574
        %v2583 = vadd.f32 %v2559, %v2575
        %v2584 = vadd.f32 %v2560, %v2576
        %v2585 = vadd.f32 %v2577, %v2579
        %v2586 = vadd.f32 %v2585, %v2581
        %v2587 = vadd.f32 %v2586, %v2583
        %v2588 = vadd.f32 %v2578, %v2580
        %v2589 = vadd.f32 %v2588, %v2582
        %v2590 = vadd.f32 %v2589, %v2584
        %v2591 = vmul.f32 %v2587, 0.25
        %v2592 = vmul.f32 %v2590, 0.25
        %v2593 = vsub.f32 %v817, %v1113
        %v2594 = vsub.f32 %v818, %v1114
        %v2595 = vsub.f32 %v819, %v1115
        %v2596 = vsub.f32 %v820, %v1116
        %v2597 = vsub.f32 %v821, %v1117
        %v2598 = vsub.f32 %v822, %v1118
        %v2599 = vsub.f32 %v823, %v1119
        %v2600 = vsub.f32 %v824, %v1120
        %v2601 = vmul.f32 %v2593, %v2593
        %v2602 = vmul.f32 %v2594, %v2594
        %v2603 = vmul.f32 %v2595, %v2595
        %v2604 = vmul.f32 %v2596, %v2596
        %v2605 = vmul.f32 %v2597, %v2597
        %v2606 = vmul.f32 %v2598, %v2598
        %v2607 = vmul.f32 %v2599, %v2599
        %v2608 = vmul.f32 %v2600, %v2600
        %v2609 = vadd.f32 %v2485, %v2601
        %v2610 = vadd.f32 %v2486, %v2602
        %v2611 = vadd.f32 %v2487, %v2603
        %v2612 = vadd.f32 %v2488, %v2604
        %v2613 = vadd.f32 %v2489, %v2605
        %v2614 = vadd.f32 %v2490, %v2606
        %v2615 = vadd.f32 %v2491, %v2607
        %v2616 = vadd.f32 %v2492, %v2608
        %v2617 = vrot.slane %v817, 1
        %v2618 = vrot.slane %v818, 1
        %v2619 = vrot.slane %v819, 1
        %v2620 = vrot.slane %v820, 1
        %v2621 = vrot.slane %v821, 1
        %v2622 = vrot.slane %v822, 1
        %v2623 = vrot.slane %v823, 1
        %v2624 = vrot.slane %v824, 1
        %v2625 = vsel %vm283, %v2623, %v2624
        %v2626 = vsel %vm283, %v2622, %v2623
        %v2627 = vsel %vm283, %v2621, %v2622
        %v2628 = vsel %vm283, %v2620, %v2621
        %v2629 = vsel %vm283, %v2619, %v2620
        %v2630 = vsel %vm283, %v2618, %v2619
        %v2631 = vsel %vm283, %v2617, %v2618
        %v2632 = vsel %vm283, %v2624, %v2617
        %v2633 = vperm.slane %v818, 7
        %v2634 = vperm.slane %v820, 7
        %v2635 = vperm.slane %v822, 7
        %v2636 = vperm.slane %v824, 7
        %v2637 = vsel %vm294, %v2633, %v2631
        %v2638 = vsel %vm295, %v2633, %v2630
        %v2639 = vsel %vm294, %v2634, %v2629
        %v2640 = vsel %vm295, %v2634, %v2628
        %v2641 = vsel %vm294, %v2635, %v2627
        %v2642 = vsel %vm295, %v2635, %v2626
        %v2643 = vsel %vm294, %v2636, %v2625
        %v2644 = vsel %vm295, %v2636, %v2632
        %2645 = vrot.lane.b32.xlu0 %v817, 127
        %v2646 = vpop.permute.xlu0 %2645
        %2647 = vrot.lane.b32.xlu0 %v818, 127
        %v2648 = vpop.permute.xlu0 %2647
        %2649 = vrot.lane.b32.xlu0 %v819, 127
        %v2650 = vpop.permute.xlu0 %2649
        %2651 = vrot.lane.b32.xlu0 %v820, 127
        %v2652 = vpop.permute.xlu0 %2651
        %2653 = vrot.lane.b32.xlu0 %v821, 127
        %v2654 = vpop.permute.xlu0 %2653
        %2655 = vrot.lane.b32.xlu0 %v822, 127
        %v2656 = vpop.permute.xlu0 %2655
        %2657 = vrot.lane.b32.xlu0 %v823, 127
        %v2658 = vpop.permute.xlu0 %2657
        %2659 = vrot.lane.b32.xlu0 %v824, 127
        %v2660 = vpop.permute.xlu0 %2659
        %2662 = vset.pattern.permute.xlu0 127
        %2663 = vperm.xlu0 %2662, %v817
        %v2664 = vpop.permute.xlu0 %2663
        %2667 = vset.pattern.permute.xlu0 127
        %2668 = vperm.xlu0 %2667, %v818
        %v2669 = vpop.permute.xlu0 %2668
        %2672 = vset.pattern.permute.xlu0 127
        %2673 = vperm.xlu0 %2672, %v819
        %v2674 = vpop.permute.xlu0 %2673
        %2677 = vset.pattern.permute.xlu0 127
        %2678 = vperm.xlu0 %2677, %v820
        %v2679 = vpop.permute.xlu0 %2678
        %2682 = vset.pattern.permute.xlu0 127
        %2683 = vperm.xlu0 %2682, %v821
        %v2684 = vpop.permute.xlu0 %2683
        %2687 = vset.pattern.permute.xlu0 127
        %2688 = vperm.xlu0 %2687, %v822
        %v2689 = vpop.permute.xlu0 %2688
        %2692 = vset.pattern.permute.xlu0 127
        %2693 = vperm.xlu0 %2692, %v823
        %v2694 = vpop.permute.xlu0 %2693
        %2697 = vset.pattern.permute.xlu0 127
        %2698 = vperm.xlu0 %2697, %v824
        %v2699 = vpop.permute.xlu0 %2698
        %v2701 = vsel %vm420, %v2664, %v2646
        %v2702 = vsel %vm420, %v2669, %v2648
        %v2703 = vsel %vm420, %v2674, %v2650
        %v2704 = vsel %vm420, %v2679, %v2652
        %v2705 = vsel %vm420, %v2684, %v2654
        %v2706 = vsel %vm420, %v2689, %v2656
        %v2707 = vsel %vm420, %v2694, %v2658
        %v2708 = vsel %vm420, %v2699, %v2660
        %v2709 = vsub.f32 %v817, %v2637
        %v2710 = vsub.f32 %v818, %v2638
        %v2711 = vsub.f32 %v819, %v2639
        %v2712 = vsub.f32 %v820, %v2640
        %v2713 = vsub.f32 %v821, %v2641
        %v2714 = vsub.f32 %v822, %v2642
        %v2715 = vsub.f32 %v823, %v2643
        %v2716 = vsub.f32 %v824, %v2644
        %v2717 = vmul.f32 %v2709, %v2709
        %v2718 = vmul.f32 %v2710, %v2710
        %v2719 = vmul.f32 %v2711, %v2711
        %v2720 = vmul.f32 %v2712, %v2712
        %v2721 = vmul.f32 %v2713, %v2713
        %v2722 = vmul.f32 %v2714, %v2714
        %v2723 = vmul.f32 %v2715, %v2715
        %v2724 = vmul.f32 %v2716, %v2716
        %v2725 = vsub.f32 %v817, %v2701
        %v2726 = vsub.f32 %v818, %v2702
        %v2727 = vsub.f32 %v819, %v2703
        %v2728 = vsub.f32 %v820, %v2704
        %v2729 = vsub.f32 %v821, %v2705
        %v2730 = vsub.f32 %v822, %v2706
        %v2731 = vsub.f32 %v823, %v2707
        %v2732 = vsub.f32 %v824, %v2708
        %v2733 = vmul.f32 %v2725, %v2725
        %v2734 = vmul.f32 %v2726, %v2726
        %v2735 = vmul.f32 %v2727, %v2727
        %v2736 = vmul.f32 %v2728, %v2728
        %v2737 = vmul.f32 %v2729, %v2729
        %v2738 = vmul.f32 %v2730, %v2730
        %v2739 = vmul.f32 %v2731, %v2731
        %v2740 = vmul.f32 %v2732, %v2732
        %v2741 = vadd.f32 %v2717, %v2733
        %v2742 = vadd.f32 %v2718, %v2734
        %v2743 = vadd.f32 %v2719, %v2735
        %v2744 = vadd.f32 %v2720, %v2736
        %v2745 = vadd.f32 %v2721, %v2737
        %v2746 = vadd.f32 %v2722, %v2738
        %v2747 = vadd.f32 %v2723, %v2739
        %v2748 = vadd.f32 %v2724, %v2740
        %v2749 = vadd.f32 %v2741, %v2743
        %v2750 = vadd.f32 %v2749, %v2745
        %v2751 = vadd.f32 %v2750, %v2747
        %v2752 = vadd.f32 %v2742, %v2744
        %v2753 = vadd.f32 %v2752, %v2746
        %v2754 = vadd.f32 %v2753, %v2748
        %v2755 = vmul.f32 %v2751, 0.25
        %v2756 = vmul.f32 %v2754, 0.25
        %v2757 = vsub.f32 %v841, %v1113
        %v2758 = vsub.f32 %v842, %v1114
        %v2759 = vsub.f32 %v843, %v1115
        %v2760 = vsub.f32 %v844, %v1116
        %v2761 = vsub.f32 %v845, %v1117
        %v2762 = vsub.f32 %v846, %v1118
        %v2763 = vsub.f32 %v847, %v1119
        %v2764 = vsub.f32 %v848, %v1120
        %v2765 = vmul.f32 %v2757, %v2757
        %v2766 = vmul.f32 %v2758, %v2758
        %v2767 = vmul.f32 %v2759, %v2759
        %v2768 = vmul.f32 %v2760, %v2760
        %v2769 = vmul.f32 %v2761, %v2761
        %v2770 = vmul.f32 %v2762, %v2762
        %v2771 = vmul.f32 %v2763, %v2763
        %v2772 = vmul.f32 %v2764, %v2764
        %v2773 = vadd.f32 %v2609, %v2765
        %v2774 = vadd.f32 %v2610, %v2766
        %v2775 = vadd.f32 %v2611, %v2767
        %v2776 = vadd.f32 %v2612, %v2768
        %v2777 = vadd.f32 %v2613, %v2769
        %v2778 = vadd.f32 %v2614, %v2770
        %v2779 = vadd.f32 %v2615, %v2771
        %v2780 = vadd.f32 %v2616, %v2772
        %v2781 = vrot.slane %v841, 1
        %v2782 = vrot.slane %v842, 1
        %v2783 = vrot.slane %v843, 1
        %v2784 = vrot.slane %v844, 1
        %v2785 = vrot.slane %v845, 1
        %v2786 = vrot.slane %v846, 1
        %v2787 = vrot.slane %v847, 1
        %v2788 = vrot.slane %v848, 1
        %v2789 = vsel %vm283, %v2787, %v2788
        %v2790 = vsel %vm283, %v2786, %v2787
        %v2791 = vsel %vm283, %v2785, %v2786
        %v2792 = vsel %vm283, %v2784, %v2785
        %v2793 = vsel %vm283, %v2783, %v2784
        %v2794 = vsel %vm283, %v2782, %v2783
        %v2795 = vsel %vm283, %v2781, %v2782
        %v2796 = vsel %vm283, %v2788, %v2781
        %v2797 = vperm.slane %v842, 7
        %v2798 = vperm.slane %v844, 7
        %v2799 = vperm.slane %v846, 7
        %v2800 = vperm.slane %v848, 7
        %v2801 = vsel %vm294, %v2797, %v2795
        %v2802 = vsel %vm295, %v2797, %v2794
        %v2803 = vsel %vm294, %v2798, %v2793
        %v2804 = vsel %vm295, %v2798, %v2792
        %v2805 = vsel %vm294, %v2799, %v2791
        %v2806 = vsel %vm295, %v2799, %v2790
        %v2807 = vsel %vm294, %v2800, %v2789
        %v2808 = vsel %vm295, %v2800, %v2796
        %2809 = vrot.lane.b32.xlu0 %v841, 127
        %v2810 = vpop.permute.xlu0 %2809
        %2811 = vrot.lane.b32.xlu0 %v842, 127
        %v2812 = vpop.permute.xlu0 %2811
        %2813 = vrot.lane.b32.xlu0 %v843, 127
        %v2814 = vpop.permute.xlu0 %2813
        %2815 = vrot.lane.b32.xlu0 %v844, 127
        %v2816 = vpop.permute.xlu0 %2815
        %2817 = vrot.lane.b32.xlu0 %v845, 127
        %v2818 = vpop.permute.xlu0 %2817
        %2819 = vrot.lane.b32.xlu0 %v846, 127
        %v2820 = vpop.permute.xlu0 %2819
        %2821 = vrot.lane.b32.xlu0 %v847, 127
        %v2822 = vpop.permute.xlu0 %2821
        %2823 = vrot.lane.b32.xlu0 %v848, 127
        %v2824 = vpop.permute.xlu0 %2823
        %2826 = vset.pattern.permute.xlu0 127
        %2827 = vperm.xlu0 %2826, %v841
        %v2828 = vpop.permute.xlu0 %2827
        %2831 = vset.pattern.permute.xlu0 127
        %2832 = vperm.xlu0 %2831, %v842
        %v2833 = vpop.permute.xlu0 %2832
        %2836 = vset.pattern.permute.xlu0 127
        %2837 = vperm.xlu0 %2836, %v843
        %v2838 = vpop.permute.xlu0 %2837
        %2841 = vset.pattern.permute.xlu0 127
        %2842 = vperm.xlu0 %2841, %v844
        %v2843 = vpop.permute.xlu0 %2842
        %2846 = vset.pattern.permute.xlu0 127
        %2847 = vperm.xlu0 %2846, %v845
        %v2848 = vpop.permute.xlu0 %2847
        %2851 = vset.pattern.permute.xlu0 127
        %2852 = vperm.xlu0 %2851, %v846
        %v2853 = vpop.permute.xlu0 %2852
        %2856 = vset.pattern.permute.xlu0 127
        %2857 = vperm.xlu0 %2856, %v847
        %v2858 = vpop.permute.xlu0 %2857
        %2861 = vset.pattern.permute.xlu0 127
        %2862 = vperm.xlu0 %2861, %v848
        %v2863 = vpop.permute.xlu0 %2862
        %v2865 = vsel %vm420, %v2828, %v2810
        %v2866 = vsel %vm420, %v2833, %v2812
        %v2867 = vsel %vm420, %v2838, %v2814
        %v2868 = vsel %vm420, %v2843, %v2816
        %v2869 = vsel %vm420, %v2848, %v2818
        %v2870 = vsel %vm420, %v2853, %v2820
        %v2871 = vsel %vm420, %v2858, %v2822
        %v2872 = vsel %vm420, %v2863, %v2824
        %v2873 = vsub.f32 %v841, %v2801
        %v2874 = vsub.f32 %v842, %v2802
        %v2875 = vsub.f32 %v843, %v2803
        %v2876 = vsub.f32 %v844, %v2804
        %v2877 = vsub.f32 %v845, %v2805
        %v2878 = vsub.f32 %v846, %v2806
        %v2879 = vsub.f32 %v847, %v2807
        %v2880 = vsub.f32 %v848, %v2808
        %v2881 = vmul.f32 %v2873, %v2873
        %v2882 = vmul.f32 %v2874, %v2874
        %v2883 = vmul.f32 %v2875, %v2875
        %v2884 = vmul.f32 %v2876, %v2876
        %v2885 = vmul.f32 %v2877, %v2877
        %v2886 = vmul.f32 %v2878, %v2878
        %v2887 = vmul.f32 %v2879, %v2879
        %v2888 = vmul.f32 %v2880, %v2880
        %v2889 = vsub.f32 %v841, %v2865
        %v2890 = vsub.f32 %v842, %v2866
        %v2891 = vsub.f32 %v843, %v2867
        %v2892 = vsub.f32 %v844, %v2868
        %v2893 = vsub.f32 %v845, %v2869
        %v2894 = vsub.f32 %v846, %v2870
        %v2895 = vsub.f32 %v847, %v2871
        %v2896 = vsub.f32 %v848, %v2872
        %v2897 = vmul.f32 %v2889, %v2889
        %v2898 = vmul.f32 %v2890, %v2890
        %v2899 = vmul.f32 %v2891, %v2891
        %v2900 = vmul.f32 %v2892, %v2892
        %v2901 = vmul.f32 %v2893, %v2893
        %v2902 = vmul.f32 %v2894, %v2894
        %v2903 = vmul.f32 %v2895, %v2895
        %v2904 = vmul.f32 %v2896, %v2896
        %v2905 = vadd.f32 %v2881, %v2897
        %v2906 = vadd.f32 %v2882, %v2898
        %v2907 = vadd.f32 %v2883, %v2899
        %v2908 = vadd.f32 %v2884, %v2900
        %v2909 = vadd.f32 %v2885, %v2901
        %v2910 = vadd.f32 %v2886, %v2902
        %v2911 = vadd.f32 %v2887, %v2903
        %v2912 = vadd.f32 %v2888, %v2904
        %v2913 = vadd.f32 %v2905, %v2907
        %v2914 = vadd.f32 %v2913, %v2909
        %v2915 = vadd.f32 %v2914, %v2911
        %v2916 = vadd.f32 %v2906, %v2908
        %v2917 = vadd.f32 %v2916, %v2910
        %v2918 = vadd.f32 %v2917, %v2912
        %v2919 = vmul.f32 %v2915, 0.25
        %v2920 = vmul.f32 %v2918, 0.25
        %v2921 = vsub.f32 %v865, %v1113
        %v2922 = vsub.f32 %v866, %v1114
        %v2923 = vsub.f32 %v867, %v1115
        %v2924 = vsub.f32 %v868, %v1116
        %v2925 = vsub.f32 %v869, %v1117
        %v2926 = vsub.f32 %v870, %v1118
        %v2927 = vsub.f32 %v871, %v1119
        %v2928 = vsub.f32 %v872, %v1120
        %v2929 = vmul.f32 %v2921, %v2921
        %v2930 = vmul.f32 %v2922, %v2922
        %v2931 = vmul.f32 %v2923, %v2923
        %v2932 = vmul.f32 %v2924, %v2924
        %v2933 = vmul.f32 %v2925, %v2925
        %v2934 = vmul.f32 %v2926, %v2926
        %v2935 = vmul.f32 %v2927, %v2927
        %v2936 = vmul.f32 %v2928, %v2928
        %v2937 = vadd.f32 %v2773, %v2929
        %v2938 = vadd.f32 %v2774, %v2930
        %v2939 = vadd.f32 %v2775, %v2931
        %v2940 = vadd.f32 %v2776, %v2932
        %v2941 = vadd.f32 %v2777, %v2933
        %v2942 = vadd.f32 %v2778, %v2934
        %v2943 = vadd.f32 %v2779, %v2935
        %v2944 = vadd.f32 %v2780, %v2936
        %v2945 = vrot.slane %v865, 1
        %v2946 = vrot.slane %v866, 1
        %v2947 = vrot.slane %v867, 1
        %v2948 = vrot.slane %v868, 1
        %v2949 = vrot.slane %v869, 1
        %v2950 = vrot.slane %v870, 1
        %v2951 = vrot.slane %v871, 1
        %v2952 = vrot.slane %v872, 1
        %v2953 = vsel %vm283, %v2951, %v2952
        %v2954 = vsel %vm283, %v2950, %v2951
        %v2955 = vsel %vm283, %v2949, %v2950
        %v2956 = vsel %vm283, %v2948, %v2949
        %v2957 = vsel %vm283, %v2947, %v2948
        %v2958 = vsel %vm283, %v2946, %v2947
        %v2959 = vsel %vm283, %v2945, %v2946
        %v2960 = vsel %vm283, %v2952, %v2945
        %v2961 = vperm.slane %v866, 7
        %v2962 = vperm.slane %v868, 7
        %v2963 = vperm.slane %v870, 7
        %v2964 = vperm.slane %v872, 7
        %v2965 = vsel %vm294, %v2961, %v2959
        %v2966 = vsel %vm295, %v2961, %v2958
        %v2967 = vsel %vm294, %v2962, %v2957
        %v2968 = vsel %vm295, %v2962, %v2956
        %v2969 = vsel %vm294, %v2963, %v2955
        %v2970 = vsel %vm295, %v2963, %v2954
        %v2971 = vsel %vm294, %v2964, %v2953
        %v2972 = vsel %vm295, %v2964, %v2960
        %2973 = vrot.lane.b32.xlu0 %v865, 127
        %v2974 = vpop.permute.xlu0 %2973
        %2975 = vrot.lane.b32.xlu0 %v866, 127
        %v2976 = vpop.permute.xlu0 %2975
        %2977 = vrot.lane.b32.xlu0 %v867, 127
        %v2978 = vpop.permute.xlu0 %2977
        %2979 = vrot.lane.b32.xlu0 %v868, 127
        %v2980 = vpop.permute.xlu0 %2979
        %2981 = vrot.lane.b32.xlu0 %v869, 127
        %v2982 = vpop.permute.xlu0 %2981
        %2983 = vrot.lane.b32.xlu0 %v870, 127
        %v2984 = vpop.permute.xlu0 %2983
        %2985 = vrot.lane.b32.xlu0 %v871, 127
        %v2986 = vpop.permute.xlu0 %2985
        %2987 = vrot.lane.b32.xlu0 %v872, 127
        %v2988 = vpop.permute.xlu0 %2987
        %2990 = vset.pattern.permute.xlu0 127
        %2991 = vperm.xlu0 %2990, %v865
        %v2992 = vpop.permute.xlu0 %2991
        %2995 = vset.pattern.permute.xlu0 127
        %2996 = vperm.xlu0 %2995, %v866
        %v2997 = vpop.permute.xlu0 %2996
        %3000 = vset.pattern.permute.xlu0 127
        %3001 = vperm.xlu0 %3000, %v867
        %v3002 = vpop.permute.xlu0 %3001
        %3005 = vset.pattern.permute.xlu0 127
        %3006 = vperm.xlu0 %3005, %v868
        %v3007 = vpop.permute.xlu0 %3006
        %3010 = vset.pattern.permute.xlu0 127
        %3011 = vperm.xlu0 %3010, %v869
        %v3012 = vpop.permute.xlu0 %3011
        %3015 = vset.pattern.permute.xlu0 127
        %3016 = vperm.xlu0 %3015, %v870
        %v3017 = vpop.permute.xlu0 %3016
        %3020 = vset.pattern.permute.xlu0 127
        %3021 = vperm.xlu0 %3020, %v871
        %v3022 = vpop.permute.xlu0 %3021
        %3025 = vset.pattern.permute.xlu0 127
        %3026 = vperm.xlu0 %3025, %v872
        %v3027 = vpop.permute.xlu0 %3026
        %v3029 = vsel %vm420, %v2992, %v2974
        %v3030 = vsel %vm420, %v2997, %v2976
        %v3031 = vsel %vm420, %v3002, %v2978
        %v3032 = vsel %vm420, %v3007, %v2980
        %v3033 = vsel %vm420, %v3012, %v2982
        %v3034 = vsel %vm420, %v3017, %v2984
        %v3035 = vsel %vm420, %v3022, %v2986
        %v3036 = vsel %vm420, %v3027, %v2988
        %v3037 = vsub.f32 %v865, %v2965
        %v3038 = vsub.f32 %v866, %v2966
        %v3039 = vsub.f32 %v867, %v2967
        %v3040 = vsub.f32 %v868, %v2968
        %v3041 = vsub.f32 %v869, %v2969
        %v3042 = vsub.f32 %v870, %v2970
        %v3043 = vsub.f32 %v871, %v2971
        %v3044 = vsub.f32 %v872, %v2972
        %v3045 = vmul.f32 %v3037, %v3037
        %v3046 = vmul.f32 %v3038, %v3038
        %v3047 = vmul.f32 %v3039, %v3039
        %v3048 = vmul.f32 %v3040, %v3040
        %v3049 = vmul.f32 %v3041, %v3041
        %v3050 = vmul.f32 %v3042, %v3042
        %v3051 = vmul.f32 %v3043, %v3043
        %v3052 = vmul.f32 %v3044, %v3044
        %v3053 = vsub.f32 %v865, %v3029
        %v3054 = vsub.f32 %v866, %v3030
        %v3055 = vsub.f32 %v867, %v3031
        %v3056 = vsub.f32 %v868, %v3032
        %v3057 = vsub.f32 %v869, %v3033
        %v3058 = vsub.f32 %v870, %v3034
        %v3059 = vsub.f32 %v871, %v3035
        %v3060 = vsub.f32 %v872, %v3036
        %v3061 = vmul.f32 %v3053, %v3053
        %v3062 = vmul.f32 %v3054, %v3054
        %v3063 = vmul.f32 %v3055, %v3055
        %v3064 = vmul.f32 %v3056, %v3056
        %v3065 = vmul.f32 %v3057, %v3057
        %v3066 = vmul.f32 %v3058, %v3058
        %v3067 = vmul.f32 %v3059, %v3059
        %v3068 = vmul.f32 %v3060, %v3060
        %v3069 = vadd.f32 %v3045, %v3061
        %v3070 = vadd.f32 %v3046, %v3062
        %v3071 = vadd.f32 %v3047, %v3063
        %v3072 = vadd.f32 %v3048, %v3064
        %v3073 = vadd.f32 %v3049, %v3065
        %v3074 = vadd.f32 %v3050, %v3066
        %v3075 = vadd.f32 %v3051, %v3067
        %v3076 = vadd.f32 %v3052, %v3068
        %v3077 = vadd.f32 %v3069, %v3071
        %v3078 = vadd.f32 %v3077, %v3073
        %v3079 = vadd.f32 %v3078, %v3075
        %v3080 = vadd.f32 %v3070, %v3072
        %v3081 = vadd.f32 %v3080, %v3074
        %v3082 = vadd.f32 %v3081, %v3076
        %v3083 = vmul.f32 %v3079, 0.25
        %v3084 = vmul.f32 %v3082, 0.25
        %v3085 = vsub.f32 %v929, %v1113
        %v3086 = vsub.f32 %v930, %v1114
        %v3087 = vsub.f32 %v931, %v1115
        %v3088 = vsub.f32 %v932, %v1116
        %v3089 = vsub.f32 %v933, %v1117
        %v3090 = vsub.f32 %v934, %v1118
        %v3091 = vsub.f32 %v935, %v1119
        %v3092 = vsub.f32 %v936, %v1120
        %v3093 = vmul.f32 %v3085, %v3085
        %v3094 = vmul.f32 %v3086, %v3086
        %v3095 = vmul.f32 %v3087, %v3087
        %v3096 = vmul.f32 %v3088, %v3088
        %v3097 = vmul.f32 %v3089, %v3089
        %v3098 = vmul.f32 %v3090, %v3090
        %v3099 = vmul.f32 %v3091, %v3091
        %v3100 = vmul.f32 %v3092, %v3092
        %v3101 = vadd.f32 %v2937, %v3093
        %v3102 = vadd.f32 %v2938, %v3094
        %v3103 = vadd.f32 %v2939, %v3095
        %v3104 = vadd.f32 %v2940, %v3096
        %v3105 = vadd.f32 %v2941, %v3097
        %v3106 = vadd.f32 %v2942, %v3098
        %v3107 = vadd.f32 %v2943, %v3099
        %v3108 = vadd.f32 %v2944, %v3100
        %v3109 = vrot.slane %v929, 1
        %v3110 = vrot.slane %v930, 1
        %v3111 = vrot.slane %v931, 1
        %v3112 = vrot.slane %v932, 1
        %v3113 = vrot.slane %v933, 1
        %v3114 = vrot.slane %v934, 1
        %v3115 = vrot.slane %v935, 1
        %v3116 = vrot.slane %v936, 1
        %v3117 = vsel %vm283, %v3115, %v3116
        %v3118 = vsel %vm283, %v3114, %v3115
        %v3119 = vsel %vm283, %v3113, %v3114
        %v3120 = vsel %vm283, %v3112, %v3113
        %v3121 = vsel %vm283, %v3111, %v3112
        %v3122 = vsel %vm283, %v3110, %v3111
        %v3123 = vsel %vm283, %v3109, %v3110
        %v3124 = vsel %vm283, %v3116, %v3109
        %v3125 = vperm.slane %v930, 7
        %v3126 = vperm.slane %v932, 7
        %v3127 = vperm.slane %v934, 7
        %v3128 = vperm.slane %v936, 7
        %v3129 = vsel %vm294, %v3125, %v3123
        %v3130 = vsel %vm295, %v3125, %v3122
        %v3131 = vsel %vm294, %v3126, %v3121
        %v3132 = vsel %vm295, %v3126, %v3120
        %v3133 = vsel %vm294, %v3127, %v3119
        %v3134 = vsel %vm295, %v3127, %v3118
        %v3135 = vsel %vm294, %v3128, %v3117
        %v3136 = vsel %vm295, %v3128, %v3124
        %3137 = vrot.lane.b32.xlu0 %v929, 127
        %v3138 = vpop.permute.xlu0 %3137
        %3139 = vrot.lane.b32.xlu0 %v930, 127
        %v3140 = vpop.permute.xlu0 %3139
        %3141 = vrot.lane.b32.xlu0 %v931, 127
        %v3142 = vpop.permute.xlu0 %3141
        %3143 = vrot.lane.b32.xlu0 %v932, 127
        %v3144 = vpop.permute.xlu0 %3143
        %3145 = vrot.lane.b32.xlu0 %v933, 127
        %v3146 = vpop.permute.xlu0 %3145
        %3147 = vrot.lane.b32.xlu0 %v934, 127
        %v3148 = vpop.permute.xlu0 %3147
        %3149 = vrot.lane.b32.xlu0 %v935, 127
        %v3150 = vpop.permute.xlu0 %3149
        %3151 = vrot.lane.b32.xlu0 %v936, 127
        %v3152 = vpop.permute.xlu0 %3151
        %3154 = vset.pattern.permute.xlu0 127
        %3155 = vperm.xlu0 %3154, %v929
        %v3156 = vpop.permute.xlu0 %3155
        %3159 = vset.pattern.permute.xlu0 127
        %3160 = vperm.xlu0 %3159, %v930
        %v3161 = vpop.permute.xlu0 %3160
        %3164 = vset.pattern.permute.xlu0 127
        %3165 = vperm.xlu0 %3164, %v931
        %v3166 = vpop.permute.xlu0 %3165
        %3169 = vset.pattern.permute.xlu0 127
        %3170 = vperm.xlu0 %3169, %v932
        %v3171 = vpop.permute.xlu0 %3170
        %3174 = vset.pattern.permute.xlu0 127
        %3175 = vperm.xlu0 %3174, %v933
        %v3176 = vpop.permute.xlu0 %3175
        %3179 = vset.pattern.permute.xlu0 127
        %3180 = vperm.xlu0 %3179, %v934
        %v3181 = vpop.permute.xlu0 %3180
        %3184 = vset.pattern.permute.xlu0 127
        %3185 = vperm.xlu0 %3184, %v935
        %v3186 = vpop.permute.xlu0 %3185
        %3189 = vset.pattern.permute.xlu0 127
        %3190 = vperm.xlu0 %3189, %v936
        %v3191 = vpop.permute.xlu0 %3190
        %v3193 = vsel %vm420, %v3156, %v3138
        %v3194 = vsel %vm420, %v3161, %v3140
        %v3195 = vsel %vm420, %v3166, %v3142
        %v3196 = vsel %vm420, %v3171, %v3144
        %v3197 = vsel %vm420, %v3176, %v3146
        %v3198 = vsel %vm420, %v3181, %v3148
        %v3199 = vsel %vm420, %v3186, %v3150
        %v3200 = vsel %vm420, %v3191, %v3152
        %v3201 = vsub.f32 %v929, %v3129
        %v3202 = vsub.f32 %v930, %v3130
        %v3203 = vsub.f32 %v931, %v3131
        %v3204 = vsub.f32 %v932, %v3132
        %v3205 = vsub.f32 %v933, %v3133
        %v3206 = vsub.f32 %v934, %v3134
        %v3207 = vsub.f32 %v935, %v3135
        %v3208 = vsub.f32 %v936, %v3136
        %v3209 = vmul.f32 %v3201, %v3201
        %v3210 = vmul.f32 %v3202, %v3202
        %v3211 = vmul.f32 %v3203, %v3203
        %v3212 = vmul.f32 %v3204, %v3204
        %v3213 = vmul.f32 %v3205, %v3205
        %v3214 = vmul.f32 %v3206, %v3206
        %v3215 = vmul.f32 %v3207, %v3207
        %v3216 = vmul.f32 %v3208, %v3208
        %v3217 = vsub.f32 %v929, %v3193
        %v3218 = vsub.f32 %v930, %v3194
        %v3219 = vsub.f32 %v931, %v3195
        %v3220 = vsub.f32 %v932, %v3196
        %v3221 = vsub.f32 %v933, %v3197
        %v3222 = vsub.f32 %v934, %v3198
        %v3223 = vsub.f32 %v935, %v3199
        %v3224 = vsub.f32 %v936, %v3200
        %v3225 = vmul.f32 %v3217, %v3217
        %v3226 = vmul.f32 %v3218, %v3218
        %v3227 = vmul.f32 %v3219, %v3219
        %v3228 = vmul.f32 %v3220, %v3220
        %v3229 = vmul.f32 %v3221, %v3221
        %v3230 = vmul.f32 %v3222, %v3222
        %v3231 = vmul.f32 %v3223, %v3223
        %v3232 = vmul.f32 %v3224, %v3224
        %v3233 = vadd.f32 %v3209, %v3225
        %v3234 = vadd.f32 %v3210, %v3226
        %v3235 = vadd.f32 %v3211, %v3227
        %v3236 = vadd.f32 %v3212, %v3228
        %v3237 = vadd.f32 %v3213, %v3229
        %v3238 = vadd.f32 %v3214, %v3230
        %v3239 = vadd.f32 %v3215, %v3231
        %v3240 = vadd.f32 %v3216, %v3232
        %v3241 = vadd.f32 %v3233, %v3235
        %v3242 = vadd.f32 %v3241, %v3237
        %v3243 = vadd.f32 %v3242, %v3239
        %v3244 = vadd.f32 %v3234, %v3236
        %v3245 = vadd.f32 %v3244, %v3238
        %v3246 = vadd.f32 %v3245, %v3240
        %v3247 = vmul.f32 %v3243, 0.25
        %v3248 = vmul.f32 %v3246, 0.25
        %v3249 = vsub.f32 %v329, %v1113
        %v3250 = vsub.f32 %v330, %v1114
        %v3251 = vsub.f32 %v331, %v1115
        %v3252 = vsub.f32 %v332, %v1116
        %v3253 = vsub.f32 %v333, %v1117
        %v3254 = vsub.f32 %v334, %v1118
        %v3255 = vsub.f32 %v335, %v1119
        %v3256 = vsub.f32 %v336, %v1120
        %v3257 = vmul.f32 %v3249, %v3249
        %v3258 = vmul.f32 %v3250, %v3250
        %v3259 = vmul.f32 %v3251, %v3251
        %v3260 = vmul.f32 %v3252, %v3252
        %v3261 = vmul.f32 %v3253, %v3253
        %v3262 = vmul.f32 %v3254, %v3254
        %v3263 = vmul.f32 %v3255, %v3255
        %v3264 = vmul.f32 %v3256, %v3256
        %v3265 = vadd.f32 %v3101, %v3257
        %v3266 = vadd.f32 %v3102, %v3258
        %v3267 = vadd.f32 %v3103, %v3259
        %v3268 = vadd.f32 %v3104, %v3260
        %v3269 = vadd.f32 %v3105, %v3261
        %v3270 = vadd.f32 %v3106, %v3262
        %v3271 = vadd.f32 %v3107, %v3263
        %v3272 = vadd.f32 %v3108, %v3264
        %v3273 = vrot.slane %v329, 1
        %v3274 = vrot.slane %v330, 1
        %v3275 = vrot.slane %v331, 1
        %v3276 = vrot.slane %v332, 1
        %v3277 = vrot.slane %v333, 1
        %v3278 = vrot.slane %v334, 1
        %v3279 = vrot.slane %v335, 1
        %v3280 = vrot.slane %v336, 1
        %v3281 = vsel %vm283, %v3279, %v3280
        %v3282 = vsel %vm283, %v3278, %v3279
        %v3283 = vsel %vm283, %v3277, %v3278
        %v3284 = vsel %vm283, %v3276, %v3277
        %v3285 = vsel %vm283, %v3275, %v3276
        %v3286 = vsel %vm283, %v3274, %v3275
        %v3287 = vsel %vm283, %v3273, %v3274
        %v3288 = vsel %vm283, %v3280, %v3273
        %v3289 = vperm.slane %v330, 7
        %v3290 = vperm.slane %v332, 7
        %v3291 = vperm.slane %v334, 7
        %v3292 = vperm.slane %v336, 7
        %v3293 = vsel %vm294, %v3289, %v3287
        %v3294 = vsel %vm295, %v3289, %v3286
        %v3295 = vsel %vm294, %v3290, %v3285
        %v3296 = vsel %vm295, %v3290, %v3284
        %v3297 = vsel %vm294, %v3291, %v3283
        %v3298 = vsel %vm295, %v3291, %v3282
        %v3299 = vsel %vm294, %v3292, %v3281
        %v3300 = vsel %vm295, %v3292, %v3288
        %3301 = vrot.lane.b32.xlu0 %v329, 127
        %v3302 = vpop.permute.xlu0 %3301
        %3303 = vrot.lane.b32.xlu0 %v330, 127
        %v3304 = vpop.permute.xlu0 %3303
        %3305 = vrot.lane.b32.xlu0 %v331, 127
        %v3306 = vpop.permute.xlu0 %3305
        %3307 = vrot.lane.b32.xlu0 %v332, 127
        %v3308 = vpop.permute.xlu0 %3307
        %3309 = vrot.lane.b32.xlu0 %v333, 127
        %v3310 = vpop.permute.xlu0 %3309
        %3311 = vrot.lane.b32.xlu0 %v334, 127
        %v3312 = vpop.permute.xlu0 %3311
        %3313 = vrot.lane.b32.xlu0 %v335, 127
        %v3314 = vpop.permute.xlu0 %3313
        %3315 = vrot.lane.b32.xlu0 %v336, 127
        %v3316 = vpop.permute.xlu0 %3315
        %v3317 = vsel %vm420, %v955, %v3302
        %v3318 = vsel %vm420, %v959, %v3304
        %v3319 = vsel %vm420, %v963, %v3306
        %v3320 = vsel %vm420, %v967, %v3308
        %v3321 = vsel %vm420, %v971, %v3310
        %v3322 = vsel %vm420, %v975, %v3312
        %v3323 = vsel %vm420, %v979, %v3314
        %v3324 = vsel %vm420, %v983, %v3316
        %v3325 = vsub.f32 %v329, %v3293
        %v3326 = vsub.f32 %v330, %v3294
        %v3327 = vsub.f32 %v331, %v3295
        %v3328 = vsub.f32 %v332, %v3296
        %v3329 = vsub.f32 %v333, %v3297
        %v3330 = vsub.f32 %v334, %v3298
        %v3331 = vsub.f32 %v335, %v3299
        %v3332 = vsub.f32 %v336, %v3300
        %v3333 = vmul.f32 %v3325, %v3325
        %v3334 = vmul.f32 %v3326, %v3326
        %v3335 = vmul.f32 %v3327, %v3327
        %v3336 = vmul.f32 %v3328, %v3328
        %v3337 = vmul.f32 %v3329, %v3329
        %v3338 = vmul.f32 %v3330, %v3330
        %v3339 = vmul.f32 %v3331, %v3331
        %v3340 = vmul.f32 %v3332, %v3332
        %v3341 = vsub.f32 %v329, %v3317
        %v3342 = vsub.f32 %v330, %v3318
        %v3343 = vsub.f32 %v331, %v3319
        %v3344 = vsub.f32 %v332, %v3320
        %v3345 = vsub.f32 %v333, %v3321
        %v3346 = vsub.f32 %v334, %v3322
        %v3347 = vsub.f32 %v335, %v3323
        %v3348 = vsub.f32 %v336, %v3324
        %v3349 = vmul.f32 %v3341, %v3341
        %v3350 = vmul.f32 %v3342, %v3342
        %v3351 = vmul.f32 %v3343, %v3343
        %v3352 = vmul.f32 %v3344, %v3344
        %v3353 = vmul.f32 %v3345, %v3345
        %v3354 = vmul.f32 %v3346, %v3346
        %v3355 = vmul.f32 %v3347, %v3347
        %v3356 = vmul.f32 %v3348, %v3348
        %v3357 = vadd.f32 %v3333, %v3349
        %v3358 = vadd.f32 %v3334, %v3350
        %v3359 = vadd.f32 %v3335, %v3351
        %v3360 = vadd.f32 %v3336, %v3352
        %v3361 = vadd.f32 %v3337, %v3353
        %v3362 = vadd.f32 %v3338, %v3354
        %v3363 = vadd.f32 %v3339, %v3355
        %v3364 = vadd.f32 %v3340, %v3356
        %v3365 = vadd.f32 %v3357, %v3359
        %v3366 = vadd.f32 %v3365, %v3361
        %v3367 = vadd.f32 %v3366, %v3363
        %v3368 = vadd.f32 %v3358, %v3360
        %v3369 = vadd.f32 %v3368, %v3362
        %v3370 = vadd.f32 %v3369, %v3364
        %v3371 = vmul.f32 %v3367, 0.25
        %v3372 = vmul.f32 %v3370, 0.25
        %v3373 = vsub.f32 %v985, %v1113
        %v3374 = vsub.f32 %v986, %v1114
        %v3375 = vsub.f32 %v987, %v1115
        %v3376 = vsub.f32 %v988, %v1116
        %v3377 = vsub.f32 %v989, %v1117
        %v3378 = vsub.f32 %v990, %v1118
        %v3379 = vsub.f32 %v991, %v1119
        %v3380 = vsub.f32 %v992, %v1120
        %v3381 = vmul.f32 %v3373, %v3373
        %v3382 = vmul.f32 %v3374, %v3374
        %v3383 = vmul.f32 %v3375, %v3375
        %v3384 = vmul.f32 %v3376, %v3376
        %v3385 = vmul.f32 %v3377, %v3377
        %v3386 = vmul.f32 %v3378, %v3378
        %v3387 = vmul.f32 %v3379, %v3379
        %v3388 = vmul.f32 %v3380, %v3380
        %v3389 = vadd.f32 %v3265, %v3381
        %v3390 = vadd.f32 %v3266, %v3382
        %v3391 = vadd.f32 %v3267, %v3383
        %v3392 = vadd.f32 %v3268, %v3384
        %v3393 = vadd.f32 %v3269, %v3385
        %v3394 = vadd.f32 %v3270, %v3386
        %v3395 = vadd.f32 %v3271, %v3387
        %v3396 = vadd.f32 %v3272, %v3388
        %v3397 = vrot.slane %v985, 1
        %v3398 = vrot.slane %v986, 1
        %v3399 = vrot.slane %v987, 1
        %v3400 = vrot.slane %v988, 1
        %v3401 = vrot.slane %v989, 1
        %v3402 = vrot.slane %v990, 1
        %v3403 = vrot.slane %v991, 1
        %v3404 = vrot.slane %v992, 1
        %v3405 = vsel %vm283, %v3403, %v3404
        %v3406 = vsel %vm283, %v3402, %v3403
        %v3407 = vsel %vm283, %v3401, %v3402
        %v3408 = vsel %vm283, %v3400, %v3401
        %v3409 = vsel %vm283, %v3399, %v3400
        %v3410 = vsel %vm283, %v3398, %v3399
        %v3411 = vsel %vm283, %v3397, %v3398
        %v3412 = vsel %vm283, %v3404, %v3397
        %v3413 = vperm.slane %v986, 7
        %v3414 = vperm.slane %v988, 7
        %v3415 = vperm.slane %v990, 7
        %v3416 = vperm.slane %v992, 7
        %v3417 = vsel %vm294, %v3413, %v3411
        %v3418 = vsel %vm295, %v3413, %v3410
        %v3419 = vsel %vm294, %v3414, %v3409
        %v3420 = vsel %vm295, %v3414, %v3408
        %v3421 = vsel %vm294, %v3415, %v3407
        %v3422 = vsel %vm295, %v3415, %v3406
        %v3423 = vsel %vm294, %v3416, %v3405
        %v3424 = vsel %vm295, %v3416, %v3412
        %3425 = vrot.lane.b32.xlu0 %v985, 127
        %v3426 = vpop.permute.xlu0 %3425
        %3427 = vrot.lane.b32.xlu0 %v986, 127
        %v3428 = vpop.permute.xlu0 %3427
        %3429 = vrot.lane.b32.xlu0 %v987, 127
        %v3430 = vpop.permute.xlu0 %3429
        %3431 = vrot.lane.b32.xlu0 %v988, 127
        %v3432 = vpop.permute.xlu0 %3431
        %3433 = vrot.lane.b32.xlu0 %v989, 127
        %v3434 = vpop.permute.xlu0 %3433
        %3435 = vrot.lane.b32.xlu0 %v990, 127
        %v3436 = vpop.permute.xlu0 %3435
        %3437 = vrot.lane.b32.xlu0 %v991, 127
        %v3438 = vpop.permute.xlu0 %3437
        %3439 = vrot.lane.b32.xlu0 %v992, 127
        %v3440 = vpop.permute.xlu0 %3439
        %3442 = vset.pattern.permute.xlu0 127
        %3443 = vperm.xlu0 %3442, %v985
        %v3444 = vpop.permute.xlu0 %3443
        %3447 = vset.pattern.permute.xlu0 127
        %3448 = vperm.xlu0 %3447, %v986
        %v3449 = vpop.permute.xlu0 %3448
        %3452 = vset.pattern.permute.xlu0 127
        %3453 = vperm.xlu0 %3452, %v987
        %v3454 = vpop.permute.xlu0 %3453
        %3457 = vset.pattern.permute.xlu0 127
        %3458 = vperm.xlu0 %3457, %v988
        %v3459 = vpop.permute.xlu0 %3458
        %3462 = vset.pattern.permute.xlu0 127
        %3463 = vperm.xlu0 %3462, %v989
        %v3464 = vpop.permute.xlu0 %3463
        %3467 = vset.pattern.permute.xlu0 127
        %3468 = vperm.xlu0 %3467, %v990
        %v3469 = vpop.permute.xlu0 %3468
        %3472 = vset.pattern.permute.xlu0 127
        %3473 = vperm.xlu0 %3472, %v991
        %v3474 = vpop.permute.xlu0 %3473
        %3477 = vset.pattern.permute.xlu0 127
        %3478 = vperm.xlu0 %3477, %v992
        %v3479 = vpop.permute.xlu0 %3478
        %v3481 = vsel %vm420, %v3444, %v3426
        %v3482 = vsel %vm420, %v3449, %v3428
        %v3483 = vsel %vm420, %v3454, %v3430
        %v3484 = vsel %vm420, %v3459, %v3432
        %v3485 = vsel %vm420, %v3464, %v3434
        %v3486 = vsel %vm420, %v3469, %v3436
        %v3487 = vsel %vm420, %v3474, %v3438
        %v3488 = vsel %vm420, %v3479, %v3440
        %v3489 = vsub.f32 %v985, %v3417
        %v3490 = vsub.f32 %v986, %v3418
        %v3491 = vsub.f32 %v987, %v3419
        %v3492 = vsub.f32 %v988, %v3420
        %v3493 = vsub.f32 %v989, %v3421
        %v3494 = vsub.f32 %v990, %v3422
        %v3495 = vsub.f32 %v991, %v3423
        %v3496 = vsub.f32 %v992, %v3424
        %v3497 = vmul.f32 %v3489, %v3489
        %v3498 = vmul.f32 %v3490, %v3490
        %v3499 = vmul.f32 %v3491, %v3491
        %v3500 = vmul.f32 %v3492, %v3492
        %v3501 = vmul.f32 %v3493, %v3493
        %v3502 = vmul.f32 %v3494, %v3494
        %v3503 = vmul.f32 %v3495, %v3495
        %v3504 = vmul.f32 %v3496, %v3496
        %v3505 = vsub.f32 %v985, %v3481
        %v3506 = vsub.f32 %v986, %v3482
        %v3507 = vsub.f32 %v987, %v3483
        %v3508 = vsub.f32 %v988, %v3484
        %v3509 = vsub.f32 %v989, %v3485
        %v3510 = vsub.f32 %v990, %v3486
        %v3511 = vsub.f32 %v991, %v3487
        %v3512 = vsub.f32 %v992, %v3488
        %v3513 = vmul.f32 %v3505, %v3505
        %v3514 = vmul.f32 %v3506, %v3506
        %v3515 = vmul.f32 %v3507, %v3507
        %v3516 = vmul.f32 %v3508, %v3508
        %v3517 = vmul.f32 %v3509, %v3509
        %v3518 = vmul.f32 %v3510, %v3510
        %v3519 = vmul.f32 %v3511, %v3511
        %v3520 = vmul.f32 %v3512, %v3512
        %v3521 = vadd.f32 %v3497, %v3513
        %v3522 = vadd.f32 %v3498, %v3514
        %v3523 = vadd.f32 %v3499, %v3515
        %v3524 = vadd.f32 %v3500, %v3516
        %v3525 = vadd.f32 %v3501, %v3517
        %v3526 = vadd.f32 %v3502, %v3518
        %v3527 = vadd.f32 %v3503, %v3519
        %v3528 = vadd.f32 %v3504, %v3520
        %v3529 = vadd.f32 %v3521, %v3523
        %v3530 = vadd.f32 %v3529, %v3525
        %v3531 = vadd.f32 %v3530, %v3527
        %v3532 = vadd.f32 %v3522, %v3524
        %v3533 = vadd.f32 %v3532, %v3526
        %v3534 = vadd.f32 %v3533, %v3528
        %v3535 = vmul.f32 %v3531, 0.25
        %v3536 = vmul.f32 %v3534, 0.25
        %v3537 = vmul.f32 %v3389, 0.06666667
        %v3538 = vmul.f32 %v3390, 0.06666667
        %v3539 = vmul.f32 %v3391, 0.06666667
        %v3540 = vmul.f32 %v3392, 0.06666667
        %v3541 = vmul.f32 %v3393, 0.06666667
        %v3542 = vmul.f32 %v3394, 0.06666667
        %v3543 = vmul.f32 %v3395, 0.06666667
        %v3544 = vmul.f32 %v3396, 0.06666667
        %v3545 = vrsqrt.pop %v3537
        %v3546 = vmul.f32 %v3545, %v3537
        %v3547 = vmul.f32 %v3546, %v3545
        %v3548 = vmul.f32 0.5, %v3547
        %v3549 = vsub.f32 1.5, %v3548
        %v3550 = vmul.f32 %v3545, %v3549
        %v3551 = vmul.f32 %v3537, %v3550
        %vm3552 = vcmp.eq.f32.partialorder %v3537, inf
        %v3553 = vsel %vm3552, %v3537, %v3551
        %vm3554 = vcmp.eq.f32.partialorder %v3537, 0.0
        %v3555 = vand.u32 %v3537, 2147483648
        %v3556 = vsel %vm3554, %v3555, %v3553
        %v3557 = vrsqrt.pop %v3538
        %v3558 = vmul.f32 %v3557, %v3538
        %v3559 = vmul.f32 %v3558, %v3557
        %v3560 = vmul.f32 0.5, %v3559
        %v3561 = vsub.f32 1.5, %v3560
        %v3562 = vmul.f32 %v3557, %v3561
        %v3563 = vmul.f32 %v3538, %v3562
        %vm3564 = vcmp.eq.f32.partialorder %v3538, inf
        %v3565 = vsel %vm3564, %v3538, %v3563
        %vm3566 = vcmp.eq.f32.partialorder %v3538, 0.0
        %v3567 = vand.u32 %v3538, 2147483648
        %v3568 = vsel %vm3566, %v3567, %v3565
        %v3569 = vrsqrt.pop %v3539
        %v3570 = vmul.f32 %v3569, %v3539
        %v3571 = vmul.f32 %v3570, %v3569
        %v3572 = vmul.f32 0.5, %v3571
        %v3573 = vsub.f32 1.5, %v3572
        %v3574 = vmul.f32 %v3569, %v3573
        %v3575 = vmul.f32 %v3539, %v3574
        %vm3576 = vcmp.eq.f32.partialorder %v3539, inf
        %v3577 = vsel %vm3576, %v3539, %v3575
        %vm3578 = vcmp.eq.f32.partialorder %v3539, 0.0
        %v3579 = vand.u32 %v3539, 2147483648
        %v3580 = vsel %vm3578, %v3579, %v3577
        %v3581 = vrsqrt.pop %v3540
        %v3582 = vmul.f32 %v3581, %v3540
        %v3583 = vmul.f32 %v3582, %v3581
        %v3584 = vmul.f32 0.5, %v3583
        %v3585 = vsub.f32 1.5, %v3584
        %v3586 = vmul.f32 %v3581, %v3585
        %v3587 = vmul.f32 %v3540, %v3586
        %vm3588 = vcmp.eq.f32.partialorder %v3540, inf
        %v3589 = vsel %vm3588, %v3540, %v3587
        %vm3590 = vcmp.eq.f32.partialorder %v3540, 0.0
        %v3591 = vand.u32 %v3540, 2147483648
        %v3592 = vsel %vm3590, %v3591, %v3589
        %v3593 = vrsqrt.pop %v3541
        %v3594 = vmul.f32 %v3593, %v3541
        %v3595 = vmul.f32 %v3594, %v3593
        %v3596 = vmul.f32 0.5, %v3595
        %v3597 = vsub.f32 1.5, %v3596
        %v3598 = vmul.f32 %v3593, %v3597
        %v3599 = vmul.f32 %v3541, %v3598
        %vm3600 = vcmp.eq.f32.partialorder %v3541, inf
        %v3601 = vsel %vm3600, %v3541, %v3599
        %vm3602 = vcmp.eq.f32.partialorder %v3541, 0.0
        %v3603 = vand.u32 %v3541, 2147483648
        %v3604 = vsel %vm3602, %v3603, %v3601
        %v3605 = vrsqrt.pop %v3542
        %v3606 = vmul.f32 %v3605, %v3542
        %v3607 = vmul.f32 %v3606, %v3605
        %v3608 = vmul.f32 0.5, %v3607
        %v3609 = vsub.f32 1.5, %v3608
        %v3610 = vmul.f32 %v3605, %v3609
        %v3611 = vmul.f32 %v3542, %v3610
        %vm3612 = vcmp.eq.f32.partialorder %v3542, inf
        %v3613 = vsel %vm3612, %v3542, %v3611
        %vm3614 = vcmp.eq.f32.partialorder %v3542, 0.0
        %v3615 = vand.u32 %v3542, 2147483648
        %v3616 = vsel %vm3614, %v3615, %v3613
        %v3617 = vrsqrt.pop %v3543
        %v3618 = vmul.f32 %v3617, %v3543
        %v3619 = vmul.f32 %v3618, %v3617
        %v3620 = vmul.f32 0.5, %v3619
        %v3621 = vsub.f32 1.5, %v3620
        %v3622 = vmul.f32 %v3617, %v3621
        %v3623 = vmul.f32 %v3543, %v3622
        %vm3624 = vcmp.eq.f32.partialorder %v3543, inf
        %v3625 = vsel %vm3624, %v3543, %v3623
        %vm3626 = vcmp.eq.f32.partialorder %v3543, 0.0
        %v3627 = vand.u32 %v3543, 2147483648
        %v3628 = vsel %vm3626, %v3627, %v3625
        %v3629 = vrsqrt.pop %v3544
        %v3630 = vmul.f32 %v3629, %v3544
        %v3631 = vmul.f32 %v3630, %v3629
        %v3632 = vmul.f32 0.5, %v3631
        %v3633 = vsub.f32 1.5, %v3632
        %v3634 = vmul.f32 %v3629, %v3633
        %v3635 = vmul.f32 %v3544, %v3634
        %vm3636 = vcmp.eq.f32.partialorder %v3544, inf
        %v3637 = vsel %vm3636, %v3544, %v3635
        %vm3638 = vcmp.eq.f32.partialorder %v3544, 0.0
        %v3639 = vand.u32 %v3544, 2147483648
        %v3640 = vsel %vm3638, %v3639, %v3637
        %v3641 = vadd.f32 %v3556, 1e-08
        %v3642 = vadd.f32 %v3568, 1e-08
        %v3643 = vadd.f32 %v3580, 1e-08
        %v3644 = vadd.f32 %v3592, 1e-08
        %v3645 = vadd.f32 %v3604, 1e-08
        %v3646 = vadd.f32 %v3616, 1e-08
        %v3647 = vadd.f32 %v3628, 1e-08
        %v3648 = vadd.f32 %v3640, 1e-08
        %v3649 = vrcp.pop %v3641
        %v3650 = vmul.f32 %v3641, %v3649
        %v3651 = vsub.f32 1.0, %v3650
        %v3652 = vmul.f32 %v3649, %v3651
        %v3653 = vadd.f32 %v3649, %v3652
        %vm3654 = vweird.f32 %v3641
        %vm3655 = vweird.f32 %v3649
        %vm3656 = vmor %vm3654, %vm3655
        %v3657 = vsel %vm3656, %v3649, %v3653
        %v3658 = vand.u32 2147483647, %v3641
        %vm3659 = vcmp.eq.f32.partialorder %v3658, 8.507059e+37
        %v3660 = vand.u32 %v3641, 2147483648
        %v3661 = vor.u32 1.1754944e-38, %v3660
        %v3662 = vsel %vm3659, %v3661, %v3657
        %v3663 = vmul.f32 3.3333333, %v3662
        %v3664 = vrcp.pop %v3642
        %v3665 = vmul.f32 %v3642, %v3664
        %v3666 = vsub.f32 1.0, %v3665
        %v3667 = vmul.f32 %v3664, %v3666
        %v3668 = vadd.f32 %v3664, %v3667
        %vm3669 = vweird.f32 %v3642
        %vm3670 = vweird.f32 %v3664
        %vm3671 = vmor %vm3669, %vm3670
        %v3672 = vsel %vm3671, %v3664, %v3668
        %v3673 = vand.u32 2147483647, %v3642
        %vm3674 = vcmp.eq.f32.partialorder %v3673, 8.507059e+37
        %v3675 = vand.u32 %v3642, 2147483648
        %v3676 = vor.u32 1.1754944e-38, %v3675
        %v3677 = vsel %vm3674, %v3676, %v3672
        %v3678 = vmul.f32 3.3333333, %v3677
        %v3679 = vrcp.pop %v3643
        %v3680 = vmul.f32 %v3643, %v3679
        %v3681 = vsub.f32 1.0, %v3680
        %v3682 = vmul.f32 %v3679, %v3681
        %v3683 = vadd.f32 %v3679, %v3682
        %vm3684 = vweird.f32 %v3643
        %vm3685 = vweird.f32 %v3679
        %vm3686 = vmor %vm3684, %vm3685
        %v3687 = vsel %vm3686, %v3679, %v3683
        %v3688 = vand.u32 2147483647, %v3643
        %vm3689 = vcmp.eq.f32.partialorder %v3688, 8.507059e+37
        %v3690 = vand.u32 %v3643, 2147483648
        %v3691 = vor.u32 1.1754944e-38, %v3690
        %v3692 = vsel %vm3689, %v3691, %v3687
        %v3693 = vmul.f32 3.3333333, %v3692
        %v3694 = vrcp.pop %v3644
        %v3695 = vmul.f32 %v3644, %v3694
        %v3696 = vsub.f32 1.0, %v3695
        %v3697 = vmul.f32 %v3694, %v3696
        %v3698 = vadd.f32 %v3694, %v3697
        %vm3699 = vweird.f32 %v3644
        %vm3700 = vweird.f32 %v3694
        %vm3701 = vmor %vm3699, %vm3700
        %v3702 = vsel %vm3701, %v3694, %v3698
        %v3703 = vand.u32 2147483647, %v3644
        %vm3704 = vcmp.eq.f32.partialorder %v3703, 8.507059e+37
        %v3705 = vand.u32 %v3644, 2147483648
        %v3706 = vor.u32 1.1754944e-38, %v3705
        %v3707 = vsel %vm3704, %v3706, %v3702
        %v3708 = vmul.f32 3.3333333, %v3707
        %v3709 = vrcp.pop %v3645
        %v3710 = vmul.f32 %v3645, %v3709
        %v3711 = vsub.f32 1.0, %v3710
        %v3712 = vmul.f32 %v3709, %v3711
        %v3713 = vadd.f32 %v3709, %v3712
        %vm3714 = vweird.f32 %v3645
        %vm3715 = vweird.f32 %v3709
        %vm3716 = vmor %vm3714, %vm3715
        %v3717 = vsel %vm3716, %v3709, %v3713
        %v3718 = vand.u32 2147483647, %v3645
        %vm3719 = vcmp.eq.f32.partialorder %v3718, 8.507059e+37
        %v3720 = vand.u32 %v3645, 2147483648
        %v3721 = vor.u32 1.1754944e-38, %v3720
        %v3722 = vsel %vm3719, %v3721, %v3717
        %v3723 = vmul.f32 3.3333333, %v3722
        %v3724 = vrcp.pop %v3646
        %v3725 = vmul.f32 %v3646, %v3724
        %v3726 = vsub.f32 1.0, %v3725
        %v3727 = vmul.f32 %v3724, %v3726
        %v3728 = vadd.f32 %v3724, %v3727
        %vm3729 = vweird.f32 %v3646
        %vm3730 = vweird.f32 %v3724
        %vm3731 = vmor %vm3729, %vm3730
        %v3732 = vsel %vm3731, %v3724, %v3728
        %v3733 = vand.u32 2147483647, %v3646
        %vm3734 = vcmp.eq.f32.partialorder %v3733, 8.507059e+37
        %v3735 = vand.u32 %v3646, 2147483648
        %v3736 = vor.u32 1.1754944e-38, %v3735
        %v3737 = vsel %vm3734, %v3736, %v3732
        %v3738 = vmul.f32 3.3333333, %v3737
        %v3739 = vrcp.pop %v3647
        %v3740 = vmul.f32 %v3647, %v3739
        %v3741 = vsub.f32 1.0, %v3740
        %v3742 = vmul.f32 %v3739, %v3741
        %v3743 = vadd.f32 %v3739, %v3742
        %vm3744 = vweird.f32 %v3647
        %vm3745 = vweird.f32 %v3739
        %vm3746 = vmor %vm3744, %vm3745
        %v3747 = vsel %vm3746, %v3739, %v3743
        %v3748 = vand.u32 2147483647, %v3647
        %vm3749 = vcmp.eq.f32.partialorder %v3748, 8.507059e+37
        %v3750 = vand.u32 %v3647, 2147483648
        %v3751 = vor.u32 1.1754944e-38, %v3750
        %v3752 = vsel %vm3749, %v3751, %v3747
        %v3753 = vmul.f32 3.3333333, %v3752
        %v3754 = vrcp.pop %v3648
        %v3755 = vmul.f32 %v3648, %v3754
        %v3756 = vsub.f32 1.0, %v3755
        %v3757 = vmul.f32 %v3754, %v3756
        %v3758 = vadd.f32 %v3754, %v3757
        %vm3759 = vweird.f32 %v3648
        %vm3760 = vweird.f32 %v3754
        %vm3761 = vmor %vm3759, %vm3760
        %v3762 = vsel %vm3761, %v3754, %v3758
        %v3763 = vand.u32 2147483647, %v3648
        %vm3764 = vcmp.eq.f32.partialorder %v3763, 8.507059e+37
        %v3765 = vand.u32 %v3648, 2147483648
        %v3766 = vor.u32 1.1754944e-38, %v3765
        %v3767 = vsel %vm3764, %v3766, %v3762
        %v3768 = vmul.f32 3.3333333, %v3767
        %v3769 = vsub.f32 %v395, %v184
        %v3770 = vsub.f32 %v396, %v185
        %v3771 = vsub.f32 %v397, %v186
        %v3772 = vsub.f32 %v398, %v187
        %v3773 = vsub.f32 %v399, %v188
        %v3774 = vsub.f32 %v400, %v189
        %v3775 = vsub.f32 %v401, %v190
        %v3776 = vsub.f32 %v402, %v191
        %v3777 = vmul.f32 %v3769, %v3663
        %v3778 = vmul.f32 %v3770, %v3678
        %v3779 = vmul.f32 %v3771, %v3693
        %v3780 = vmul.f32 %v3772, %v3708
        %v3781 = vmul.f32 %v3773, %v3723
        %v3782 = vmul.f32 %v3774, %v3738
        %v3783 = vmul.f32 %v3775, %v3753
        %v3784 = vmul.f32 %v3776, %v3768
        %v3785 = vmul.f32 %v3777, %v3777
        %v3786 = vmul.f32 %v3778, %v3778
        %v3787 = vmul.f32 %v3779, %v3779
        %v3788 = vmul.f32 %v3780, %v3780
        %v3789 = vmul.f32 %v3781, %v3781
        %v3790 = vmul.f32 %v3782, %v3782
        %v3791 = vmul.f32 %v3783, %v3783
        %v3792 = vmul.f32 %v3784, %v3784
        %v3793 = vadd.f32 %v3785, %v3787
        %v3794 = vadd.f32 %v3793, %v3789
        %v3795 = vadd.f32 %v3794, %v3791
        %v3796 = vadd.f32 %v3786, %v3788
        %v3797 = vadd.f32 %v3796, %v3790
        %v3798 = vadd.f32 %v3797, %v3792
        %v3799 = vmul.f32 %v3795, 0.25
        %v3800 = vmul.f32 %v3798, 0.25
        %v3801 = vsub.f32 0.0, %v3799
        %v3802 = vsub.f32 0.0, %v3800
        %v3803 = vsub.f32 %v267, %v184
        %v3804 = vsub.f32 %v268, %v185
        %v3805 = vsub.f32 %v269, %v186
        %v3806 = vsub.f32 %v270, %v187
        %v3807 = vsub.f32 %v271, %v188
        %v3808 = vsub.f32 %v272, %v189
        %v3809 = vsub.f32 %v273, %v190
        %v3810 = vsub.f32 %v274, %v191
        %v3811 = vmul.f32 %v3803, %v3663
        %v3812 = vmul.f32 %v3804, %v3678
        %v3813 = vmul.f32 %v3805, %v3693
        %v3814 = vmul.f32 %v3806, %v3708
        %v3815 = vmul.f32 %v3807, %v3723
        %v3816 = vmul.f32 %v3808, %v3738
        %v3817 = vmul.f32 %v3809, %v3753
        %v3818 = vmul.f32 %v3810, %v3768
        %v3819 = vmul.f32 %v3811, %v3811
        %v3820 = vmul.f32 %v3812, %v3812
        %v3821 = vmul.f32 %v3813, %v3813
        %v3822 = vmul.f32 %v3814, %v3814
        %v3823 = vmul.f32 %v3815, %v3815
        %v3824 = vmul.f32 %v3816, %v3816
        %v3825 = vmul.f32 %v3817, %v3817
        %v3826 = vmul.f32 %v3818, %v3818
        %v3827 = vadd.f32 %v3819, %v3821
        %v3828 = vadd.f32 %v3827, %v3823
        %v3829 = vadd.f32 %v3828, %v3825
        %v3830 = vadd.f32 %v3820, %v3822
        %v3831 = vadd.f32 %v3830, %v3824
        %v3832 = vadd.f32 %v3831, %v3826
        %v3833 = vmul.f32 %v3829, 0.25
        %v3834 = vmul.f32 %v3832, 0.25
        %v3835 = vsub.f32 0.0, %v3833
        %v3836 = vsub.f32 0.0, %v3834
        %v3837 = vsub.f32 %v453, %v184
        %v3838 = vsub.f32 %v454, %v185
        %v3839 = vsub.f32 %v455, %v186
        %v3840 = vsub.f32 %v456, %v187
        %v3841 = vsub.f32 %v457, %v188
        %v3842 = vsub.f32 %v458, %v189
        %v3843 = vsub.f32 %v459, %v190
        %v3844 = vsub.f32 %v460, %v191
        %v3845 = vmul.f32 %v3837, %v3663
        %v3846 = vmul.f32 %v3838, %v3678
        %v3847 = vmul.f32 %v3839, %v3693
        %v3848 = vmul.f32 %v3840, %v3708
        %v3849 = vmul.f32 %v3841, %v3723
        %v3850 = vmul.f32 %v3842, %v3738
        %v3851 = vmul.f32 %v3843, %v3753
        %v3852 = vmul.f32 %v3844, %v3768
        %v3853 = vmul.f32 %v3845, %v3845
        %v3854 = vmul.f32 %v3846, %v3846
        %v3855 = vmul.f32 %v3847, %v3847
        %v3856 = vmul.f32 %v3848, %v3848
        %v3857 = vmul.f32 %v3849, %v3849
        %v3858 = vmul.f32 %v3850, %v3850
        %v3859 = vmul.f32 %v3851, %v3851
        %v3860 = vmul.f32 %v3852, %v3852
        %v3861 = vadd.f32 %v3853, %v3855
        %v3862 = vadd.f32 %v3861, %v3857
        %v3863 = vadd.f32 %v3862, %v3859
        %v3864 = vadd.f32 %v3854, %v3856
        %v3865 = vadd.f32 %v3864, %v3858
        %v3866 = vadd.f32 %v3865, %v3860
        %v3867 = vmul.f32 %v3863, 0.25
        %v3868 = vmul.f32 %v3866, 0.25
        %v3869 = vsub.f32 0.0, %v3867
        %v3870 = vsub.f32 0.0, %v3868
        %v3871 = vsub.f32 %v517, %v184
        %v3872 = vsub.f32 %v518, %v185
        %v3873 = vsub.f32 %v519, %v186
        %v3874 = vsub.f32 %v520, %v187
        %v3875 = vsub.f32 %v521, %v188
        %v3876 = vsub.f32 %v522, %v189
        %v3877 = vsub.f32 %v523, %v190
        %v3878 = vsub.f32 %v524, %v191
        %v3879 = vmul.f32 %v3871, %v3663
        %v3880 = vmul.f32 %v3872, %v3678
        %v3881 = vmul.f32 %v3873, %v3693
        %v3882 = vmul.f32 %v3874, %v3708
        %v3883 = vmul.f32 %v3875, %v3723
        %v3884 = vmul.f32 %v3876, %v3738
        %v3885 = vmul.f32 %v3877, %v3753
        %v3886 = vmul.f32 %v3878, %v3768
        %v3887 = vmul.f32 %v3879, %v3879
        %v3888 = vmul.f32 %v3880, %v3880
        %v3889 = vmul.f32 %v3881, %v3881
        %v3890 = vmul.f32 %v3882, %v3882
        %v3891 = vmul.f32 %v3883, %v3883
        %v3892 = vmul.f32 %v3884, %v3884
        %v3893 = vmul.f32 %v3885, %v3885
        %v3894 = vmul.f32 %v3886, %v3886
        %v3895 = vadd.f32 %v3887, %v3889
        %v3896 = vadd.f32 %v3895, %v3891
        %v3897 = vadd.f32 %v3896, %v3893
        %v3898 = vadd.f32 %v3888, %v3890
        %v3899 = vadd.f32 %v3898, %v3892
        %v3900 = vadd.f32 %v3899, %v3894
        %v3901 = vmul.f32 %v3897, 0.25
        %v3902 = vmul.f32 %v3900, 0.25
        %v3903 = vsub.f32 0.0, %v3901
        %v3904 = vsub.f32 0.0, %v3902
        %v3905 = vsub.f32 %v573, %v184
        %v3906 = vsub.f32 %v574, %v185
        %v3907 = vsub.f32 %v575, %v186
        %v3908 = vsub.f32 %v576, %v187
        %v3909 = vsub.f32 %v577, %v188
        %v3910 = vsub.f32 %v578, %v189
        %v3911 = vsub.f32 %v579, %v190
        %v3912 = vsub.f32 %v580, %v191
        %v3913 = vmul.f32 %v3905, %v3663
        %v3914 = vmul.f32 %v3906, %v3678
        %v3915 = vmul.f32 %v3907, %v3693
        %v3916 = vmul.f32 %v3908, %v3708
        %v3917 = vmul.f32 %v3909, %v3723
        %v3918 = vmul.f32 %v3910, %v3738
        %v3919 = vmul.f32 %v3911, %v3753
        %v3920 = vmul.f32 %v3912, %v3768
        %v3921 = vmul.f32 %v3913, %v3913
        %v3922 = vmul.f32 %v3914, %v3914
        %v3923 = vmul.f32 %v3915, %v3915
        %v3924 = vmul.f32 %v3916, %v3916
        %v3925 = vmul.f32 %v3917, %v3917
        %v3926 = vmul.f32 %v3918, %v3918
        %v3927 = vmul.f32 %v3919, %v3919
        %v3928 = vmul.f32 %v3920, %v3920
        %v3929 = vadd.f32 %v3921, %v3923
        %v3930 = vadd.f32 %v3929, %v3925
        %v3931 = vadd.f32 %v3930, %v3927
        %v3932 = vadd.f32 %v3922, %v3924
        %v3933 = vadd.f32 %v3932, %v3926
        %v3934 = vadd.f32 %v3933, %v3928
        %v3935 = vmul.f32 %v3931, 0.25
        %v3936 = vmul.f32 %v3934, 0.25
        %v3937 = vsub.f32 0.0, %v3935
        %v3938 = vsub.f32 0.0, %v3936
        %v3939 = vsub.f32 %v637, %v184
        %v3940 = vsub.f32 %v638, %v185
        %v3941 = vsub.f32 %v639, %v186
        %v3942 = vsub.f32 %v640, %v187
        %v3943 = vsub.f32 %v641, %v188
        %v3944 = vsub.f32 %v642, %v189
        %v3945 = vsub.f32 %v643, %v190
        %v3946 = vsub.f32 %v644, %v191
        %v3947 = vmul.f32 %v3939, %v3663
        %v3948 = vmul.f32 %v3940, %v3678
        %v3949 = vmul.f32 %v3941, %v3693
        %v3950 = vmul.f32 %v3942, %v3708
        %v3951 = vmul.f32 %v3943, %v3723
        %v3952 = vmul.f32 %v3944, %v3738
        %v3953 = vmul.f32 %v3945, %v3753
        %v3954 = vmul.f32 %v3946, %v3768
        %v3955 = vmul.f32 %v3947, %v3947
        %v3956 = vmul.f32 %v3948, %v3948
        %v3957 = vmul.f32 %v3949, %v3949
        %v3958 = vmul.f32 %v3950, %v3950
        %v3959 = vmul.f32 %v3951, %v3951
        %v3960 = vmul.f32 %v3952, %v3952
        %v3961 = vmul.f32 %v3953, %v3953
        %v3962 = vmul.f32 %v3954, %v3954
        %v3963 = vadd.f32 %v3955, %v3957
        %v3964 = vadd.f32 %v3963, %v3959
        %v3965 = vadd.f32 %v3964, %v3961
        %v3966 = vadd.f32 %v3956, %v3958
        %v3967 = vadd.f32 %v3966, %v3960
        %v3968 = vadd.f32 %v3967, %v3962
        %v3969 = vmul.f32 %v3965, 0.25
        %v3970 = vmul.f32 %v3968, 0.25
        %v3971 = vsub.f32 0.0, %v3969
        %v3972 = vsub.f32 0.0, %v3970
        %v3973 = vsub.f32 %v300, %v184
        %v3974 = vsub.f32 %v301, %v185
        %v3975 = vsub.f32 %v302, %v186
        %v3976 = vsub.f32 %v303, %v187
        %v3977 = vsub.f32 %v304, %v188
        %v3978 = vsub.f32 %v305, %v189
        %v3979 = vsub.f32 %v306, %v190
        %v3980 = vsub.f32 %v307, %v191
        %v3981 = vmul.f32 %v3973, %v3663
        %v3982 = vmul.f32 %v3974, %v3678
        %v3983 = vmul.f32 %v3975, %v3693
        %v3984 = vmul.f32 %v3976, %v3708
        %v3985 = vmul.f32 %v3977, %v3723
        %v3986 = vmul.f32 %v3978, %v3738
        %v3987 = vmul.f32 %v3979, %v3753
        %v3988 = vmul.f32 %v3980, %v3768
        %v3989 = vmul.f32 %v3981, %v3981
        %v3990 = vmul.f32 %v3982, %v3982
        %v3991 = vmul.f32 %v3983, %v3983
        %v3992 = vmul.f32 %v3984, %v3984
        %v3993 = vmul.f32 %v3985, %v3985
        %v3994 = vmul.f32 %v3986, %v3986
        %v3995 = vmul.f32 %v3987, %v3987
        %v3996 = vmul.f32 %v3988, %v3988
        %v3997 = vadd.f32 %v3989, %v3991
        %v3998 = vadd.f32 %v3997, %v3993
        %v3999 = vadd.f32 %v3998, %v3995
        %v4000 = vadd.f32 %v3990, %v3992
        %v4001 = vadd.f32 %v4000, %v3994
        %v4002 = vadd.f32 %v4001, %v3996
        %v4003 = vmul.f32 %v3999, 0.25
        %v4004 = vmul.f32 %v4002, 0.25
        %v4005 = vsub.f32 0.0, %v4003
        %v4006 = vsub.f32 0.0, %v4004
        %v4007 = vsub.f32 %v693, %v184
        %v4008 = vsub.f32 %v694, %v185
        %v4009 = vsub.f32 %v695, %v186
        %v4010 = vsub.f32 %v696, %v187
        %v4011 = vsub.f32 %v697, %v188
        %v4012 = vsub.f32 %v698, %v189
        %v4013 = vsub.f32 %v699, %v190
        %v4014 = vsub.f32 %v700, %v191
        %v4015 = vmul.f32 %v4007, %v3663
        %v4016 = vmul.f32 %v4008, %v3678
        %v4017 = vmul.f32 %v4009, %v3693
        %v4018 = vmul.f32 %v4010, %v3708
        %v4019 = vmul.f32 %v4011, %v3723
        %v4020 = vmul.f32 %v4012, %v3738
        %v4021 = vmul.f32 %v4013, %v3753
        %v4022 = vmul.f32 %v4014, %v3768
        %v4023 = vmul.f32 %v4015, %v4015
        %v4024 = vmul.f32 %v4016, %v4016
        %v4025 = vmul.f32 %v4017, %v4017
        %v4026 = vmul.f32 %v4018, %v4018
        %v4027 = vmul.f32 %v4019, %v4019
        %v4028 = vmul.f32 %v4020, %v4020
        %v4029 = vmul.f32 %v4021, %v4021
        %v4030 = vmul.f32 %v4022, %v4022
        %v4031 = vadd.f32 %v4023, %v4025
        %v4032 = vadd.f32 %v4031, %v4027
        %v4033 = vadd.f32 %v4032, %v4029
        %v4034 = vadd.f32 %v4024, %v4026
        %v4035 = vadd.f32 %v4034, %v4028
        %v4036 = vadd.f32 %v4035, %v4030
        %v4037 = vmul.f32 %v4033, 0.25
        %v4038 = vmul.f32 %v4036, 0.25
        %v4039 = vsub.f32 0.0, %v4037
        %v4040 = vsub.f32 0.0, %v4038
        %v4041 = vsub.f32 %v759, %v184
        %v4042 = vsub.f32 %v760, %v185
        %v4043 = vsub.f32 %v761, %v186
        %v4044 = vsub.f32 %v762, %v187
        %v4045 = vsub.f32 %v763, %v188
        %v4046 = vsub.f32 %v764, %v189
        %v4047 = vsub.f32 %v765, %v190
        %v4048 = vsub.f32 %v766, %v191
        %v4049 = vmul.f32 %v4041, %v3663
        %v4050 = vmul.f32 %v4042, %v3678
        %v4051 = vmul.f32 %v4043, %v3693
        %v4052 = vmul.f32 %v4044, %v3708
        %v4053 = vmul.f32 %v4045, %v3723
        %v4054 = vmul.f32 %v4046, %v3738
        %v4055 = vmul.f32 %v4047, %v3753
        %v4056 = vmul.f32 %v4048, %v3768
        %v4057 = vmul.f32 %v4049, %v4049
        %v4058 = vmul.f32 %v4050, %v4050
        %v4059 = vmul.f32 %v4051, %v4051
        %v4060 = vmul.f32 %v4052, %v4052
        %v4061 = vmul.f32 %v4053, %v4053
        %v4062 = vmul.f32 %v4054, %v4054
        %v4063 = vmul.f32 %v4055, %v4055
        %v4064 = vmul.f32 %v4056, %v4056
        %v4065 = vadd.f32 %v4057, %v4059
        %v4066 = vadd.f32 %v4065, %v4061
        %v4067 = vadd.f32 %v4066, %v4063
        %v4068 = vadd.f32 %v4058, %v4060
        %v4069 = vadd.f32 %v4068, %v4062
        %v4070 = vadd.f32 %v4069, %v4064
        %v4071 = vmul.f32 %v4067, 0.25
        %v4072 = vmul.f32 %v4070, 0.25
        %v4073 = vsub.f32 0.0, %v4071
        %v4074 = vsub.f32 0.0, %v4072
        %v4075 = vsub.f32 %v239, %v184
        %v4076 = vsub.f32 %v240, %v185
        %v4077 = vsub.f32 %v241, %v186
        %v4078 = vsub.f32 %v242, %v187
        %v4079 = vsub.f32 %v243, %v188
        %v4080 = vsub.f32 %v244, %v189
        %v4081 = vsub.f32 %v245, %v190
        %v4082 = vsub.f32 %v246, %v191
        %v4083 = vmul.f32 %v4075, %v3663
        %v4084 = vmul.f32 %v4076, %v3678
        %v4085 = vmul.f32 %v4077, %v3693
        %v4086 = vmul.f32 %v4078, %v3708
        %v4087 = vmul.f32 %v4079, %v3723
        %v4088 = vmul.f32 %v4080, %v3738
        %v4089 = vmul.f32 %v4081, %v3753
        %v4090 = vmul.f32 %v4082, %v3768
        %v4091 = vmul.f32 %v4083, %v4083
        %v4092 = vmul.f32 %v4084, %v4084
        %v4093 = vmul.f32 %v4085, %v4085
        %v4094 = vmul.f32 %v4086, %v4086
        %v4095 = vmul.f32 %v4087, %v4087
        %v4096 = vmul.f32 %v4088, %v4088
        %v4097 = vmul.f32 %v4089, %v4089
        %v4098 = vmul.f32 %v4090, %v4090
        %v4099 = vadd.f32 %v4091, %v4093
        %v4100 = vadd.f32 %v4099, %v4095
        %v4101 = vadd.f32 %v4100, %v4097
        %v4102 = vadd.f32 %v4092, %v4094
        %v4103 = vadd.f32 %v4102, %v4096
        %v4104 = vadd.f32 %v4103, %v4098
        %v4105 = vmul.f32 %v4101, 0.25
        %v4106 = vmul.f32 %v4104, 0.25
        %v4107 = vsub.f32 0.0, %v4105
        %v4108 = vsub.f32 0.0, %v4106
        %v4109 = vsub.f32 %v817, %v184
        %v4110 = vsub.f32 %v818, %v185
        %v4111 = vsub.f32 %v819, %v186
        %v4112 = vsub.f32 %v820, %v187
        %v4113 = vsub.f32 %v821, %v188
        %v4114 = vsub.f32 %v822, %v189
        %v4115 = vsub.f32 %v823, %v190
        %v4116 = vsub.f32 %v824, %v191
        %v4117 = vmul.f32 %v4109, %v3663
        %v4118 = vmul.f32 %v4110, %v3678
        %v4119 = vmul.f32 %v4111, %v3693
        %v4120 = vmul.f32 %v4112, %v3708
        %v4121 = vmul.f32 %v4113, %v3723
        %v4122 = vmul.f32 %v4114, %v3738
        %v4123 = vmul.f32 %v4115, %v3753
        %v4124 = vmul.f32 %v4116, %v3768
        %v4125 = vmul.f32 %v4117, %v4117
        %v4126 = vmul.f32 %v4118, %v4118
        %v4127 = vmul.f32 %v4119, %v4119
        %v4128 = vmul.f32 %v4120, %v4120
        %v4129 = vmul.f32 %v4121, %v4121
        %v4130 = vmul.f32 %v4122, %v4122
        %v4131 = vmul.f32 %v4123, %v4123
        %v4132 = vmul.f32 %v4124, %v4124
        %v4133 = vadd.f32 %v4125, %v4127
        %v4134 = vadd.f32 %v4133, %v4129
        %v4135 = vadd.f32 %v4134, %v4131
        %v4136 = vadd.f32 %v4126, %v4128
        %v4137 = vadd.f32 %v4136, %v4130
        %v4138 = vadd.f32 %v4137, %v4132
        %v4139 = vmul.f32 %v4135, 0.25
        %v4140 = vmul.f32 %v4138, 0.25
        %v4141 = vsub.f32 0.0, %v4139
        %v4142 = vsub.f32 0.0, %v4140
        %v4143 = vsub.f32 %v841, %v184
        %v4144 = vsub.f32 %v842, %v185
        %v4145 = vsub.f32 %v843, %v186
        %v4146 = vsub.f32 %v844, %v187
        %v4147 = vsub.f32 %v845, %v188
        %v4148 = vsub.f32 %v846, %v189
        %v4149 = vsub.f32 %v847, %v190
        %v4150 = vsub.f32 %v848, %v191
        %v4151 = vmul.f32 %v4143, %v3663
        %v4152 = vmul.f32 %v4144, %v3678
        %v4153 = vmul.f32 %v4145, %v3693
        %v4154 = vmul.f32 %v4146, %v3708
        %v4155 = vmul.f32 %v4147, %v3723
        %v4156 = vmul.f32 %v4148, %v3738
        %v4157 = vmul.f32 %v4149, %v3753
        %v4158 = vmul.f32 %v4150, %v3768
        %v4159 = vmul.f32 %v4151, %v4151
        %v4160 = vmul.f32 %v4152, %v4152
        %v4161 = vmul.f32 %v4153, %v4153
        %v4162 = vmul.f32 %v4154, %v4154
        %v4163 = vmul.f32 %v4155, %v4155
        %v4164 = vmul.f32 %v4156, %v4156
        %v4165 = vmul.f32 %v4157, %v4157
        %v4166 = vmul.f32 %v4158, %v4158
        %v4167 = vadd.f32 %v4159, %v4161
        %v4168 = vadd.f32 %v4167, %v4163
        %v4169 = vadd.f32 %v4168, %v4165
        %v4170 = vadd.f32 %v4160, %v4162
        %v4171 = vadd.f32 %v4170, %v4164
        %v4172 = vadd.f32 %v4171, %v4166
        %v4173 = vmul.f32 %v4169, 0.25
        %v4174 = vmul.f32 %v4172, 0.25
        %v4175 = vsub.f32 0.0, %v4173
        %v4176 = vsub.f32 0.0, %v4174
        %v4177 = vsub.f32 %v865, %v184
        %v4178 = vsub.f32 %v866, %v185
        %v4179 = vsub.f32 %v867, %v186
        %v4180 = vsub.f32 %v868, %v187
        %v4181 = vsub.f32 %v869, %v188
        %v4182 = vsub.f32 %v870, %v189
        %v4183 = vsub.f32 %v871, %v190
        %v4184 = vsub.f32 %v872, %v191
        %v4185 = vmul.f32 %v4177, %v3663
        %v4186 = vmul.f32 %v4178, %v3678
        %v4187 = vmul.f32 %v4179, %v3693
        %v4188 = vmul.f32 %v4180, %v3708
        %v4189 = vmul.f32 %v4181, %v3723
        %v4190 = vmul.f32 %v4182, %v3738
        %v4191 = vmul.f32 %v4183, %v3753
        %v4192 = vmul.f32 %v4184, %v3768
        %v4193 = vmul.f32 %v4185, %v4185
        %v4194 = vmul.f32 %v4186, %v4186
        %v4195 = vmul.f32 %v4187, %v4187
        %v4196 = vmul.f32 %v4188, %v4188
        %v4197 = vmul.f32 %v4189, %v4189
        %v4198 = vmul.f32 %v4190, %v4190
        %v4199 = vmul.f32 %v4191, %v4191
        %v4200 = vmul.f32 %v4192, %v4192
        %v4201 = vadd.f32 %v4193, %v4195
        %v4202 = vadd.f32 %v4201, %v4197
        %v4203 = vadd.f32 %v4202, %v4199
        %v4204 = vadd.f32 %v4194, %v4196
        %v4205 = vadd.f32 %v4204, %v4198
        %v4206 = vadd.f32 %v4205, %v4200
        %v4207 = vmul.f32 %v4203, 0.25
        %v4208 = vmul.f32 %v4206, 0.25
        %v4209 = vsub.f32 0.0, %v4207
        %v4210 = vsub.f32 0.0, %v4208
        %v4211 = vsub.f32 %v929, %v184
        %v4212 = vsub.f32 %v930, %v185
        %v4213 = vsub.f32 %v931, %v186
        %v4214 = vsub.f32 %v932, %v187
        %v4215 = vsub.f32 %v933, %v188
        %v4216 = vsub.f32 %v934, %v189
        %v4217 = vsub.f32 %v935, %v190
        %v4218 = vsub.f32 %v936, %v191
        %v4219 = vmul.f32 %v4211, %v3663
        %v4220 = vmul.f32 %v4212, %v3678
        %v4221 = vmul.f32 %v4213, %v3693
        %v4222 = vmul.f32 %v4214, %v3708
        %v4223 = vmul.f32 %v4215, %v3723
        %v4224 = vmul.f32 %v4216, %v3738
        %v4225 = vmul.f32 %v4217, %v3753
        %v4226 = vmul.f32 %v4218, %v3768
        %v4227 = vmul.f32 %v4219, %v4219
        %v4228 = vmul.f32 %v4220, %v4220
        %v4229 = vmul.f32 %v4221, %v4221
        %v4230 = vmul.f32 %v4222, %v4222
        %v4231 = vmul.f32 %v4223, %v4223
        %v4232 = vmul.f32 %v4224, %v4224
        %v4233 = vmul.f32 %v4225, %v4225
        %v4234 = vmul.f32 %v4226, %v4226
        %v4235 = vadd.f32 %v4227, %v4229
        %v4236 = vadd.f32 %v4235, %v4231
        %v4237 = vadd.f32 %v4236, %v4233
        %v4238 = vadd.f32 %v4228, %v4230
        %v4239 = vadd.f32 %v4238, %v4232
        %v4240 = vadd.f32 %v4239, %v4234
        %v4241 = vmul.f32 %v4237, 0.25
        %v4242 = vmul.f32 %v4240, 0.25
        %v4243 = vsub.f32 0.0, %v4241
        %v4244 = vsub.f32 0.0, %v4242
        %v4245 = vsub.f32 %v329, %v184
        %v4246 = vsub.f32 %v330, %v185
        %v4247 = vsub.f32 %v331, %v186
        %v4248 = vsub.f32 %v332, %v187
        %v4249 = vsub.f32 %v333, %v188
        %v4250 = vsub.f32 %v334, %v189
        %v4251 = vsub.f32 %v335, %v190
        %v4252 = vsub.f32 %v336, %v191
        %v4253 = vmul.f32 %v4245, %v3663
        %v4254 = vmul.f32 %v4246, %v3678
        %v4255 = vmul.f32 %v4247, %v3693
        %v4256 = vmul.f32 %v4248, %v3708
        %v4257 = vmul.f32 %v4249, %v3723
        %v4258 = vmul.f32 %v4250, %v3738
        %v4259 = vmul.f32 %v4251, %v3753
        %v4260 = vmul.f32 %v4252, %v3768
        %v4261 = vmul.f32 %v4253, %v4253
        %v4262 = vmul.f32 %v4254, %v4254
        %v4263 = vmul.f32 %v4255, %v4255
        %v4264 = vmul.f32 %v4256, %v4256
        %v4265 = vmul.f32 %v4257, %v4257
        %v4266 = vmul.f32 %v4258, %v4258
        %v4267 = vmul.f32 %v4259, %v4259
        %v4268 = vmul.f32 %v4260, %v4260
        %v4269 = vadd.f32 %v4261, %v4263
        %v4270 = vadd.f32 %v4269, %v4265
        %v4271 = vadd.f32 %v4270, %v4267
        %v4272 = vadd.f32 %v4262, %v4264
        %v4273 = vadd.f32 %v4272, %v4266
        %v4274 = vadd.f32 %v4273, %v4268
        %v4275 = vmul.f32 %v4271, 0.25
        %v4276 = vmul.f32 %v4274, 0.25
        %v4277 = vsub.f32 0.0, %v4275
        %v4278 = vsub.f32 0.0, %v4276
        %v4279 = vsub.f32 %v985, %v184
        %v4280 = vsub.f32 %v986, %v185
        %v4281 = vsub.f32 %v987, %v186
        %v4282 = vsub.f32 %v988, %v187
        %v4283 = vsub.f32 %v989, %v188
        %v4284 = vsub.f32 %v990, %v189
        %v4285 = vsub.f32 %v991, %v190
        %v4286 = vsub.f32 %v992, %v191
        %v4287 = vmul.f32 %v4279, %v3663
        %v4288 = vmul.f32 %v4280, %v3678
        %v4289 = vmul.f32 %v4281, %v3693
        %v4290 = vmul.f32 %v4282, %v3708
        %v4291 = vmul.f32 %v4283, %v3723
        %v4292 = vmul.f32 %v4284, %v3738
        %v4293 = vmul.f32 %v4285, %v3753
        %v4294 = vmul.f32 %v4286, %v3768
        %v4295 = vmul.f32 %v4287, %v4287
        %v4296 = vmul.f32 %v4288, %v4288
        %v4297 = vmul.f32 %v4289, %v4289
        %v4298 = vmul.f32 %v4290, %v4290
        %v4299 = vmul.f32 %v4291, %v4291
        %v4300 = vmul.f32 %v4292, %v4292
        %v4301 = vmul.f32 %v4293, %v4293
        %v4302 = vmul.f32 %v4294, %v4294
        %v4303 = vadd.f32 %v4295, %v4297
        %v4304 = vadd.f32 %v4303, %v4299
        %v4305 = vadd.f32 %v4304, %v4301
        %v4306 = vadd.f32 %v4296, %v4298
        %v4307 = vadd.f32 %v4306, %v4300
        %v4308 = vadd.f32 %v4307, %v4302
        %v4309 = vmul.f32 %v4305, 0.25
        %v4310 = vmul.f32 %v4308, 0.25
        %v4311 = vsub.f32 0.0, %v4309
        %v4312 = vsub.f32 0.0, %v4310
        %v4313 = vmax.f32 %v3801, %v3835
        %v4314 = vmax.f32 %v3802, %v3836
        %v4315 = vmax.f32 %v1283, %v1383
        %v4316 = vmax.f32 %v1284, %v1384
        %v4317 = vmax.f32 %v4313, %v3869
        %v4318 = vmax.f32 %v4314, %v3870
        %v4319 = vmax.f32 %v4315, %v1547
        %v4320 = vmax.f32 %v4316, %v1548
        %v4321 = vmax.f32 %v4317, %v3903
        %v4322 = vmax.f32 %v4318, %v3904
        %v4323 = vmax.f32 %v4319, %v1711
        %v4324 = vmax.f32 %v4320, %v1712
        %v4325 = vmax.f32 %v4321, %v3937
        %v4326 = vmax.f32 %v4322, %v3938
        %v4327 = vmax.f32 %v4323, %v1875
        %v4328 = vmax.f32 %v4324, %v1876
        %v4329 = vmax.f32 %v4325, %v3971
        %v4330 = vmax.f32 %v4326, %v3972
        %v4331 = vmax.f32 %v4327, %v2039
        %v4332 = vmax.f32 %v4328, %v2040
        %v4333 = vmax.f32 %v4329, %v4005
        %v4334 = vmax.f32 %v4330, %v4006
        %v4335 = vmax.f32 %v4331, %v2139
        %v4336 = vmax.f32 %v4332, %v2140
        %v4337 = vmax.f32 %v4333, %v4039
        %v4338 = vmax.f32 %v4334, %v4040
        %v4339 = vmax.f32 %v4335, %v2303
        %v4340 = vmax.f32 %v4336, %v2304
        %v4341 = vmax.f32 %v4337, %v4073
        %v4342 = vmax.f32 %v4338, %v4074
        %v4343 = vmax.f32 %v4339, %v2467
        %v4344 = vmax.f32 %v4340, %v2468
        %v4345 = vmax.f32 %v4341, %v4107
        %v4346 = vmax.f32 %v4342, %v4108
        %v4347 = vmax.f32 %v4343, %v2591
        %v4348 = vmax.f32 %v4344, %v2592
        %v4349 = vmax.f32 %v4345, %v4141
        %v4350 = vmax.f32 %v4346, %v4142
        %v4351 = vmax.f32 %v4347, %v2755
        %v4352 = vmax.f32 %v4348, %v2756
        %v4353 = vmax.f32 %v4349, %v4175
        %v4354 = vmax.f32 %v4350, %v4176
        %v4355 = vmax.f32 %v4351, %v2919
        %v4356 = vmax.f32 %v4352, %v2920
        %v4357 = vmax.f32 %v4353, %v4209
        %v4358 = vmax.f32 %v4354, %v4210
        %v4359 = vmax.f32 %v4355, %v3083
        %v4360 = vmax.f32 %v4356, %v3084
        %v4361 = vmax.f32 %v4357, %v4243
        %v4362 = vmax.f32 %v4358, %v4244
        %v4363 = vmax.f32 %v4359, %v3247
        %v4364 = vmax.f32 %v4360, %v3248
        %v4365 = vmax.f32 %v4361, %v4277
        %v4366 = vmax.f32 %v4362, %v4278
        %v4367 = vmax.f32 %v4363, %v3371
        %v4368 = vmax.f32 %v4364, %v3372
        %v4369 = vmax.f32 %v4365, %v4311
        %v4370 = vmax.f32 %v4366, %v4312
        %v4371 = vmax.f32 %v4367, %v3535
        %v4372 = vmax.f32 %v4368, %v3536
        %v4373 = vsub.f32 %v3801, %v4369
        %v4374 = vsub.f32 %v3802, %v4370
        %v4375 = vmul.f32 %v4373, 1.442695
        %v4376 = vpow.pop %v4375
        %v4377 = vmul.f32 %v4374, 1.442695
        %v4378 = vpow.pop %v4377
        %v4379 = vsub.f32 %v1283, %v4371
        %v4380 = vsub.f32 %v1284, %v4372
        %v4381 = vmul.f32 %v4379, 1.442695
        %v4382 = vpow.pop %v4381
        %v4383 = vmul.f32 %v4380, 1.442695
        %v4384 = vpow.pop %v4383
        %v4385 = vsub.f32 %v3835, %v4369
        %v4386 = vsub.f32 %v3836, %v4370
        %v4387 = vmul.f32 %v4385, 1.442695
        %v4388 = vpow.pop %v4387
        %v4389 = vmul.f32 %v4386, 1.442695
        %v4390 = vpow.pop %v4389
        %v4391 = vadd.f32 %v4376, %v4388
        %v4392 = vadd.f32 %v4378, %v4390
        %v4393 = vsub.f32 %v1383, %v4371
        %v4394 = vsub.f32 %v1384, %v4372
        %v4395 = vmul.f32 %v4393, 1.442695
        %v4396 = vpow.pop %v4395
        %v4397 = vmul.f32 %v4394, 1.442695
        %v4398 = vpow.pop %v4397
        %v4399 = vadd.f32 %v4382, %v4396
        %v4400 = vadd.f32 %v4384, %v4398
        %v4401 = vsub.f32 %v3869, %v4369
        %v4402 = vsub.f32 %v3870, %v4370
        %v4403 = vmul.f32 %v4401, 1.442695
        %v4404 = vpow.pop %v4403
        %v4405 = vmul.f32 %v4402, 1.442695
        %v4406 = vpow.pop %v4405
        %v4407 = vadd.f32 %v4391, %v4404
        %v4408 = vadd.f32 %v4392, %v4406
        %v4409 = vsub.f32 %v1547, %v4371
        %v4410 = vsub.f32 %v1548, %v4372
        %v4411 = vmul.f32 %v4409, 1.442695
        %v4412 = vpow.pop %v4411
        %v4413 = vmul.f32 %v4410, 1.442695
        %v4414 = vpow.pop %v4413
        %v4415 = vadd.f32 %v4399, %v4412
        %v4416 = vadd.f32 %v4400, %v4414
        %v4417 = vsub.f32 %v3903, %v4369
        %v4418 = vsub.f32 %v3904, %v4370
        %v4419 = vmul.f32 %v4417, 1.442695
        %v4420 = vpow.pop %v4419
        %v4421 = vmul.f32 %v4418, 1.442695
        %v4422 = vpow.pop %v4421
        %v4423 = vadd.f32 %v4407, %v4420
        %v4424 = vadd.f32 %v4408, %v4422
        %v4425 = vsub.f32 %v1711, %v4371
        %v4426 = vsub.f32 %v1712, %v4372
        %v4427 = vmul.f32 %v4425, 1.442695
        %v4428 = vpow.pop %v4427
        %v4429 = vmul.f32 %v4426, 1.442695
        %v4430 = vpow.pop %v4429
        %v4431 = vadd.f32 %v4415, %v4428
        %v4432 = vadd.f32 %v4416, %v4430
        %v4433 = vsub.f32 %v3937, %v4369
        %v4434 = vsub.f32 %v3938, %v4370
        %v4435 = vmul.f32 %v4433, 1.442695
        %v4436 = vpow.pop %v4435
        %v4437 = vmul.f32 %v4434, 1.442695
        %v4438 = vpow.pop %v4437
        %v4439 = vadd.f32 %v4423, %v4436
        %v4440 = vadd.f32 %v4424, %v4438
        %v4441 = vsub.f32 %v1875, %v4371
        %v4442 = vsub.f32 %v1876, %v4372
        %v4443 = vmul.f32 %v4441, 1.442695
        %v4444 = vpow.pop %v4443
        %v4445 = vmul.f32 %v4442, 1.442695
        %v4446 = vpow.pop %v4445
        %v4447 = vadd.f32 %v4431, %v4444
        %v4448 = vadd.f32 %v4432, %v4446
        %v4449 = vsub.f32 %v3971, %v4369
        %v4450 = vsub.f32 %v3972, %v4370
        %v4451 = vmul.f32 %v4449, 1.442695
        %v4452 = vpow.pop %v4451
        %v4453 = vmul.f32 %v4450, 1.442695
        %v4454 = vpow.pop %v4453
        %v4455 = vadd.f32 %v4439, %v4452
        %v4456 = vadd.f32 %v4440, %v4454
        %v4457 = vsub.f32 %v2039, %v4371
        %v4458 = vsub.f32 %v2040, %v4372
        %v4459 = vmul.f32 %v4457, 1.442695
        %v4460 = vpow.pop %v4459
        %v4461 = vmul.f32 %v4458, 1.442695
        %v4462 = vpow.pop %v4461
        %v4463 = vadd.f32 %v4447, %v4460
        %v4464 = vadd.f32 %v4448, %v4462
        %v4465 = vsub.f32 %v4005, %v4369
        %v4466 = vsub.f32 %v4006, %v4370
        %v4467 = vmul.f32 %v4465, 1.442695
        %v4468 = vpow.pop %v4467
        %v4469 = vmul.f32 %v4466, 1.442695
        %v4470 = vpow.pop %v4469
        %v4471 = vadd.f32 %v4455, %v4468
        %v4472 = vadd.f32 %v4456, %v4470
        %v4473 = vsub.f32 %v2139, %v4371
        %v4474 = vsub.f32 %v2140, %v4372
        %v4475 = vmul.f32 %v4473, 1.442695
        %v4476 = vpow.pop %v4475
        %v4477 = vmul.f32 %v4474, 1.442695
        %v4478 = vpow.pop %v4477
        %v4479 = vadd.f32 %v4463, %v4476
        %v4480 = vadd.f32 %v4464, %v4478
        %v4481 = vsub.f32 %v4039, %v4369
        %v4482 = vsub.f32 %v4040, %v4370
        %v4483 = vmul.f32 %v4481, 1.442695
        %v4484 = vpow.pop %v4483
        %v4485 = vmul.f32 %v4482, 1.442695
        %v4486 = vpow.pop %v4485
        %v4487 = vadd.f32 %v4471, %v4484
        %v4488 = vadd.f32 %v4472, %v4486
        %v4489 = vsub.f32 %v2303, %v4371
        %v4490 = vsub.f32 %v2304, %v4372
        %v4491 = vmul.f32 %v4489, 1.442695
        %v4492 = vpow.pop %v4491
        %v4493 = vmul.f32 %v4490, 1.442695
        %v4494 = vpow.pop %v4493
        %v4495 = vadd.f32 %v4479, %v4492
        %v4496 = vadd.f32 %v4480, %v4494
        %v4497 = vsub.f32 %v4073, %v4369
        %v4498 = vsub.f32 %v4074, %v4370
        %v4499 = vmul.f32 %v4497, 1.442695
        %v4500 = vpow.pop %v4499
        %v4501 = vmul.f32 %v4498, 1.442695
        %v4502 = vpow.pop %v4501
        %v4503 = vadd.f32 %v4487, %v4500
        %v4504 = vadd.f32 %v4488, %v4502
        %v4505 = vsub.f32 %v2467, %v4371
        %v4506 = vsub.f32 %v2468, %v4372
        %v4507 = vmul.f32 %v4505, 1.442695
        %v4508 = vpow.pop %v4507
        %v4509 = vmul.f32 %v4506, 1.442695
        %v4510 = vpow.pop %v4509
        %v4511 = vadd.f32 %v4495, %v4508
        %v4512 = vadd.f32 %v4496, %v4510
        %v4513 = vsub.f32 %v4107, %v4369
        %v4514 = vsub.f32 %v4108, %v4370
        %v4515 = vmul.f32 %v4513, 1.442695
        %v4516 = vpow.pop %v4515
        %v4517 = vmul.f32 %v4514, 1.442695
        %v4518 = vpow.pop %v4517
        %v4519 = vadd.f32 %v4503, %v4516
        %v4520 = vadd.f32 %v4504, %v4518
        %v4521 = vsub.f32 %v2591, %v4371
        %v4522 = vsub.f32 %v2592, %v4372
        %v4523 = vmul.f32 %v4521, 1.442695
        %v4524 = vpow.pop %v4523
        %v4525 = vmul.f32 %v4522, 1.442695
        %v4526 = vpow.pop %v4525
        %v4527 = vadd.f32 %v4511, %v4524
        %v4528 = vadd.f32 %v4512, %v4526
        %v4529 = vsub.f32 %v4141, %v4369
        %v4530 = vsub.f32 %v4142, %v4370
        %v4531 = vmul.f32 %v4529, 1.442695
        %v4532 = vpow.pop %v4531
        %v4533 = vmul.f32 %v4530, 1.442695
        %v4534 = vpow.pop %v4533
        %v4535 = vadd.f32 %v4519, %v4532
        %v4536 = vadd.f32 %v4520, %v4534
        %v4537 = vsub.f32 %v2755, %v4371
        %v4538 = vsub.f32 %v2756, %v4372
        %v4539 = vmul.f32 %v4537, 1.442695
        %v4540 = vpow.pop %v4539
        %v4541 = vmul.f32 %v4538, 1.442695
        %v4542 = vpow.pop %v4541
        %v4543 = vadd.f32 %v4527, %v4540
        %v4544 = vadd.f32 %v4528, %v4542
        %v4545 = vsub.f32 %v4175, %v4369
        %v4546 = vsub.f32 %v4176, %v4370
        %v4547 = vmul.f32 %v4545, 1.442695
        %v4548 = vpow.pop %v4547
        %v4549 = vmul.f32 %v4546, 1.442695
        %v4550 = vpow.pop %v4549
        %v4551 = vadd.f32 %v4535, %v4548
        %v4552 = vadd.f32 %v4536, %v4550
        %v4553 = vsub.f32 %v2919, %v4371
        %v4554 = vsub.f32 %v2920, %v4372
        %v4555 = vmul.f32 %v4553, 1.442695
        %v4556 = vpow.pop %v4555
        %v4557 = vmul.f32 %v4554, 1.442695
        %v4558 = vpow.pop %v4557
        %v4559 = vadd.f32 %v4543, %v4556
        %v4560 = vadd.f32 %v4544, %v4558
        %v4561 = vsub.f32 %v4209, %v4369
        %v4562 = vsub.f32 %v4210, %v4370
        %v4563 = vmul.f32 %v4561, 1.442695
        %v4564 = vpow.pop %v4563
        %v4565 = vmul.f32 %v4562, 1.442695
        %v4566 = vpow.pop %v4565
        %v4567 = vadd.f32 %v4551, %v4564
        %v4568 = vadd.f32 %v4552, %v4566
        %v4569 = vsub.f32 %v3083, %v4371
        %v4570 = vsub.f32 %v3084, %v4372
        %v4571 = vmul.f32 %v4569, 1.442695
        %v4572 = vpow.pop %v4571
        %v4573 = vmul.f32 %v4570, 1.442695
        %v4574 = vpow.pop %v4573
        %v4575 = vadd.f32 %v4559, %v4572
        %v4576 = vadd.f32 %v4560, %v4574
        %v4577 = vsub.f32 %v4243, %v4369
        %v4578 = vsub.f32 %v4244, %v4370
        %v4579 = vmul.f32 %v4577, 1.442695
        %v4580 = vpow.pop %v4579
        %v4581 = vmul.f32 %v4578, 1.442695
        %v4582 = vpow.pop %v4581
        %v4583 = vadd.f32 %v4567, %v4580
        %v4584 = vadd.f32 %v4568, %v4582
        %v4585 = vsub.f32 %v3247, %v4371
        %v4586 = vsub.f32 %v3248, %v4372
        %v4587 = vmul.f32 %v4585, 1.442695
        %v4588 = vpow.pop %v4587
        %v4589 = vmul.f32 %v4586, 1.442695
        %v4590 = vpow.pop %v4589
        %v4591 = vadd.f32 %v4575, %v4588
        %v4592 = vadd.f32 %v4576, %v4590
        %v4593 = vsub.f32 %v4277, %v4369
        %v4594 = vsub.f32 %v4278, %v4370
        %v4595 = vmul.f32 %v4593, 1.442695
        %v4596 = vpow.pop %v4595
        %v4597 = vmul.f32 %v4594, 1.442695
        %v4598 = vpow.pop %v4597
        %v4599 = vadd.f32 %v4583, %v4596
        %v4600 = vadd.f32 %v4584, %v4598
        %v4601 = vsub.f32 %v3371, %v4371
        %v4602 = vsub.f32 %v3372, %v4372
        %v4603 = vmul.f32 %v4601, 1.442695
        %v4604 = vpow.pop %v4603
        %v4605 = vmul.f32 %v4602, 1.442695
        %v4606 = vpow.pop %v4605
        %v4607 = vadd.f32 %v4591, %v4604
        %v4608 = vadd.f32 %v4592, %v4606
        %v4609 = vsub.f32 %v4311, %v4369
        %v4610 = vsub.f32 %v4312, %v4370
        %v4611 = vmul.f32 %v4609, 1.442695
        %v4612 = vpow.pop %v4611
        %v4613 = vmul.f32 %v4610, 1.442695
        %v4614 = vpow.pop %v4613
        %v4615 = vadd.f32 %v4599, %v4612
        %v4616 = vadd.f32 %v4600, %v4614
        %v4617 = vsub.f32 %v3535, %v4371
        %v4618 = vsub.f32 %v3536, %v4372
        %v4619 = vmul.f32 %v4617, 1.442695
        %v4620 = vpow.pop %v4619
        %v4621 = vmul.f32 %v4618, 1.442695
        %v4622 = vpow.pop %v4621
        %v4623 = vadd.f32 %v4607, %v4620
        %v4624 = vadd.f32 %v4608, %v4622
        %v4625 = vrcp.pop %v4615
        %v4626 = vmul.f32 %v4615, %v4625
        %v4627 = vsub.f32 1.0, %v4626
        %v4628 = vmul.f32 %v4625, %v4627
        %v4629 = vadd.f32 %v4625, %v4628
        %vm4630 = vweird.f32 %v4615
        %vm4631 = vweird.f32 %v4625
        %vm4632 = vmor %vm4630, %vm4631
        %v4633 = vsel %vm4632, %v4625, %v4629
        %v4634 = vand.u32 2147483647, %v4615
        %vm4635 = vcmp.eq.f32.partialorder %v4634, 8.507059e+37
        %v4636 = vand.u32 %v4615, 2147483648
        %v4637 = vor.u32 1.1754944e-38, %v4636
        %v4638 = vsel %vm4635, %v4637, %v4633
        %v4639 = vmul.f32 %v4623, %v4638
        %v4640 = vrcp.pop %v4616
        %v4641 = vmul.f32 %v4616, %v4640
        %v4642 = vsub.f32 1.0, %v4641
        %v4643 = vmul.f32 %v4640, %v4642
        %v4644 = vadd.f32 %v4640, %v4643
        %vm4645 = vweird.f32 %v4616
        %vm4646 = vweird.f32 %v4640
        %vm4647 = vmor %vm4645, %vm4646
        %v4648 = vsel %vm4647, %v4640, %v4644
        %v4649 = vand.u32 2147483647, %v4616
        %vm4650 = vcmp.eq.f32.partialorder %v4649, 8.507059e+37
        %v4651 = vand.u32 %v4616, 2147483648
        %v4652 = vor.u32 1.1754944e-38, %v4651
        %v4653 = vsel %vm4650, %v4652, %v4648
        %v4654 = vmul.f32 %v4624, %v4653
        %v4655 = vsub.f32 %v4373, %v4379
        %v4656 = vsub.f32 %v4374, %v4380
        %v4657 = vmul.f32 %v4655, 1.442695
        %v4658 = vpow.pop %v4657
        %v4659 = vmul.f32 %v4656, 1.442695
        %v4660 = vpow.pop %v4659
        %v4661 = vmul.f32 %v4658, %v4639
        %v4662 = vmul.f32 %v4660, %v4654
        %v4663 = vsub.f32 %v4385, %v4393
        %v4664 = vsub.f32 %v4386, %v4394
        %v4665 = vmul.f32 %v4663, 1.442695
        %v4666 = vpow.pop %v4665
        %v4667 = vmul.f32 %v4664, 1.442695
        %v4668 = vpow.pop %v4667
        %v4669 = vmul.f32 %v4666, %v4639
        %v4670 = vmul.f32 %v4668, %v4654
        %v4671 = vsub.f32 %v4401, %v4409
        %v4672 = vsub.f32 %v4402, %v4410
        %v4673 = vmul.f32 %v4671, 1.442695
        %v4674 = vpow.pop %v4673
        %v4675 = vmul.f32 %v4672, 1.442695
        %v4676 = vpow.pop %v4675
        %v4677 = vmul.f32 %v4674, %v4639
        %v4678 = vmul.f32 %v4676, %v4654
        %v4679 = vsub.f32 %v4417, %v4425
        %v4680 = vsub.f32 %v4418, %v4426
        %v4681 = vmul.f32 %v4679, 1.442695
        %v4682 = vpow.pop %v4681
        %v4683 = vmul.f32 %v4680, 1.442695
        %v4684 = vpow.pop %v4683
        %v4685 = vmul.f32 %v4682, %v4639
        %v4686 = vmul.f32 %v4684, %v4654
        %v4687 = vsub.f32 %v4433, %v4441
        %v4688 = vsub.f32 %v4434, %v4442
        %v4689 = vmul.f32 %v4687, 1.442695
        %v4690 = vpow.pop %v4689
        %v4691 = vmul.f32 %v4688, 1.442695
        %v4692 = vpow.pop %v4691
        %v4693 = vmul.f32 %v4690, %v4639
        %v4694 = vmul.f32 %v4692, %v4654
        %v4695 = vsub.f32 %v4449, %v4457
        %v4696 = vsub.f32 %v4450, %v4458
        %v4697 = vmul.f32 %v4695, 1.442695
        %v4698 = vpow.pop %v4697
        %v4699 = vmul.f32 %v4696, 1.442695
        %v4700 = vpow.pop %v4699
        %v4701 = vmul.f32 %v4698, %v4639
        %v4702 = vmul.f32 %v4700, %v4654
        %v4703 = vsub.f32 %v4465, %v4473
        %v4704 = vsub.f32 %v4466, %v4474
        %v4705 = vmul.f32 %v4703, 1.442695
        %v4706 = vpow.pop %v4705
        %v4707 = vmul.f32 %v4704, 1.442695
        %v4708 = vpow.pop %v4707
        %v4709 = vmul.f32 %v4706, %v4639
        %v4710 = vmul.f32 %v4708, %v4654
        %v4711 = vsub.f32 %v4481, %v4489
        %v4712 = vsub.f32 %v4482, %v4490
        %v4713 = vmul.f32 %v4711, 1.442695
        %v4714 = vpow.pop %v4713
        %v4715 = vmul.f32 %v4712, 1.442695
        %v4716 = vpow.pop %v4715
        %v4717 = vmul.f32 %v4714, %v4639
        %v4718 = vmul.f32 %v4716, %v4654
        %v4719 = vsub.f32 %v4497, %v4505
        %v4720 = vsub.f32 %v4498, %v4506
        %v4721 = vmul.f32 %v4719, 1.442695
        %v4722 = vpow.pop %v4721
        %v4723 = vmul.f32 %v4720, 1.442695
        %v4724 = vpow.pop %v4723
        %v4725 = vmul.f32 %v4722, %v4639
        %v4726 = vmul.f32 %v4724, %v4654
        %v4727 = vsub.f32 %v4513, %v4521
        %v4728 = vsub.f32 %v4514, %v4522
        %v4729 = vmul.f32 %v4727, 1.442695
        %v4730 = vpow.pop %v4729
        %v4731 = vmul.f32 %v4728, 1.442695
        %v4732 = vpow.pop %v4731
        %v4733 = vmul.f32 %v4730, %v4639
        %v4734 = vmul.f32 %v4732, %v4654
        %v4735 = vsub.f32 %v4529, %v4537
        %v4736 = vsub.f32 %v4530, %v4538
        %v4737 = vmul.f32 %v4735, 1.442695
        %v4738 = vpow.pop %v4737
        %v4739 = vmul.f32 %v4736, 1.442695
        %v4740 = vpow.pop %v4739
        %v4741 = vmul.f32 %v4738, %v4639
        %v4742 = vmul.f32 %v4740, %v4654
        %v4743 = vsub.f32 %v4545, %v4553
        %v4744 = vsub.f32 %v4546, %v4554
        %v4745 = vmul.f32 %v4743, 1.442695
        %v4746 = vpow.pop %v4745
        %v4747 = vmul.f32 %v4744, 1.442695
        %v4748 = vpow.pop %v4747
        %v4749 = vmul.f32 %v4746, %v4639
        %v4750 = vmul.f32 %v4748, %v4654
        %v4751 = vsub.f32 %v4561, %v4569
        %v4752 = vsub.f32 %v4562, %v4570
        %v4753 = vmul.f32 %v4751, 1.442695
        %v4754 = vpow.pop %v4753
        %v4755 = vmul.f32 %v4752, 1.442695
        %v4756 = vpow.pop %v4755
        %v4757 = vmul.f32 %v4754, %v4639
        %v4758 = vmul.f32 %v4756, %v4654
        %v4759 = vsub.f32 %v4577, %v4585
        %v4760 = vsub.f32 %v4578, %v4586
        %v4761 = vmul.f32 %v4759, 1.442695
        %v4762 = vpow.pop %v4761
        %v4763 = vmul.f32 %v4760, 1.442695
        %v4764 = vpow.pop %v4763
        %v4765 = vmul.f32 %v4762, %v4639
        %v4766 = vmul.f32 %v4764, %v4654
        %v4767 = vsub.f32 %v4593, %v4601
        %v4768 = vsub.f32 %v4594, %v4602
        %v4769 = vmul.f32 %v4767, 1.442695
        %v4770 = vpow.pop %v4769
        %v4771 = vmul.f32 %v4768, 1.442695
        %v4772 = vpow.pop %v4771
        %v4773 = vmul.f32 %v4770, %v4639
        %v4774 = vmul.f32 %v4772, %v4654
        %v4775 = vsub.f32 %v4609, %v4617
        %v4776 = vsub.f32 %v4610, %v4618
        %v4777 = vmul.f32 %v4775, 1.442695
        %v4778 = vpow.pop %v4777
        %v4779 = vmul.f32 %v4776, 1.442695
        %v4780 = vpow.pop %v4779
        %v4781 = vmul.f32 %v4778, %v4639
        %v4782 = vmul.f32 %v4780, %v4654
        %v4783 = vrot.slane %v192, 6
        %v4784 = vrot.slane %v193, 6
        %v4785 = vrot.slane %v194, 6
        %v4786 = vrot.slane %v195, 6
        %v4787 = vrot.slane %v196, 6
        %v4788 = vrot.slane %v197, 6
        %v4789 = vsel %vm203, %v4787, %v4788
        %v4790 = vsel %vm203, %v4786, %v4787
        %v4791 = vsel %vm203, %v4785, %v4786
        %v4792 = vsel %vm203, %v4784, %v4785
        %v4793 = vsel %vm203, %v4783, %v4784
        %v4794 = vsel %vm203, %v4788, %v4783
        %v4795 = vperm.slane %v192, 0
        %v4796 = vperm.slane %v194, 0
        %v4797 = vperm.slane %v196, 0
        %v4798 = vsel %vm233, %v4795, %v4794
        %v4799 = vsel %vm234, %v4795, %v4793
        %v4800 = vsel %vm233, %v4796, %v4792
        %v4801 = vsel %vm234, %v4796, %v4791
        %v4802 = vsel %vm233, %v4797, %v4790
        %v4803 = vsel %vm234, %v4797, %v4789
        %v4804 = vrot.slane %v192, 7
        %v4805 = vrot.slane %v193, 7
        %v4806 = vrot.slane %v194, 7
        %v4807 = vrot.slane %v195, 7
        %v4808 = vrot.slane %v196, 7
        %v4809 = vrot.slane %v197, 7
        %v4810 = vsel %vm205, %v4808, %v4809
        %v4811 = vsel %vm205, %v4807, %v4808
        %v4812 = vsel %vm205, %v4806, %v4807
        %v4813 = vsel %vm205, %v4805, %v4806
        %v4814 = vsel %vm205, %v4804, %v4805
        %v4815 = vsel %vm205, %v4809, %v4804
        %v4816 = vsel %vm265, %v4795, %v4815
        %v4817 = vsel %vm266, %v4795, %v4814
        %v4818 = vsel %vm265, %v4796, %v4813
        %v4819 = vsel %vm266, %v4796, %v4812
        %v4820 = vsel %vm265, %v4797, %v4811
        %v4821 = vsel %vm266, %v4797, %v4810
        %v4822 = vrot.slane %v192, 1
        %v4823 = vrot.slane %v193, 1
        %v4824 = vrot.slane %v194, 1
        %v4825 = vrot.slane %v195, 1
        %v4826 = vrot.slane %v196, 1
        %v4827 = vrot.slane %v197, 1
        %v4828 = vsel %vm283, %v4826, %v4827
        %v4829 = vsel %vm283, %v4825, %v4826
        %v4830 = vsel %vm283, %v4824, %v4825
        %v4831 = vsel %vm283, %v4823, %v4824
        %v4832 = vsel %vm283, %v4822, %v4823
        %v4833 = vsel %vm283, %v4827, %v4822
        %v4834 = vperm.slane %v193, 7
        %v4835 = vperm.slane %v195, 7
        %v4836 = vperm.slane %v197, 7
        %v4837 = vsel %vm294, %v4834, %v4832
        %v4838 = vsel %vm295, %v4834, %v4831
        %v4839 = vsel %vm294, %v4835, %v4830
        %v4840 = vsel %vm295, %v4835, %v4829
        %v4841 = vsel %vm294, %v4836, %v4828
        %v4842 = vsel %vm295, %v4836, %v4833
        %v4843 = vrot.slane %v192, 2
        %v4844 = vrot.slane %v193, 2
        %v4845 = vrot.slane %v194, 2
        %v4846 = vrot.slane %v195, 2
        %v4847 = vrot.slane %v196, 2
        %v4848 = vrot.slane %v197, 2
        %v4849 = vsel %vm316, %v4847, %v4848
        %v4850 = vsel %vm316, %v4846, %v4847
        %v4851 = vsel %vm316, %v4845, %v4846
        %v4852 = vsel %vm316, %v4844, %v4845
        %v4853 = vsel %vm316, %v4843, %v4844
        %v4854 = vsel %vm316, %v4848, %v4843
        %v4855 = vsel %vm327, %v4834, %v4853
        %v4856 = vsel %vm328, %v4834, %v4852
        %v4857 = vsel %vm327, %v4835, %v4851
        %v4858 = vsel %vm328, %v4835, %v4850
        %v4859 = vsel %vm327, %v4836, %v4849
        %v4860 = vsel %vm328, %v4836, %v4854
        %4861 = vrot.lane.b32.xlu0 %v4816, 1
        %v4862 = vpop.permute.xlu0 %4861
        %4863 = vrot.lane.b32.xlu0 %v4817, 1
        %v4864 = vpop.permute.xlu0 %4863
        %4865 = vrot.lane.b32.xlu0 %v4818, 1
        %v4866 = vpop.permute.xlu0 %4865
        %4867 = vrot.lane.b32.xlu0 %v4819, 1
        %v4868 = vpop.permute.xlu0 %4867
        %4869 = vrot.lane.b32.xlu0 %v4820, 1
        %v4870 = vpop.permute.xlu0 %4869
        %4871 = vrot.lane.b32.xlu0 %v4821, 1
        %v4872 = vpop.permute.xlu0 %4871
        %4874 = vset.pattern.permute.xlu0 0
        %4875 = vperm.xlu0 %4874, %v4816
        %v4876 = vpop.permute.xlu0 %4875
        %4879 = vset.pattern.permute.xlu0 0
        %4880 = vperm.xlu0 %4879, %v4817
        %v4881 = vpop.permute.xlu0 %4880
        %4884 = vset.pattern.permute.xlu0 0
        %4885 = vperm.xlu0 %4884, %v4818
        %v4886 = vpop.permute.xlu0 %4885
        %4889 = vset.pattern.permute.xlu0 0
        %4890 = vperm.xlu0 %4889, %v4819
        %v4891 = vpop.permute.xlu0 %4890
        %4894 = vset.pattern.permute.xlu0 0
        %4895 = vperm.xlu0 %4894, %v4820
        %v4896 = vpop.permute.xlu0 %4895
        %4899 = vset.pattern.permute.xlu0 0
        %4900 = vperm.xlu0 %4899, %v4821
        %v4901 = vpop.permute.xlu0 %4900
        %v4903 = vsel %vm354, %v4876, %v4862
        %v4904 = vsel %vm354, %v4881, %v4864
        %v4905 = vsel %vm354, %v4886, %v4866
        %v4906 = vsel %vm354, %v4891, %v4868
        %v4907 = vsel %vm354, %v4896, %v4870
        %v4908 = vsel %vm354, %v4901, %v4872
        %v4909 = vmul.f32 %v4903, %v4661
        %v4910 = vmul.f32 %v4904, %v4662
        %v4911 = vmul.f32 %v4905, %v4661
        %v4912 = vmul.f32 %v4906, %v4662
        %v4913 = vmul.f32 %v4907, %v4661
        %v4914 = vmul.f32 %v4908, %v4662
        %v4915 = vmul.f32 %v4816, %v4669
        %v4916 = vmul.f32 %v4817, %v4670
        %v4917 = vmul.f32 %v4818, %v4669
        %v4918 = vmul.f32 %v4819, %v4670
        %v4919 = vmul.f32 %v4820, %v4669
        %v4920 = vmul.f32 %v4821, %v4670
        %v4921 = vadd.f32 %v4909, %v4915
        %v4922 = vadd.f32 %v4910, %v4916
        %v4923 = vadd.f32 %v4911, %v4917
        %v4924 = vadd.f32 %v4912, %v4918
        %v4925 = vadd.f32 %v4913, %v4919
        %v4926 = vadd.f32 %v4914, %v4920
        %4927 = vrot.lane.b32.xlu0 %v4816, 127
        %v4928 = vpop.permute.xlu0 %4927
        %4929 = vrot.lane.b32.xlu0 %v4817, 127
        %v4930 = vpop.permute.xlu0 %4929
        %4931 = vrot.lane.b32.xlu0 %v4818, 127
        %v4932 = vpop.permute.xlu0 %4931
        %4933 = vrot.lane.b32.xlu0 %v4819, 127
        %v4934 = vpop.permute.xlu0 %4933
        %4935 = vrot.lane.b32.xlu0 %v4820, 127
        %v4936 = vpop.permute.xlu0 %4935
        %4937 = vrot.lane.b32.xlu0 %v4821, 127
        %v4938 = vpop.permute.xlu0 %4937
        %4939 = vset.pattern.permute.xlu0 127
        %4940 = vperm.xlu0 %4939, %v4816
        %v4941 = vpop.permute.xlu0 %4940
        %4943 = vset.pattern.permute.xlu0 127
        %4944 = vperm.xlu0 %4943, %v4817
        %v4945 = vpop.permute.xlu0 %4944
        %4947 = vset.pattern.permute.xlu0 127
        %4948 = vperm.xlu0 %4947, %v4818
        %v4949 = vpop.permute.xlu0 %4948
        %4951 = vset.pattern.permute.xlu0 127
        %4952 = vperm.xlu0 %4951, %v4819
        %v4953 = vpop.permute.xlu0 %4952
        %4955 = vset.pattern.permute.xlu0 127
        %4956 = vperm.xlu0 %4955, %v4820
        %v4957 = vpop.permute.xlu0 %4956
        %4959 = vset.pattern.permute.xlu0 127
        %4960 = vperm.xlu0 %4959, %v4821
        %v4961 = vpop.permute.xlu0 %4960
        %v4963 = vsel %vm420, %v4941, %v4928
        %v4964 = vsel %vm420, %v4945, %v4930
        %v4965 = vsel %vm420, %v4949, %v4932
        %v4966 = vsel %vm420, %v4953, %v4934
        %v4967 = vsel %vm420, %v4957, %v4936
        %v4968 = vsel %vm420, %v4961, %v4938
        %v4969 = vmul.f32 %v4963, %v4677
        %v4970 = vmul.f32 %v4964, %v4678
        %v4971 = vmul.f32 %v4965, %v4677
        %v4972 = vmul.f32 %v4966, %v4678
        %v4973 = vmul.f32 %v4967, %v4677
        %v4974 = vmul.f32 %v4968, %v4678
        %v4975 = vadd.f32 %v4921, %v4969
        %v4976 = vadd.f32 %v4922, %v4970
        %v4977 = vadd.f32 %v4923, %v4971
        %v4978 = vadd.f32 %v4924, %v4972
        %v4979 = vadd.f32 %v4925, %v4973
        %v4980 = vadd.f32 %v4926, %v4974
        %4981 = vrot.lane.b32.xlu0 %v192, 1
        %v4982 = vpop.permute.xlu0 %4981
        %4983 = vrot.lane.b32.xlu0 %v193, 1
        %v4984 = vpop.permute.xlu0 %4983
        %4985 = vrot.lane.b32.xlu0 %v194, 1
        %v4986 = vpop.permute.xlu0 %4985
        %4987 = vrot.lane.b32.xlu0 %v195, 1
        %v4988 = vpop.permute.xlu0 %4987
        %4989 = vrot.lane.b32.xlu0 %v196, 1
        %v4990 = vpop.permute.xlu0 %4989
        %4991 = vrot.lane.b32.xlu0 %v197, 1
        %v4992 = vpop.permute.xlu0 %4991
        %4994 = vset.pattern.permute.xlu0 0
        %4995 = vperm.xlu0 %4994, %v192
        %v4996 = vpop.permute.xlu0 %4995
        %4999 = vset.pattern.permute.xlu0 0
        %5000 = vperm.xlu0 %4999, %v193
        %v5001 = vpop.permute.xlu0 %5000
        %5004 = vset.pattern.permute.xlu0 0
        %5005 = vperm.xlu0 %5004, %v194
        %v5006 = vpop.permute.xlu0 %5005
        %5009 = vset.pattern.permute.xlu0 0
        %5010 = vperm.xlu0 %5009, %v195
        %v5011 = vpop.permute.xlu0 %5010
        %5014 = vset.pattern.permute.xlu0 0
        %5015 = vperm.xlu0 %5014, %v196
        %v5016 = vpop.permute.xlu0 %5015
        %5019 = vset.pattern.permute.xlu0 0
        %5020 = vperm.xlu0 %5019, %v197
        %v5021 = vpop.permute.xlu0 %5020
        %v5023 = vsel %vm354, %v4996, %v4982
        %v5024 = vsel %vm354, %v5001, %v4984
        %v5025 = vsel %vm354, %v5006, %v4986
        %v5026 = vsel %vm354, %v5011, %v4988
        %v5027 = vsel %vm354, %v5016, %v4990
        %v5028 = vsel %vm354, %v5021, %v4992
        %v5029 = vmul.f32 %v5023, %v4685
        %v5030 = vmul.f32 %v5024, %v4686
        %v5031 = vmul.f32 %v5025, %v4685
        %v5032 = vmul.f32 %v5026, %v4686
        %v5033 = vmul.f32 %v5027, %v4685
        %v5034 = vmul.f32 %v5028, %v4686
        %v5035 = vadd.f32 %v4975, %v5029
        %v5036 = vadd.f32 %v4976, %v5030
        %v5037 = vadd.f32 %v4977, %v5031
        %v5038 = vadd.f32 %v4978, %v5032
        %v5039 = vadd.f32 %v4979, %v5033
        %v5040 = vadd.f32 %v4980, %v5034
        %5041 = vrot.lane.b32.xlu0 %v192, 127
        %v5042 = vpop.permute.xlu0 %5041
        %5043 = vrot.lane.b32.xlu0 %v193, 127
        %v5044 = vpop.permute.xlu0 %5043
        %5045 = vrot.lane.b32.xlu0 %v194, 127
        %v5046 = vpop.permute.xlu0 %5045
        %5047 = vrot.lane.b32.xlu0 %v195, 127
        %v5048 = vpop.permute.xlu0 %5047
        %5049 = vrot.lane.b32.xlu0 %v196, 127
        %v5050 = vpop.permute.xlu0 %5049
        %5051 = vrot.lane.b32.xlu0 %v197, 127
        %v5052 = vpop.permute.xlu0 %5051
        %5053 = vset.pattern.permute.xlu0 127
        %5054 = vperm.xlu0 %5053, %v192
        %v5055 = vpop.permute.xlu0 %5054
        %5057 = vset.pattern.permute.xlu0 127
        %5058 = vperm.xlu0 %5057, %v193
        %v5059 = vpop.permute.xlu0 %5058
        %5061 = vset.pattern.permute.xlu0 127
        %5062 = vperm.xlu0 %5061, %v194
        %v5063 = vpop.permute.xlu0 %5062
        %5065 = vset.pattern.permute.xlu0 127
        %5066 = vperm.xlu0 %5065, %v195
        %v5067 = vpop.permute.xlu0 %5066
        %5069 = vset.pattern.permute.xlu0 127
        %5070 = vperm.xlu0 %5069, %v196
        %v5071 = vpop.permute.xlu0 %5070
        %5073 = vset.pattern.permute.xlu0 127
        %5074 = vperm.xlu0 %5073, %v197
        %v5075 = vpop.permute.xlu0 %5074
        %v5077 = vsel %vm420, %v5055, %v5042
        %v5078 = vsel %vm420, %v5059, %v5044
        %v5079 = vsel %vm420, %v5063, %v5046
        %v5080 = vsel %vm420, %v5067, %v5048
        %v5081 = vsel %vm420, %v5071, %v5050
        %v5082 = vsel %vm420, %v5075, %v5052
        %v5083 = vmul.f32 %v5077, %v4693
        %v5084 = vmul.f32 %v5078, %v4694
        %v5085 = vmul.f32 %v5079, %v4693
        %v5086 = vmul.f32 %v5080, %v4694
        %v5087 = vmul.f32 %v5081, %v4693
        %v5088 = vmul.f32 %v5082, %v4694
        %v5089 = vadd.f32 %v5035, %v5083
        %v5090 = vadd.f32 %v5036, %v5084
        %v5091 = vadd.f32 %v5037, %v5085
        %v5092 = vadd.f32 %v5038, %v5086
        %v5093 = vadd.f32 %v5039, %v5087
        %v5094 = vadd.f32 %v5040, %v5088
        %5095 = vrot.lane.b32.xlu0 %v4837, 1
        %v5096 = vpop.permute.xlu0 %5095
        %5097 = vrot.lane.b32.xlu0 %v4838, 1
        %v5098 = vpop.permute.xlu0 %5097
        %5099 = vrot.lane.b32.xlu0 %v4839, 1
        %v5100 = vpop.permute.xlu0 %5099
        %5101 = vrot.lane.b32.xlu0 %v4840, 1
        %v5102 = vpop.permute.xlu0 %5101
        %5103 = vrot.lane.b32.xlu0 %v4841, 1
        %v5104 = vpop.permute.xlu0 %5103
        %5105 = vrot.lane.b32.xlu0 %v4842, 1
        %v5106 = vpop.permute.xlu0 %5105
        %5108 = vset.pattern.permute.xlu0 0
        %5109 = vperm.xlu0 %5108, %v4837
        %v5110 = vpop.permute.xlu0 %5109
        %5113 = vset.pattern.permute.xlu0 0
        %5114 = vperm.xlu0 %5113, %v4838
        %v5115 = vpop.permute.xlu0 %5114
        %5118 = vset.pattern.permute.xlu0 0
        %5119 = vperm.xlu0 %5118, %v4839
        %v5120 = vpop.permute.xlu0 %5119
        %5123 = vset.pattern.permute.xlu0 0
        %5124 = vperm.xlu0 %5123, %v4840
        %v5125 = vpop.permute.xlu0 %5124
        %5128 = vset.pattern.permute.xlu0 0
        %5129 = vperm.xlu0 %5128, %v4841
        %v5130 = vpop.permute.xlu0 %5129
        %5133 = vset.pattern.permute.xlu0 0
        %5134 = vperm.xlu0 %5133, %v4842
        %v5135 = vpop.permute.xlu0 %5134
        %v5137 = vsel %vm354, %v5110, %v5096
        %v5138 = vsel %vm354, %v5115, %v5098
        %v5139 = vsel %vm354, %v5120, %v5100
        %v5140 = vsel %vm354, %v5125, %v5102
        %v5141 = vsel %vm354, %v5130, %v5104
        %v5142 = vsel %vm354, %v5135, %v5106
        %v5143 = vmul.f32 %v5137, %v4701
        %v5144 = vmul.f32 %v5138, %v4702
        %v5145 = vmul.f32 %v5139, %v4701
        %v5146 = vmul.f32 %v5140, %v4702
        %v5147 = vmul.f32 %v5141, %v4701
        %v5148 = vmul.f32 %v5142, %v4702
        %v5149 = vadd.f32 %v5089, %v5143
        %v5150 = vadd.f32 %v5090, %v5144
        %v5151 = vadd.f32 %v5091, %v5145
        %v5152 = vadd.f32 %v5092, %v5146
        %v5153 = vadd.f32 %v5093, %v5147
        %v5154 = vadd.f32 %v5094, %v5148
        %v5155 = vmul.f32 %v4837, %v4709
        %v5156 = vmul.f32 %v4838, %v4710
        %v5157 = vmul.f32 %v4839, %v4709
        %v5158 = vmul.f32 %v4840, %v4710
        %v5159 = vmul.f32 %v4841, %v4709
        %v5160 = vmul.f32 %v4842, %v4710
        %v5161 = vadd.f32 %v5149, %v5155
        %v5162 = vadd.f32 %v5150, %v5156
        %v5163 = vadd.f32 %v5151, %v5157
        %v5164 = vadd.f32 %v5152, %v5158
        %v5165 = vadd.f32 %v5153, %v5159
        %v5166 = vadd.f32 %v5154, %v5160
        %5167 = vrot.lane.b32.xlu0 %v4837, 127
        %v5168 = vpop.permute.xlu0 %5167
        %5169 = vrot.lane.b32.xlu0 %v4838, 127
        %v5170 = vpop.permute.xlu0 %5169
        %5171 = vrot.lane.b32.xlu0 %v4839, 127
        %v5172 = vpop.permute.xlu0 %5171
        %5173 = vrot.lane.b32.xlu0 %v4840, 127
        %v5174 = vpop.permute.xlu0 %5173
        %5175 = vrot.lane.b32.xlu0 %v4841, 127
        %v5176 = vpop.permute.xlu0 %5175
        %5177 = vrot.lane.b32.xlu0 %v4842, 127
        %v5178 = vpop.permute.xlu0 %5177
        %5179 = vset.pattern.permute.xlu0 127
        %5180 = vperm.xlu0 %5179, %v4837
        %v5181 = vpop.permute.xlu0 %5180
        %5183 = vset.pattern.permute.xlu0 127
        %5184 = vperm.xlu0 %5183, %v4838
        %v5185 = vpop.permute.xlu0 %5184
        %5187 = vset.pattern.permute.xlu0 127
        %5188 = vperm.xlu0 %5187, %v4839
        %v5189 = vpop.permute.xlu0 %5188
        %5191 = vset.pattern.permute.xlu0 127
        %5192 = vperm.xlu0 %5191, %v4840
        %v5193 = vpop.permute.xlu0 %5192
        %5195 = vset.pattern.permute.xlu0 127
        %5196 = vperm.xlu0 %5195, %v4841
        %v5197 = vpop.permute.xlu0 %5196
        %5199 = vset.pattern.permute.xlu0 127
        %5200 = vperm.xlu0 %5199, %v4842
        %v5201 = vpop.permute.xlu0 %5200
        %v5203 = vsel %vm420, %v5181, %v5168
        %v5204 = vsel %vm420, %v5185, %v5170
        %v5205 = vsel %vm420, %v5189, %v5172
        %v5206 = vsel %vm420, %v5193, %v5174
        %v5207 = vsel %vm420, %v5197, %v5176
        %v5208 = vsel %vm420, %v5201, %v5178
        %v5209 = vmul.f32 %v5203, %v4717
        %v5210 = vmul.f32 %v5204, %v4718
        %v5211 = vmul.f32 %v5205, %v4717
        %v5212 = vmul.f32 %v5206, %v4718
        %v5213 = vmul.f32 %v5207, %v4717
        %v5214 = vmul.f32 %v5208, %v4718
        %v5215 = vadd.f32 %v5161, %v5209
        %v5216 = vadd.f32 %v5162, %v5210
        %v5217 = vadd.f32 %v5163, %v5211
        %v5218 = vadd.f32 %v5164, %v5212
        %v5219 = vadd.f32 %v5165, %v5213
        %v5220 = vadd.f32 %v5166, %v5214
        %5221 = vrot.lane.b32.xlu0 %v4798, 2
        %v5222 = vpop.permute.xlu0 %5221
        %5223 = vrot.lane.b32.xlu0 %v4799, 2
        %v5224 = vpop.permute.xlu0 %5223
        %5225 = vrot.lane.b32.xlu0 %v4800, 2
        %v5226 = vpop.permute.xlu0 %5225
        %5227 = vrot.lane.b32.xlu0 %v4801, 2
        %v5228 = vpop.permute.xlu0 %5227
        %5229 = vrot.lane.b32.xlu0 %v4802, 2
        %v5230 = vpop.permute.xlu0 %5229
        %5231 = vrot.lane.b32.xlu0 %v4803, 2
        %v5232 = vpop.permute.xlu0 %5231
        %5234 = vset.pattern.permute.xlu0 0
        %5235 = vperm.xlu0 %5234, %v4798
        %v5236 = vpop.permute.xlu0 %5235
        %5239 = vset.pattern.permute.xlu0 0
        %5240 = vperm.xlu0 %5239, %v4799
        %v5241 = vpop.permute.xlu0 %5240
        %5244 = vset.pattern.permute.xlu0 0
        %5245 = vperm.xlu0 %5244, %v4800
        %v5246 = vpop.permute.xlu0 %5245
        %5249 = vset.pattern.permute.xlu0 0
        %5250 = vperm.xlu0 %5249, %v4801
        %v5251 = vpop.permute.xlu0 %5250
        %5254 = vset.pattern.permute.xlu0 0
        %5255 = vperm.xlu0 %5254, %v4802
        %v5256 = vpop.permute.xlu0 %5255
        %5259 = vset.pattern.permute.xlu0 0
        %5260 = vperm.xlu0 %5259, %v4803
        %v5261 = vpop.permute.xlu0 %5260
        %v5263 = vsel %vm718, %v5236, %v5222
        %v5264 = vsel %vm718, %v5241, %v5224
        %v5265 = vsel %vm718, %v5246, %v5226
        %v5266 = vsel %vm718, %v5251, %v5228
        %v5267 = vsel %vm718, %v5256, %v5230
        %v5268 = vsel %vm718, %v5261, %v5232
        %v5269 = vmul.f32 %v5263, %v4725
        %v5270 = vmul.f32 %v5264, %v4726
        %v5271 = vmul.f32 %v5265, %v4725
        %v5272 = vmul.f32 %v5266, %v4726
        %v5273 = vmul.f32 %v5267, %v4725
        %v5274 = vmul.f32 %v5268, %v4726
        %v5275 = vadd.f32 %v5215, %v5269
        %v5276 = vadd.f32 %v5216, %v5270
        %v5277 = vadd.f32 %v5217, %v5271
        %v5278 = vadd.f32 %v5218, %v5272
        %v5279 = vadd.f32 %v5219, %v5273
        %v5280 = vadd.f32 %v5220, %v5274
        %v5281 = vmul.f32 %v4798, %v4733
        %v5282 = vmul.f32 %v4799, %v4734
        %v5283 = vmul.f32 %v4800, %v4733
        %v5284 = vmul.f32 %v4801, %v4734
        %v5285 = vmul.f32 %v4802, %v4733
        %v5286 = vmul.f32 %v4803, %v4734
        %v5287 = vadd.f32 %v5275, %v5281
        %v5288 = vadd.f32 %v5276, %v5282
        %v5289 = vadd.f32 %v5277, %v5283
        %v5290 = vadd.f32 %v5278, %v5284
        %v5291 = vadd.f32 %v5279, %v5285
        %v5292 = vadd.f32 %v5280, %v5286
        %5293 = vrot.lane.b32.xlu0 %v4798, 126
        %v5294 = vpop.permute.xlu0 %5293
        %5295 = vrot.lane.b32.xlu0 %v4799, 126
        %v5296 = vpop.permute.xlu0 %5295
        %5297 = vrot.lane.b32.xlu0 %v4800, 126
        %v5298 = vpop.permute.xlu0 %5297
        %5299 = vrot.lane.b32.xlu0 %v4801, 126
        %v5300 = vpop.permute.xlu0 %5299
        %5301 = vrot.lane.b32.xlu0 %v4802, 126
        %v5302 = vpop.permute.xlu0 %5301
        %5303 = vrot.lane.b32.xlu0 %v4803, 126
        %v5304 = vpop.permute.xlu0 %5303
        %5305 = vset.pattern.permute.xlu0 127
        %5306 = vperm.xlu0 %5305, %v4798
        %v5307 = vpop.permute.xlu0 %5306
        %5309 = vset.pattern.permute.xlu0 127
        %5310 = vperm.xlu0 %5309, %v4799
        %v5311 = vpop.permute.xlu0 %5310
        %5313 = vset.pattern.permute.xlu0 127
        %5314 = vperm.xlu0 %5313, %v4800
        %v5315 = vpop.permute.xlu0 %5314
        %5317 = vset.pattern.permute.xlu0 127
        %5318 = vperm.xlu0 %5317, %v4801
        %v5319 = vpop.permute.xlu0 %5318
        %5321 = vset.pattern.permute.xlu0 127
        %5322 = vperm.xlu0 %5321, %v4802
        %v5323 = vpop.permute.xlu0 %5322
        %5325 = vset.pattern.permute.xlu0 127
        %5326 = vperm.xlu0 %5325, %v4803
        %v5327 = vpop.permute.xlu0 %5326
        %v5329 = vsel %vm784, %v5307, %v5294
        %v5330 = vsel %vm784, %v5311, %v5296
        %v5331 = vsel %vm784, %v5315, %v5298
        %v5332 = vsel %vm784, %v5319, %v5300
        %v5333 = vsel %vm784, %v5323, %v5302
        %v5334 = vsel %vm784, %v5327, %v5304
        %v5335 = vmul.f32 %v5329, %v4741
        %v5336 = vmul.f32 %v5330, %v4742
        %v5337 = vmul.f32 %v5331, %v4741
        %v5338 = vmul.f32 %v5332, %v4742
        %v5339 = vmul.f32 %v5333, %v4741
        %v5340 = vmul.f32 %v5334, %v4742
        %v5341 = vadd.f32 %v5287, %v5335
        %v5342 = vadd.f32 %v5288, %v5336
        %v5343 = vadd.f32 %v5289, %v5337
        %v5344 = vadd.f32 %v5290, %v5338
        %v5345 = vadd.f32 %v5291, %v5339
        %v5346 = vadd.f32 %v5292, %v5340
        %5347 = vrot.lane.b32.xlu0 %v192, 2
        %v5348 = vpop.permute.xlu0 %5347
        %5349 = vrot.lane.b32.xlu0 %v193, 2
        %v5350 = vpop.permute.xlu0 %5349
        %5351 = vrot.lane.b32.xlu0 %v194, 2
        %v5352 = vpop.permute.xlu0 %5351
        %5353 = vrot.lane.b32.xlu0 %v195, 2
        %v5354 = vpop.permute.xlu0 %5353
        %5355 = vrot.lane.b32.xlu0 %v196, 2
        %v5356 = vpop.permute.xlu0 %5355
        %5357 = vrot.lane.b32.xlu0 %v197, 2
        %v5358 = vpop.permute.xlu0 %5357
        %v5359 = vsel %vm718, %v4996, %v5348
        %v5360 = vsel %vm718, %v5001, %v5350
        %v5361 = vsel %vm718, %v5006, %v5352
        %v5362 = vsel %vm718, %v5011, %v5354
        %v5363 = vsel %vm718, %v5016, %v5356
        %v5364 = vsel %vm718, %v5021, %v5358
        %v5365 = vmul.f32 %v5359, %v4749
        %v5366 = vmul.f32 %v5360, %v4750
        %v5367 = vmul.f32 %v5361, %v4749
        %v5368 = vmul.f32 %v5362, %v4750
        %v5369 = vmul.f32 %v5363, %v4749
        %v5370 = vmul.f32 %v5364, %v4750
        %v5371 = vadd.f32 %v5341, %v5365
        %v5372 = vadd.f32 %v5342, %v5366
        %v5373 = vadd.f32 %v5343, %v5367
        %v5374 = vadd.f32 %v5344, %v5368
        %v5375 = vadd.f32 %v5345, %v5369
        %v5376 = vadd.f32 %v5346, %v5370
        %5377 = vrot.lane.b32.xlu0 %v192, 126
        %v5378 = vpop.permute.xlu0 %5377
        %5379 = vrot.lane.b32.xlu0 %v193, 126
        %v5380 = vpop.permute.xlu0 %5379
        %5381 = vrot.lane.b32.xlu0 %v194, 126
        %v5382 = vpop.permute.xlu0 %5381
        %5383 = vrot.lane.b32.xlu0 %v195, 126
        %v5384 = vpop.permute.xlu0 %5383
        %5385 = vrot.lane.b32.xlu0 %v196, 126
        %v5386 = vpop.permute.xlu0 %5385
        %5387 = vrot.lane.b32.xlu0 %v197, 126
        %v5388 = vpop.permute.xlu0 %5387
        %v5389 = vsel %vm784, %v5055, %v5378
        %v5390 = vsel %vm784, %v5059, %v5380
        %v5391 = vsel %vm784, %v5063, %v5382
        %v5392 = vsel %vm784, %v5067, %v5384
        %v5393 = vsel %vm784, %v5071, %v5386
        %v5394 = vsel %vm784, %v5075, %v5388
        %v5395 = vmul.f32 %v5389, %v4757
        %v5396 = vmul.f32 %v5390, %v4758
        %v5397 = vmul.f32 %v5391, %v4757
        %v5398 = vmul.f32 %v5392, %v4758
        %v5399 = vmul.f32 %v5393, %v4757
        %v5400 = vmul.f32 %v5394, %v4758
        %v5401 = vadd.f32 %v5371, %v5395
        %v5402 = vadd.f32 %v5372, %v5396
        %v5403 = vadd.f32 %v5373, %v5397
        %v5404 = vadd.f32 %v5374, %v5398
        %v5405 = vadd.f32 %v5375, %v5399
        %v5406 = vadd.f32 %v5376, %v5400
        %5407 = vrot.lane.b32.xlu0 %v4855, 2
        %v5408 = vpop.permute.xlu0 %5407
        %5409 = vrot.lane.b32.xlu0 %v4856, 2
        %v5410 = vpop.permute.xlu0 %5409
        %5411 = vrot.lane.b32.xlu0 %v4857, 2
        %v5412 = vpop.permute.xlu0 %5411
        %5413 = vrot.lane.b32.xlu0 %v4858, 2
        %v5414 = vpop.permute.xlu0 %5413
        %5415 = vrot.lane.b32.xlu0 %v4859, 2
        %v5416 = vpop.permute.xlu0 %5415
        %5417 = vrot.lane.b32.xlu0 %v4860, 2
        %v5418 = vpop.permute.xlu0 %5417
        %5420 = vset.pattern.permute.xlu0 0
        %5421 = vperm.xlu0 %5420, %v4855
        %v5422 = vpop.permute.xlu0 %5421
        %5425 = vset.pattern.permute.xlu0 0
        %5426 = vperm.xlu0 %5425, %v4856
        %v5427 = vpop.permute.xlu0 %5426
        %5430 = vset.pattern.permute.xlu0 0
        %5431 = vperm.xlu0 %5430, %v4857
        %v5432 = vpop.permute.xlu0 %5431
        %5435 = vset.pattern.permute.xlu0 0
        %5436 = vperm.xlu0 %5435, %v4858
        %v5437 = vpop.permute.xlu0 %5436
        %5440 = vset.pattern.permute.xlu0 0
        %5441 = vperm.xlu0 %5440, %v4859
        %v5442 = vpop.permute.xlu0 %5441
        %5445 = vset.pattern.permute.xlu0 0
        %5446 = vperm.xlu0 %5445, %v4860
        %v5447 = vpop.permute.xlu0 %5446
        %v5449 = vsel %vm718, %v5422, %v5408
        %v5450 = vsel %vm718, %v5427, %v5410
        %v5451 = vsel %vm718, %v5432, %v5412
        %v5452 = vsel %vm718, %v5437, %v5414
        %v5453 = vsel %vm718, %v5442, %v5416
        %v5454 = vsel %vm718, %v5447, %v5418
        %v5455 = vmul.f32 %v5449, %v4765
        %v5456 = vmul.f32 %v5450, %v4766
        %v5457 = vmul.f32 %v5451, %v4765
        %v5458 = vmul.f32 %v5452, %v4766
        %v5459 = vmul.f32 %v5453, %v4765
        %v5460 = vmul.f32 %v5454, %v4766
        %v5461 = vadd.f32 %v5401, %v5455
        %v5462 = vadd.f32 %v5402, %v5456
        %v5463 = vadd.f32 %v5403, %v5457
        %v5464 = vadd.f32 %v5404, %v5458
        %v5465 = vadd.f32 %v5405, %v5459
        %v5466 = vadd.f32 %v5406, %v5460
        %v5467 = vmul.f32 %v4855, %v4773
        %v5468 = vmul.f32 %v4856, %v4774
        %v5469 = vmul.f32 %v4857, %v4773
        %v5470 = vmul.f32 %v4858, %v4774
        %v5471 = vmul.f32 %v4859, %v4773
        %v5472 = vmul.f32 %v4860, %v4774
        %v5473 = vadd.f32 %v5461, %v5467
        %v5474 = vadd.f32 %v5462, %v5468
        %v5475 = vadd.f32 %v5463, %v5469
        %v5476 = vadd.f32 %v5464, %v5470
        %v5477 = vadd.f32 %v5465, %v5471
        %v5478 = vadd.f32 %v5466, %v5472
        %5479 = vrot.lane.b32.xlu0 %v4855, 126
        %v5480 = vpop.permute.xlu0 %5479
        %5481 = vrot.lane.b32.xlu0 %v4856, 126
        %v5482 = vpop.permute.xlu0 %5481
        %5483 = vrot.lane.b32.xlu0 %v4857, 126
        %v5484 = vpop.permute.xlu0 %5483
        %5485 = vrot.lane.b32.xlu0 %v4858, 126
        %v5486 = vpop.permute.xlu0 %5485
        %5487 = vrot.lane.b32.xlu0 %v4859, 126
        %v5488 = vpop.permute.xlu0 %5487
        %5489 = vrot.lane.b32.xlu0 %v4860, 126
        %v5490 = vpop.permute.xlu0 %5489
        %5491 = vset.pattern.permute.xlu0 127
        %5492 = vperm.xlu0 %5491, %v4855
        %v5493 = vpop.permute.xlu0 %5492
        %5495 = vset.pattern.permute.xlu0 127
        %5496 = vperm.xlu0 %5495, %v4856
        %v5497 = vpop.permute.xlu0 %5496
        %5499 = vset.pattern.permute.xlu0 127
        %5500 = vperm.xlu0 %5499, %v4857
        %v5501 = vpop.permute.xlu0 %5500
        %5503 = vset.pattern.permute.xlu0 127
        %5504 = vperm.xlu0 %5503, %v4858
        %v5505 = vpop.permute.xlu0 %5504
        %5507 = vset.pattern.permute.xlu0 127
        %5508 = vperm.xlu0 %5507, %v4859
        %v5509 = vpop.permute.xlu0 %5508
        %5511 = vset.pattern.permute.xlu0 127
        %5512 = vperm.xlu0 %5511, %v4860
        %v5513 = vpop.permute.xlu0 %5512
        %v5515 = vsel %vm784, %v5493, %v5480
        %v5516 = vsel %vm784, %v5497, %v5482
        %v5517 = vsel %vm784, %v5501, %v5484
        %v5518 = vsel %vm784, %v5505, %v5486
        %v5519 = vsel %vm784, %v5509, %v5488
        %v5520 = vsel %vm784, %v5513, %v5490
        %v5521 = vmul.f32 %v5515, %v4781
        %v5522 = vmul.f32 %v5516, %v4782
        %v5523 = vmul.f32 %v5517, %v4781
        %v5524 = vmul.f32 %v5518, %v4782
        %v5525 = vmul.f32 %v5519, %v4781
        %v5526 = vmul.f32 %v5520, %v4782
        %v5527 = vadd.f32 %v5473, %v5521
        %v5528 = vadd.f32 %v5474, %v5522
        %v5529 = vadd.f32 %v5475, %v5523
        %v5530 = vadd.f32 %v5476, %v5524
        %v5531 = vadd.f32 %v5477, %v5525
        %v5532 = vadd.f32 %v5478, %v5526
        %v5533 = vrot.slane %v5527, 6
        %v5534 = vrot.slane %v5528, 6
        %v5535 = vrot.slane %v5529, 6
        %v5536 = vrot.slane %v5530, 6
        %v5537 = vrot.slane %v5531, 6
        %v5538 = vrot.slane %v5532, 6
        %v5539 = vsel %vm203, %v5537, %v5538
        %v5540 = vsel %vm203, %v5536, %v5537
        %v5541 = vsel %vm203, %v5535, %v5536
        %v5542 = vsel %vm203, %v5534, %v5535
        %v5543 = vsel %vm203, %v5533, %v5534
        %v5544 = vsel %vm203, %v5538, %v5533
        %v5545 = vperm.slane %v5527, 0
        %v5546 = vperm.slane %v5529, 0
        %v5547 = vperm.slane %v5531, 0
        %v5548 = vsel %vm233, %v5545, %v5544
        %v5549 = vsel %vm234, %v5545, %v5543
        %v5550 = vsel %vm233, %v5546, %v5542
        %v5551 = vsel %vm234, %v5546, %v5541
        %v5552 = vsel %vm233, %v5547, %v5540
        %v5553 = vsel %vm234, %v5547, %v5539
        %v5554 = vrot.slane %v5527, 7
        %v5555 = vrot.slane %v5528, 7
        %v5556 = vrot.slane %v5529, 7
        %v5557 = vrot.slane %v5530, 7
        %v5558 = vrot.slane %v5531, 7
        %v5559 = vrot.slane %v5532, 7
        %v5560 = vsel %vm205, %v5558, %v5559
        %v5561 = vsel %vm205, %v5557, %v5558
        %v5562 = vsel %vm205, %v5556, %v5557
        %v5563 = vsel %vm205, %v5555, %v5556
        %v5564 = vsel %vm205, %v5554, %v5555
        %v5565 = vsel %vm205, %v5559, %v5554
        %v5566 = vsel %vm265, %v5545, %v5565
        %v5567 = vsel %vm266, %v5545, %v5564
        %v5568 = vsel %vm265, %v5546, %v5563
        %v5569 = vsel %vm266, %v5546, %v5562
        %v5570 = vsel %vm265, %v5547, %v5561
        %v5571 = vsel %vm266, %v5547, %v5560
        %v5572 = vrot.slane %v5527, 1
        %v5573 = vrot.slane %v5528, 1
        %v5574 = vrot.slane %v5529, 1
        %v5575 = vrot.slane %v5530, 1
        %v5576 = vrot.slane %v5531, 1
        %v5577 = vrot.slane %v5532, 1
        %v5578 = vsel %vm283, %v5576, %v5577
        %v5579 = vsel %vm283, %v5575, %v5576
        %v5580 = vsel %vm283, %v5574, %v5575
        %v5581 = vsel %vm283, %v5573, %v5574
        %v5582 = vsel %vm283, %v5572, %v5573
        %v5583 = vsel %vm283, %v5577, %v5572
        %v5584 = vperm.slane %v5528, 7
        %v5585 = vperm.slane %v5530, 7
        %v5586 = vperm.slane %v5532, 7
        %v5587 = vsel %vm294, %v5584, %v5582
        %v5588 = vsel %vm295, %v5584, %v5581
        %v5589 = vsel %vm294, %v5585, %v5580
        %v5590 = vsel %vm295, %v5585, %v5579
        %v5591 = vsel %vm294, %v5586, %v5578
        %v5592 = vsel %vm295, %v5586, %v5583
        %v5593 = vrot.slane %v5527, 2
        %v5594 = vrot.slane %v5528, 2
        %v5595 = vrot.slane %v5529, 2
        %v5596 = vrot.slane %v5530, 2
        %v5597 = vrot.slane %v5531, 2
        %v5598 = vrot.slane %v5532, 2
        %v5599 = vsel %vm316, %v5597, %v5598
        %v5600 = vsel %vm316, %v5596, %v5597
        %v5601 = vsel %vm316, %v5595, %v5596
        %v5602 = vsel %vm316, %v5594, %v5595
        %v5603 = vsel %vm316, %v5593, %v5594
        %v5604 = vsel %vm316, %v5598, %v5593
        %v5605 = vsel %vm327, %v5584, %v5603
        %v5606 = vsel %vm328, %v5584, %v5602
        %v5607 = vsel %vm327, %v5585, %v5601
        %v5608 = vsel %vm328, %v5585, %v5600
        %v5609 = vsel %vm327, %v5586, %v5599
        %v5610 = vsel %vm328, %v5586, %v5604
        %5611 = vrot.lane.b32.xlu0 %v5566, 1
        %v5612 = vpop.permute.xlu0 %5611
        %5613 = vrot.lane.b32.xlu0 %v5567, 1
        %v5614 = vpop.permute.xlu0 %5613
        %5615 = vrot.lane.b32.xlu0 %v5568, 1
        %v5616 = vpop.permute.xlu0 %5615
        %5617 = vrot.lane.b32.xlu0 %v5569, 1
        %v5618 = vpop.permute.xlu0 %5617
        %5619 = vrot.lane.b32.xlu0 %v5570, 1
        %v5620 = vpop.permute.xlu0 %5619
        %5621 = vrot.lane.b32.xlu0 %v5571, 1
        %v5622 = vpop.permute.xlu0 %5621
        %5624 = vset.pattern.permute.xlu0 0
        %5625 = vperm.xlu0 %5624, %v5566
        %v5626 = vpop.permute.xlu0 %5625
        %5629 = vset.pattern.permute.xlu0 0
        %5630 = vperm.xlu0 %5629, %v5567
        %v5631 = vpop.permute.xlu0 %5630
        %5634 = vset.pattern.permute.xlu0 0
        %5635 = vperm.xlu0 %5634, %v5568
        %v5636 = vpop.permute.xlu0 %5635
        %5639 = vset.pattern.permute.xlu0 0
        %5640 = vperm.xlu0 %5639, %v5569
        %v5641 = vpop.permute.xlu0 %5640
        %5644 = vset.pattern.permute.xlu0 0
        %5645 = vperm.xlu0 %5644, %v5570
        %v5646 = vpop.permute.xlu0 %5645
        %5649 = vset.pattern.permute.xlu0 0
        %5650 = vperm.xlu0 %5649, %v5571
        %v5651 = vpop.permute.xlu0 %5650
        %v5653 = vsel %vm354, %v5626, %v5612
        %v5654 = vsel %vm354, %v5631, %v5614
        %v5655 = vsel %vm354, %v5636, %v5616
        %v5656 = vsel %vm354, %v5641, %v5618
        %v5657 = vsel %vm354, %v5646, %v5620
        %v5658 = vsel %vm354, %v5651, %v5622
        %v5659 = vmul.f32 %v5653, %v4661
        %v5660 = vmul.f32 %v5654, %v4662
        %v5661 = vmul.f32 %v5655, %v4661
        %v5662 = vmul.f32 %v5656, %v4662
        %v5663 = vmul.f32 %v5657, %v4661
        %v5664 = vmul.f32 %v5658, %v4662
        %v5665 = vmul.f32 %v5566, %v4669
        %v5666 = vmul.f32 %v5567, %v4670
        %v5667 = vmul.f32 %v5568, %v4669
        %v5668 = vmul.f32 %v5569, %v4670
        %v5669 = vmul.f32 %v5570, %v4669
        %v5670 = vmul.f32 %v5571, %v4670
        %v5671 = vadd.f32 %v5659, %v5665
        %v5672 = vadd.f32 %v5660, %v5666
        %v5673 = vadd.f32 %v5661, %v5667
        %v5674 = vadd.f32 %v5662, %v5668
        %v5675 = vadd.f32 %v5663, %v5669
        %v5676 = vadd.f32 %v5664, %v5670
        %5677 = vrot.lane.b32.xlu0 %v5566, 127
        %v5678 = vpop.permute.xlu0 %5677
        %5679 = vrot.lane.b32.xlu0 %v5567, 127
        %v5680 = vpop.permute.xlu0 %5679
        %5681 = vrot.lane.b32.xlu0 %v5568, 127
        %v5682 = vpop.permute.xlu0 %5681
        %5683 = vrot.lane.b32.xlu0 %v5569, 127
        %v5684 = vpop.permute.xlu0 %5683
        %5685 = vrot.lane.b32.xlu0 %v5570, 127
        %v5686 = vpop.permute.xlu0 %5685
        %5687 = vrot.lane.b32.xlu0 %v5571, 127
        %v5688 = vpop.permute.xlu0 %5687
        %5689 = vset.pattern.permute.xlu0 127
        %5690 = vperm.xlu0 %5689, %v5566
        %v5691 = vpop.permute.xlu0 %5690
        %5693 = vset.pattern.permute.xlu0 127
        %5694 = vperm.xlu0 %5693, %v5567
        %v5695 = vpop.permute.xlu0 %5694
        %5697 = vset.pattern.permute.xlu0 127
        %5698 = vperm.xlu0 %5697, %v5568
        %v5699 = vpop.permute.xlu0 %5698
        %5701 = vset.pattern.permute.xlu0 127
        %5702 = vperm.xlu0 %5701, %v5569
        %v5703 = vpop.permute.xlu0 %5702
        %5705 = vset.pattern.permute.xlu0 127
        %5706 = vperm.xlu0 %5705, %v5570
        %v5707 = vpop.permute.xlu0 %5706
        %5709 = vset.pattern.permute.xlu0 127
        %5710 = vperm.xlu0 %5709, %v5571
        %v5711 = vpop.permute.xlu0 %5710
        %v5713 = vsel %vm420, %v5691, %v5678
        %v5714 = vsel %vm420, %v5695, %v5680
        %v5715 = vsel %vm420, %v5699, %v5682
        %v5716 = vsel %vm420, %v5703, %v5684
        %v5717 = vsel %vm420, %v5707, %v5686
        %v5718 = vsel %vm420, %v5711, %v5688
        %v5719 = vmul.f32 %v5713, %v4677
        %v5720 = vmul.f32 %v5714, %v4678
        %v5721 = vmul.f32 %v5715, %v4677
        %v5722 = vmul.f32 %v5716, %v4678
        %v5723 = vmul.f32 %v5717, %v4677
        %v5724 = vmul.f32 %v5718, %v4678
        %v5725 = vadd.f32 %v5671, %v5719
        %v5726 = vadd.f32 %v5672, %v5720
        %v5727 = vadd.f32 %v5673, %v5721
        %v5728 = vadd.f32 %v5674, %v5722
        %v5729 = vadd.f32 %v5675, %v5723
        %v5730 = vadd.f32 %v5676, %v5724
        %5731 = vrot.lane.b32.xlu0 %v5527, 1
        %v5732 = vpop.permute.xlu0 %5731
        %5733 = vrot.lane.b32.xlu0 %v5528, 1
        %v5734 = vpop.permute.xlu0 %5733
        %5735 = vrot.lane.b32.xlu0 %v5529, 1
        %v5736 = vpop.permute.xlu0 %5735
        %5737 = vrot.lane.b32.xlu0 %v5530, 1
        %v5738 = vpop.permute.xlu0 %5737
        %5739 = vrot.lane.b32.xlu0 %v5531, 1
        %v5740 = vpop.permute.xlu0 %5739
        %5741 = vrot.lane.b32.xlu0 %v5532, 1
        %v5742 = vpop.permute.xlu0 %5741
        %5744 = vset.pattern.permute.xlu0 0
        %5745 = vperm.xlu0 %5744, %v5527
        %v5746 = vpop.permute.xlu0 %5745
        %5749 = vset.pattern.permute.xlu0 0
        %5750 = vperm.xlu0 %5749, %v5528
        %v5751 = vpop.permute.xlu0 %5750
        %5754 = vset.pattern.permute.xlu0 0
        %5755 = vperm.xlu0 %5754, %v5529
        %v5756 = vpop.permute.xlu0 %5755
        %5759 = vset.pattern.permute.xlu0 0
        %5760 = vperm.xlu0 %5759, %v5530
        %v5761 = vpop.permute.xlu0 %5760
        %5764 = vset.pattern.permute.xlu0 0
        %5765 = vperm.xlu0 %5764, %v5531
        %v5766 = vpop.permute.xlu0 %5765
        %5769 = vset.pattern.permute.xlu0 0
        %5770 = vperm.xlu0 %5769, %v5532
        %v5771 = vpop.permute.xlu0 %5770
        %v5773 = vsel %vm354, %v5746, %v5732
        %v5774 = vsel %vm354, %v5751, %v5734
        %v5775 = vsel %vm354, %v5756, %v5736
        %v5776 = vsel %vm354, %v5761, %v5738
        %v5777 = vsel %vm354, %v5766, %v5740
        %v5778 = vsel %vm354, %v5771, %v5742
        %v5779 = vmul.f32 %v5773, %v4685
        %v5780 = vmul.f32 %v5774, %v4686
        %v5781 = vmul.f32 %v5775, %v4685
        %v5782 = vmul.f32 %v5776, %v4686
        %v5783 = vmul.f32 %v5777, %v4685
        %v5784 = vmul.f32 %v5778, %v4686
        %v5785 = vadd.f32 %v5725, %v5779
        %v5786 = vadd.f32 %v5726, %v5780
        %v5787 = vadd.f32 %v5727, %v5781
        %v5788 = vadd.f32 %v5728, %v5782
        %v5789 = vadd.f32 %v5729, %v5783
        %v5790 = vadd.f32 %v5730, %v5784
        %5791 = vrot.lane.b32.xlu0 %v5527, 127
        %v5792 = vpop.permute.xlu0 %5791
        %5793 = vrot.lane.b32.xlu0 %v5528, 127
        %v5794 = vpop.permute.xlu0 %5793
        %5795 = vrot.lane.b32.xlu0 %v5529, 127
        %v5796 = vpop.permute.xlu0 %5795
        %5797 = vrot.lane.b32.xlu0 %v5530, 127
        %v5798 = vpop.permute.xlu0 %5797
        %5799 = vrot.lane.b32.xlu0 %v5531, 127
        %v5800 = vpop.permute.xlu0 %5799
        %5801 = vrot.lane.b32.xlu0 %v5532, 127
        %v5802 = vpop.permute.xlu0 %5801
        %5803 = vset.pattern.permute.xlu0 127
        %5804 = vperm.xlu0 %5803, %v5527
        %v5805 = vpop.permute.xlu0 %5804
        %5807 = vset.pattern.permute.xlu0 127
        %5808 = vperm.xlu0 %5807, %v5528
        %v5809 = vpop.permute.xlu0 %5808
        %5811 = vset.pattern.permute.xlu0 127
        %5812 = vperm.xlu0 %5811, %v5529
        %v5813 = vpop.permute.xlu0 %5812
        %5815 = vset.pattern.permute.xlu0 127
        %5816 = vperm.xlu0 %5815, %v5530
        %v5817 = vpop.permute.xlu0 %5816
        %5819 = vset.pattern.permute.xlu0 127
        %5820 = vperm.xlu0 %5819, %v5531
        %v5821 = vpop.permute.xlu0 %5820
        %5823 = vset.pattern.permute.xlu0 127
        %5824 = vperm.xlu0 %5823, %v5532
        %v5825 = vpop.permute.xlu0 %5824
        %v5827 = vsel %vm420, %v5805, %v5792
        %v5828 = vsel %vm420, %v5809, %v5794
        %v5829 = vsel %vm420, %v5813, %v5796
        %v5830 = vsel %vm420, %v5817, %v5798
        %v5831 = vsel %vm420, %v5821, %v5800
        %v5832 = vsel %vm420, %v5825, %v5802
        %v5833 = vmul.f32 %v5827, %v4693
        %v5834 = vmul.f32 %v5828, %v4694
        %v5835 = vmul.f32 %v5829, %v4693
        %v5836 = vmul.f32 %v5830, %v4694
        %v5837 = vmul.f32 %v5831, %v4693
        %v5838 = vmul.f32 %v5832, %v4694
        %v5839 = vadd.f32 %v5785, %v5833
        %v5840 = vadd.f32 %v5786, %v5834
        %v5841 = vadd.f32 %v5787, %v5835
        %v5842 = vadd.f32 %v5788, %v5836
        %v5843 = vadd.f32 %v5789, %v5837
        %v5844 = vadd.f32 %v5790, %v5838
        %5845 = vrot.lane.b32.xlu0 %v5587, 1
        %v5846 = vpop.permute.xlu0 %5845
        %5847 = vrot.lane.b32.xlu0 %v5588, 1
        %v5848 = vpop.permute.xlu0 %5847
        %5849 = vrot.lane.b32.xlu0 %v5589, 1
        %v5850 = vpop.permute.xlu0 %5849
        %5851 = vrot.lane.b32.xlu0 %v5590, 1
        %v5852 = vpop.permute.xlu0 %5851
        %5853 = vrot.lane.b32.xlu0 %v5591, 1
        %v5854 = vpop.permute.xlu0 %5853
        %5855 = vrot.lane.b32.xlu0 %v5592, 1
        %v5856 = vpop.permute.xlu0 %5855
        %5858 = vset.pattern.permute.xlu0 0
        %5859 = vperm.xlu0 %5858, %v5587
        %v5860 = vpop.permute.xlu0 %5859
        %5863 = vset.pattern.permute.xlu0 0
        %5864 = vperm.xlu0 %5863, %v5588
        %v5865 = vpop.permute.xlu0 %5864
        %5868 = vset.pattern.permute.xlu0 0
        %5869 = vperm.xlu0 %5868, %v5589
        %v5870 = vpop.permute.xlu0 %5869
        %5873 = vset.pattern.permute.xlu0 0
        %5874 = vperm.xlu0 %5873, %v5590
        %v5875 = vpop.permute.xlu0 %5874
        %5878 = vset.pattern.permute.xlu0 0
        %5879 = vperm.xlu0 %5878, %v5591
        %v5880 = vpop.permute.xlu0 %5879
        %5883 = vset.pattern.permute.xlu0 0
        %5884 = vperm.xlu0 %5883, %v5592
        %v5885 = vpop.permute.xlu0 %5884
        %v5887 = vsel %vm354, %v5860, %v5846
        %v5888 = vsel %vm354, %v5865, %v5848
        %v5889 = vsel %vm354, %v5870, %v5850
        %v5890 = vsel %vm354, %v5875, %v5852
        %v5891 = vsel %vm354, %v5880, %v5854
        %v5892 = vsel %vm354, %v5885, %v5856
        %v5893 = vmul.f32 %v5887, %v4701
        %v5894 = vmul.f32 %v5888, %v4702
        %v5895 = vmul.f32 %v5889, %v4701
        %v5896 = vmul.f32 %v5890, %v4702
        %v5897 = vmul.f32 %v5891, %v4701
        %v5898 = vmul.f32 %v5892, %v4702
        %v5899 = vadd.f32 %v5839, %v5893
        %v5900 = vadd.f32 %v5840, %v5894
        %v5901 = vadd.f32 %v5841, %v5895
        %v5902 = vadd.f32 %v5842, %v5896
        %v5903 = vadd.f32 %v5843, %v5897
        %v5904 = vadd.f32 %v5844, %v5898
        %v5905 = vmul.f32 %v5587, %v4709
        %v5906 = vmul.f32 %v5588, %v4710
        %v5907 = vmul.f32 %v5589, %v4709
        %v5908 = vmul.f32 %v5590, %v4710
        %v5909 = vmul.f32 %v5591, %v4709
        %v5910 = vmul.f32 %v5592, %v4710
        %v5911 = vadd.f32 %v5899, %v5905
        %v5912 = vadd.f32 %v5900, %v5906
        %v5913 = vadd.f32 %v5901, %v5907
        %v5914 = vadd.f32 %v5902, %v5908
        %v5915 = vadd.f32 %v5903, %v5909
        %v5916 = vadd.f32 %v5904, %v5910
        %5917 = vrot.lane.b32.xlu0 %v5587, 127
        %v5918 = vpop.permute.xlu0 %5917
        %5919 = vrot.lane.b32.xlu0 %v5588, 127
        %v5920 = vpop.permute.xlu0 %5919
        %5921 = vrot.lane.b32.xlu0 %v5589, 127
        %v5922 = vpop.permute.xlu0 %5921
        %5923 = vrot.lane.b32.xlu0 %v5590, 127
        %v5924 = vpop.permute.xlu0 %5923
        %5925 = vrot.lane.b32.xlu0 %v5591, 127
        %v5926 = vpop.permute.xlu0 %5925
        %5927 = vrot.lane.b32.xlu0 %v5592, 127
        %v5928 = vpop.permute.xlu0 %5927
        %5929 = vset.pattern.permute.xlu0 127
        %5930 = vperm.xlu0 %5929, %v5587
        %v5931 = vpop.permute.xlu0 %5930
        %5933 = vset.pattern.permute.xlu0 127
        %5934 = vperm.xlu0 %5933, %v5588
        %v5935 = vpop.permute.xlu0 %5934
        %5937 = vset.pattern.permute.xlu0 127
        %5938 = vperm.xlu0 %5937, %v5589
        %v5939 = vpop.permute.xlu0 %5938
        %5941 = vset.pattern.permute.xlu0 127
        %5942 = vperm.xlu0 %5941, %v5590
        %v5943 = vpop.permute.xlu0 %5942
        %5945 = vset.pattern.permute.xlu0 127
        %5946 = vperm.xlu0 %5945, %v5591
        %v5947 = vpop.permute.xlu0 %5946
        %5949 = vset.pattern.permute.xlu0 127
        %5950 = vperm.xlu0 %5949, %v5592
        %v5951 = vpop.permute.xlu0 %5950
        %v5953 = vsel %vm420, %v5931, %v5918
        %v5954 = vsel %vm420, %v5935, %v5920
        %v5955 = vsel %vm420, %v5939, %v5922
        %v5956 = vsel %vm420, %v5943, %v5924
        %v5957 = vsel %vm420, %v5947, %v5926
        %v5958 = vsel %vm420, %v5951, %v5928
        %v5959 = vmul.f32 %v5953, %v4717
        %v5960 = vmul.f32 %v5954, %v4718
        %v5961 = vmul.f32 %v5955, %v4717
        %v5962 = vmul.f32 %v5956, %v4718
        %v5963 = vmul.f32 %v5957, %v4717
        %v5964 = vmul.f32 %v5958, %v4718
        %v5965 = vadd.f32 %v5911, %v5959
        %v5966 = vadd.f32 %v5912, %v5960
        %v5967 = vadd.f32 %v5913, %v5961
        %v5968 = vadd.f32 %v5914, %v5962
        %v5969 = vadd.f32 %v5915, %v5963
        %v5970 = vadd.f32 %v5916, %v5964
        %5971 = vrot.lane.b32.xlu0 %v5548, 2
        %v5972 = vpop.permute.xlu0 %5971
        %5973 = vrot.lane.b32.xlu0 %v5549, 2
        %v5974 = vpop.permute.xlu0 %5973
        %5975 = vrot.lane.b32.xlu0 %v5550, 2
        %v5976 = vpop.permute.xlu0 %5975
        %5977 = vrot.lane.b32.xlu0 %v5551, 2
        %v5978 = vpop.permute.xlu0 %5977
        %5979 = vrot.lane.b32.xlu0 %v5552, 2
        %v5980 = vpop.permute.xlu0 %5979
        %5981 = vrot.lane.b32.xlu0 %v5553, 2
        %v5982 = vpop.permute.xlu0 %5981
        %5984 = vset.pattern.permute.xlu0 0
        %5985 = vperm.xlu0 %5984, %v5548
        %v5986 = vpop.permute.xlu0 %5985
        %5989 = vset.pattern.permute.xlu0 0
        %5990 = vperm.xlu0 %5989, %v5549
        %v5991 = vpop.permute.xlu0 %5990
        %5994 = vset.pattern.permute.xlu0 0
        %5995 = vperm.xlu0 %5994, %v5550
        %v5996 = vpop.permute.xlu0 %5995
        %5999 = vset.pattern.permute.xlu0 0
        %6000 = vperm.xlu0 %5999, %v5551
        %v6001 = vpop.permute.xlu0 %6000
        %6004 = vset.pattern.permute.xlu0 0
        %6005 = vperm.xlu0 %6004, %v5552
        %v6006 = vpop.permute.xlu0 %6005
        %6009 = vset.pattern.permute.xlu0 0
        %6010 = vperm.xlu0 %6009, %v5553
        %v6011 = vpop.permute.xlu0 %6010
        %v6013 = vsel %vm718, %v5986, %v5972
        %v6014 = vsel %vm718, %v5991, %v5974
        %v6015 = vsel %vm718, %v5996, %v5976
        %v6016 = vsel %vm718, %v6001, %v5978
        %v6017 = vsel %vm718, %v6006, %v5980
        %v6018 = vsel %vm718, %v6011, %v5982
        %v6019 = vmul.f32 %v6013, %v4725
        %v6020 = vmul.f32 %v6014, %v4726
        %v6021 = vmul.f32 %v6015, %v4725
        %v6022 = vmul.f32 %v6016, %v4726
        %v6023 = vmul.f32 %v6017, %v4725
        %v6024 = vmul.f32 %v6018, %v4726
        %v6025 = vadd.f32 %v5965, %v6019
        %v6026 = vadd.f32 %v5966, %v6020
        %v6027 = vadd.f32 %v5967, %v6021
        %v6028 = vadd.f32 %v5968, %v6022
        %v6029 = vadd.f32 %v5969, %v6023
        %v6030 = vadd.f32 %v5970, %v6024
        %v6031 = vmul.f32 %v5548, %v4733
        %v6032 = vmul.f32 %v5549, %v4734
        %v6033 = vmul.f32 %v5550, %v4733
        %v6034 = vmul.f32 %v5551, %v4734
        %v6035 = vmul.f32 %v5552, %v4733
        %v6036 = vmul.f32 %v5553, %v4734
        %v6037 = vadd.f32 %v6025, %v6031
        %v6038 = vadd.f32 %v6026, %v6032
        %v6039 = vadd.f32 %v6027, %v6033
        %v6040 = vadd.f32 %v6028, %v6034
        %v6041 = vadd.f32 %v6029, %v6035
        %v6042 = vadd.f32 %v6030, %v6036
        %6043 = vrot.lane.b32.xlu0 %v5548, 126
        %v6044 = vpop.permute.xlu0 %6043
        %6045 = vrot.lane.b32.xlu0 %v5549, 126
        %v6046 = vpop.permute.xlu0 %6045
        %6047 = vrot.lane.b32.xlu0 %v5550, 126
        %v6048 = vpop.permute.xlu0 %6047
        %6049 = vrot.lane.b32.xlu0 %v5551, 126
        %v6050 = vpop.permute.xlu0 %6049
        %6051 = vrot.lane.b32.xlu0 %v5552, 126
        %v6052 = vpop.permute.xlu0 %6051
        %6053 = vrot.lane.b32.xlu0 %v5553, 126
        %v6054 = vpop.permute.xlu0 %6053
        %6055 = vset.pattern.permute.xlu0 127
        %6056 = vperm.xlu0 %6055, %v5548
        %v6057 = vpop.permute.xlu0 %6056
        %6059 = vset.pattern.permute.xlu0 127
        %6060 = vperm.xlu0 %6059, %v5549
        %v6061 = vpop.permute.xlu0 %6060
        %6063 = vset.pattern.permute.xlu0 127
        %6064 = vperm.xlu0 %6063, %v5550
        %v6065 = vpop.permute.xlu0 %6064
        %6067 = vset.pattern.permute.xlu0 127
        %6068 = vperm.xlu0 %6067, %v5551
        %v6069 = vpop.permute.xlu0 %6068
        %6071 = vset.pattern.permute.xlu0 127
        %6072 = vperm.xlu0 %6071, %v5552
        %v6073 = vpop.permute.xlu0 %6072
        %6075 = vset.pattern.permute.xlu0 127
        %6076 = vperm.xlu0 %6075, %v5553
        %v6077 = vpop.permute.xlu0 %6076
        %v6079 = vsel %vm784, %v6057, %v6044
        %v6080 = vsel %vm784, %v6061, %v6046
        %v6081 = vsel %vm784, %v6065, %v6048
        %v6082 = vsel %vm784, %v6069, %v6050
        %v6083 = vsel %vm784, %v6073, %v6052
        %v6084 = vsel %vm784, %v6077, %v6054
        %v6085 = vmul.f32 %v6079, %v4741
        %v6086 = vmul.f32 %v6080, %v4742
        %v6087 = vmul.f32 %v6081, %v4741
        %v6088 = vmul.f32 %v6082, %v4742
        %v6089 = vmul.f32 %v6083, %v4741
        %v6090 = vmul.f32 %v6084, %v4742
        %v6091 = vadd.f32 %v6037, %v6085
        %v6092 = vadd.f32 %v6038, %v6086
        %v6093 = vadd.f32 %v6039, %v6087
        %v6094 = vadd.f32 %v6040, %v6088
        %v6095 = vadd.f32 %v6041, %v6089
        %v6096 = vadd.f32 %v6042, %v6090
        %6097 = vrot.lane.b32.xlu0 %v5527, 2
        %v6098 = vpop.permute.xlu0 %6097
        %6099 = vrot.lane.b32.xlu0 %v5528, 2
        %v6100 = vpop.permute.xlu0 %6099
        %6101 = vrot.lane.b32.xlu0 %v5529, 2
        %v6102 = vpop.permute.xlu0 %6101
        %6103 = vrot.lane.b32.xlu0 %v5530, 2
        %v6104 = vpop.permute.xlu0 %6103
        %6105 = vrot.lane.b32.xlu0 %v5531, 2
        %v6106 = vpop.permute.xlu0 %6105
        %6107 = vrot.lane.b32.xlu0 %v5532, 2
        %v6108 = vpop.permute.xlu0 %6107
        %v6109 = vsel %vm718, %v5746, %v6098
        %v6110 = vsel %vm718, %v5751, %v6100
        %v6111 = vsel %vm718, %v5756, %v6102
        %v6112 = vsel %vm718, %v5761, %v6104
        %v6113 = vsel %vm718, %v5766, %v6106
        %v6114 = vsel %vm718, %v5771, %v6108
        %v6115 = vmul.f32 %v6109, %v4749
        %v6116 = vmul.f32 %v6110, %v4750
        %v6117 = vmul.f32 %v6111, %v4749
        %v6118 = vmul.f32 %v6112, %v4750
        %v6119 = vmul.f32 %v6113, %v4749
        %v6120 = vmul.f32 %v6114, %v4750
        %v6121 = vadd.f32 %v6091, %v6115
        %v6122 = vadd.f32 %v6092, %v6116
        %v6123 = vadd.f32 %v6093, %v6117
        %v6124 = vadd.f32 %v6094, %v6118
        %v6125 = vadd.f32 %v6095, %v6119
        %v6126 = vadd.f32 %v6096, %v6120
        %6127 = vrot.lane.b32.xlu0 %v5527, 126
        %v6128 = vpop.permute.xlu0 %6127
        %6129 = vrot.lane.b32.xlu0 %v5528, 126
        %v6130 = vpop.permute.xlu0 %6129
        %6131 = vrot.lane.b32.xlu0 %v5529, 126
        %v6132 = vpop.permute.xlu0 %6131
        %6133 = vrot.lane.b32.xlu0 %v5530, 126
        %v6134 = vpop.permute.xlu0 %6133
        %6135 = vrot.lane.b32.xlu0 %v5531, 126
        %v6136 = vpop.permute.xlu0 %6135
        %6137 = vrot.lane.b32.xlu0 %v5532, 126
        %v6138 = vpop.permute.xlu0 %6137
        %v6139 = vsel %vm784, %v5805, %v6128
        %v6140 = vsel %vm784, %v5809, %v6130
        %v6141 = vsel %vm784, %v5813, %v6132
        %v6142 = vsel %vm784, %v5817, %v6134
        %v6143 = vsel %vm784, %v5821, %v6136
        %v6144 = vsel %vm784, %v5825, %v6138
        %v6145 = vmul.f32 %v6139, %v4757
        %v6146 = vmul.f32 %v6140, %v4758
        %v6147 = vmul.f32 %v6141, %v4757
        %v6148 = vmul.f32 %v6142, %v4758
        %v6149 = vmul.f32 %v6143, %v4757
        %v6150 = vmul.f32 %v6144, %v4758
        %v6151 = vadd.f32 %v6121, %v6145
        %v6152 = vadd.f32 %v6122, %v6146
        %v6153 = vadd.f32 %v6123, %v6147
        %v6154 = vadd.f32 %v6124, %v6148
        %v6155 = vadd.f32 %v6125, %v6149
        %v6156 = vadd.f32 %v6126, %v6150
        %6157 = vrot.lane.b32.xlu0 %v5605, 2
        %v6158 = vpop.permute.xlu0 %6157
        %6159 = vrot.lane.b32.xlu0 %v5606, 2
        %v6160 = vpop.permute.xlu0 %6159
        %6161 = vrot.lane.b32.xlu0 %v5607, 2
        %v6162 = vpop.permute.xlu0 %6161
        %6163 = vrot.lane.b32.xlu0 %v5608, 2
        %v6164 = vpop.permute.xlu0 %6163
        %6165 = vrot.lane.b32.xlu0 %v5609, 2
        %v6166 = vpop.permute.xlu0 %6165
        %6167 = vrot.lane.b32.xlu0 %v5610, 2
        %v6168 = vpop.permute.xlu0 %6167
        %6170 = vset.pattern.permute.xlu0 0
        %6171 = vperm.xlu0 %6170, %v5605
        %v6172 = vpop.permute.xlu0 %6171
        %6175 = vset.pattern.permute.xlu0 0
        %6176 = vperm.xlu0 %6175, %v5606
        %v6177 = vpop.permute.xlu0 %6176
        %6180 = vset.pattern.permute.xlu0 0
        %6181 = vperm.xlu0 %6180, %v5607
        %v6182 = vpop.permute.xlu0 %6181
        %6185 = vset.pattern.permute.xlu0 0
        %6186 = vperm.xlu0 %6185, %v5608
        %v6187 = vpop.permute.xlu0 %6186
        %6190 = vset.pattern.permute.xlu0 0
        %6191 = vperm.xlu0 %6190, %v5609
        %v6192 = vpop.permute.xlu0 %6191
        %6195 = vset.pattern.permute.xlu0 0
        %6196 = vperm.xlu0 %6195, %v5610
        %v6197 = vpop.permute.xlu0 %6196
        %v6199 = vsel %vm718, %v6172, %v6158
        %v6200 = vsel %vm718, %v6177, %v6160
        %v6201 = vsel %vm718, %v6182, %v6162
        %v6202 = vsel %vm718, %v6187, %v6164
        %v6203 = vsel %vm718, %v6192, %v6166
        %v6204 = vsel %vm718, %v6197, %v6168
        %v6205 = vmul.f32 %v6199, %v4765
        %v6206 = vmul.f32 %v6200, %v4766
        %v6207 = vmul.f32 %v6201, %v4765
        %v6208 = vmul.f32 %v6202, %v4766
        %v6209 = vmul.f32 %v6203, %v4765
        %v6210 = vmul.f32 %v6204, %v4766
        %v6211 = vadd.f32 %v6151, %v6205
        %v6212 = vadd.f32 %v6152, %v6206
        %v6213 = vadd.f32 %v6153, %v6207
        %v6214 = vadd.f32 %v6154, %v6208
        %v6215 = vadd.f32 %v6155, %v6209
        %v6216 = vadd.f32 %v6156, %v6210
        %v6217 = vmul.f32 %v5605, %v4773
        %v6218 = vmul.f32 %v5606, %v4774
        %v6219 = vmul.f32 %v5607, %v4773
        %v6220 = vmul.f32 %v5608, %v4774
        %v6221 = vmul.f32 %v5609, %v4773
        %v6222 = vmul.f32 %v5610, %v4774
        %v6223 = vadd.f32 %v6211, %v6217
        %v6224 = vadd.f32 %v6212, %v6218
        %v6225 = vadd.f32 %v6213, %v6219
        %v6226 = vadd.f32 %v6214, %v6220
        %v6227 = vadd.f32 %v6215, %v6221
        %v6228 = vadd.f32 %v6216, %v6222
        %6229 = vrot.lane.b32.xlu0 %v5605, 126
        %v6230 = vpop.permute.xlu0 %6229
        %6231 = vrot.lane.b32.xlu0 %v5606, 126
        %v6232 = vpop.permute.xlu0 %6231
        %6233 = vrot.lane.b32.xlu0 %v5607, 126
        %v6234 = vpop.permute.xlu0 %6233
        %6235 = vrot.lane.b32.xlu0 %v5608, 126
        %v6236 = vpop.permute.xlu0 %6235
        %6237 = vrot.lane.b32.xlu0 %v5609, 126
        %v6238 = vpop.permute.xlu0 %6237
        %6239 = vrot.lane.b32.xlu0 %v5610, 126
        %v6240 = vpop.permute.xlu0 %6239
        %6241 = vset.pattern.permute.xlu0 127
        %6242 = vperm.xlu0 %6241, %v5605
        %v6243 = vpop.permute.xlu0 %6242
        %6245 = vset.pattern.permute.xlu0 127
        %6246 = vperm.xlu0 %6245, %v5606
        %v6247 = vpop.permute.xlu0 %6246
        %6249 = vset.pattern.permute.xlu0 127
        %6250 = vperm.xlu0 %6249, %v5607
        %v6251 = vpop.permute.xlu0 %6250
        %6253 = vset.pattern.permute.xlu0 127
        %6254 = vperm.xlu0 %6253, %v5608
        %v6255 = vpop.permute.xlu0 %6254
        %6257 = vset.pattern.permute.xlu0 127
        %6258 = vperm.xlu0 %6257, %v5609
        %v6259 = vpop.permute.xlu0 %6258
        %6261 = vset.pattern.permute.xlu0 127
        %6262 = vperm.xlu0 %6261, %v5610
        %v6263 = vpop.permute.xlu0 %6262
        %v6265 = vsel %vm784, %v6243, %v6230
        %v6266 = vsel %vm784, %v6247, %v6232
        %v6267 = vsel %vm784, %v6251, %v6234
        %v6268 = vsel %vm784, %v6255, %v6236
        %v6269 = vsel %vm784, %v6259, %v6238
        %v6270 = vsel %vm784, %v6263, %v6240
        %v6271 = vmul.f32 %v6265, %v4781
        %v6272 = vmul.f32 %v6266, %v4782
        %v6273 = vmul.f32 %v6267, %v4781
        %v6274 = vmul.f32 %v6268, %v4782
        %v6275 = vmul.f32 %v6269, %v4781
        %v6276 = vmul.f32 %v6270, %v4782
        %v6277 = vadd.f32 %v6223, %v6271
        %v6278 = vadd.f32 %v6224, %v6272
        %v6279 = vadd.f32 %v6225, %v6273
        %v6280 = vadd.f32 %v6226, %v6274
        %v6281 = vadd.f32 %v6227, %v6275
        %v6282 = vadd.f32 %v6228, %v6276
        %6283 = vst [vmem:[%s178] sm:$0xff] %v6277
        %6284 = vst [vmem:[%s178 + $0x8] sm:$0xff] %v6278
        %6285 = vst [vmem:[%s178 + $0x10] sm:$0xff] %v6279
        %6286 = vst [vmem:[%s178 + $0x18] sm:$0xff] %v6280
        %6287 = vst [vmem:[%s178 + $0x20] sm:$0xff] %v6281
        %6288 = vst [vmem:[%s178 + $0x28] sm:$0xff] %v6282
        %s6289 = sand.u32 %s79, 1
        %s6290 = scalar_lea.sflag [#allocation4], %s6289
        %s6291 = sand.u32 %s79, 1
        %s6292 = smul.addr %s6291, 48
        %s6293 = scalar_lea.vmem [#allocation5], %s6292
        // Predicated region
        $region33: #{par3e_forward.1} parent=27 // pred_check
          %p6294 = pneg %p89
        $region34: #{par3e_forward.1} parent=27 // pred_check_branch
          %6296 = sbr.rel (%p6294) target = $region36
        $region35: #{par3e_forward.1} parent=27 // pred_region
          %6298 = vsyncadd %s6290, 0
          %s6299 = smul.addr %s19, 6
          %s6300 = smul.addr %s6299, 8
          %s6301 = scalar_lea.hbm %s2, %s6300
          %s6302 = sshll.u32 %s6293, 4
          %s6303 = int_to_ptr.vmem [resolvable:$true] %s6302
          %s6304 = sshll.u32 %s6301, 4
          %s6305 = int_to_ptr.hbm [resolvable:$true] %s6304
          %6310 = dma.vmem_to_hbm [thread:$0]  %s6303, 768, %s6305, %s6290, 128, 128, 8
        $region36: #{par3e_forward.1} parent=27 // pred_fallthru
          _
      $region28: #{par3e_forward.1} parent=5 // pred_fallthru
        _
      %p6311 = scmp.le.s32.totalorder 2, %s14
      // Predicated region
      $region37: #{par3e_forward.1} parent=5 // pred_check
        %p6312 = pneg %p6311
      $region38: #{par3e_forward.1} parent=5 // pred_check_branch
        %6314 = sbr.rel (%p6312) target = $region40
      $region39: #{par3e_forward.1} parent=5 // pred_region
        %s6315 = ssub.s32 %s14, 2
        // Predicated region
        $region41: #{par3e_forward.1} parent=39 // pred_check
          %p6316 = pneg %p95
        $region42: #{par3e_forward.1} parent=39 // pred_check_branch
          %6318 = sbr.rel (%p6316) target = $region44
        $region43: #{par3e_forward.1} parent=39 // pred_region
          %s6319 = sand.u32 %s80, 1
          %s6320 = scalar_lea.sflag [#allocation4], %s6319
          %s6321 = sand.u32 %s80, 1
          %s6322 = smul.addr %s6321, 48
          %s6323 = scalar_lea.vmem [#allocation5], %s6322
          %6325 = dma.done %s6320, 768
        $region44: #{par3e_forward.1} parent=39 // pred_fallthru
          _
      $region40: #{par3e_forward.1} parent=5 // pred_fallthru
        _
    $region6: #{par3e_forward.1} parent=1 // loop_footer
      %s18 = sadd.s32 1, %s14
    $region7: #{par3e_forward.1} parent=1 // loop_footer_branch
      %13 = sbr.rel target = $region3
    $region8: #{par3e_forward.1} parent=1 // loop_exit
      _
    %6326 = vsyncpa [#allocation3], 1
    %s6327 = scalar_lea.sflag [#allocation3], 1
    %6328 = vsyncpa %s6327, 1
    %6329 = vsyncpa [#allocation4], 1
    %s6330 = scalar_lea.sflag [#allocation4], 1
    %6331 = vsyncpa %s6330, 1

</llo_original>
